<compile_context>
chip_gen: v5e
topology: v5e:2x2
jax: 0.10.0
libtpu: 0.0.40
codegen_flags: <defaults>
</compile_context>

<pallas_src>
import math
import functools

import numpy as np
import jax
import jax.numpy as jnp
from jax import lax
from jax.experimental import pallas as pl
from jax.experimental.pallas import tpu as pltpu

F32 = jnp.float32
BF16 = jnp.bfloat16


# ------------------------------ small helpers ------------------------------

def _round_up(x, m):
    return ((x + m - 1) // m) * m


@functools.lru_cache(maxsize=None)
def _vmem_limit_bytes() -> int:
    """Generation-aware VMEM limit: 75% of physical capacity, capped at 100MiB."""
    cap = None
    try:
        info = pltpu.get_tpu_info()
        cap = getattr(info, "vmem_capacity_bytes", None)
    except Exception:
        cap = None
    if not cap:
        cap = 64 * 1024 * 1024          # conservative (v7x-sized) fallback
    return int(min(int(cap * 0.75), 100 * 1024 * 1024))


@functools.lru_cache(maxsize=None)
def _pipeline_mode_ok() -> bool:
    """Probe whether BlockSpec(pipeline_mode=pl.Buffered(k)) compiles+runs here."""
    if not hasattr(pl, "Buffered"):
        return False
    try:
        def _probe_kernel(x_ref, w_ref, o_ref):
            o_ref[...] = x_ref[...] + w_ref[...]
        probe = pl.pallas_call(
            _probe_kernel,
            out_shape=jax.ShapeDtypeStruct((32, 128), jnp.float32),
            grid=(4,),
            in_specs=[pl.BlockSpec((8, 128), lambda i: (i, 0),
                                   pipeline_mode=pl.Buffered(3)),
                      pl.BlockSpec((8, 128), lambda i: (0, 0),
                                   pipeline_mode=pl.Buffered(1))],
            out_specs=pl.BlockSpec((8, 128), lambda i: (i, 0)),
        )
        jax.block_until_ready(probe(jnp.zeros((32, 128), jnp.float32),
                                    jnp.zeros((8, 128), jnp.float32)))
        return True
    except Exception:
        return False


def _bspec(block_shape, index_map, buffers=None):
    """BlockSpec with optional pipeline_mode=Buffered(n) (only if supported)."""
    if buffers is not None and _pipeline_mode_ok():
        return pl.BlockSpec(block_shape, index_map,
                            pipeline_mode=pl.Buffered(buffers))
    return pl.BlockSpec(block_shape, index_map)


def _cp(*sem):
    return pltpu.CompilerParams(dimension_semantics=tuple(sem),
                                vmem_limit_bytes=_vmem_limit_bytes())


def _pick_row_tile(m, target=None):
    """Multiple-of-8 row tile that yields >=2 grid steps whenever m >= 16.

    Callers pad the row dim up to a multiple of the tile, so there is no
    silent 1-step / giant-block fallback for awkward m.
    """
    if target is None:
        target = 512 if _vmem_limit_bytes() >= (96 << 20) else 256
    if m <= 8:
        return 8
    half = _round_up(m, 8) // 2
    half = max(8, (half // 8) * 8)
    return min(target, half)


def _norm_rows(x, alpha, bias):
    """EasyDeep Norm: alpha*(x-mean)/(std+eps)+bias over the last dim.

    torch.std default is unbiased (N-1); eps is added to std (not var).
    Exact division (no approx reciprocal) to match the PyTorch reference.
    """
    n = x.shape[-1]
    mean = jnp.mean(x, axis=-1, keepdims=True)
    xc = x - mean
    var = jnp.sum(xc * xc, axis=-1, keepdims=True) / (n - 1)
    std = jnp.sqrt(var)
    return alpha * xc / (std + 1e-6) + bias


# ------------------------------ Pallas kernels ------------------------------

def _linear_kernel(x_ref, w_ref, b_ref, o_ref):
    x = x_ref[...].astype(BF16)
    o_ref[...] = (jnp.dot(x, w_ref[...], preferred_element_type=jnp.float32)
                  + b_ref[...])


def linear_pallas(x, w, b):
    """Row-tiled x[M,K] @ w[K,N] + b[N] (bf16 weights, f32 accumulation)."""
    M, K = x.shape
    N = w.shape[1]
    TM = _pick_row_tile(M)
    Mp = _round_up(M, TM)
    xp = jnp.pad(x, ((0, Mp - M), (0, 0))) if Mp != M else x
    out = pl.pallas_call(
        _linear_kernel,
        out_shape=jax.ShapeDtypeStruct((Mp, N), F32),
        grid=(Mp // TM,),
        in_specs=[_bspec((TM, K), lambda i: (i, 0), buffers=3),     # streamed x
                  _bspec((K, N), lambda i: (0, 0), buffers=1),      # resident w
                  _bspec((1, N), lambda i: (0, 0), buffers=1)],     # resident b
        out_specs=pl.BlockSpec((TM, N), lambda i: (i, 0)),
        compiler_params=_cp("parallel"),
        cost_estimate=pl.CostEstimate(
            flops=2 * Mp * K * N, transcendentals=0,
            bytes_accessed=4 * (Mp * K + Mp * N) + 2 * K * N),
    )(xp, w, b.reshape(1, N))
    return out[:M] if Mp != M else out


def _embed_pe_kernel(x_ref, w_ref, b_ref, pe_ref, o_ref, *, scale):
    x = x_ref[0].astype(BF16)                                   # [S, Fin]
    y = jnp.dot(x, w_ref[...], preferred_element_type=jnp.float32) + b_ref[...]
    o_ref[0] = y * scale + pe_ref[...]


def embed_pe_pallas(src, w, b, pe, scale):
    """Fused src_word_emb linear + sqrt(E) scale + positional-encoding add."""
    B, S, Fin = src.shape
    E = w.shape[1]
    kern = functools.partial(_embed_pe_kernel, scale=scale)
    return pl.pallas_call(
        kern,
        out_shape=jax.ShapeDtypeStruct((B, S, E), F32),
        grid=(B,),
        in_specs=[pl.BlockSpec((1, S, Fin), lambda b_: (b_, 0, 0)),
                  _bspec((Fin, E), lambda b_: (0, 0), buffers=1),
                  _bspec((1, E), lambda b_: (0, 0), buffers=1),
                  _bspec((S, E), lambda b_: (0, 0), buffers=1)],
        out_specs=pl.BlockSpec((1, S, E), lambda b_: (b_, 0, 0)),
        compiler_params=_cp("parallel"),
        cost_estimate=pl.CostEstimate(
            flops=2 * B * S * Fin * E, transcendentals=0,
            bytes_accessed=4 * B * S * (Fin + E) + 2 * Fin * E),
    )(src, w, b.reshape(1, E), pe[:S])


def _pe_kernel(x_ref, pe_ref, o_ref, *, scale):
    o_ref[0] = x_ref[0] * scale + pe_ref[...]


def pe_pallas(src, pe, scale):
    """scale + PE add (only used on the no_embedding path: vocab_size==E)."""
    B, S, E = src.shape
    kern = functools.partial(_pe_kernel, scale=scale)
    return pl.pallas_call(
        kern,
        out_shape=jax.ShapeDtypeStruct((B, S, E), F32),
        grid=(B,),
        in_specs=[pl.BlockSpec((1, S, E), lambda b_: (b_, 0, 0)),
                  _bspec((S, E), lambda b_: (0, 0), buffers=1)],
        out_specs=pl.BlockSpec((1, S, E), lambda b_: (b_, 0, 0)),
        compiler_params=_cp("parallel"),
    )(src, pe[:S])


def _encoder_layers_kernel(x_ref, a1_ref, g1_ref, wqkv_ref, bqkv_ref, wo_ref,
                           bo_ref, a2_ref, g2_ref, w1_ref, b1_ref, w2_ref,
                           b2_ref, o_ref, *, heads):
    """All encoder layers for ONE batch element; activations stay in VMEM/vregs.

    wqkv/bqkv are lane-padded to P = round_up(3E, 128) columns; q/k/v head
    slices ignore the zero tail.  Per-head score/PV matmuls run in f32 (d_k is
    tiny so bf16 buys nothing on the MXU); head outputs are concatenated once
    and the out-projection is a single [S,E]@[E,E] matmul.
    """
    L = wqkv_ref.shape[0]
    E = x_ref.shape[2]
    D = w1_ref.shape[2]
    d_k = E // heads
    scale = 1.0 / math.sqrt(d_k)
    ff_chunk = min(512, D)

    x = x_ref[0]                                            # [S, E] f32
    for l in range(L):
        # ---- norm_1 fused as the prologue of the padded QKV projection ----
        xn = _norm_rows(x, a1_ref[l], g1_ref[l]).astype(BF16)
        qkv = (jnp.dot(xn, wqkv_ref[l], preferred_element_type=jnp.float32)
               + bqkv_ref[l])                               # [S, P]
        # ---- attention (mask is always None in Transformer2E) ----
        head_outs = []
        for h in range(heads):
            q = qkv[:, h * d_k:(h + 1) * d_k]
            k = qkv[:, E + h * d_k:E + (h + 1) * d_k]
            v = qkv[:, 2 * E + h * d_k:2 * E + (h + 1) * d_k]
            s = lax.dot_general(q, k, (((1,), (1,)), ((), ())),
                                preferred_element_type=jnp.float32) * scale
            s = s - jnp.max(s, axis=-1, keepdims=True)
            e = jnp.exp(s)
            p = e * pl.reciprocal(jnp.sum(e, axis=-1, keepdims=True),
                                  approx=True)
            head_outs.append(jnp.dot(p, v, preferred_element_type=jnp.float32))
        concat = jnp.concatenate(head_outs, axis=-1).astype(BF16)   # [S, E]
        # single out-projection matmul + residual
        x = x + (jnp.dot(concat, wo_ref[l], preferred_element_type=jnp.float32)
                 + bo_ref[l])
        # ---- norm_2 + FeedForward (chunked hidden dim) + residual ----
        xn2 = _norm_rows(x, a2_ref[l], g2_ref[l]).astype(BF16)
        ff = jnp.zeros(x.shape, jnp.float32)
        for c0 in range(0, D, ff_chunk):
            c1 = min(c0 + ff_chunk, D)
            h1 = (jnp.dot(xn2, w1_ref[l, :, c0:c1],
                          preferred_element_type=jnp.float32)
                  + b1_ref[l, :, c0:c1])
            h1 = jnp.maximum(h1, 0.0).astype(BF16)                  # ReLU
            ff = ff + jnp.dot(h1, w2_ref[l, c0:c1, :],
                              preferred_element_type=jnp.float32)
        x = x + ff + b2_ref[l]
    o_ref[0] = x


def encoder_layers_pallas(x, lp, heads):
    """One fused pallas_call (gridded over batch) for a chunk of stacked layers.

    Layer chunking keeps resident weights within a fraction of the
    generation-aware VMEM budget (relevant for big configs on v7x's 64 MiB).
    """
    B, S, E = x.shape
    L = lp["wqkv"].shape[0]
    P = lp["wqkv"].shape[2]
    D = lp["w1"].shape[2]

    per_layer = ((E * P + E * E + E * D + D * E) * 2      # bf16 weights
                 + (P + 3 * E + D) * 4 + 4 * E * 4)       # f32 biases / norms
    budget = max(per_layer, _vmem_limit_bytes() // 4)
    lpc = max(1, min(L, budget // per_layer))

    def run(xc, s0, s1):
        Lc = s1 - s0
        sl = slice(s0, s1)
        kern = functools.partial(_encoder_layers_kernel, heads=heads)
        flops = Lc * B * (2 * S * E * P + 4 * S * S * E + 2 * S * E * E
                          + 4 * S * E * D)
        return pl.pallas_call(
            kern,
            out_shape=jax.ShapeDtypeStruct((B, S, E), F32),
            grid=(B,),
            in_specs=[
                pl.BlockSpec((1, S, E), lambda b: (b, 0, 0)),            # x
                _bspec((Lc, 1, E), lambda b: (0, 0, 0), buffers=1),      # a1
                _bspec((Lc, 1, E), lambda b: (0, 0, 0), buffers=1),      # g1
                _bspec((Lc, E, P), lambda b: (0, 0, 0), buffers=1),      # wqkv
                _bspec((Lc, 1, P), lambda b: (0, 0, 0), buffers=1),      # bqkv
                _bspec((Lc, E, E), lambda b: (0, 0, 0), buffers=1),      # wo
                _bspec((Lc, 1, E), lambda b: (0, 0, 0), buffers=1),      # bo
                _bspec((Lc, 1, E), lambda b: (0, 0, 0), buffers=1),      # a2
                _bspec((Lc, 1, E), lambda b: (0, 0, 0), buffers=1),      # g2
                _bspec((Lc, E, D), lambda b: (0, 0, 0), buffers=1),      # w1
                _bspec((Lc, 1, D), lambda b: (0, 0, 0), buffers=1),      # b1
                _bspec((Lc, D, E), lambda b: (0, 0, 0), buffers=1),      # w2
                _bspec((Lc, 1, E), lambda b: (0, 0, 0), buffers=1),      # b2
            ],
            out_specs=pl.BlockSpec((1, S, E), lambda b: (b, 0, 0)),
            compiler_params=_cp("parallel"),
            cost_estimate=pl.CostEstimate(
                flops=flops, transcendentals=Lc * B * heads * S * S,
                bytes_accessed=8 * B * S * E + Lc * per_layer),
        )(xc, lp["a1"][sl], lp["g1"][sl], lp["wqkv"][sl], lp["bqkv"][sl],
          lp["wo"][sl], lp["bo"][sl], lp["a2"][sl], lp["g2"][sl],
          lp["w1"][sl], lp["b1"][sl], lp["w2"][sl], lp["b2"][sl])

    s0 = 0
    while s0 < L:
        s1 = min(s0 + lpc, L)
        x = run(x, s0, s1)
        s0 = s1
    return x


def _head_kernel(xb_ref, xa_ref, ab_ref, bb_ref, aa_ref, ba_ref,
                 w_ref, b_ref, o_ref):
    """Final encoder Norms + concat + mean(time) + sigmoid + classifier."""
    xb = xb_ref[...]                                            # [B, Sb, E]
    xa = xa_ref[...]                                            # [B, Sa, E]
    nb = _norm_rows(xb, ab_ref[...], bb_ref[...])
    na = _norm_rows(xa, aa_ref[...], ba_ref[...])
    total = xb.shape[1] + xa.shape[1]
    pooled = (jnp.sum(nb, axis=1) + jnp.sum(na, axis=1)) * (1.0 / total)
    pooled = 1.0 / (1.0 + jnp.exp(-pooled))                     # sigmoid
    # TODO(synk): Dropout(p=0.1) is identity here (eval-mode forward).
    o_ref[...] = (jnp.dot(pooled, w_ref[...],
                          preferred_element_type=jnp.float32) + b_ref[...])


def head_pallas(xb, xa, norm_b, norm_a, w_pad, b_pad, num_class):
    B, Sb, E = xb.shape
    Sa = xa.shape[1]
    Cp = w_pad.shape[1]                 # classifier lane-padded to 128
    out = pl.pallas_call(
        _head_kernel,
        out_shape=jax.ShapeDtypeStruct((B, Cp), F32),
        grid=(1,),
        in_specs=[pl.BlockSpec((B, Sb, E), lambda i: (0, 0, 0)),
                  pl.BlockSpec((B, Sa, E), lambda i: (0, 0, 0)),
                  pl.BlockSpec((1, E), lambda i: (0, 0)),
                  pl.BlockSpec((1, E), lambda i: (0, 0)),
                  pl.BlockSpec((1, E), lambda i: (0, 0)),
                  pl.BlockSpec((1, E), lambda i: (0, 0)),
                  pl.BlockSpec((E, Cp), lambda i: (0, 0)),
                  pl.BlockSpec((1, Cp), lambda i: (0, 0))],
        out_specs=pl.BlockSpec((B, Cp), lambda i: (0, 0)),
        compiler_params=_cp("arbitrary"),
    )(xb, xa,
      norm_b["alpha"].reshape(1, E), norm_b["bias"].reshape(1, E),
      norm_a["alpha"].reshape(1, E), norm_a["bias"].reshape(1, E),
      w_pad, b_pad.reshape(1, Cp))
    return out[:, :num_class]


# ------------------------------ parameter init ------------------------------

def init_linear(key, in_dim, out_dim):
    kw, kb = jax.random.split(key)
    bound = 1.0 / math.sqrt(in_dim)
    w = jax.random.uniform(kw, (in_dim, out_dim), F32, -bound, bound)  # [in,out]
    b = jax.random.uniform(kb, (out_dim,), F32, -bound, bound)
    return w, b


def make_pe(embedding_dim, max_seq_len=200):
    # replicates the EasyDeep PositionalEncoder loop exactly
    pe = np.zeros((max_seq_len, embedding_dim), dtype=np.float32)
    for pos in range(max_seq_len):
        for i in range(0, embedding_dim, 2):
            pe[pos, i] = math.sin(pos / 10000 ** (2 * i / embedding_dim))
            pe[pos, i + 1] = math.cos(pos / 10000 ** (2 * (i + 1) / embedding_dim))
    return jnp.asarray(pe)


def init_encoder(key, vocab_size, embedding_dim, N, d_ff=2048):
    E = embedding_dim
    P = _round_up(3 * E, 128)                 # lane-padded fused QKV width
    keys = jax.random.split(key, N + 1)
    if vocab_size == E:
        emb = None
    else:
        w, b = init_linear(keys[0], vocab_size, E)
        emb = {"w": w.astype(BF16), "b": b}

    wqkv, bqkv, wo_s, bo_s, w1_s, b1_s, w2_s, b2_s = ([] for _ in range(8))
    for i in range(N):
        k = jax.random.split(keys[1 + i], 6)
        wq, bq = init_linear(k[0], E, E)
        wk, bk = init_linear(k[1], E, E)
        wv, bv = init_linear(k[2], E, E)
        wo, bo = init_linear(k[3], E, E)
        w1, b1 = init_linear(k[4], E, d_ff)
        w2, b2 = init_linear(k[5], d_ff, E)
        wq3 = jnp.pad(jnp.concatenate([wq, wk, wv], axis=1),
                      ((0, 0), (0, P - 3 * E)))
        bq3 = jnp.pad(jnp.concatenate([bq, bk, bv], axis=0), ((0, P - 3 * E),))
        wqkv.append(wq3); bqkv.append(bq3)
        wo_s.append(wo); bo_s.append(bo)
        w1_s.append(w1); b1_s.append(b1)
        w2_s.append(w2); b2_s.append(b2)

    layers = {
        "a1": jnp.ones((N, 1, E), F32), "g1": jnp.zeros((N, 1, E), F32),
        "a2": jnp.ones((N, 1, E), F32), "g2": jnp.zeros((N, 1, E), F32),
        "wqkv": jnp.stack(wqkv).astype(BF16),          # [N, E, P]
        "bqkv": jnp.stack(bqkv)[:, None, :],           # [N, 1, P]
        "wo": jnp.stack(wo_s).astype(BF16),            # [N, E, E]
        "bo": jnp.stack(bo_s)[:, None, :],             # [N, 1, E]
        "w1": jnp.stack(w1_s).astype(BF16),            # [N, E, d_ff]
        "b1": jnp.stack(b1_s)[:, None, :],             # [N, 1, d_ff]
        "w2": jnp.stack(w2_s).astype(BF16),            # [N, d_ff, E]
        "b2": jnp.stack(b2_s)[:, None, :],             # [N, 1, E]
    }
    return {"emb": emb, "pe": make_pe(E),
            "norm": {"alpha": jnp.ones((E,), F32), "bias": jnp.zeros((E,), F32)},
            "layers": layers}


def init_params(key, vocab_size, embedding_dim, N, num_class):
    k_fe, k_b, k_a, k_out = jax.random.split(key, 4)
    w_fe, b_fe = init_linear(k_fe, vocab_size, 512)
    w_out, b_out = init_linear(k_out, embedding_dim, num_class)
    # classifier padded to a lane-dense (multiple of 128) output; trimmed later
    Cp = _round_up(num_class, 128)
    w_out_p = jnp.zeros((embedding_dim, Cp), F32).at[:, :num_class].set(w_out)
    b_out_p = jnp.zeros((Cp,), F32).at[:num_class].set(b_out)
    return {
        "fe": {"w": w_fe.astype(BF16), "b": b_fe},              # feature_extractor
        "enc_before": init_encoder(k_b, 512, embedding_dim, N),
        "enc_after": init_encoder(k_a, 512, embedding_dim, N),
        "out": {"w": w_out_p, "b": b_out_p},
    }


# ------------------------------ forward (glue) ------------------------------

def encoder_forward(p, src, heads):
    E = p["pe"].shape[1]
    scale = math.sqrt(E)
    if p["emb"] is not None:
        x = embed_pe_pallas(src, p["emb"]["w"], p["emb"]["b"], p["pe"], scale)
    else:
        x = pe_pallas(src, p["pe"], scale)
    # all encoder layers fused (final Norm is fused into the head kernel)
    return encoder_layers_pallas(x, p["layers"], heads)


def transformer2e_forward(params, src, heads, num_class):
    B, T, Fin = src.shape
    feat = linear_pallas(src.reshape(B * T, Fin),
                         params["fe"]["w"], params["fe"]["b"]).reshape(B, T, 512)
    half = T // 2
    # NB: the PyTorch module feeds the SECOND half to encoder_before
    out_before = encoder_forward(params["enc_before"], feat[:, half:, :], heads)
    out_after = encoder_forward(params["enc_after"], feat[:, :half, :], heads)
    # concat + final norms + mean(time) + sigmoid + (dropout: identity) + Linear
    return head_pallas(out_before, out_after,
                       params["enc_before"]["norm"], params["enc_after"]["norm"],
                       params["out"]["w"], params["out"]["b"], num_class)


# ----------------------------------- main -----------------------------------

if __name__ == "__main__":
    B, T, F_in = 2, 8, 16            # batch, num_frame, num_feature (vocab_size)
    E, N_layers, heads, num_class = 32, 2, 4, 5

    # run the (cached) hardware probes eagerly, outside jit tracing
    _ = _vmem_limit_bytes()
    _ = _pipeline_mode_ok()

    key = jax.random.PRNGKey(0)
    k_params, k_x = jax.random.split(key)
    params = init_params(k_params, F_in, E, N_layers, num_class)
    src = jax.random.normal(k_x, (B, T, F_in), F32)

    fwd = jax.jit(transformer2e_forward, static_argnums=(2, 3))
    out = fwd(params, src, heads, num_class)
    out = jax.block_until_ready(out)
    assert out.shape == (B, num_class) and bool(jnp.all(jnp.isfinite(out)))
    print("KERNEL_OK")
</pallas_src>

<mosaic_0001>
module attributes {stable_mosaic.version = 11 : i64} {
  func.func @_embed_pe_kernel(%arg0: i32, %arg1: memref<1x4x512xf32, #tpu.memory_space<vmem>>, %arg2: memref<512x32xbf16, #tpu.memory_space<vmem>>, %arg3: memref<1x32xf32, #tpu.memory_space<vmem>>, %arg4: memref<4x32xf32, #tpu.memory_space<vmem>>, %arg5: memref<1x4x32xf32, #tpu.memory_space<vmem>>) attributes {dimension_semantics = [#tpu.dimension_semantics<parallel>], iteration_bounds = array<i64: 2>, scalar_prefetch = 0 : i64, scratch_operands = 0 : i64, tpu.core_type = #tpu.core_type<tc>, window_params = [{transform_indices = @transform_0, window_bounds = array<i64: 1, 4, 512>}, {pipeline_mode = #tpu.pipeline_mode<synchronous>, transform_indices = @transform_1, window_bounds = array<i64: 512, 32>}, {pipeline_mode = #tpu.pipeline_mode<synchronous>, transform_indices = @transform_2, window_bounds = array<i64: 1, 32>}, {pipeline_mode = #tpu.pipeline_mode<synchronous>, transform_indices = @transform_3, window_bounds = array<i64: 4, 32>}, {transform_indices = @transform_4, window_bounds = array<i64: 1, 4, 32>}]} {
    %c0 = arith.constant 0 : index
    %c0_0 = arith.constant 0 : index
    %c0_1 = arith.constant 0 : index
    %0 = vector.load %arg1[%c0, %c0_0, %c0_1] : memref<1x4x512xf32, #tpu.memory_space<vmem>>, vector<1x4x512xf32>
    %1 = vector.shape_cast %0 : vector<1x4x512xf32> to vector<4x512xf32>
    %2 = arith.truncf %1 : vector<4x512xf32> to vector<4x512xbf16>
    %c0_2 = arith.constant 0 : index
    %c0_3 = arith.constant 0 : index
    %3 = vector.load %arg2[%c0_2, %c0_3] : memref<512x32xbf16, #tpu.memory_space<vmem>>, vector<512x32xbf16>
    %cst = arith.constant dense<0.000000e+00> : vector<4x32xf32>
    %4 = tpu.matmul %2, %3, %cst {dimension_numbers = #tpu.dot_dimension_numbers<[1], [0], [0], [1], [0, 0, 1, 1], [], []>} : vector<4x512xbf16>, vector<512x32xbf16>, vector<4x32xf32> -> vector<4x32xf32>
    %c0_4 = arith.constant 0 : index
    %c0_5 = arith.constant 0 : index
    %5 = vector.load %arg3[%c0_4, %c0_5] : memref<1x32xf32, #tpu.memory_space<vmem>>, vector<1x32xf32>
    %6 = vector.broadcast %5 : vector<1x32xf32> to vector<4x32xf32>
    %7 = arith.addf %4, %6 : vector<4x32xf32>
    %cst_6 = arith.constant 5.65685415 : f32
    %8 = vector.broadcast %cst_6 : f32 to vector<4x32xf32>
    %9 = arith.mulf %7, %8 : vector<4x32xf32>
    %c0_7 = arith.constant 0 : index
    %c0_8 = arith.constant 0 : index
    %10 = vector.load %arg4[%c0_7, %c0_8] : memref<4x32xf32, #tpu.memory_space<vmem>>, vector<4x32xf32>
    %11 = arith.addf %9, %10 : vector<4x32xf32>
    %c0_9 = arith.constant 0 : index
    %c0_10 = arith.constant 0 : index
    %c0_11 = arith.constant 0 : index
    %12 = vector.load %arg5[%c0_9, %c0_10, %c0_11] : memref<1x4x32xf32, #tpu.memory_space<vmem>>, vector<1x4x32xf32>
    %13 = vector.shape_cast %12 : vector<1x4x32xf32> to vector<4x32xf32>
    %14 = vector.shape_cast %11 : vector<4x32xf32> to vector<1x4x32xf32>
    tpu.vector_store %arg5[%c0_9, %c0_10, %c0_11], %14 {strides = array<i32>} : memref<1x4x32xf32, #tpu.memory_space<vmem>>, vector<1x4x32xf32>,
    return
  }
  func.func @transform_0(%arg0: i32) -> (i32, i32, i32) {
    %c0_i32 = arith.constant 0 : i32
    %c0_i32_0 = arith.constant 0 : i32
    %c0_i32_1 = arith.constant 0 : i32
    return %arg0, %c0_i32, %c0_i32_0 : i32, i32, i32
  }
  func.func @transform_1(%arg0: i32) -> (i32, i32) {
    %c0_i32 = arith.constant 0 : i32
    %c0_i32_0 = arith.constant 0 : i32
    %c0_i32_1 = arith.constant 0 : i32
    return %c0_i32, %c0_i32_0 : i32, i32
  }
  func.func @transform_2(%arg0: i32) -> (i32, i32) {
    %c0_i32 = arith.constant 0 : i32
    %c0_i32_0 = arith.constant 0 : i32
    %c0_i32_1 = arith.constant 0 : i32
    return %c0_i32, %c0_i32_0 : i32, i32
  }
  func.func @transform_3(%arg0: i32) -> (i32, i32) {
    %c0_i32 = arith.constant 0 : i32
    %c0_i32_0 = arith.constant 0 : i32
    %c0_i32_1 = arith.constant 0 : i32
    return %c0_i32, %c0_i32_0 : i32, i32
  }
  func.func @transform_4(%arg0: i32) -> (i32, i32, i32) {
    %c0_i32 = arith.constant 0 : i32
    %c0_i32_0 = arith.constant 0 : i32
    %c0_i32_1 = arith.constant 0 : i32
    return %arg0, %c0_i32, %c0_i32_0 : i32, i32, i32
  }
}

module attributes {stable_mosaic.version = 11 : i64} {
  func.func @_linear_kernel(%arg0: i32, %arg1: memref<8x16xf32, #tpu.memory_space<vmem>>, %arg2: memref<16x512xbf16, #tpu.memory_space<vmem>>, %arg3: memref<1x512xf32, #tpu.memory_space<vmem>>, %arg4: memref<8x512xf32, #tpu.memory_space<vmem>>) attributes {dimension_semantics = [#tpu.dimension_semantics<parallel>], iteration_bounds = array<i64: 2>, scalar_prefetch = 0 : i64, scratch_operands = 0 : i64, tpu.core_type = #tpu.core_type<tc>, window_params = [{transform_indices = @transform_0, window_bounds = array<i64: 8, 16>}, {pipeline_mode = #tpu.pipeline_mode<synchronous>, transform_indices = @transform_1, window_bounds = array<i64: 16, 512>}, {pipeline_mode = #tpu.pipeline_mode<synchronous>, transform_indices = @transform_2, window_bounds = array<i64: 1, 512>}, {transform_indices = @transform_3, window_bounds = array<i64: 8, 512>}]} {
    %c0 = arith.constant 0 : index
    %c0_0 = arith.constant 0 : index
    %0 = vector.load %arg1[%c0, %c0_0] : memref<8x16xf32, #tpu.memory_space<vmem>>, vector<8x16xf32>
    %1 = arith.truncf %0 : vector<8x16xf32> to vector<8x16xbf16>
    %c0_1 = arith.constant 0 : index
    %c0_2 = arith.constant 0 : index
    %2 = vector.load %arg2[%c0_1, %c0_2] : memref<16x512xbf16, #tpu.memory_space<vmem>>, vector<16x512xbf16>
    %cst = arith.constant dense<0.000000e+00> : vector<8x512xf32>
    %3 = tpu.matmul %1, %2, %cst {dimension_numbers = #tpu.dot_dimension_numbers<[1], [0], [0], [1], [0, 0, 1, 1], [], []>} : vector<8x16xbf16>, vector<16x512xbf16>, vector<8x512xf32> -> vector<8x512xf32>
    %c0_3 = arith.constant 0 : index
    %c0_4 = arith.constant 0 : index
    %4 = vector.load %arg3[%c0_3, %c0_4] : memref<1x512xf32, #tpu.memory_space<vmem>>, vector<1x512xf32>
    %5 = vector.broadcast %4 : vector<1x512xf32> to vector<8x512xf32>
    %6 = arith.addf %3, %5 : vector<8x512xf32>
    %c0_5 = arith.constant 0 : index
    %c0_6 = arith.constant 0 : index
    %7 = vector.load %arg4[%c0_5, %c0_6] : memref<8x512xf32, #tpu.memory_space<vmem>>, vector<8x512xf32>
    tpu.vector_store %arg4[%c0_5, %c0_6], %6 {strides = array<i32>} : memref<8x512xf32, #tpu.memory_space<vmem>>, vector<8x512xf32>,
    return
  }
  func.func @transform_0(%arg0: i32) -> (i32, i32) {
    %c0_i32 = arith.constant 0 : i32
    %c0_i32_0 = arith.constant 0 : i32
    return %arg0, %c0_i32 : i32, i32
  }
  func.func @transform_1(%arg0: i32) -> (i32, i32) {
    %c0_i32 = arith.constant 0 : i32
    %c0_i32_0 = arith.constant 0 : i32
    %c0_i32_1 = arith.constant 0 : i32
    return %c0_i32, %c0_i32_0 : i32, i32
  }
  func.func @transform_2(%arg0: i32) -> (i32, i32) {
    %c0_i32 = arith.constant 0 : i32
    %c0_i32_0 = arith.constant 0 : i32
    %c0_i32_1 = arith.constant 0 : i32
    return %c0_i32, %c0_i32_0 : i32, i32
  }
  func.func @transform_3(%arg0: i32) -> (i32, i32) {
    %c0_i32 = arith.constant 0 : i32
    %c0_i32_0 = arith.constant 0 : i32
    return %arg0, %c0_i32 : i32, i32
  }
}

module attributes {stable_mosaic.version = 11 : i64} {
  func.func @_encoder_layers_kernel(%arg0: i32, %arg1: memref<1x4x32xf32, #tpu.memory_space<vmem>>, %arg2: memref<2x1x32xf32, #tpu.memory_space<vmem>>, %arg3: memref<2x1x32xf32, #tpu.memory_space<vmem>>, %arg4: memref<2x32x128xbf16, #tpu.memory_space<vmem>>, %arg5: memref<2x1x128xf32, #tpu.memory_space<vmem>>, %arg6: memref<2x32x32xbf16, #tpu.memory_space<vmem>>, %arg7: memref<2x1x32xf32, #tpu.memory_space<vmem>>, %arg8: memref<2x1x32xf32, #tpu.memory_space<vmem>>, %arg9: memref<2x1x32xf32, #tpu.memory_space<vmem>>, %arg10: memref<2x32x2048xbf16, #tpu.memory_space<vmem>>, %arg11: memref<2x1x2048xf32, #tpu.memory_space<vmem>>, %arg12: memref<2x2048x32xbf16, #tpu.memory_space<vmem>>, %arg13: memref<2x1x32xf32, #tpu.memory_space<vmem>>, %arg14: memref<1x4x32xf32, #tpu.memory_space<vmem>>) attributes {dimension_semantics = [#tpu.dimension_semantics<parallel>], iteration_bounds = array<i64: 2>, scalar_prefetch = 0 : i64, scratch_operands = 0 : i64, tpu.core_type = #tpu.core_type<tc>, window_params = [{transform_indices = @transform_0, window_bounds = array<i64: 1, 4, 32>}, {pipeline_mode = #tpu.pipeline_mode<synchronous>, transform_indices = @transform_1, window_bounds = array<i64: 2, 1, 32>}, {pipeline_mode = #tpu.pipeline_mode<synchronous>, transform_indices = @transform_2, window_bounds = array<i64: 2, 1, 32>}, {pipeline_mode = #tpu.pipeline_mode<synchronous>, transform_indices = @transform_3, window_bounds = array<i64: 2, 32, 128>}, {pipeline_mode = #tpu.pipeline_mode<synchronous>, transform_indices = @transform_4, window_bounds = array<i64: 2, 1, 128>}, {pipeline_mode = #tpu.pipeline_mode<synchronous>, transform_indices = @transform_5, window_bounds = array<i64: 2, 32, 32>}, {pipeline_mode = #tpu.pipeline_mode<synchronous>, transform_indices = @transform_6, window_bounds = array<i64: 2, 1, 32>}, {pipeline_mode = #tpu.pipeline_mode<synchronous>, transform_indices = @transform_7, window_bounds = array<i64: 2, 1, 32>}, {pipeline_mode = #tpu.pipeline_mode<synchronous>, transform_indices = @transform_8, window_bounds = array<i64: 2, 1, 32>}, {pipeline_mode = #tpu.pipeline_mode<synchronous>, transform_indices = @transform_9, window_bounds = array<i64: 2, 32, 2048>}, {pipeline_mode = #tpu.pipeline_mode<synchronous>, transform_indices = @transform_10, window_bounds = array<i64: 2, 1, 2048>}, {pipeline_mode = #tpu.pipeline_mode<synchronous>, transform_indices = @transform_11, window_bounds = array<i64: 2, 2048, 32>}, {pipeline_mode = #tpu.pipeline_mode<synchronous>, transform_indices = @transform_12, window_bounds = array<i64: 2, 1, 32>}, {transform_indices = @transform_13, window_bounds = array<i64: 1, 4, 32>}]} {
    %c0 = arith.constant 0 : index
    %c0_0 = arith.constant 0 : index
    %c0_1 = arith.constant 0 : index
    %0 = vector.load %arg1[%c0, %c0_0, %c0_1] : memref<1x4x32xf32, #tpu.memory_space<vmem>>, vector<1x4x32xf32>
    %1 = vector.shape_cast %0 : vector<1x4x32xf32> to vector<4x32xf32>
    %c0_2 = arith.constant 0 : index
    %c0_3 = arith.constant 0 : index
    %c0_4 = arith.constant 0 : index
    %2 = vector.load %arg2[%c0_2, %c0_3, %c0_4] : memref<2x1x32xf32, #tpu.memory_space<vmem>>, vector<1x1x32xf32>
    %3 = vector.shape_cast %2 : vector<1x1x32xf32> to vector<1x32xf32>
    %c0_5 = arith.constant 0 : index
    %c0_6 = arith.constant 0 : index
    %c0_7 = arith.constant 0 : index
    %4 = vector.load %arg3[%c0_5, %c0_6, %c0_7] : memref<2x1x32xf32, #tpu.memory_space<vmem>>, vector<1x1x32xf32>
    %5 = vector.shape_cast %4 : vector<1x1x32xf32> to vector<1x32xf32>
    %cst = arith.constant dense<0.000000e+00> : vector<4xf32>
    %6 = vector.multi_reduction <add>, %1, %cst [1] : vector<4x32xf32> to vector<4xf32>
    %7 = vector.shape_cast %6 : vector<4xf32> to vector<4x1xf32>
    %cst_8 = arith.constant 3.200000e+01 : f32
    %8 = vector.broadcast %cst_8 : f32 to vector<4x1xf32>
    %9 = arith.divf %7, %8 : vector<4x1xf32>
    %10 = vector.broadcast %9 : vector<4x1xf32> to vector<4x32xf32>
    %11 = arith.subf %1, %10 : vector<4x32xf32>
    %12 = arith.mulf %11, %11 : vector<4x32xf32>
    %cst_9 = arith.constant dense<0.000000e+00> : vector<4xf32>
    %13 = vector.multi_reduction <add>, %12, %cst_9 [1] : vector<4x32xf32> to vector<4xf32>
    %14 = vector.shape_cast %13 : vector<4xf32> to vector<4x1xf32>
    %cst_10 = arith.constant 3.100000e+01 : f32
    %15 = vector.broadcast %cst_10 : f32 to vector<4x1xf32>
    %16 = arith.divf %14, %15 : vector<4x1xf32>
    %17 = math.sqrt %16 : vector<4x1xf32>
    %18 = vector.broadcast %3 : vector<1x32xf32> to vector<4x32xf32>
    %19 = arith.mulf %18, %11 : vector<4x32xf32>
    %cst_11 = arith.constant 9.99999997E-7 : f32
    %20 = vector.broadcast %cst_11 : f32 to vector<4x1xf32>
    %21 = arith.addf %17, %20 : vector<4x1xf32>
    %22 = vector.broadcast %21 : vector<4x1xf32> to vector<4x32xf32>
    %23 = arith.divf %19, %22 : vector<4x32xf32>
    %24 = vector.broadcast %5 : vector<1x32xf32> to vector<4x32xf32>
    %25 = arith.addf %23, %24 : vector<4x32xf32>
    %26 = arith.truncf %25 : vector<4x32xf32> to vector<4x32xbf16>
    %c0_12 = arith.constant 0 : index
    %c0_13 = arith.constant 0 : index
    %c0_14 = arith.constant 0 : index
    %27 = vector.load %arg4[%c0_12, %c0_13, %c0_14] : memref<2x32x128xbf16, #tpu.memory_space<vmem>>, vector<1x32x128xbf16>
    %28 = vector.shape_cast %27 : vector<1x32x128xbf16> to vector<32x128xbf16>
    %cst_15 = arith.constant dense<0.000000e+00> : vector<4x128xf32>
    %29 = tpu.matmul %26, %28, %cst_15 {dimension_numbers = #tpu.dot_dimension_numbers<[1], [0], [0], [1], [0, 0, 1, 1], [], []>} : vector<4x32xbf16>, vector<32x128xbf16>, vector<4x128xf32> -> vector<4x128xf32>
    %c0_16 = arith.constant 0 : index
    %c0_17 = arith.constant 0 : index
    %c0_18 = arith.constant 0 : index
    %30 = vector.load %arg5[%c0_16, %c0_17, %c0_18] : memref<2x1x128xf32, #tpu.memory_space<vmem>>, vector<1x1x128xf32>
    %31 = vector.shape_cast %30 : vector<1x1x128xf32> to vector<1x128xf32>
    %32 = vector.broadcast %31 : vector<1x128xf32> to vector<4x128xf32>
    %33 = arith.addf %29, %32 : vector<4x128xf32>
    %34 = vector.extract_strided_slice %33 {offsets = [0, 0], sizes = [4, 8], strides = [1, 1]} : vector<4x128xf32> to vector<4x8xf32>
    %35 = vector.extract_strided_slice %33 {offsets = [0, 32], sizes = [4, 8], strides = [1, 1]} : vector<4x128xf32> to vector<4x8xf32>
    %36 = vector.extract_strided_slice %33 {offsets = [0, 64], sizes = [4, 8], strides = [1, 1]} : vector<4x128xf32> to vector<4x8xf32>
    %cst_19 = arith.constant dense<0.000000e+00> : vector<4x4xf32>
    %37 = tpu.matmul %34, %35, %cst_19 {dimension_numbers = #tpu.dot_dimension_numbers<[1], [1], [0], [0], [0, 0, 1, 0], [], []>} : vector<4x8xf32>, vector<4x8xf32>, vector<4x4xf32> -> vector<4x4xf32>
    %cst_20 = arith.constant 0.353553385 : f32
    %38 = vector.broadcast %cst_20 : f32 to vector<4x4xf32>
    %39 = arith.mulf %37, %38 : vector<4x4xf32>
    %cst_21 = arith.constant dense<0xFF800000> : vector<4xf32>
    %40 = vector.multi_reduction <maximumf>, %39, %cst_21 [1] : vector<4x4xf32> to vector<4xf32>
    %41 = vector.shape_cast %40 : vector<4xf32> to vector<4x1xf32>
    %42 = vector.broadcast %41 : vector<4x1xf32> to vector<4x4xf32>
    %43 = arith.subf %39, %42 : vector<4x4xf32>
    %44 = math.exp %43 : vector<4x4xf32>
    %cst_22 = arith.constant dense<0.000000e+00> : vector<4xf32>
    %45 = vector.multi_reduction <add>, %44, %cst_22 [1] : vector<4x4xf32> to vector<4xf32>
    %46 = vector.shape_cast %45 : vector<4xf32> to vector<4x1xf32>
    %47 = tpu.reciprocal %46 {approx = true} : vector<4x1xf32> -> vector<4x1xf32>
    %48 = vector.broadcast %47 : vector<4x1xf32> to vector<4x4xf32>
    %49 = arith.mulf %44, %48 : vector<4x4xf32>
    %cst_23 = arith.constant dense<0.000000e+00> : vector<4x8xf32>
    %50 = tpu.matmul %49, %36, %cst_23 {dimension_numbers = #tpu.dot_dimension_numbers<[1], [0], [0], [1], [0, 0, 1, 1], [], []>} : vector<4x4xf32>, vector<4x8xf32>, vector<4x8xf32> -> vector<4x8xf32>
    %51 = vector.extract_strided_slice %33 {offsets = [0, 8], sizes = [4, 8], strides = [1, 1]} : vector<4x128xf32> to vector<4x8xf32>
    %52 = vector.extract_strided_slice %33 {offsets = [0, 40], sizes = [4, 8], strides = [1, 1]} : vector<4x128xf32> to vector<4x8xf32>
    %53 = vector.extract_strided_slice %33 {offsets = [0, 72], sizes = [4, 8], strides = [1, 1]} : vector<4x128xf32> to vector<4x8xf32>
    %cst_24 = arith.constant dense<0.000000e+00> : vector<4x4xf32>
    %54 = tpu.matmul %51, %52, %cst_24 {dimension_numbers = #tpu.dot_dimension_numbers<[1], [1], [0], [0], [0, 0, 1, 0], [], []>} : vector<4x8xf32>, vector<4x8xf32>, vector<4x4xf32> -> vector<4x4xf32>
    %cst_25 = arith.constant 0.353553385 : f32
    %55 = vector.broadcast %cst_25 : f32 to vector<4x4xf32>
    %56 = arith.mulf %54, %55 : vector<4x4xf32>
    %cst_26 = arith.constant dense<0xFF800000> : vector<4xf32>
    %57 = vector.multi_reduction <maximumf>, %56, %cst_26 [1] : vector<4x4xf32> to vector<4xf32>
    %58 = vector.shape_cast %57 : vector<4xf32> to vector<4x1xf32>
    %59 = vector.broadcast %58 : vector<4x1xf32> to vector<4x4xf32>
    %60 = arith.subf %56, %59 : vector<4x4xf32>
    %61 = math.exp %60 : vector<4x4xf32>
    %cst_27 = arith.constant dense<0.000000e+00> : vector<4xf32>
    %62 = vector.multi_reduction <add>, %61, %cst_27 [1] : vector<4x4xf32> to vector<4xf32>
    %63 = vector.shape_cast %62 : vector<4xf32> to vector<4x1xf32>
    %64 = tpu.reciprocal %63 {approx = true} : vector<4x1xf32> -> vector<4x1xf32>
    %65 = vector.broadcast %64 : vector<4x1xf32> to vector<4x4xf32>
    %66 = arith.mulf %61, %65 : vector<4x4xf32>
    %cst_28 = arith.constant dense<0.000000e+00> : vector<4x8xf32>
    %67 = tpu.matmul %66, %53, %cst_28 {dimension_numbers = #tpu.dot_dimension_numbers<[1], [0], [0], [1], [0, 0, 1, 1], [], []>} : vector<4x4xf32>, vector<4x8xf32>, vector<4x8xf32> -> vector<4x8xf32>
    %68 = vector.extract_strided_slice %33 {offsets = [0, 16], sizes = [4, 8], strides = [1, 1]} : vector<4x128xf32> to vector<4x8xf32>
    %69 = vector.extract_strided_slice %33 {offsets = [0, 48], sizes = [4, 8], strides = [1, 1]} : vector<4x128xf32> to vector<4x8xf32>
    %70 = vector.extract_strided_slice %33 {offsets = [0, 80], sizes = [4, 8], strides = [1, 1]} : vector<4x128xf32> to vector<4x8xf32>
    %cst_29 = arith.constant dense<0.000000e+00> : vector<4x4xf32>
    %71 = tpu.matmul %68, %69, %cst_29 {dimension_numbers = #tpu.dot_dimension_numbers<[1], [1], [0], [0], [0, 0, 1, 0], [], []>} : vector<4x8xf32>, vector<4x8xf32>, vector<4x4xf32> -> vector<4x4xf32>
    %cst_30 = arith.constant 0.353553385 : f32
    %72 = vector.broadcast %cst_30 : f32 to vector<4x4xf32>
    %73 = arith.mulf %71, %72 : vector<4x4xf32>
    %cst_31 = arith.constant dense<0xFF800000> : vector<4xf32>
    %74 = vector.multi_reduction <maximumf>, %73, %cst_31 [1] : vector<4x4xf32> to vector<4xf32>
    %75 = vector.shape_cast %74 : vector<4xf32> to vector<4x1xf32>
    %76 = vector.broadcast %75 : vector<4x1xf32> to vector<4x4xf32>
    %77 = arith.subf %73, %76 : vector<4x4xf32>
    %78 = math.exp %77 : vector<4x4xf32>
    %cst_32 = arith.constant dense<0.000000e+00> : vector<4xf32>
    %79 = vector.multi_reduction <add>, %78, %cst_32 [1] : vector<4x4xf32> to vector<4xf32>
    %80 = vector.shape_cast %79 : vector<4xf32> to vector<4x1xf32>
    %81 = tpu.reciprocal %80 {approx = true} : vector<4x1xf32> -> vector<4x1xf32>
    %82 = vector.broadcast %81 : vector<4x1xf32> to vector<4x4xf32>
    %83 = arith.mulf %78, %82 : vector<4x4xf32>
    %cst_33 = arith.constant dense<0.000000e+00> : vector<4x8xf32>
    %84 = tpu.matmul %83, %70, %cst_33 {dimension_numbers = #tpu.dot_dimension_numbers<[1], [0], [0], [1], [0, 0, 1, 1], [], []>} : vector<4x4xf32>, vector<4x8xf32>, vector<4x8xf32> -> vector<4x8xf32>
    %85 = vector.extract_strided_slice %33 {offsets = [0, 24], sizes = [4, 8], strides = [1, 1]} : vector<4x128xf32> to vector<4x8xf32>
    %86 = vector.extract_strided_slice %33 {offsets = [0, 56], sizes = [4, 8], strides = [1, 1]} : vector<4x128xf32> to vector<4x8xf32>
    %87 = vector.extract_strided_slice %33 {offsets = [0, 88], sizes = [4, 8], strides = [1, 1]} : vector<4x128xf32> to vector<4x8xf32>
    %cst_34 = arith.constant dense<0.000000e+00> : vector<4x4xf32>
    %88 = tpu.matmul %85, %86, %cst_34 {dimension_numbers = #tpu.dot_dimension_numbers<[1], [1], [0], [0], [0, 0, 1, 0], [], []>} : vector<4x8xf32>, vector<4x8xf32>, vector<4x4xf32> -> vector<4x4xf32>
    %cst_35 = arith.constant 0.353553385 : f32
    %89 = vector.broadcast %cst_35 : f32 to vector<4x4xf32>
    %90 = arith.mulf %88, %89 : vector<4x4xf32>
    %cst_36 = arith.constant dense<0xFF800000> : vector<4xf32>
    %91 = vector.multi_reduction <maximumf>, %90, %cst_36 [1] : vector<4x4xf32> to vector<4xf32>
    %92 = vector.shape_cast %91 : vector<4xf32> to vector<4x1xf32>
    %93 = vector.broadcast %92 : vector<4x1xf32> to vector<4x4xf32>
    %94 = arith.subf %90, %93 : vector<4x4xf32>
    %95 = math.exp %94 : vector<4x4xf32>
    %cst_37 = arith.constant dense<0.000000e+00> : vector<4xf32>
    %96 = vector.multi_reduction <add>, %95, %cst_37 [1] : vector<4x4xf32> to vector<4xf32>
    %97 = vector.shape_cast %96 : vector<4xf32> to vector<4x1xf32>
    %98 = tpu.reciprocal %97 {approx = true} : vector<4x1xf32> -> vector<4x1xf32>
    %99 = vector.broadcast %98 : vector<4x1xf32> to vector<4x4xf32>
    %100 = arith.mulf %95, %99 : vector<4x4xf32>
    %cst_38 = arith.constant dense<0.000000e+00> : vector<4x8xf32>
    %101 = tpu.matmul %100, %87, %cst_38 {dimension_numbers = #tpu.dot_dimension_numbers<[1], [0], [0], [1], [0, 0, 1, 1], [], []>} : vector<4x4xf32>, vector<4x8xf32>, vector<4x8xf32> -> vector<4x8xf32>
    %102 = tpu.concatenate %50, %67, %84, %101 in 1 : vector<4x8xf32>, vector<4x8xf32>, vector<4x8xf32>, vector<4x8xf32> -> vector<4x32xf32>
    %103 = arith.truncf %102 : vector<4x32xf32> to vector<4x32xbf16>
    %c0_39 = arith.constant 0 : index
    %c0_40 = arith.constant 0 : index
    %c0_41 = arith.constant 0 : index
    %104 = vector.load %arg6[%c0_39, %c0_40, %c0_41] : memref<2x32x32xbf16, #tpu.memory_space<vmem>>, vector<1x32x32xbf16>
    %105 = vector.shape_cast %104 : vector<1x32x32xbf16> to vector<32x32xbf16>
    %cst_42 = arith.constant dense<0.000000e+00> : vector<4x32xf32>
    %106 = tpu.matmul %103, %105, %cst_42 {dimension_numbers = #tpu.dot_dimension_numbers<[1], [0], [0], [1], [0, 0, 1, 1], [], []>} : vector<4x32xbf16>, vector<32x32xbf16>, vector<4x32xf32> -> vector<4x32xf32>
    %c0_43 = arith.constant 0 : index
    %c0_44 = arith.constant 0 : index
    %c0_45 = arith.constant 0 : index
    %107 = vector.load %arg7[%c0_43, %c0_44, %c0_45] : memref<2x1x32xf32, #tpu.memory_space<vmem>>, vector<1x1x32xf32>
    %108 = vector.shape_cast %107 : vector<1x1x32xf32> to vector<1x32xf32>
    %109 = vector.broadcast %108 : vector<1x32xf32> to vector<4x32xf32>
    %110 = arith.addf %106, %109 : vector<4x32xf32>
    %111 = arith.addf %1, %110 : vector<4x32xf32>
    %c0_46 = arith.constant 0 : index
    %c0_47 = arith.constant 0 : index
    %c0_48 = arith.constant 0 : index
    %112 = vector.load %arg8[%c0_46, %c0_47, %c0_48] : memref<2x1x32xf32, #tpu.memory_space<vmem>>, vector<1x1x32xf32>
    %113 = vector.shape_cast %112 : vector<1x1x32xf32> to vector<1x32xf32>
    %c0_49 = arith.constant 0 : index
    %c0_50 = arith.constant 0 : index
    %c0_51 = arith.constant 0 : index
    %114 = vector.load %arg9[%c0_49, %c0_50, %c0_51] : memref<2x1x32xf32, #tpu.memory_space<vmem>>, vector<1x1x32xf32>
    %115 = vector.shape_cast %114 : vector<1x1x32xf32> to vector<1x32xf32>
    %cst_52 = arith.constant dense<0.000000e+00> : vector<4xf32>
    %116 = vector.multi_reduction <add>, %111, %cst_52 [1] : vector<4x32xf32> to vector<4xf32>
    %117 = vector.shape_cast %116 : vector<4xf32> to vector<4x1xf32>
    %cst_53 = arith.constant 3.200000e+01 : f32
    %118 = vector.broadcast %cst_53 : f32 to vector<4x1xf32>
    %119 = arith.divf %117, %118 : vector<4x1xf32>
    %120 = vector.broadcast %119 : vector<4x1xf32> to vector<4x32xf32>
    %121 = arith.subf %111, %120 : vector<4x32xf32>
    %122 = arith.mulf %121, %121 : vector<4x32xf32>
    %cst_54 = arith.constant dense<0.000000e+00> : vector<4xf32>
    %123 = vector.multi_reduction <add>, %122, %cst_54 [1] : vector<4x32xf32> to vector<4xf32>
    %124 = vector.shape_cast %123 : vector<4xf32> to vector<4x1xf32>
    %cst_55 = arith.constant 3.100000e+01 : f32
    %125 = vector.broadcast %cst_55 : f32 to vector<4x1xf32>
    %126 = arith.divf %124, %125 : vector<4x1xf32>
    %127 = math.sqrt %126 : vector<4x1xf32>
    %128 = vector.broadcast %113 : vector<1x32xf32> to vector<4x32xf32>
    %129 = arith.mulf %128, %121 : vector<4x32xf32>
    %cst_56 = arith.constant 9.99999997E-7 : f32
    %130 = vector.broadcast %cst_56 : f32 to vector<4x1xf32>
    %131 = arith.addf %127, %130 : vector<4x1xf32>
    %132 = vector.broadcast %131 : vector<4x1xf32> to vector<4x32xf32>
    %133 = arith.divf %129, %132 : vector<4x32xf32>
    %134 = vector.broadcast %115 : vector<1x32xf32> to vector<4x32xf32>
    %135 = arith.addf %133, %134 : vector<4x32xf32>
    %136 = arith.truncf %135 : vector<4x32xf32> to vector<4x32xbf16>
    %cst_57 = arith.constant 0.000000e+00 : f32
    %137 = vector.broadcast %cst_57 : f32 to vector<4x32xf32>
    %c0_58 = arith.constant 0 : index
    %c0_59 = arith.constant 0 : index
    %c0_60 = arith.constant 0 : index
    %138 = vector.load %arg10[%c0_58, %c0_59, %c0_60] : memref<2x32x2048xbf16, #tpu.memory_space<vmem>>, vector<1x32x512xbf16>
    %139 = vector.shape_cast %138 : vector<1x32x512xbf16> to vector<32x512xbf16>
    %cst_61 = arith.constant dense<0.000000e+00> : vector<4x512xf32>
    %140 = tpu.matmul %136, %139, %cst_61 {dimension_numbers = #tpu.dot_dimension_numbers<[1], [0], [0], [1], [0, 0, 1, 1], [], []>} : vector<4x32xbf16>, vector<32x512xbf16>, vector<4x512xf32> -> vector<4x512xf32>
    %c0_62 = arith.constant 0 : index
    %c0_63 = arith.constant 0 : index
    %c0_64 = arith.constant 0 : index
    %141 = vector.load %arg11[%c0_62, %c0_63, %c0_64] : memref<2x1x2048xf32, #tpu.memory_space<vmem>>, vector<1x1x512xf32>
    %142 = vector.shape_cast %141 : vector<1x1x512xf32> to vector<1x512xf32>
    %143 = vector.broadcast %142 : vector<1x512xf32> to vector<4x512xf32>
    %144 = arith.addf %140, %143 : vector<4x512xf32>
    %cst_65 = arith.constant 0.000000e+00 : f32
    %145 = vector.broadcast %cst_65 : f32 to vector<4x512xf32>
    %146 = arith.maximumf %144, %145 : vector<4x512xf32>
    %147 = arith.truncf %146 : vector<4x512xf32> to vector<4x512xbf16>
    %c0_66 = arith.constant 0 : index
    %c0_67 = arith.constant 0 : index
    %c0_68 = arith.constant 0 : index
    %148 = vector.load %arg12[%c0_66, %c0_67, %c0_68] : memref<2x2048x32xbf16, #tpu.memory_space<vmem>>, vector<1x512x32xbf16>
    %149 = vector.shape_cast %148 : vector<1x512x32xbf16> to vector<512x32xbf16>
    %cst_69 = arith.constant dense<0.000000e+00> : vector<4x32xf32>
    %150 = tpu.matmul %147, %149, %cst_69 {dimension_numbers = #tpu.dot_dimension_numbers<[1], [0], [0], [1], [0, 0, 1, 1], [], []>} : vector<4x512xbf16>, vector<512x32xbf16>, vector<4x32xf32> -> vector<4x32xf32>
    %151 = arith.addf %137, %150 : vector<4x32xf32>
    %c0_70 = arith.constant 0 : index
    %c0_71 = arith.constant 0 : index
    %c512 = arith.constant 512 : index
    %152 = vector.load %arg10[%c0_70, %c0_71, %c512] : memref<2x32x2048xbf16, #tpu.memory_space<vmem>>, vector<1x32x512xbf16>
    %153 = vector.shape_cast %152 : vector<1x32x512xbf16> to vector<32x512xbf16>
    %cst_72 = arith.constant dense<0.000000e+00> : vector<4x512xf32>
    %154 = tpu.matmul %136, %153, %cst_72 {dimension_numbers = #tpu.dot_dimension_numbers<[1], [0], [0], [1], [0, 0, 1, 1], [], []>} : vector<4x32xbf16>, vector<32x512xbf16>, vector<4x512xf32> -> vector<4x512xf32>
    %c0_73 = arith.constant 0 : index
    %c0_74 = arith.constant 0 : index
    %c512_75 = arith.constant 512 : index
    %155 = vector.load %arg11[%c0_73, %c0_74, %c512_75] : memref<2x1x2048xf32, #tpu.memory_space<vmem>>, vector<1x1x512xf32>
    %156 = vector.shape_cast %155 : vector<1x1x512xf32> to vector<1x512xf32>
    %157 = vector.broadcast %156 : vector<1x512xf32> to vector<4x512xf32>
    %158 = arith.addf %154, %157 : vector<4x512xf32>
    %cst_76 = arith.constant 0.000000e+00 : f32
    %159 = vector.broadcast %cst_76 : f32 to vector<4x512xf32>
    %160 = arith.maximumf %158, %159 : vector<4x512xf32>
    %161 = arith.truncf %160 : vector<4x512xf32> to vector<4x512xbf16>
    %c0_77 = arith.constant 0 : index
    %c512_78 = arith.constant 512 : index
    %c0_79 = arith.constant 0 : index
    %162 = vector.load %arg12[%c0_77, %c512_78, %c0_79] : memref<2x2048x32xbf16, #tpu.memory_space<vmem>>, vector<1x512x32xbf16>
    %163 = vector.shape_cast %162 : vector<1x512x32xbf16> to vector<512x32xbf16>
    %cst_80 = arith.constant dense<0.000000e+00> : vector<4x32xf32>
    %164 = tpu.matmul %161, %163, %cst_80 {dimension_numbers = #tpu.dot_dimension_numbers<[1], [0], [0], [1], [0, 0, 1, 1], [], []>} : vector<4x512xbf16>, vector<512x32xbf16>, vector<4x32xf32> -> vector<4x32xf32>
    %165 = arith.addf %151, %164 : vector<4x32xf32>
    %c0_81 = arith.constant 0 : index
    %c0_82 = arith.constant 0 : index
    %c1024 = arith.constant 1024 : index
    %166 = vector.load %arg10[%c0_81, %c0_82, %c1024] : memref<2x32x2048xbf16, #tpu.memory_space<vmem>>, vector<1x32x512xbf16>
    %167 = vector.shape_cast %166 : vector<1x32x512xbf16> to vector<32x512xbf16>
    %cst_83 = arith.constant dense<0.000000e+00> : vector<4x512xf32>
    %168 = tpu.matmul %136, %167, %cst_83 {dimension_numbers = #tpu.dot_dimension_numbers<[1], [0], [0], [1], [0, 0, 1, 1], [], []>} : vector<4x32xbf16>, vector<32x512xbf16>, vector<4x512xf32> -> vector<4x512xf32>
    %c0_84 = arith.constant 0 : index
    %c0_85 = arith.constant 0 : index
    %c1024_86 = arith.constant 1024 : index
    %169 = vector.load %arg11[%c0_84, %c0_85, %c1024_86] : memref<2x1x2048xf32, #tpu.memory_space<vmem>>, vector<1x1x512xf32>
    %170 = vector.shape_cast %169 : vector<1x1x512xf32> to vector<1x512xf32>
    %171 = vector.broadcast %170 : vector<1x512xf32> to vector<4x512xf32>
    %172 = arith.addf %168, %171 : vector<4x512xf32>
    %cst_87 = arith.constant 0.000000e+00 : f32
    %173 = vector.broadcast %cst_87 : f32 to vector<4x512xf32>
    %174 = arith.maximumf %172, %173 : vector<4x512xf32>
    %175 = arith.truncf %174 : vector<4x512xf32> to vector<4x512xbf16>
    %c0_88 = arith.constant 0 : index
    %c1024_89 = arith.constant 1024 : index
    %c0_90 = arith.constant 0 : index
    %176 = vector.load %arg12[%c0_88, %c1024_89, %c0_90] : memref<2x2048x32xbf16, #tpu.memory_space<vmem>>, vector<1x512x32xbf16>
    %177 = vector.shape_cast %176 : vector<1x512x32xbf16> to vector<512x32xbf16>
    %cst_91 = arith.constant dense<0.000000e+00> : vector<4x32xf32>
    %178 = tpu.matmul %175, %177, %cst_91 {dimension_numbers = #tpu.dot_dimension_numbers<[1], [0], [0], [1], [0, 0, 1, 1], [], []>} : vector<4x512xbf16>, vector<512x32xbf16>, vector<4x32xf32> -> vector<4x32xf32>
    %179 = arith.addf %165, %178 : vector<4x32xf32>
    %c0_92 = arith.constant 0 : index
    %c0_93 = arith.constant 0 : index
    %c1536 = arith.constant 1536 : index
    %180 = vector.load %arg10[%c0_92, %c0_93, %c1536] : memref<2x32x2048xbf16, #tpu.memory_space<vmem>>, vector<1x32x512xbf16>
    %181 = vector.shape_cast %180 : vector<1x32x512xbf16> to vector<32x512xbf16>
    %cst_94 = arith.constant dense<0.000000e+00> : vector<4x512xf32>
    %182 = tpu.matmul %136, %181, %cst_94 {dimension_numbers = #tpu.dot_dimension_numbers<[1], [0], [0], [1], [0, 0, 1, 1], [], []>} : vector<4x32xbf16>, vector<32x512xbf16>, vector<4x512xf32> -> vector<4x512xf32>
    %c0_95 = arith.constant 0 : index
    %c0_96 = arith.constant 0 : index
    %c1536_97 = arith.constant 1536 : index
    %183 = vector.load %arg11[%c0_95, %c0_96, %c1536_97] : memref<2x1x2048xf32, #tpu.memory_space<vmem>>, vector<1x1x512xf32>
    %184 = vector.shape_cast %183 : vector<1x1x512xf32> to vector<1x512xf32>
    %185 = vector.broadcast %184 : vector<1x512xf32> to vector<4x512xf32>
    %186 = arith.addf %182, %185 : vector<4x512xf32>
    %cst_98 = arith.constant 0.000000e+00 : f32
    %187 = vector.broadcast %cst_98 : f32 to vector<4x512xf32>
    %188 = arith.maximumf %186, %187 : vector<4x512xf32>
    %189 = arith.truncf %188 : vector<4x512xf32> to vector<4x512xbf16>
    %c0_99 = arith.constant 0 : index
    %c1536_100 = arith.constant 1536 : index
    %c0_101 = arith.constant 0 : index
    %190 = vector.load %arg12[%c0_99, %c1536_100, %c0_101] : memref<2x2048x32xbf16, #tpu.memory_space<vmem>>, vector<1x512x32xbf16>
    %191 = vector.shape_cast %190 : vector<1x512x32xbf16> to vector<512x32xbf16>
    %cst_102 = arith.constant dense<0.000000e+00> : vector<4x32xf32>
    %192 = tpu.matmul %189, %191, %cst_102 {dimension_numbers = #tpu.dot_dimension_numbers<[1], [0], [0], [1], [0, 0, 1, 1], [], []>} : vector<4x512xbf16>, vector<512x32xbf16>, vector<4x32xf32> -> vector<4x32xf32>
    %193 = arith.addf %179, %192 : vector<4x32xf32>
    %194 = arith.addf %111, %193 : vector<4x32xf32>
    %c0_103 = arith.constant 0 : index
    %c0_104 = arith.constant 0 : index
    %c0_105 = arith.constant 0 : index
    %195 = vector.load %arg13[%c0_103, %c0_104, %c0_105] : memref<2x1x32xf32, #tpu.memory_space<vmem>>, vector<1x1x32xf32>
    %196 = vector.shape_cast %195 : vector<1x1x32xf32> to vector<1x32xf32>
    %197 = vector.broadcast %196 : vector<1x32xf32> to vector<4x32xf32>
    %198 = arith.addf %194, %197 : vector<4x32xf32>
    %c1 = arith.constant 1 : index
    %c0_106 = arith.constant 0 : index
    %c0_107 = arith.constant 0 : index
    %199 = vector.load %arg2[%c1, %c0_106, %c0_107] : memref<2x1x32xf32, #tpu.memory_space<vmem>>, vector<1x1x32xf32>
    %200 = vector.shape_cast %199 : vector<1x1x32xf32> to vector<1x32xf32>
    %c1_108 = arith.constant 1 : index
    %c0_109 = arith.constant 0 : index
    %c0_110 = arith.constant 0 : index
    %201 = vector.load %arg3[%c1_108, %c0_109, %c0_110] : memref<2x1x32xf32, #tpu.memory_space<vmem>>, vector<1x1x32xf32>
    %202 = vector.shape_cast %201 : vector<1x1x32xf32> to vector<1x32xf32>
    %cst_111 = arith.constant dense<0.000000e+00> : vector<4xf32>
    %203 = vector.multi_reduction <add>, %198, %cst_111 [1] : vector<4x32xf32> to vector<4xf32>
    %204 = vector.shape_cast %203 : vector<4xf32> to vector<4x1xf32>
    %cst_112 = arith.constant 3.200000e+01 : f32
    %205 = vector.broadcast %cst_112 : f32 to vector<4x1xf32>
    %206 = arith.divf %204, %205 : vector<4x1xf32>
    %207 = vector.broadcast %206 : vector<4x1xf32> to vector<4x32xf32>
    %208 = arith.subf %198, %207 : vector<4x32xf32>
    %209 = arith.mulf %208, %208 : vector<4x32xf32>
    %cst_113 = arith.constant dense<0.000000e+00> : vector<4xf32>
    %210 = vector.multi_reduction <add>, %209, %cst_113 [1] : vector<4x32xf32> to vector<4xf32>
    %211 = vector.shape_cast %210 : vector<4xf32> to vector<4x1xf32>
    %cst_114 = arith.constant 3.100000e+01 : f32
    %212 = vector.broadcast %cst_114 : f32 to vector<4x1xf32>
    %213 = arith.divf %211, %212 : vector<4x1xf32>
    %214 = math.sqrt %213 : vector<4x1xf32>
    %215 = vector.broadcast %200 : vector<1x32xf32> to vector<4x32xf32>
    %216 = arith.mulf %215, %208 : vector<4x32xf32>
    %cst_115 = arith.constant 9.99999997E-7 : f32
    %217 = vector.broadcast %cst_115 : f32 to vector<4x1xf32>
    %218 = arith.addf %214, %217 : vector<4x1xf32>
    %219 = vector.broadcast %218 : vector<4x1xf32> to vector<4x32xf32>
    %220 = arith.divf %216, %219 : vector<4x32xf32>
    %221 = vector.broadcast %202 : vector<1x32xf32> to vector<4x32xf32>
    %222 = arith.addf %220, %221 : vector<4x32xf32>
    %223 = arith.truncf %222 : vector<4x32xf32> to vector<4x32xbf16>
    %c1_116 = arith.constant 1 : index
    %c0_117 = arith.constant 0 : index
    %c0_118 = arith.constant 0 : index
    %224 = vector.load %arg4[%c1_116, %c0_117, %c0_118] : memref<2x32x128xbf16, #tpu.memory_space<vmem>>, vector<1x32x128xbf16>
    %225 = vector.shape_cast %224 : vector<1x32x128xbf16> to vector<32x128xbf16>
    %cst_119 = arith.constant dense<0.000000e+00> : vector<4x128xf32>
    %226 = tpu.matmul %223, %225, %cst_119 {dimension_numbers = #tpu.dot_dimension_numbers<[1], [0], [0], [1], [0, 0, 1, 1], [], []>} : vector<4x32xbf16>, vector<32x128xbf16>, vector<4x128xf32> -> vector<4x128xf32>
    %c1_120 = arith.constant 1 : index
    %c0_121 = arith.constant 0 : index
    %c0_122 = arith.constant 0 : index
    %227 = vector.load %arg5[%c1_120, %c0_121, %c0_122] : memref<2x1x128xf32, #tpu.memory_space<vmem>>, vector<1x1x128xf32>
    %228 = vector.shape_cast %227 : vector<1x1x128xf32> to vector<1x128xf32>
    %229 = vector.broadcast %228 : vector<1x128xf32> to vector<4x128xf32>
    %230 = arith.addf %226, %229 : vector<4x128xf32>
    %231 = vector.extract_strided_slice %230 {offsets = [0, 0], sizes = [4, 8], strides = [1, 1]} : vector<4x128xf32> to vector<4x8xf32>
    %232 = vector.extract_strided_slice %230 {offsets = [0, 32], sizes = [4, 8], strides = [1, 1]} : vector<4x128xf32> to vector<4x8xf32>
    %233 = vector.extract_strided_slice %230 {offsets = [0, 64], sizes = [4, 8], strides = [1, 1]} : vector<4x128xf32> to vector<4x8xf32>
    %cst_123 = arith.constant dense<0.000000e+00> : vector<4x4xf32>
    %234 = tpu.matmul %231, %232, %cst_123 {dimension_numbers = #tpu.dot_dimension_numbers<[1], [1], [0], [0], [0, 0, 1, 0], [], []>} : vector<4x8xf32>, vector<4x8xf32>, vector<4x4xf32> -> vector<4x4xf32>
    %cst_124 = arith.constant 0.353553385 : f32
    %235 = vector.broadcast %cst_124 : f32 to vector<4x4xf32>
    %236 = arith.mulf %234, %235 : vector<4x4xf32>
    %cst_125 = arith.constant dense<0xFF800000> : vector<4xf32>
    %237 = vector.multi_reduction <maximumf>, %236, %cst_125 [1] : vector<4x4xf32> to vector<4xf32>
    %238 = vector.shape_cast %237 : vector<4xf32> to vector<4x1xf32>
    %239 = vector.broadcast %238 : vector<4x1xf32> to vector<4x4xf32>
    %240 = arith.subf %236, %239 : vector<4x4xf32>
    %241 = math.exp %240 : vector<4x4xf32>
    %cst_126 = arith.constant dense<0.000000e+00> : vector<4xf32>
    %242 = vector.multi_reduction <add>, %241, %cst_126 [1] : vector<4x4xf32> to vector<4xf32>
    %243 = vector.shape_cast %242 : vector<4xf32> to vector<4x1xf32>
    %244 = tpu.reciprocal %243 {approx = true} : vector<4x1xf32> -> vector<4x1xf32>
    %245 = vector.broadcast %244 : vector<4x1xf32> to vector<4x4xf32>
    %246 = arith.mulf %241, %245 : vector<4x4xf32>
    %cst_127 = arith.constant dense<0.000000e+00> : vector<4x8xf32>
    %247 = tpu.matmul %246, %233, %cst_127 {dimension_numbers = #tpu.dot_dimension_numbers<[1], [0], [0], [1], [0, 0, 1, 1], [], []>} : vector<4x4xf32>, vector<4x8xf32>, vector<4x8xf32> -> vector<4x8xf32>
    %248 = vector.extract_strided_slice %230 {offsets = [0, 8], sizes = [4, 8], strides = [1, 1]} : vector<4x128xf32> to vector<4x8xf32>
    %249 = vector.extract_strided_slice %230 {offsets = [0, 40], sizes = [4, 8], strides = [1, 1]} : vector<4x128xf32> to vector<4x8xf32>
    %250 = vector.extract_strided_slice %230 {offsets = [0, 72], sizes = [4, 8], strides = [1, 1]} : vector<4x128xf32> to vector<4x8xf32>
    %cst_128 = arith.constant dense<0.000000e+00> : vector<4x4xf32>
    %251 = tpu.matmul %248, %249, %cst_128 {dimension_numbers = #tpu.dot_dimension_numbers<[1], [1], [0], [0], [0, 0, 1, 0], [], []>} : vector<4x8xf32>, vector<4x8xf32>, vector<4x4xf32> -> vector<4x4xf32>
    %cst_129 = arith.constant 0.353553385 : f32
    %252 = vector.broadcast %cst_129 : f32 to vector<4x4xf32>
    %253 = arith.mulf %251, %252 : vector<4x4xf32>
    %cst_130 = arith.constant dense<0xFF800000> : vector<4xf32>
    %254 = vector.multi_reduction <maximumf>, %253, %cst_130 [1] : vector<4x4xf32> to vector<4xf32>
    %255 = vector.shape_cast %254 : vector<4xf32> to vector<4x1xf32>
    %256 = vector.broadcast %255 : vector<4x1xf32> to vector<4x4xf32>
    %257 = arith.subf %253, %256 : vector<4x4xf32>
    %258 = math.exp %257 : vector<4x4xf32>
    %cst_131 = arith.constant dense<0.000000e+00> : vector<4xf32>
    %259 = vector.multi_reduction <add>, %258, %cst_131 [1] : vector<4x4xf32> to vector<4xf32>
    %260 = vector.shape_cast %259 : vector<4xf32> to vector<4x1xf32>
    %261 = tpu.reciprocal %260 {approx = true} : vector<4x1xf32> -> vector<4x1xf32>
    %262 = vector.broadcast %261 : vector<4x1xf32> to vector<4x4xf32>
    %263 = arith.mulf %258, %262 : vector<4x4xf32>
    %cst_132 = arith.constant dense<0.000000e+00> : vector<4x8xf32>
    %264 = tpu.matmul %263, %250, %cst_132 {dimension_numbers = #tpu.dot_dimension_numbers<[1], [0], [0], [1], [0, 0, 1, 1], [], []>} : vector<4x4xf32>, vector<4x8xf32>, vector<4x8xf32> -> vector<4x8xf32>
    %265 = vector.extract_strided_slice %230 {offsets = [0, 16], sizes = [4, 8], strides = [1, 1]} : vector<4x128xf32> to vector<4x8xf32>
    %266 = vector.extract_strided_slice %230 {offsets = [0, 48], sizes = [4, 8], strides = [1, 1]} : vector<4x128xf32> to vector<4x8xf32>
    %267 = vector.extract_strided_slice %230 {offsets = [0, 80], sizes = [4, 8], strides = [1, 1]} : vector<4x128xf32> to vector<4x8xf32>
    %cst_133 = arith.constant dense<0.000000e+00> : vector<4x4xf32>
    %268 = tpu.matmul %265, %266, %cst_133 {dimension_numbers = #tpu.dot_dimension_numbers<[1], [1], [0], [0], [0, 0, 1, 0], [], []>} : vector<4x8xf32>, vector<4x8xf32>, vector<4x4xf32> -> vector<4x4xf32>
    %cst_134 = arith.constant 0.353553385 : f32
    %269 = vector.broadcast %cst_134 : f32 to vector<4x4xf32>
    %270 = arith.mulf %268, %269 : vector<4x4xf32>
    %cst_135 = arith.constant dense<0xFF800000> : vector<4xf32>
    %271 = vector.multi_reduction <maximumf>, %270, %cst_135 [1] : vector<4x4xf32> to vector<4xf32>
    %272 = vector.shape_cast %271 : vector<4xf32> to vector<4x1xf32>
    %273 = vector.broadcast %272 : vector<4x1xf32> to vector<4x4xf32>
    %274 = arith.subf %270, %273 : vector<4x4xf32>
    %275 = math.exp %274 : vector<4x4xf32>
    %cst_136 = arith.constant dense<0.000000e+00> : vector<4xf32>
    %276 = vector.multi_reduction <add>, %275, %cst_136 [1] : vector<4x4xf32> to vector<4xf32>
    %277 = vector.shape_cast %276 : vector<4xf32> to vector<4x1xf32>
    %278 = tpu.reciprocal %277 {approx = true} : vector<4x1xf32> -> vector<4x1xf32>
    %279 = vector.broadcast %278 : vector<4x1xf32> to vector<4x4xf32>
    %280 = arith.mulf %275, %279 : vector<4x4xf32>
    %cst_137 = arith.constant dense<0.000000e+00> : vector<4x8xf32>
    %281 = tpu.matmul %280, %267, %cst_137 {dimension_numbers = #tpu.dot_dimension_numbers<[1], [0], [0], [1], [0, 0, 1, 1], [], []>} : vector<4x4xf32>, vector<4x8xf32>, vector<4x8xf32> -> vector<4x8xf32>
    %282 = vector.extract_strided_slice %230 {offsets = [0, 24], sizes = [4, 8], strides = [1, 1]} : vector<4x128xf32> to vector<4x8xf32>
    %283 = vector.extract_strided_slice %230 {offsets = [0, 56], sizes = [4, 8], strides = [1, 1]} : vector<4x128xf32> to vector<4x8xf32>
    %284 = vector.extract_strided_slice %230 {offsets = [0, 88], sizes = [4, 8], strides = [1, 1]} : vector<4x128xf32> to vector<4x8xf32>
    %cst_138 = arith.constant dense<0.000000e+00> : vector<4x4xf32>
    %285 = tpu.matmul %282, %283, %cst_138 {dimension_numbers = #tpu.dot_dimension_numbers<[1], [1], [0], [0], [0, 0, 1, 0], [], []>} : vector<4x8xf32>, vector<4x8xf32>, vector<4x4xf32> -> vector<4x4xf32>
    %cst_139 = arith.constant 0.353553385 : f32
    %286 = vector.broadcast %cst_139 : f32 to vector<4x4xf32>
    %287 = arith.mulf %285, %286 : vector<4x4xf32>
    %cst_140 = arith.constant dense<0xFF800000> : vector<4xf32>
    %288 = vector.multi_reduction <maximumf>, %287, %cst_140 [1] : vector<4x4xf32> to vector<4xf32>
    %289 = vector.shape_cast %288 : vector<4xf32> to vector<4x1xf32>
    %290 = vector.broadcast %289 : vector<4x1xf32> to vector<4x4xf32>
    %291 = arith.subf %287, %290 : vector<4x4xf32>
    %292 = math.exp %291 : vector<4x4xf32>
    %cst_141 = arith.constant dense<0.000000e+00> : vector<4xf32>
    %293 = vector.multi_reduction <add>, %292, %cst_141 [1] : vector<4x4xf32> to vector<4xf32>
    %294 = vector.shape_cast %293 : vector<4xf32> to vector<4x1xf32>
    %295 = tpu.reciprocal %294 {approx = true} : vector<4x1xf32> -> vector<4x1xf32>
    %296 = vector.broadcast %295 : vector<4x1xf32> to vector<4x4xf32>
    %297 = arith.mulf %292, %296 : vector<4x4xf32>
    %cst_142 = arith.constant dense<0.000000e+00> : vector<4x8xf32>
    %298 = tpu.matmul %297, %284, %cst_142 {dimension_numbers = #tpu.dot_dimension_numbers<[1], [0], [0], [1], [0, 0, 1, 1], [], []>} : vector<4x4xf32>, vector<4x8xf32>, vector<4x8xf32> -> vector<4x8xf32>
    %299 = tpu.concatenate %247, %264, %281, %298 in 1 : vector<4x8xf32>, vector<4x8xf32>, vector<4x8xf32>, vector<4x8xf32> -> vector<4x32xf32>
    %300 = arith.truncf %299 : vector<4x32xf32> to vector<4x32xbf16>
    %c1_143 = arith.constant 1 : index
    %c0_144 = arith.constant 0 : index
    %c0_145 = arith.constant 0 : index
    %301 = vector.load %arg6[%c1_143, %c0_144, %c0_145] : memref<2x32x32xbf16, #tpu.memory_space<vmem>>, vector<1x32x32xbf16>
    %302 = vector.shape_cast %301 : vector<1x32x32xbf16> to vector<32x32xbf16>
    %cst_146 = arith.constant dense<0.000000e+00> : vector<4x32xf32>
    %303 = tpu.matmul %300, %302, %cst_146 {dimension_numbers = #tpu.dot_dimension_numbers<[1], [0], [0], [1], [0, 0, 1, 1], [], []>} : vector<4x32xbf16>, vector<32x32xbf16>, vector<4x32xf32> -> vector<4x32xf32>
    %c1_147 = arith.constant 1 : index
    %c0_148 = arith.constant 0 : index
    %c0_149 = arith.constant 0 : index
    %304 = vector.load %arg7[%c1_147, %c0_148, %c0_149] : memref<2x1x32xf32, #tpu.memory_space<vmem>>, vector<1x1x32xf32>
    %305 = vector.shape_cast %304 : vector<1x1x32xf32> to vector<1x32xf32>
    %306 = vector.broadcast %305 : vector<1x32xf32> to vector<4x32xf32>
    %307 = arith.addf %303, %306 : vector<4x32xf32>
    %308 = arith.addf %198, %307 : vector<4x32xf32>
    %c1_150 = arith.constant 1 : index
    %c0_151 = arith.constant 0 : index
    %c0_152 = arith.constant 0 : index
    %309 = vector.load %arg8[%c1_150, %c0_151, %c0_152] : memref<2x1x32xf32, #tpu.memory_space<vmem>>, vector<1x1x32xf32>
    %310 = vector.shape_cast %309 : vector<1x1x32xf32> to vector<1x32xf32>
    %c1_153 = arith.constant 1 : index
    %c0_154 = arith.constant 0 : index
    %c0_155 = arith.constant 0 : index
    %311 = vector.load %arg9[%c1_153, %c0_154, %c0_155] : memref<2x1x32xf32, #tpu.memory_space<vmem>>, vector<1x1x32xf32>
    %312 = vector.shape_cast %311 : vector<1x1x32xf32> to vector<1x32xf32>
    %cst_156 = arith.constant dense<0.000000e+00> : vector<4xf32>
    %313 = vector.multi_reduction <add>, %308, %cst_156 [1] : vector<4x32xf32> to vector<4xf32>
    %314 = vector.shape_cast %313 : vector<4xf32> to vector<4x1xf32>
    %cst_157 = arith.constant 3.200000e+01 : f32
    %315 = vector.broadcast %cst_157 : f32 to vector<4x1xf32>
    %316 = arith.divf %314, %315 : vector<4x1xf32>
    %317 = vector.broadcast %316 : vector<4x1xf32> to vector<4x32xf32>
    %318 = arith.subf %308, %317 : vector<4x32xf32>
    %319 = arith.mulf %318, %318 : vector<4x32xf32>
    %cst_158 = arith.constant dense<0.000000e+00> : vector<4xf32>
    %320 = vector.multi_reduction <add>, %319, %cst_158 [1] : vector<4x32xf32> to vector<4xf32>
    %321 = vector.shape_cast %320 : vector<4xf32> to vector<4x1xf32>
    %cst_159 = arith.constant 3.100000e+01 : f32
    %322 = vector.broadcast %cst_159 : f32 to vector<4x1xf32>
    %323 = arith.divf %321, %322 : vector<4x1xf32>
    %324 = math.sqrt %323 : vector<4x1xf32>
    %325 = vector.broadcast %310 : vector<1x32xf32> to vector<4x32xf32>
    %326 = arith.mulf %325, %318 : vector<4x32xf32>
    %cst_160 = arith.constant 9.99999997E-7 : f32
    %327 = vector.broadcast %cst_160 : f32 to vector<4x1xf32>
    %328 = arith.addf %324, %327 : vector<4x1xf32>
    %329 = vector.broadcast %328 : vector<4x1xf32> to vector<4x32xf32>
    %330 = arith.divf %326, %329 : vector<4x32xf32>
    %331 = vector.broadcast %312 : vector<1x32xf32> to vector<4x32xf32>
    %332 = arith.addf %330, %331 : vector<4x32xf32>
    %333 = arith.truncf %332 : vector<4x32xf32> to vector<4x32xbf16>
    %cst_161 = arith.constant 0.000000e+00 : f32
    %334 = vector.broadcast %cst_161 : f32 to vector<4x32xf32>
    %c1_162 = arith.constant 1 : index
    %c0_163 = arith.constant 0 : index
    %c0_164 = arith.constant 0 : index
    %335 = vector.load %arg10[%c1_162, %c0_163, %c0_164] : memref<2x32x2048xbf16, #tpu.memory_space<vmem>>, vector<1x32x512xbf16>
    %336 = vector.shape_cast %335 : vector<1x32x512xbf16> to vector<32x512xbf16>
    %cst_165 = arith.constant dense<0.000000e+00> : vector<4x512xf32>
    %337 = tpu.matmul %333, %336, %cst_165 {dimension_numbers = #tpu.dot_dimension_numbers<[1], [0], [0], [1], [0, 0, 1, 1], [], []>} : vector<4x32xbf16>, vector<32x512xbf16>, vector<4x512xf32> -> vector<4x512xf32>
    %c1_166 = arith.constant 1 : index
    %c0_167 = arith.constant 0 : index
    %c0_168 = arith.constant 0 : index
    %338 = vector.load %arg11[%c1_166, %c0_167, %c0_168] : memref<2x1x2048xf32, #tpu.memory_space<vmem>>, vector<1x1x512xf32>
    %339 = vector.shape_cast %338 : vector<1x1x512xf32> to vector<1x512xf32>
    %340 = vector.broadcast %339 : vector<1x512xf32> to vector<4x512xf32>
    %341 = arith.addf %337, %340 : vector<4x512xf32>
    %cst_169 = arith.constant 0.000000e+00 : f32
    %342 = vector.broadcast %cst_169 : f32 to vector<4x512xf32>
    %343 = arith.maximumf %341, %342 : vector<4x512xf32>
    %344 = arith.truncf %343 : vector<4x512xf32> to vector<4x512xbf16>
    %c1_170 = arith.constant 1 : index
    %c0_171 = arith.constant 0 : index
    %c0_172 = arith.constant 0 : index
    %345 = vector.load %arg12[%c1_170, %c0_171, %c0_172] : memref<2x2048x32xbf16, #tpu.memory_space<vmem>>, vector<1x512x32xbf16>
    %346 = vector.shape_cast %345 : vector<1x512x32xbf16> to vector<512x32xbf16>
    %cst_173 = arith.constant dense<0.000000e+00> : vector<4x32xf32>
    %347 = tpu.matmul %344, %346, %cst_173 {dimension_numbers = #tpu.dot_dimension_numbers<[1], [0], [0], [1], [0, 0, 1, 1], [], []>} : vector<4x512xbf16>, vector<512x32xbf16>, vector<4x32xf32> -> vector<4x32xf32>
    %348 = arith.addf %334, %347 : vector<4x32xf32>
    %c1_174 = arith.constant 1 : index
    %c0_175 = arith.constant 0 : index
    %c512_176 = arith.constant 512 : index
    %349 = vector.load %arg10[%c1_174, %c0_175, %c512_176] : memref<2x32x2048xbf16, #tpu.memory_space<vmem>>, vector<1x32x512xbf16>
    %350 = vector.shape_cast %349 : vector<1x32x512xbf16> to vector<32x512xbf16>
    %cst_177 = arith.constant dense<0.000000e+00> : vector<4x512xf32>
    %351 = tpu.matmul %333, %350, %cst_177 {dimension_numbers = #tpu.dot_dimension_numbers<[1], [0], [0], [1], [0, 0, 1, 1], [], []>} : vector<4x32xbf16>, vector<32x512xbf16>, vector<4x512xf32> -> vector<4x512xf32>
    %c1_178 = arith.constant 1 : index
    %c0_179 = arith.constant 0 : index
    %c512_180 = arith.constant 512 : index
    %352 = vector.load %arg11[%c1_178, %c0_179, %c512_180] : memref<2x1x2048xf32, #tpu.memory_space<vmem>>, vector<1x1x512xf32>
    %353 = vector.shape_cast %352 : vector<1x1x512xf32> to vector<1x512xf32>
    %354 = vector.broadcast %353 : vector<1x512xf32> to vector<4x512xf32>
    %355 = arith.addf %351, %354 : vector<4x512xf32>
    %cst_181 = arith.constant 0.000000e+00 : f32
    %356 = vector.broadcast %cst_181 : f32 to vector<4x512xf32>
    %357 = arith.maximumf %355, %356 : vector<4x512xf32>
    %358 = arith.truncf %357 : vector<4x512xf32> to vector<4x512xbf16>
    %c1_182 = arith.constant 1 : index
    %c512_183 = arith.constant 512 : index
    %c0_184 = arith.constant 0 : index
    %359 = vector.load %arg12[%c1_182, %c512_183, %c0_184] : memref<2x2048x32xbf16, #tpu.memory_space<vmem>>, vector<1x512x32xbf16>
    %360 = vector.shape_cast %359 : vector<1x512x32xbf16> to vector<512x32xbf16>
    %cst_185 = arith.constant dense<0.000000e+00> : vector<4x32xf32>
    %361 = tpu.matmul %358, %360, %cst_185 {dimension_numbers = #tpu.dot_dimension_numbers<[1], [0], [0], [1], [0, 0, 1, 1], [], []>} : vector<4x512xbf16>, vector<512x32xbf16>, vector<4x32xf32> -> vector<4x32xf32>
    %362 = arith.addf %348, %361 : vector<4x32xf32>
    %c1_186 = arith.constant 1 : index
    %c0_187 = arith.constant 0 : index
    %c1024_188 = arith.constant 1024 : index
    %363 = vector.load %arg10[%c1_186, %c0_187, %c1024_188] : memref<2x32x2048xbf16, #tpu.memory_space<vmem>>, vector<1x32x512xbf16>
    %364 = vector.shape_cast %363 : vector<1x32x512xbf16> to vector<32x512xbf16>
    %cst_189 = arith.constant dense<0.000000e+00> : vector<4x512xf32>
    %365 = tpu.matmul %333, %364, %cst_189 {dimension_numbers = #tpu.dot_dimension_numbers<[1], [0], [0], [1], [0, 0, 1, 1], [], []>} : vector<4x32xbf16>, vector<32x512xbf16>, vector<4x512xf32> -> vector<4x512xf32>
    %c1_190 = arith.constant 1 : index
    %c0_191 = arith.constant 0 : index
    %c1024_192 = arith.constant 1024 : index
    %366 = vector.load %arg11[%c1_190, %c0_191, %c1024_192] : memref<2x1x2048xf32, #tpu.memory_space<vmem>>, vector<1x1x512xf32>
    %367 = vector.shape_cast %366 : vector<1x1x512xf32> to vector<1x512xf32>
    %368 = vector.broadcast %367 : vector<1x512xf32> to vector<4x512xf32>
    %369 = arith.addf %365, %368 : vector<4x512xf32>
    %cst_193 = arith.constant 0.000000e+00 : f32
    %370 = vector.broadcast %cst_193 : f32 to vector<4x512xf32>
    %371 = arith.maximumf %369, %370 : vector<4x512xf32>
    %372 = arith.truncf %371 : vector<4x512xf32> to vector<4x512xbf16>
    %c1_194 = arith.constant 1 : index
    %c1024_195 = arith.constant 1024 : index
    %c0_196 = arith.constant 0 : index
    %373 = vector.load %arg12[%c1_194, %c1024_195, %c0_196] : memref<2x2048x32xbf16, #tpu.memory_space<vmem>>, vector<1x512x32xbf16>
    %374 = vector.shape_cast %373 : vector<1x512x32xbf16> to vector<512x32xbf16>
    %cst_197 = arith.constant dense<0.000000e+00> : vector<4x32xf32>
    %375 = tpu.matmul %372, %374, %cst_197 {dimension_numbers = #tpu.dot_dimension_numbers<[1], [0], [0], [1], [0, 0, 1, 1], [], []>} : vector<4x512xbf16>, vector<512x32xbf16>, vector<4x32xf32> -> vector<4x32xf32>
    %376 = arith.addf %362, %375 : vector<4x32xf32>
    %c1_198 = arith.constant 1 : index
    %c0_199 = arith.constant 0 : index
    %c1536_200 = arith.constant 1536 : index
    %377 = vector.load %arg10[%c1_198, %c0_199, %c1536_200] : memref<2x32x2048xbf16, #tpu.memory_space<vmem>>, vector<1x32x512xbf16>
    %378 = vector.shape_cast %377 : vector<1x32x512xbf16> to vector<32x512xbf16>
    %cst_201 = arith.constant dense<0.000000e+00> : vector<4x512xf32>
    %379 = tpu.matmul %333, %378, %cst_201 {dimension_numbers = #tpu.dot_dimension_numbers<[1], [0], [0], [1], [0, 0, 1, 1], [], []>} : vector<4x32xbf16>, vector<32x512xbf16>, vector<4x512xf32> -> vector<4x512xf32>
    %c1_202 = arith.constant 1 : index
    %c0_203 = arith.constant 0 : index
    %c1536_204 = arith.constant 1536 : index
    %380 = vector.load %arg11[%c1_202, %c0_203, %c1536_204] : memref<2x1x2048xf32, #tpu.memory_space<vmem>>, vector<1x1x512xf32>
    %381 = vector.shape_cast %380 : vector<1x1x512xf32> to vector<1x512xf32>
    %382 = vector.broadcast %381 : vector<1x512xf32> to vector<4x512xf32>
    %383 = arith.addf %379, %382 : vector<4x512xf32>
    %cst_205 = arith.constant 0.000000e+00 : f32
    %384 = vector.broadcast %cst_205 : f32 to vector<4x512xf32>
    %385 = arith.maximumf %383, %384 : vector<4x512xf32>
    %386 = arith.truncf %385 : vector<4x512xf32> to vector<4x512xbf16>
    %c1_206 = arith.constant 1 : index
    %c1536_207 = arith.constant 1536 : index
    %c0_208 = arith.constant 0 : index
    %387 = vector.load %arg12[%c1_206, %c1536_207, %c0_208] : memref<2x2048x32xbf16, #tpu.memory_space<vmem>>, vector<1x512x32xbf16>
    %388 = vector.shape_cast %387 : vector<1x512x32xbf16> to vector<512x32xbf16>
    %cst_209 = arith.constant dense<0.000000e+00> : vector<4x32xf32>
    %389 = tpu.matmul %386, %388, %cst_209 {dimension_numbers = #tpu.dot_dimension_numbers<[1], [0], [0], [1], [0, 0, 1, 1], [], []>} : vector<4x512xbf16>, vector<512x32xbf16>, vector<4x32xf32> -> vector<4x32xf32>
    %390 = arith.addf %376, %389 : vector<4x32xf32>
    %391 = arith.addf %308, %390 : vector<4x32xf32>
    %c1_210 = arith.constant 1 : index
    %c0_211 = arith.constant 0 : index
    %c0_212 = arith.constant 0 : index
    %392 = vector.load %arg13[%c1_210, %c0_211, %c0_212] : memref<2x1x32xf32, #tpu.memory_space<vmem>>, vector<1x1x32xf32>
    %393 = vector.shape_cast %392 : vector<1x1x32xf32> to vector<1x32xf32>
    %394 = vector.broadcast %393 : vector<1x32xf32> to vector<4x32xf32>
    %395 = arith.addf %391, %394 : vector<4x32xf32>
    %c0_213 = arith.constant 0 : index
    %c0_214 = arith.constant 0 : index
    %c0_215 = arith.constant 0 : index
    %396 = vector.load %arg14[%c0_213, %c0_214, %c0_215] : memref<1x4x32xf32, #tpu.memory_space<vmem>>, vector<1x4x32xf32>
    %397 = vector.shape_cast %396 : vector<1x4x32xf32> to vector<4x32xf32>
    %398 = vector.shape_cast %395 : vector<4x32xf32> to vector<1x4x32xf32>
    tpu.vector_store %arg14[%c0_213, %c0_214, %c0_215], %398 {strides = array<i32>} : memref<1x4x32xf32, #tpu.memory_space<vmem>>, vector<1x4x32xf32>,
    return
  }
  func.func @transform_0(%arg0: i32) -> (i32, i32, i32) {
    %c0_i32 = arith.constant 0 : i32
    %c0_i32_0 = arith.constant 0 : i32
    %c0_i32_1 = arith.constant 0 : i32
    return %arg0, %c0_i32, %c0_i32_0 : i32, i32, i32
  }
  func.func @transform_1(%arg0: i32) -> (i32, i32, i32) {
    %c0_i32 = arith.constant 0 : i32
    %c0_i32_0 = arith.constant 0 : i32
    %c0_i32_1 = arith.constant 0 : i32
    %c0_i32_2 = arith.constant 0 : i32
    return %c0_i32, %c0_i32_0, %c0_i32_1 : i32, i32, i32
  }
  func.func @transform_2(%arg0: i32) -> (i32, i32, i32) {
    %c0_i32 = arith.constant 0 : i32
    %c0_i32_0 = arith.constant 0 : i32
    %c0_i32_1 = arith.constant 0 : i32
    %c0_i32_2 = arith.constant 0 : i32
    return %c0_i32, %c0_i32_0, %c0_i32_1 : i32, i32, i32
  }
  func.func @transform_3(%arg0: i32) -> (i32, i32, i32) {
    %c0_i32 = arith.constant 0 : i32
    %c0_i32_0 = arith.constant 0 : i32
    %c0_i32_1 = arith.constant 0 : i32
    %c0_i32_2 = arith.constant 0 : i32
    return %c0_i32, %c0_i32_0, %c0_i32_1 : i32, i32, i32
  }
  func.func @transform_4(%arg0: i32) -> (i32, i32, i32) {
    %c0_i32 = arith.constant 0 : i32
    %c0_i32_0 = arith.constant 0 : i32
    %c0_i32_1 = arith.constant 0 : i32
    %c0_i32_2 = arith.constant 0 : i32
    return %c0_i32, %c0_i32_0, %c0_i32_1 : i32, i32, i32
  }
  func.func @transform_5(%arg0: i32) -> (i32, i32, i32) {
    %c0_i32 = arith.constant 0 : i32
    %c0_i32_0 = arith.constant 0 : i32
    %c0_i32_1 = arith.constant 0 : i32
    %c0_i32_2 = arith.constant 0 : i32
    return %c0_i32, %c0_i32_0, %c0_i32_1 : i32, i32, i32
  }
  func.func @transform_6(%arg0: i32) -> (i32, i32, i32) {
    %c0_i32 = arith.constant 0 : i32
    %c0_i32_0 = arith.constant 0 : i32
    %c0_i32_1 = arith.constant 0 : i32
    %c0_i32_2 = arith.constant 0 : i32
    return %c0_i32, %c0_i32_0, %c0_i32_1 : i32, i32, i32
  }
  func.func @transform_7(%arg0: i32) -> (i32, i32, i32) {
    %c0_i32 = arith.constant 0 : i32
    %c0_i32_0 = arith.constant 0 : i32
    %c0_i32_1 = arith.constant 0 : i32
    %c0_i32_2 = arith.constant 0 : i32
    return %c0_i32, %c0_i32_0, %c0_i32_1 : i32, i32, i32
  }
  func.func @transform_8(%arg0: i32) -> (i32, i32, i32) {
    %c0_i32 = arith.constant 0 : i32
    %c0_i32_0 = arith.constant 0 : i32
    %c0_i32_1 = arith.constant 0 : i32
    %c0_i32_2 = arith.constant 0 : i32
    return %c0_i32, %c0_i32_0, %c0_i32_1 : i32, i32, i32
  }
  func.func @transform_9(%arg0: i32) -> (i32, i32, i32) {
    %c0_i32 = arith.constant 0 : i32
    %c0_i32_0 = arith.constant 0 : i32
    %c0_i32_1 = arith.constant 0 : i32
    %c0_i32_2 = arith.constant 0 : i32
    return %c0_i32, %c0_i32_0, %c0_i32_1 : i32, i32, i32
  }
  func.func @transform_10(%arg0: i32) -> (i32, i32, i32) {
    %c0_i32 = arith.constant 0 : i32
    %c0_i32_0 = arith.constant 0 : i32
    %c0_i32_1 = arith.constant 0 : i32
    %c0_i32_2 = arith.constant 0 : i32
    return %c0_i32, %c0_i32_0, %c0_i32_1 : i32, i32, i32
  }
  func.func @transform_11(%arg0: i32) -> (i32, i32, i32) {
    %c0_i32 = arith.constant 0 : i32
    %c0_i32_0 = arith.constant 0 : i32
    %c0_i32_1 = arith.constant 0 : i32
    %c0_i32_2 = arith.constant 0 : i32
    return %c0_i32, %c0_i32_0, %c0_i32_1 : i32, i32, i32
  }
  func.func @transform_12(%arg0: i32) -> (i32, i32, i32) {
    %c0_i32 = arith.constant 0 : i32
    %c0_i32_0 = arith.constant 0 : i32
    %c0_i32_1 = arith.constant 0 : i32
    %c0_i32_2 = arith.constant 0 : i32
    return %c0_i32, %c0_i32_0, %c0_i32_1 : i32, i32, i32
  }
  func.func @transform_13(%arg0: i32) -> (i32, i32, i32) {
    %c0_i32 = arith.constant 0 : i32
    %c0_i32_0 = arith.constant 0 : i32
    %c0_i32_1 = arith.constant 0 : i32
    return %arg0, %c0_i32, %c0_i32_0 : i32, i32, i32
  }
}

module attributes {stable_mosaic.version = 11 : i64} {
  func.func @_head_kernel(%arg0: i32, %arg1: memref<2x4x32xf32, #tpu.memory_space<vmem>>, %arg2: memref<2x4x32xf32, #tpu.memory_space<vmem>>, %arg3: memref<1x32xf32, #tpu.memory_space<vmem>>, %arg4: memref<1x32xf32, #tpu.memory_space<vmem>>, %arg5: memref<1x32xf32, #tpu.memory_space<vmem>>, %arg6: memref<1x32xf32, #tpu.memory_space<vmem>>, %arg7: memref<32x128xf32, #tpu.memory_space<vmem>>, %arg8: memref<1x128xf32, #tpu.memory_space<vmem>>, %arg9: memref<2x128xf32, #tpu.memory_space<vmem>>) attributes {dimension_semantics = [#tpu.dimension_semantics<arbitrary>], iteration_bounds = array<i64: 1>, scalar_prefetch = 0 : i64, scratch_operands = 0 : i64, tpu.core_type = #tpu.core_type<tc>, window_params = [{pipeline_mode = #tpu.pipeline_mode<synchronous>, transform_indices = @transform_0, window_bounds = array<i64: 2, 4, 32>}, {pipeline_mode = #tpu.pipeline_mode<synchronous>, transform_indices = @transform_1, window_bounds = array<i64: 2, 4, 32>}, {pipeline_mode = #tpu.pipeline_mode<synchronous>, transform_indices = @transform_2, window_bounds = array<i64: 1, 32>}, {pipeline_mode = #tpu.pipeline_mode<synchronous>, transform_indices = @transform_3, window_bounds = array<i64: 1, 32>}, {pipeline_mode = #tpu.pipeline_mode<synchronous>, transform_indices = @transform_4, window_bounds = array<i64: 1, 32>}, {pipeline_mode = #tpu.pipeline_mode<synchronous>, transform_indices = @transform_5, window_bounds = array<i64: 1, 32>}, {pipeline_mode = #tpu.pipeline_mode<synchronous>, transform_indices = @transform_6, window_bounds = array<i64: 32, 128>}, {pipeline_mode = #tpu.pipeline_mode<synchronous>, transform_indices = @transform_7, window_bounds = array<i64: 1, 128>}, {pipeline_mode = #tpu.pipeline_mode<synchronous>, transform_indices = @transform_8, window_bounds = array<i64: 2, 128>}]} {
    %c0 = arith.constant 0 : index
    %c0_0 = arith.constant 0 : index
    %c0_1 = arith.constant 0 : index
    %0 = vector.load %arg1[%c0, %c0_0, %c0_1] : memref<2x4x32xf32, #tpu.memory_space<vmem>>, vector<2x4x32xf32>
    %c0_2 = arith.constant 0 : index
    %c0_3 = arith.constant 0 : index
    %c0_4 = arith.constant 0 : index
    %1 = vector.load %arg2[%c0_2, %c0_3, %c0_4] : memref<2x4x32xf32, #tpu.memory_space<vmem>>, vector<2x4x32xf32>
    %c0_5 = arith.constant 0 : index
    %c0_6 = arith.constant 0 : index
    %2 = vector.load %arg3[%c0_5, %c0_6] : memref<1x32xf32, #tpu.memory_space<vmem>>, vector<1x32xf32>
    %c0_7 = arith.constant 0 : index
    %c0_8 = arith.constant 0 : index
    %3 = vector.load %arg4[%c0_7, %c0_8] : memref<1x32xf32, #tpu.memory_space<vmem>>, vector<1x32xf32>
    %cst = arith.constant dense<0.000000e+00> : vector<2x4xf32>
    %4 = vector.multi_reduction <add>, %0, %cst [2] : vector<2x4x32xf32> to vector<2x4xf32>
    %5 = vector.shape_cast %4 : vector<2x4xf32> to vector<2x4x1xf32>
    %cst_9 = arith.constant 3.200000e+01 : f32
    %6 = vector.broadcast %cst_9 : f32 to vector<2x4x1xf32>
    %7 = arith.divf %5, %6 : vector<2x4x1xf32>
    %8 = vector.broadcast %7 : vector<2x4x1xf32> to vector<2x4x32xf32>
    %9 = arith.subf %0, %8 : vector<2x4x32xf32>
    %10 = arith.mulf %9, %9 : vector<2x4x32xf32>
    %cst_10 = arith.constant dense<0.000000e+00> : vector<2x4xf32>
    %11 = vector.multi_reduction <add>, %10, %cst_10 [2] : vector<2x4x32xf32> to vector<2x4xf32>
    %12 = vector.shape_cast %11 : vector<2x4xf32> to vector<2x4x1xf32>
    %cst_11 = arith.constant 3.100000e+01 : f32
    %13 = vector.broadcast %cst_11 : f32 to vector<2x4x1xf32>
    %14 = arith.divf %12, %13 : vector<2x4x1xf32>
    %15 = math.sqrt %14 : vector<2x4x1xf32>
    %16 = vector.shape_cast %2 : vector<1x32xf32> to vector<1x1x32xf32>
    %17 = vector.broadcast %16 : vector<1x1x32xf32> to vector<2x4x32xf32>
    %18 = arith.mulf %17, %9 : vector<2x4x32xf32>
    %cst_12 = arith.constant 9.99999997E-7 : f32
    %19 = vector.broadcast %cst_12 : f32 to vector<2x4x1xf32>
    %20 = arith.addf %15, %19 : vector<2x4x1xf32>
    %21 = vector.broadcast %20 : vector<2x4x1xf32> to vector<2x4x32xf32>
    %22 = arith.divf %18, %21 : vector<2x4x32xf32>
    %23 = vector.shape_cast %3 : vector<1x32xf32> to vector<1x1x32xf32>
    %24 = vector.broadcast %23 : vector<1x1x32xf32> to vector<2x4x32xf32>
    %25 = arith.addf %22, %24 : vector<2x4x32xf32>
    %c0_13 = arith.constant 0 : index
    %c0_14 = arith.constant 0 : index
    %26 = vector.load %arg5[%c0_13, %c0_14] : memref<1x32xf32, #tpu.memory_space<vmem>>, vector<1x32xf32>
    %c0_15 = arith.constant 0 : index
    %c0_16 = arith.constant 0 : index
    %27 = vector.load %arg6[%c0_15, %c0_16] : memref<1x32xf32, #tpu.memory_space<vmem>>, vector<1x32xf32>
    %cst_17 = arith.constant dense<0.000000e+00> : vector<2x4xf32>
    %28 = vector.multi_reduction <add>, %1, %cst_17 [2] : vector<2x4x32xf32> to vector<2x4xf32>
    %29 = vector.shape_cast %28 : vector<2x4xf32> to vector<2x4x1xf32>
    %cst_18 = arith.constant 3.200000e+01 : f32
    %30 = vector.broadcast %cst_18 : f32 to vector<2x4x1xf32>
    %31 = arith.divf %29, %30 : vector<2x4x1xf32>
    %32 = vector.broadcast %31 : vector<2x4x1xf32> to vector<2x4x32xf32>
    %33 = arith.subf %1, %32 : vector<2x4x32xf32>
    %34 = arith.mulf %33, %33 : vector<2x4x32xf32>
    %cst_19 = arith.constant dense<0.000000e+00> : vector<2x4xf32>
    %35 = vector.multi_reduction <add>, %34, %cst_19 [2] : vector<2x4x32xf32> to vector<2x4xf32>
    %36 = vector.shape_cast %35 : vector<2x4xf32> to vector<2x4x1xf32>
    %cst_20 = arith.constant 3.100000e+01 : f32
    %37 = vector.broadcast %cst_20 : f32 to vector<2x4x1xf32>
    %38 = arith.divf %36, %37 : vector<2x4x1xf32>
    %39 = math.sqrt %38 : vector<2x4x1xf32>
    %40 = vector.shape_cast %26 : vector<1x32xf32> to vector<1x1x32xf32>
    %41 = vector.broadcast %40 : vector<1x1x32xf32> to vector<2x4x32xf32>
    %42 = arith.mulf %41, %33 : vector<2x4x32xf32>
    %cst_21 = arith.constant 9.99999997E-7 : f32
    %43 = vector.broadcast %cst_21 : f32 to vector<2x4x1xf32>
    %44 = arith.addf %39, %43 : vector<2x4x1xf32>
    %45 = vector.broadcast %44 : vector<2x4x1xf32> to vector<2x4x32xf32>
    %46 = arith.divf %42, %45 : vector<2x4x32xf32>
    %47 = vector.shape_cast %27 : vector<1x32xf32> to vector<1x1x32xf32>
    %48 = vector.broadcast %47 : vector<1x1x32xf32> to vector<2x4x32xf32>
    %49 = arith.addf %46, %48 : vector<2x4x32xf32>
    %cst_22 = arith.constant dense<0.000000e+00> : vector<2x32xf32>
    %50 = vector.multi_reduction <add>, %25, %cst_22 [1] : vector<2x4x32xf32> to vector<2x32xf32>
    %cst_23 = arith.constant dense<0.000000e+00> : vector<2x32xf32>
    %51 = vector.multi_reduction <add>, %49, %cst_23 [1] : vector<2x4x32xf32> to vector<2x32xf32>
    %52 = arith.addf %50, %51 : vector<2x32xf32>
    %cst_24 = arith.constant 1.250000e-01 : f32
    %53 = vector.broadcast %cst_24 : f32 to vector<2x32xf32>
    %54 = arith.mulf %52, %53 : vector<2x32xf32>
    %cst_25 = arith.constant 0.000000e+00 : f32
    %55 = vector.broadcast %cst_25 : f32 to vector<2x32xf32>
    %56 = arith.subf %55, %54 : vector<2x32xf32>
    %57 = math.exp %56 : vector<2x32xf32>
    %cst_26 = arith.constant 1.000000e+00 : f32
    %58 = vector.broadcast %cst_26 : f32 to vector<2x32xf32>
    %59 = arith.addf %58, %57 : vector<2x32xf32>
    %cst_27 = arith.constant 1.000000e+00 : f32
    %60 = vector.broadcast %cst_27 : f32 to vector<2x32xf32>
    %61 = arith.divf %60, %59 : vector<2x32xf32>
    %c0_28 = arith.constant 0 : index
    %c0_29 = arith.constant 0 : index
    %62 = vector.load %arg7[%c0_28, %c0_29] : memref<32x128xf32, #tpu.memory_space<vmem>>, vector<32x128xf32>
    %cst_30 = arith.constant dense<0.000000e+00> : vector<2x128xf32>
    %63 = tpu.matmul %61, %62, %cst_30 {dimension_numbers = #tpu.dot_dimension_numbers<[1], [0], [0], [1], [0, 0, 1, 1], [], []>} : vector<2x32xf32>, vector<32x128xf32>, vector<2x128xf32> -> vector<2x128xf32>
    %c0_31 = arith.constant 0 : index
    %c0_32 = arith.constant 0 : index
    %64 = vector.load %arg8[%c0_31, %c0_32] : memref<1x128xf32, #tpu.memory_space<vmem>>, vector<1x128xf32>
    %65 = vector.broadcast %64 : vector<1x128xf32> to vector<2x128xf32>
    %66 = arith.addf %63, %65 : vector<2x128xf32>
    %c0_33 = arith.constant 0 : index
    %c0_34 = arith.constant 0 : index
    %67 = vector.load %arg9[%c0_33, %c0_34] : memref<2x128xf32, #tpu.memory_space<vmem>>, vector<2x128xf32>
    tpu.vector_store %arg9[%c0_33, %c0_34], %66 {strides = array<i32>} : memref<2x128xf32, #tpu.memory_space<vmem>>, vector<2x128xf32>,
    return
  }
  func.func @transform_0(%arg0: i32) -> (i32, i32, i32) {
    %c0_i32 = arith.constant 0 : i32
    %c0_i32_0 = arith.constant 0 : i32
    %c0_i32_1 = arith.constant 0 : i32
    %c0_i32_2 = arith.constant 0 : i32
    return %c0_i32, %c0_i32_0, %c0_i32_1 : i32, i32, i32
  }
  func.func @transform_1(%arg0: i32) -> (i32, i32, i32) {
    %c0_i32 = arith.constant 0 : i32
    %c0_i32_0 = arith.constant 0 : i32
    %c0_i32_1 = arith.constant 0 : i32
    %c0_i32_2 = arith.constant 0 : i32
    return %c0_i32, %c0_i32_0, %c0_i32_1 : i32, i32, i32
  }
  func.func @transform_2(%arg0: i32) -> (i32, i32) {
    %c0_i32 = arith.constant 0 : i32
    %c0_i32_0 = arith.constant 0 : i32
    %c0_i32_1 = arith.constant 0 : i32
    return %c0_i32, %c0_i32_0 : i32, i32
  }
  func.func @transform_3(%arg0: i32) -> (i32, i32) {
    %c0_i32 = arith.constant 0 : i32
    %c0_i32_0 = arith.constant 0 : i32
    %c0_i32_1 = arith.constant 0 : i32
    return %c0_i32, %c0_i32_0 : i32, i32
  }
  func.func @transform_4(%arg0: i32) -> (i32, i32) {
    %c0_i32 = arith.constant 0 : i32
    %c0_i32_0 = arith.constant 0 : i32
    %c0_i32_1 = arith.constant 0 : i32
    return %c0_i32, %c0_i32_0 : i32, i32
  }
  func.func @transform_5(%arg0: i32) -> (i32, i32) {
    %c0_i32 = arith.constant 0 : i32
    %c0_i32_0 = arith.constant 0 : i32
    %c0_i32_1 = arith.constant 0 : i32
    return %c0_i32, %c0_i32_0 : i32, i32
  }
  func.func @transform_6(%arg0: i32) -> (i32, i32) {
    %c0_i32 = arith.constant 0 : i32
    %c0_i32_0 = arith.constant 0 : i32
    %c0_i32_1 = arith.constant 0 : i32
    return %c0_i32, %c0_i32_0 : i32, i32
  }
  func.func @transform_7(%arg0: i32) -> (i32, i32) {
    %c0_i32 = arith.constant 0 : i32
    %c0_i32_0 = arith.constant 0 : i32
    %c0_i32_1 = arith.constant 0 : i32
    return %c0_i32, %c0_i32_0 : i32, i32
  }
  func.func @transform_8(%arg0: i32) -> (i32, i32) {
    %c0_i32 = arith.constant 0 : i32
    %c0_i32_0 = arith.constant 0 : i32
    %c0_i32_1 = arith.constant 0 : i32
    return %c0_i32, %c0_i32_0 : i32, i32
  }
}

</mosaic_0001>

<llo_original>
// kernel: transformer2e_forward.6
$region0: #{transformer2e_forward.6}
  #allocation0 [shape = 'u32[]', space=smem, size = 0x4, offset = 0x4, fixed_abs, tag = 'smem constant byte address 0x4 - core index']
  #allocation1 [shape = 'u32[72,128]{1,0:T(1,128)}', space=vmem, size = 0x9000, scoped, tag = 'internal scratch']
  %s0 = inlined_call_operand.vmem [shape: f32[16,16], index: 0, kind: input, shape index: {}]
  %s1 = inlined_call_operand.vmem [shape: bf16[16,512], index: 1, kind: input, shape index: {}]
  %s2 = inlined_call_operand.vmem [shape: f32[1,512], index: 2, kind: input, shape index: {}]
  %s3 = inlined_call_operand.vmem [shape: f32[16,512], index: 3, kind: output, shape index: {}]
  %s4 = sld [smem:[#allocation0]]
  $region45: #{transformer2e_forward.6} parent=0
    _
  %s6 = ssub.s32 1, %s4
  %s7 = scalar_select 0, %s6, %s4
  loop: start=0, step=1, limit=4
  $region2: #{transformer2e_forward.6} parent=0 // loop_pre_header
    _
  $region3: #{transformer2e_forward.6} parent=0 // loop_header
    %s9 = sphi 0, %s13
    %p10 = scmp.ge.s32.totalorder %s9, 4
    %s19 = sphi 0, %s21
    %s22 = sphi 0, %s19
    %s23 = sphi 0, %s22
    %s39 = sphi 0, %s23
    %s43 = sphi 0, %s43
    %s45 = sphi 0, %s43
    %s46 = sphi 0, %s45
    %s60 = sphi 0, %s46
    %s64 = sphi 0, %s64
    %s66 = sphi 0, %s64
    %s67 = sphi 0, %s66
    %s81 = sphi 0, %s67
    %s87 = sphi 0, %s89
    %s90 = sphi 0, %s87
    %s91 = sphi 0, %s90
    %s107 = sphi 0, %s91
  $region4: #{transformer2e_forward.6} parent=0 // loop_header_branch
    %12 = sbr.rel (%p10) target = $region8
  $region5: #{transformer2e_forward.6} parent=0 // loop_body
    %s14 = ssub.s32 %s9, 1
    %s15 = ssub.s32 %s9, 2
    %s16 = sadd.s32 %s9, 1
    %s17 = ssub.s32 %s9, %s16
    %p18 = scmp.eq.s32.totalorder %s17, 0
    %s20 = sadd.s32 %s19, 1
    %s21 = scalar_select %p18, %s19, %s20
    %p24 = pneg %p18
    %p25 = scmp.eq.s32.totalorder %s9, 1
    %p26 = por %p24, %p25
    %p27 = scmp.ne.s32.totalorder %s19, %s22
    %p28 = scmp.eq.s32.totalorder %s9, 0
    %p29 = por %p27, %p28
    %p30 = scmp.ne.s32.totalorder %s19, %s22
    %p31 = scmp.eq.s32.totalorder %s14, 1
    %p32 = por %p30, %p31
    %p33 = scmp.ne.s32.totalorder %s22, %s23
    %p34 = scmp.eq.s32.totalorder %s14, 0
    %p35 = por %p33, %p34
    %p36 = scmp.ne.s32.totalorder %s22, %s23
    %p37 = scmp.eq.s32.totalorder %s15, 1
    %p38 = por %p36, %p37
    %p40 = scmp.ne.s32.totalorder %s23, %s39
    %p41 = scmp.eq.s32.totalorder %s15, 0
    %p42 = por %p40, %p41
    %s44 = sadd.s32 %s43, 1
    %p47 = scmp.eq.s32.totalorder %s9, 1
    %p48 = scmp.ne.s32.totalorder %s43, %s45
    %p49 = scmp.eq.s32.totalorder %s9, 0
    %p50 = por %p48, %p49
    %p51 = scmp.ne.s32.totalorder %s43, %s45
    %p52 = scmp.eq.s32.totalorder %s14, 1
    %p53 = por %p51, %p52
    %p54 = scmp.ne.s32.totalorder %s45, %s46
    %p55 = scmp.eq.s32.totalorder %s14, 0
    %p56 = por %p54, %p55
    %p57 = scmp.ne.s32.totalorder %s45, %s46
    %p58 = scmp.eq.s32.totalorder %s15, 1
    %p59 = por %p57, %p58
    %p61 = scmp.ne.s32.totalorder %s46, %s60
    %p62 = scmp.eq.s32.totalorder %s15, 0
    %p63 = por %p61, %p62
    %s65 = sadd.s32 %s64, 1
    %p68 = scmp.eq.s32.totalorder %s9, 1
    %p69 = scmp.ne.s32.totalorder %s64, %s66
    %p70 = scmp.eq.s32.totalorder %s9, 0
    %p71 = por %p69, %p70
    %p72 = scmp.ne.s32.totalorder %s64, %s66
    %p73 = scmp.eq.s32.totalorder %s14, 1
    %p74 = por %p72, %p73
    %p75 = scmp.ne.s32.totalorder %s66, %s67
    %p76 = scmp.eq.s32.totalorder %s14, 0
    %p77 = por %p75, %p76
    %p78 = scmp.ne.s32.totalorder %s66, %s67
    %p79 = scmp.eq.s32.totalorder %s15, 1
    %p80 = por %p78, %p79
    %p82 = scmp.ne.s32.totalorder %s67, %s81
    %p83 = scmp.eq.s32.totalorder %s15, 0
    %p84 = por %p82, %p83
    %s85 = ssub.s32 %s9, %s16
    %p86 = scmp.eq.s32.totalorder %s85, 0
    %s88 = sadd.s32 %s87, 1
    %s89 = scalar_select %p86, %s87, %s88
    %p92 = pneg %p86
    %p93 = scmp.eq.s32.totalorder %s9, 1
    %p94 = por %p92, %p93
    %p95 = scmp.ne.s32.totalorder %s87, %s90
    %p96 = scmp.eq.s32.totalorder %s9, 0
    %p97 = por %p95, %p96
    %p98 = scmp.ne.s32.totalorder %s87, %s90
    %p99 = scmp.eq.s32.totalorder %s14, 1
    %p100 = por %p98, %p99
    %p101 = scmp.ne.s32.totalorder %s90, %s91
    %p102 = scmp.eq.s32.totalorder %s14, 0
    %p103 = por %p101, %p102
    %p104 = scmp.ne.s32.totalorder %s90, %s91
    %p105 = scmp.eq.s32.totalorder %s15, 1
    %p106 = por %p104, %p105
    %p108 = scmp.ne.s32.totalorder %s91, %s107
    %p109 = scmp.eq.s32.totalorder %s15, 0
    %p110 = por %p108, %p109
    %p111 = scmp.le.s32.totalorder 1, %s9
    %p112 = scmp.lt.s32.totalorder %s9, 3
    %p113 = pnand %p111, %p112
    %p114 = pneg %p113
    // Predicated region
    $region9: #{transformer2e_forward.6} parent=5 // pred_check
      _
    $region10: #{transformer2e_forward.6} parent=5 // pred_check_branch
      %116 = sbr.rel (%p113) target = $region12
    $region11: #{transformer2e_forward.6} parent=5 // pred_region
      %s117 = ssub.s32 %s9, 1
      // Predicated region
      $region13: #{transformer2e_forward.6} parent=11 // pred_check
        %p118 = pneg %p56
      $region14: #{transformer2e_forward.6} parent=11 // pred_check_branch
        %120 = sbr.rel (%p118) target = $region16
      $region15: #{transformer2e_forward.6} parent=11 // pred_region
        _
      $region16: #{transformer2e_forward.6} parent=11 // pred_fallthru
        _
      // Predicated region
      $region17: #{transformer2e_forward.6} parent=11 // pred_check
        %p121 = pneg %p77
      $region18: #{transformer2e_forward.6} parent=11 // pred_check_branch
        %123 = sbr.rel (%p121) target = $region20
      $region19: #{transformer2e_forward.6} parent=11 // pred_region
        _
      $region20: #{transformer2e_forward.6} parent=11 // pred_fallthru
        _
    $region12: #{transformer2e_forward.6} parent=5 // pred_fallthru
      _
    %p124 = scmp.lt.s32.totalorder %s9, 2
    // Predicated region
    $region21: #{transformer2e_forward.6} parent=5 // pred_check
      %p125 = pneg %p124
    $region22: #{transformer2e_forward.6} parent=5 // pred_check_branch
      %127 = sbr.rel (%p125) target = $region24
    $region23: #{transformer2e_forward.6} parent=5 // pred_region
      // Predicated region
      $region25: #{transformer2e_forward.6} parent=23 // pred_check
        %p128 = pneg %p29
      $region26: #{transformer2e_forward.6} parent=23 // pred_check_branch
        %130 = sbr.rel (%p128) target = $region28
      $region27: #{transformer2e_forward.6} parent=23 // pred_region
        %p131 = scmp.lt.s32.totalorder %s9, 1
        %s132 = scalar_select %p131, %s9, 1
        %s133 = smul.addr %s132, 8
        %s134 = scalar_lea.vmem %s0, %s133
      $region28: #{transformer2e_forward.6} parent=23 // pred_fallthru
        _
    $region24: #{transformer2e_forward.6} parent=5 // pred_fallthru
      _
    %p135 = scmp.le.s32.totalorder 1, %s9
    %p136 = scmp.lt.s32.totalorder %s9, 3
    %p137 = pnand %p135, %p136
    %p138 = pneg %p137
    // Predicated region
    $region29: #{transformer2e_forward.6} parent=5 // pred_check
      _
    $region30: #{transformer2e_forward.6} parent=5 // pred_check_branch
      %140 = sbr.rel (%p137) target = $region32
    $region31: #{transformer2e_forward.6} parent=5 // pred_region
      %s141 = ssub.s32 %s9, 1
      %p142 = scmp.lt.s32.totalorder %s14, 1
      %s143 = scalar_select %p142, %s14, 1
      %s144 = smul.addr %s143, 8
      %s145 = scalar_lea.vmem %s0, %s144
      %p146 = pneg %p35
      %p147 = pneg %p32
      %p148 = pneg %p56
      %p149 = pneg %p53
      %p150 = pneg %p77
      %p151 = pneg %p74
      %p152 = pneg %p103
      %p153 = pneg %p100
      %p154 = scmp.lt.s32.totalorder %s14, 1
      %s155 = scalar_select %p154, %s14, 1
      %s156 = smul.addr %s155, 4
      %s157 = smul.addr %s156, 8
      %s158 = scalar_lea.vmem %s3, %s157
      %p159 = scmp.lt.s32.totalorder %s14, 1
      %s160 = scalar_select %p159, %s14, 1
      %s161 = smul.addr %s160, 8
      %s162 = scalar_lea.vmem %s0, %s161
      %p163 = scmp.lt.s32.totalorder %s14, 1
      %s164 = scalar_select %p163, %s14, 1
      %s165 = smul.addr %s164, 4
      %s166 = smul.addr %s165, 8
      %s167 = scalar_lea.vmem %s3, %s166
      %v169 = vld [vmem:[%s162] sm:$0xff]
      %v170 = vpack.c.bf16 %v169, %v169
      %v171 = vld [vmem:[%s1] sm:$0xff]
      %v172 = vld [vmem:[%s1 + $0x8] sm:$0xff]
      %v173 = vld [vmem:[%s1 + $0x10] sm:$0xff]
      %v174 = vld [vmem:[%s1 + $0x18] sm:$0xff]
      %v175 = vld [vmem:[%s2] sm:$0xf]
      %v177 = vperm.slane %v175, 0
      %v178 = vperm.slane %v175, 1
      %v179 = vperm.slane %v175, 2
      %v180 = vperm.slane %v175, 3
      %v189 = vunpack.c.l.b16 %v171
      %v190 = vunpack.c.h.b16 %v171
      %v191 = vunpack.c.l.b16 %v172
      %v192 = vunpack.c.h.b16 %v172
      %v193 = vunpack.c.l.b16 %v173
      %v194 = vunpack.c.h.b16 %v173
      %v195 = vunpack.c.l.b16 %v174
      %v196 = vunpack.c.h.b16 %v174
      %v197 = vpack.c.b16 %v193, %v189
      %v198 = vpack.c.b16 %v194, %v190
      %v199 = vpack.c.b16 %v195, %v191
      %v200 = vpack.c.b16 %v196, %v192
      %vm205 = vcmask 130048
      %v207 = vsel %vm205, %v170, 0
      %209 = vmatpush.bf16.msra.mxu0 0
      %210 = vmatpush.bf16.msra.mxu0 0
      %211 = vmatpush.bf16.msra.mxu0 0
      %212 = vmatpush.bf16.msra.mxu0 0
      %213 = vmatpush.bf16.msra.mxu0 0
      %214 = vmatpush.bf16.msra.mxu0 0
      %215 = vmatpush.bf16.msra.mxu0 0
      %216 = vmatpush.bf16.msra.mxu0 %v197
      %217 = vmatmul.bf16.gmra.mxu0 %v207
      %v218 = vpop.f32.mrf.mxu0
      %v219 = vadd.f32 %v177, %v218
      %v220 = vpop.f32.mrf.mxu0
      %221 = vdwg.mxu0
      %222 = vmatpush.bf16.msra.mxu0 0
      %223 = vmatpush.bf16.msra.mxu0 0
      %224 = vmatpush.bf16.msra.mxu0 0
      %225 = vmatpush.bf16.msra.mxu0 0
      %226 = vmatpush.bf16.msra.mxu0 0
      %227 = vmatpush.bf16.msra.mxu0 0
      %228 = vmatpush.bf16.msra.mxu0 0
      %229 = vmatpush.bf16.msra.mxu0 %v198
      %230 = vmatmul.bf16.gmra.mxu0 %v207
      %v231 = vpop.f32.mrf.mxu0
      %v232 = vadd.f32 %v178, %v231
      %v233 = vpop.f32.mrf.mxu0
      %234 = vdwg.mxu0
      %235 = vmatpush.bf16.msra.mxu0 0
      %236 = vmatpush.bf16.msra.mxu0 0
      %237 = vmatpush.bf16.msra.mxu0 0
      %238 = vmatpush.bf16.msra.mxu0 0
      %239 = vmatpush.bf16.msra.mxu0 0
      %240 = vmatpush.bf16.msra.mxu0 0
      %241 = vmatpush.bf16.msra.mxu0 0
      %242 = vmatpush.bf16.msra.mxu0 %v199
      %243 = vmatmul.bf16.gmra.mxu0 %v207
      %v244 = vpop.f32.mrf.mxu0
      %v245 = vadd.f32 %v179, %v244
      %v246 = vpop.f32.mrf.mxu0
      %247 = vdwg.mxu0
      %248 = vmatpush.bf16.msra.mxu0 0
      %249 = vmatpush.bf16.msra.mxu0 0
      %250 = vmatpush.bf16.msra.mxu0 0
      %251 = vmatpush.bf16.msra.mxu0 0
      %252 = vmatpush.bf16.msra.mxu0 0
      %253 = vmatpush.bf16.msra.mxu0 0
      %254 = vmatpush.bf16.msra.mxu0 0
      %255 = vmatpush.bf16.msra.mxu0 %v200
      %256 = vmatmul.bf16.gmra.mxu0 %v207
      %v257 = vpop.f32.mrf.mxu0
      %v258 = vadd.f32 %v180, %v257
      %v259 = vpop.f32.mrf.mxu0
      %260 = vdwg.mxu0
      %261 = vst [vmem:[%s167] sm:$0xff] %v219
      %262 = vst [vmem:[%s167 + $0x8] sm:$0xff] %v232
      %263 = vst [vmem:[%s167 + $0x10] sm:$0xff] %v245
      %264 = vst [vmem:[%s167 + $0x18] sm:$0xff] %v258
      %p265 = scmp.lt.s32.totalorder %s14, 1
      %s266 = scalar_select %p265, %s14, 1
      %s267 = smul.addr %s266, 4
      %s268 = smul.addr %s267, 8
      %s269 = scalar_lea.vmem %s3, %s268
      // Predicated region
      $region33: #{transformer2e_forward.6} parent=31 // pred_check
        %p270 = pneg %p100
      $region34: #{transformer2e_forward.6} parent=31 // pred_check_branch
        %272 = sbr.rel (%p270) target = $region36
      $region35: #{transformer2e_forward.6} parent=31 // pred_region
        _
      $region36: #{transformer2e_forward.6} parent=31 // pred_fallthru
        _
    $region32: #{transformer2e_forward.6} parent=5 // pred_fallthru
      _
    %p273 = scmp.le.s32.totalorder 2, %s9
    // Predicated region
    $region37: #{transformer2e_forward.6} parent=5 // pred_check
      %p274 = pneg %p273
    $region38: #{transformer2e_forward.6} parent=5 // pred_check_branch
      %276 = sbr.rel (%p274) target = $region40
    $region39: #{transformer2e_forward.6} parent=5 // pred_region
      %s277 = ssub.s32 %s9, 2
      // Predicated region
      $region41: #{transformer2e_forward.6} parent=39 // pred_check
        %p278 = pneg %p106
      $region42: #{transformer2e_forward.6} parent=39 // pred_check_branch
        %280 = sbr.rel (%p278) target = $region44
      $region43: #{transformer2e_forward.6} parent=39 // pred_region
        %p281 = scmp.lt.s32.totalorder %s15, 1
        %s282 = scalar_select %p281, %s15, 1
        %s283 = smul.addr %s282, 4
        %s284 = smul.addr %s283, 8
        %s285 = scalar_lea.vmem %s3, %s284
      $region44: #{transformer2e_forward.6} parent=39 // pred_fallthru
        _
    $region40: #{transformer2e_forward.6} parent=5 // pred_fallthru
      _
  $region6: #{transformer2e_forward.6} parent=0 // loop_footer
    %s13 = sadd.s32 1, %s9
  $region7: #{transformer2e_forward.6} parent=0 // loop_footer_branch
    %8 = sbr.rel target = $region3
  $region8: #{transformer2e_forward.6} parent=0 // loop_exit
    _

// kernel: transformer2e_forward.9
$region0: #{transformer2e_forward.9}
  #allocation0 [shape = 'u32[]', space=smem, size = 0x4, offset = 0x4, fixed_abs, tag = 'smem constant byte address 0x4 - core index']
  #allocation1 [shape = 'u32[72,128]{1,0:T(1,128)}', space=vmem, size = 0x9000, scoped, tag = 'internal scratch']
  %s0 = inlined_call_operand.vmem [shape: f32[2,4,512], index: 0, kind: input, shape index: {}]
  %s1 = inlined_call_operand.vmem [shape: bf16[512,32], index: 1, kind: input, shape index: {}]
  %s2 = inlined_call_operand.vmem [shape: f32[1,32], index: 2, kind: input, shape index: {}]
  %s3 = inlined_call_operand.vmem [shape: f32[4,32], index: 3, kind: input, shape index: {}]
  %s4 = inlined_call_operand.vmem [shape: f32[2,4,32], index: 4, kind: output, shape index: {}]
  %s5 = sld [smem:[#allocation0]]
  $region49: #{transformer2e_forward.9} parent=0
    _
  %s7 = ssub.s32 1, %s5
  %s8 = scalar_select 0, %s7, %s5
  loop: start=0, step=1, limit=4
  $region2: #{transformer2e_forward.9} parent=0 // loop_pre_header
    _
  $region3: #{transformer2e_forward.9} parent=0 // loop_header
    %s10 = sphi 0, %s14
    %p11 = scmp.ge.s32.totalorder %s10, 4
    %s20 = sphi 0, %s22
    %s23 = sphi 0, %s20
    %s24 = sphi 0, %s23
    %s40 = sphi 0, %s24
    %s44 = sphi 0, %s44
    %s46 = sphi 0, %s44
    %s47 = sphi 0, %s46
    %s61 = sphi 0, %s47
    %s65 = sphi 0, %s65
    %s67 = sphi 0, %s65
    %s68 = sphi 0, %s67
    %s82 = sphi 0, %s68
    %s86 = sphi 0, %s86
    %s88 = sphi 0, %s86
    %s89 = sphi 0, %s88
    %s103 = sphi 0, %s89
    %s109 = sphi 0, %s111
    %s112 = sphi 0, %s109
    %s113 = sphi 0, %s112
    %s129 = sphi 0, %s113
  $region4: #{transformer2e_forward.9} parent=0 // loop_header_branch
    %13 = sbr.rel (%p11) target = $region8
  $region5: #{transformer2e_forward.9} parent=0 // loop_body
    %s15 = ssub.s32 %s10, 1
    %s16 = ssub.s32 %s10, 2
    %s17 = sadd.s32 %s10, 1
    %s18 = ssub.s32 %s10, %s17
    %p19 = scmp.eq.s32.totalorder %s18, 0
    %s21 = sadd.s32 %s20, 1
    %s22 = scalar_select %p19, %s20, %s21
    %p25 = pneg %p19
    %p26 = scmp.eq.s32.totalorder %s10, 1
    %p27 = por %p25, %p26
    %p28 = scmp.ne.s32.totalorder %s20, %s23
    %p29 = scmp.eq.s32.totalorder %s10, 0
    %p30 = por %p28, %p29
    %p31 = scmp.ne.s32.totalorder %s20, %s23
    %p32 = scmp.eq.s32.totalorder %s15, 1
    %p33 = por %p31, %p32
    %p34 = scmp.ne.s32.totalorder %s23, %s24
    %p35 = scmp.eq.s32.totalorder %s15, 0
    %p36 = por %p34, %p35
    %p37 = scmp.ne.s32.totalorder %s23, %s24
    %p38 = scmp.eq.s32.totalorder %s16, 1
    %p39 = por %p37, %p38
    %p41 = scmp.ne.s32.totalorder %s24, %s40
    %p42 = scmp.eq.s32.totalorder %s16, 0
    %p43 = por %p41, %p42
    %s45 = sadd.s32 %s44, 1
    %p48 = scmp.eq.s32.totalorder %s10, 1
    %p49 = scmp.ne.s32.totalorder %s44, %s46
    %p50 = scmp.eq.s32.totalorder %s10, 0
    %p51 = por %p49, %p50
    %p52 = scmp.ne.s32.totalorder %s44, %s46
    %p53 = scmp.eq.s32.totalorder %s15, 1
    %p54 = por %p52, %p53
    %p55 = scmp.ne.s32.totalorder %s46, %s47
    %p56 = scmp.eq.s32.totalorder %s15, 0
    %p57 = por %p55, %p56
    %p58 = scmp.ne.s32.totalorder %s46, %s47
    %p59 = scmp.eq.s32.totalorder %s16, 1
    %p60 = por %p58, %p59
    %p62 = scmp.ne.s32.totalorder %s47, %s61
    %p63 = scmp.eq.s32.totalorder %s16, 0
    %p64 = por %p62, %p63
    %s66 = sadd.s32 %s65, 1
    %p69 = scmp.eq.s32.totalorder %s10, 1
    %p70 = scmp.ne.s32.totalorder %s65, %s67
    %p71 = scmp.eq.s32.totalorder %s10, 0
    %p72 = por %p70, %p71
    %p73 = scmp.ne.s32.totalorder %s65, %s67
    %p74 = scmp.eq.s32.totalorder %s15, 1
    %p75 = por %p73, %p74
    %p76 = scmp.ne.s32.totalorder %s67, %s68
    %p77 = scmp.eq.s32.totalorder %s15, 0
    %p78 = por %p76, %p77
    %p79 = scmp.ne.s32.totalorder %s67, %s68
    %p80 = scmp.eq.s32.totalorder %s16, 1
    %p81 = por %p79, %p80
    %p83 = scmp.ne.s32.totalorder %s68, %s82
    %p84 = scmp.eq.s32.totalorder %s16, 0
    %p85 = por %p83, %p84
    %s87 = sadd.s32 %s86, 1
    %p90 = scmp.eq.s32.totalorder %s10, 1
    %p91 = scmp.ne.s32.totalorder %s86, %s88
    %p92 = scmp.eq.s32.totalorder %s10, 0
    %p93 = por %p91, %p92
    %p94 = scmp.ne.s32.totalorder %s86, %s88
    %p95 = scmp.eq.s32.totalorder %s15, 1
    %p96 = por %p94, %p95
    %p97 = scmp.ne.s32.totalorder %s88, %s89
    %p98 = scmp.eq.s32.totalorder %s15, 0
    %p99 = por %p97, %p98
    %p100 = scmp.ne.s32.totalorder %s88, %s89
    %p101 = scmp.eq.s32.totalorder %s16, 1
    %p102 = por %p100, %p101
    %p104 = scmp.ne.s32.totalorder %s89, %s103
    %p105 = scmp.eq.s32.totalorder %s16, 0
    %p106 = por %p104, %p105
    %s107 = ssub.s32 %s10, %s17
    %p108 = scmp.eq.s32.totalorder %s107, 0
    %s110 = sadd.s32 %s109, 1
    %s111 = scalar_select %p108, %s109, %s110
    %p114 = pneg %p108
    %p115 = scmp.eq.s32.totalorder %s10, 1
    %p116 = por %p114, %p115
    %p117 = scmp.ne.s32.totalorder %s109, %s112
    %p118 = scmp.eq.s32.totalorder %s10, 0
    %p119 = por %p117, %p118
    %p120 = scmp.ne.s32.totalorder %s109, %s112
    %p121 = scmp.eq.s32.totalorder %s15, 1
    %p122 = por %p120, %p121
    %p123 = scmp.ne.s32.totalorder %s112, %s113
    %p124 = scmp.eq.s32.totalorder %s15, 0
    %p125 = por %p123, %p124
    %p126 = scmp.ne.s32.totalorder %s112, %s113
    %p127 = scmp.eq.s32.totalorder %s16, 1
    %p128 = por %p126, %p127
    %p130 = scmp.ne.s32.totalorder %s113, %s129
    %p131 = scmp.eq.s32.totalorder %s16, 0
    %p132 = por %p130, %p131
    %p133 = scmp.le.s32.totalorder 1, %s10
    %p134 = scmp.lt.s32.totalorder %s10, 3
    %p135 = pnand %p133, %p134
    %p136 = pneg %p135
    // Predicated region
    $region9: #{transformer2e_forward.9} parent=5 // pred_check
      _
    $region10: #{transformer2e_forward.9} parent=5 // pred_check_branch
      %138 = sbr.rel (%p135) target = $region12
    $region11: #{transformer2e_forward.9} parent=5 // pred_region
      %s139 = ssub.s32 %s10, 1
      // Predicated region
      $region13: #{transformer2e_forward.9} parent=11 // pred_check
        %p140 = pneg %p57
      $region14: #{transformer2e_forward.9} parent=11 // pred_check_branch
        %142 = sbr.rel (%p140) target = $region16
      $region15: #{transformer2e_forward.9} parent=11 // pred_region
        _
      $region16: #{transformer2e_forward.9} parent=11 // pred_fallthru
        _
      // Predicated region
      $region17: #{transformer2e_forward.9} parent=11 // pred_check
        %p143 = pneg %p78
      $region18: #{transformer2e_forward.9} parent=11 // pred_check_branch
        %145 = sbr.rel (%p143) target = $region20
      $region19: #{transformer2e_forward.9} parent=11 // pred_region
        _
      $region20: #{transformer2e_forward.9} parent=11 // pred_fallthru
        _
      // Predicated region
      $region21: #{transformer2e_forward.9} parent=11 // pred_check
        %p146 = pneg %p99
      $region22: #{transformer2e_forward.9} parent=11 // pred_check_branch
        %148 = sbr.rel (%p146) target = $region24
      $region23: #{transformer2e_forward.9} parent=11 // pred_region
        _
      $region24: #{transformer2e_forward.9} parent=11 // pred_fallthru
        _
    $region12: #{transformer2e_forward.9} parent=5 // pred_fallthru
      _
    %p149 = scmp.lt.s32.totalorder %s10, 2
    // Predicated region
    $region25: #{transformer2e_forward.9} parent=5 // pred_check
      %p150 = pneg %p149
    $region26: #{transformer2e_forward.9} parent=5 // pred_check_branch
      %152 = sbr.rel (%p150) target = $region28
    $region27: #{transformer2e_forward.9} parent=5 // pred_region
      // Predicated region
      $region29: #{transformer2e_forward.9} parent=27 // pred_check
        %p153 = pneg %p30
      $region30: #{transformer2e_forward.9} parent=27 // pred_check_branch
        %155 = sbr.rel (%p153) target = $region32
      $region31: #{transformer2e_forward.9} parent=27 // pred_region
        %p156 = scmp.lt.s32.totalorder %s10, 1
        %s157 = scalar_select %p156, %s10, 1
        %s158 = smul.addr %s157, 4
        %s159 = smul.addr %s158, 4
        %s160 = scalar_lea.vmem %s0, %s159
      $region32: #{transformer2e_forward.9} parent=27 // pred_fallthru
        _
    $region28: #{transformer2e_forward.9} parent=5 // pred_fallthru
      _
    %p161 = scmp.le.s32.totalorder 1, %s10
    %p162 = scmp.lt.s32.totalorder %s10, 3
    %p163 = pnand %p161, %p162
    %p164 = pneg %p163
    // Predicated region
    $region33: #{transformer2e_forward.9} parent=5 // pred_check
      _
    $region34: #{transformer2e_forward.9} parent=5 // pred_check_branch
      %166 = sbr.rel (%p163) target = $region36
    $region35: #{transformer2e_forward.9} parent=5 // pred_region
      %s167 = ssub.s32 %s10, 1
      %p168 = scmp.lt.s32.totalorder %s15, 1
      %s169 = scalar_select %p168, %s15, 1
      %s170 = smul.addr %s169, 4
      %s171 = smul.addr %s170, 4
      %s172 = scalar_lea.vmem %s0, %s171
      %p173 = pneg %p36
      %p174 = pneg %p33
      %p175 = pneg %p57
      %p176 = pneg %p54
      %p177 = pneg %p78
      %p178 = pneg %p75
      %p179 = pneg %p99
      %p180 = pneg %p96
      %p181 = pneg %p125
      %p182 = pneg %p122
      %p183 = scmp.lt.s32.totalorder %s15, 1
      %s184 = scalar_select %p183, %s15, 1
      %s185 = smul.addr %s184, 4
      %s186 = scalar_lea.vmem %s4, %s185
      %p187 = scmp.lt.s32.totalorder %s15, 1
      %s188 = scalar_select %p187, %s15, 1
      %s189 = smul.addr %s188, 4
      %s190 = smul.addr %s189, 4
      %s191 = scalar_lea.vmem %s0, %s190
      %p192 = scmp.lt.s32.totalorder %s15, 1
      %s193 = scalar_select %p192, %s15, 1
      %s194 = smul.addr %s193, 4
      %s195 = scalar_lea.vmem %s4, %s194
      %v196 = vld [vmem:[%s191] sm:$0xff]
      %v197 = vld [vmem:[%s191 + $0x8] sm:$0xff]
      %200 = vst [vmem:[#allocation1] ss:$2 sm:$0xff] %v196
      %s201 = scalar_lea.vmem [#allocation1], 16
      %202 = vst [vmem:[%s201] ss:$2 sm:$0xff] %v197
      %v203 = vld.sshfl [vmem:[#allocation1] sm:$0xff pattern:$0x75316420]
      %v204 = vld.sshfl [vmem:[#allocation1 + $0x8] sm:$0xff pattern:$0x75316420]
      %v205 = vld.sshfl [vmem:[#allocation1 + $0x10] sm:$0xff pattern:$0x75316420]
      %v206 = vld.sshfl [vmem:[#allocation1 + $0x18] sm:$0xff pattern:$0x75316420]
      %v211 = vpack.c.bf16 %v203, %v203
      %v212 = vpack.c.bf16 %v204, %v204
      %v213 = vpack.c.bf16 %v205, %v205
      %v214 = vpack.c.bf16 %v206, %v206
      %v215 = vld [vmem:[%s1] sm:$0xf]
      %v216 = vld [vmem:[%s1 + $0x4] sm:$0xf]
      %v217 = vld [vmem:[%s1 + $0x8] sm:$0xf]
      %v218 = vld [vmem:[%s1 + $0xc] sm:$0xf]
      %v219 = vld [vmem:[%s1 + $0x10] sm:$0xf]
      %v220 = vld [vmem:[%s1 + $0x14] sm:$0xf]
      %v221 = vld [vmem:[%s1 + $0x18] sm:$0xf]
      %v222 = vld [vmem:[%s1 + $0x1c] sm:$0xf]
      %v223 = vld [vmem:[%s1 + $0x20] sm:$0xf]
      %v224 = vld [vmem:[%s1 + $0x24] sm:$0xf]
      %v225 = vld [vmem:[%s1 + $0x28] sm:$0xf]
      %v226 = vld [vmem:[%s1 + $0x2c] sm:$0xf]
      %v227 = vld [vmem:[%s1 + $0x30] sm:$0xf]
      %v228 = vld [vmem:[%s1 + $0x34] sm:$0xf]
      %v229 = vld [vmem:[%s1 + $0x38] sm:$0xf]
      %v230 = vld [vmem:[%s1 + $0x3c] sm:$0xf]
      %v231 = vld [vmem:[%s1 + $0x40] sm:$0xf]
      %v232 = vld [vmem:[%s1 + $0x44] sm:$0xf]
      %v233 = vld [vmem:[%s1 + $0x48] sm:$0xf]
      %v234 = vld [vmem:[%s1 + $0x4c] sm:$0xf]
      %v235 = vld [vmem:[%s1 + $0x50] sm:$0xf]
      %v236 = vld [vmem:[%s1 + $0x54] sm:$0xf]
      %v237 = vld [vmem:[%s1 + $0x58] sm:$0xf]
      %v238 = vld [vmem:[%s1 + $0x5c] sm:$0xf]
      %v239 = vld [vmem:[%s1 + $0x60] sm:$0xf]
      %v240 = vld [vmem:[%s1 + $0x64] sm:$0xf]
      %v241 = vld [vmem:[%s1 + $0x68] sm:$0xf]
      %v242 = vld [vmem:[%s1 + $0x6c] sm:$0xf]
      %v243 = vld [vmem:[%s1 + $0x70] sm:$0xf]
      %v244 = vld [vmem:[%s1 + $0x74] sm:$0xf]
      %v245 = vld [vmem:[%s1 + $0x78] sm:$0xf]
      %v246 = vld [vmem:[%s1 + $0x7c] sm:$0xf]
      %v247 = vld [vmem:[%s1 + $0x80] sm:$0xf]
      %v248 = vld [vmem:[%s1 + $0x84] sm:$0xf]
      %v249 = vld [vmem:[%s1 + $0x88] sm:$0xf]
      %v250 = vld [vmem:[%s1 + $0x8c] sm:$0xf]
      %v251 = vld [vmem:[%s1 + $0x90] sm:$0xf]
      %v252 = vld [vmem:[%s1 + $0x94] sm:$0xf]
      %v253 = vld [vmem:[%s1 + $0x98] sm:$0xf]
      %v254 = vld [vmem:[%s1 + $0x9c] sm:$0xf]
      %v255 = vld [vmem:[%s1 + $0xa0] sm:$0xf]
      %v256 = vld [vmem:[%s1 + $0xa4] sm:$0xf]
      %v257 = vld [vmem:[%s1 + $0xa8] sm:$0xf]
      %v258 = vld [vmem:[%s1 + $0xac] sm:$0xf]
      %v259 = vld [vmem:[%s1 + $0xb0] sm:$0xf]
      %v260 = vld [vmem:[%s1 + $0xb4] sm:$0xf]
      %v261 = vld [vmem:[%s1 + $0xb8] sm:$0xf]
      %v262 = vld [vmem:[%s1 + $0xbc] sm:$0xf]
      %v263 = vld [vmem:[%s1 + $0xc0] sm:$0xf]
      %v264 = vld [vmem:[%s1 + $0xc4] sm:$0xf]
      %v265 = vld [vmem:[%s1 + $0xc8] sm:$0xf]
      %v266 = vld [vmem:[%s1 + $0xcc] sm:$0xf]
      %v267 = vld [vmem:[%s1 + $0xd0] sm:$0xf]
      %v268 = vld [vmem:[%s1 + $0xd4] sm:$0xf]
      %v269 = vld [vmem:[%s1 + $0xd8] sm:$0xf]
      %v270 = vld [vmem:[%s1 + $0xdc] sm:$0xf]
      %v271 = vld [vmem:[%s1 + $0xe0] sm:$0xf]
      %v272 = vld [vmem:[%s1 + $0xe4] sm:$0xf]
      %v273 = vld [vmem:[%s1 + $0xe8] sm:$0xf]
      %v274 = vld [vmem:[%s1 + $0xec] sm:$0xf]
      %v275 = vld [vmem:[%s1 + $0xf0] sm:$0xf]
      %v276 = vld [vmem:[%s1 + $0xf4] sm:$0xf]
      %v277 = vld [vmem:[%s1 + $0xf8] sm:$0xf]
      %v278 = vld [vmem:[%s1 + $0xfc] sm:$0xf]
      %v279 = vld [vmem:[%s2] sm:$0x1]
      %v281 = vperm.slane %v279, 0
      %v347 = vunpack.c.l.b16 %v215
      %v348 = vunpack.c.l.b16 %v216
      %v349 = vunpack.c.l.b16 %v217
      %v350 = vunpack.c.l.b16 %v218
      %v351 = vunpack.c.l.b16 %v219
      %v352 = vunpack.c.l.b16 %v220
      %v353 = vunpack.c.l.b16 %v221
      %v354 = vunpack.c.l.b16 %v222
      %v355 = vunpack.c.l.b16 %v223
      %v356 = vunpack.c.l.b16 %v224
      %v357 = vunpack.c.l.b16 %v225
      %v358 = vunpack.c.l.b16 %v226
      %v359 = vunpack.c.l.b16 %v227
      %v360 = vunpack.c.l.b16 %v228
      %v361 = vunpack.c.l.b16 %v229
      %v362 = vunpack.c.l.b16 %v230
      %v363 = vunpack.c.l.b16 %v231
      %v364 = vunpack.c.l.b16 %v232
      %v365 = vunpack.c.l.b16 %v233
      %v366 = vunpack.c.l.b16 %v234
      %v367 = vunpack.c.l.b16 %v235
      %v368 = vunpack.c.l.b16 %v236
      %v369 = vunpack.c.l.b16 %v237
      %v370 = vunpack.c.l.b16 %v238
      %v371 = vunpack.c.l.b16 %v239
      %v372 = vunpack.c.l.b16 %v240
      %v373 = vunpack.c.l.b16 %v241
      %v374 = vunpack.c.l.b16 %v242
      %v375 = vunpack.c.l.b16 %v243
      %v376 = vunpack.c.l.b16 %v244
      %v377 = vunpack.c.l.b16 %v245
      %v378 = vunpack.c.l.b16 %v246
      %v379 = vunpack.c.l.b16 %v247
      %v380 = vunpack.c.l.b16 %v248
      %v381 = vunpack.c.l.b16 %v249
      %v382 = vunpack.c.l.b16 %v250
      %v383 = vunpack.c.l.b16 %v251
      %v384 = vunpack.c.l.b16 %v252
      %v385 = vunpack.c.l.b16 %v253
      %v386 = vunpack.c.l.b16 %v254
      %v387 = vunpack.c.l.b16 %v255
      %v388 = vunpack.c.l.b16 %v256
      %v389 = vunpack.c.l.b16 %v257
      %v390 = vunpack.c.l.b16 %v258
      %v391 = vunpack.c.l.b16 %v259
      %v392 = vunpack.c.l.b16 %v260
      %v393 = vunpack.c.l.b16 %v261
      %v394 = vunpack.c.l.b16 %v262
      %v395 = vunpack.c.l.b16 %v263
      %v396 = vunpack.c.l.b16 %v264
      %v397 = vunpack.c.l.b16 %v265
      %v398 = vunpack.c.l.b16 %v266
      %v399 = vunpack.c.l.b16 %v267
      %v400 = vunpack.c.l.b16 %v268
      %v401 = vunpack.c.l.b16 %v269
      %v402 = vunpack.c.l.b16 %v270
      %v403 = vunpack.c.l.b16 %v271
      %v404 = vunpack.c.l.b16 %v272
      %v405 = vunpack.c.l.b16 %v273
      %v406 = vunpack.c.l.b16 %v274
      %v407 = vunpack.c.l.b16 %v275
      %v408 = vunpack.c.l.b16 %v276
      %v409 = vunpack.c.l.b16 %v277
      %v410 = vunpack.c.l.b16 %v278
      %v411 = vpack.c.b16 %v348, %v347
      %v412 = vpack.c.b16 %v350, %v349
      %v413 = vpack.c.b16 %v352, %v351
      %v414 = vpack.c.b16 %v354, %v353
      %v415 = vpack.c.b16 %v356, %v355
      %v416 = vpack.c.b16 %v358, %v357
      %v417 = vpack.c.b16 %v360, %v359
      %v418 = vpack.c.b16 %v362, %v361
      %v419 = vpack.c.b16 %v364, %v363
      %v420 = vpack.c.b16 %v366, %v365
      %v421 = vpack.c.b16 %v368, %v367
      %v422 = vpack.c.b16 %v370, %v369
      %v423 = vpack.c.b16 %v372, %v371
      %v424 = vpack.c.b16 %v374, %v373
      %v425 = vpack.c.b16 %v376, %v375
      %v426 = vpack.c.b16 %v378, %v377
      %v427 = vpack.c.b16 %v380, %v379
      %v428 = vpack.c.b16 %v382, %v381
      %v429 = vpack.c.b16 %v384, %v383
      %v430 = vpack.c.b16 %v386, %v385
      %v431 = vpack.c.b16 %v388, %v387
      %v432 = vpack.c.b16 %v390, %v389
      %v433 = vpack.c.b16 %v392, %v391
      %v434 = vpack.c.b16 %v394, %v393
      %v435 = vpack.c.b16 %v396, %v395
      %v436 = vpack.c.b16 %v398, %v397
      %v437 = vpack.c.b16 %v400, %v399
      %v438 = vpack.c.b16 %v402, %v401
      %v439 = vpack.c.b16 %v404, %v403
      %v440 = vpack.c.b16 %v406, %v405
      %v441 = vpack.c.b16 %v408, %v407
      %v442 = vpack.c.b16 %v410, %v409
      %475 = vmatpush.bf16.msra.mxu0 %v418
      %476 = vmatpush.bf16.msra.mxu0 %v417
      %477 = vmatpush.bf16.msra.mxu0 %v416
      %478 = vmatpush.bf16.msra.mxu0 %v415
      %479 = vmatpush.bf16.msra.mxu0 %v414
      %480 = vmatpush.bf16.msra.mxu0 %v413
      %481 = vmatpush.bf16.msra.mxu0 %v412
      %482 = vmatpush.bf16.msra.mxu0 %v411
      %483 = vmatmul.bf16.gmra.mxu0 %v211
      %v484 = vpop.f32.mrf.mxu0
      %v485 = vadd.f32 %v281, %v484
      %v486 = vpop.f32.mrf.mxu0
      %487 = vdwg.mxu0
      %488 = vmatpush.bf16.msra.mxu0 %v426
      %489 = vmatpush.bf16.msra.mxu0 %v425
      %490 = vmatpush.bf16.msra.mxu0 %v424
      %491 = vmatpush.bf16.msra.mxu0 %v423
      %492 = vmatpush.bf16.msra.mxu0 %v422
      %493 = vmatpush.bf16.msra.mxu0 %v421
      %494 = vmatpush.bf16.msra.mxu0 %v420
      %495 = vmatpush.bf16.msra.mxu0 %v419
      %496 = vmatmul.bf16.gmra.mxu0 %v212
      %v497 = vpop.f32.mrf.mxu0
      %v498 = vadd.f32 %v485, %v497
      %v499 = vpop.f32.mrf.mxu0
      %500 = vdwg.mxu0
      %501 = vmatpush.bf16.msra.mxu0 %v434
      %502 = vmatpush.bf16.msra.mxu0 %v433
      %503 = vmatpush.bf16.msra.mxu0 %v432
      %504 = vmatpush.bf16.msra.mxu0 %v431
      %505 = vmatpush.bf16.msra.mxu0 %v430
      %506 = vmatpush.bf16.msra.mxu0 %v429
      %507 = vmatpush.bf16.msra.mxu0 %v428
      %508 = vmatpush.bf16.msra.mxu0 %v427
      %509 = vmatmul.bf16.gmra.mxu0 %v213
      %v510 = vpop.f32.mrf.mxu0
      %v511 = vadd.f32 %v498, %v510
      %v512 = vpop.f32.mrf.mxu0
      %513 = vdwg.mxu0
      %514 = vmatpush.bf16.msra.mxu0 %v442
      %515 = vmatpush.bf16.msra.mxu0 %v441
      %516 = vmatpush.bf16.msra.mxu0 %v440
      %517 = vmatpush.bf16.msra.mxu0 %v439
      %518 = vmatpush.bf16.msra.mxu0 %v438
      %519 = vmatpush.bf16.msra.mxu0 %v437
      %520 = vmatpush.bf16.msra.mxu0 %v436
      %521 = vmatpush.bf16.msra.mxu0 %v435
      %522 = vmatmul.bf16.gmra.mxu0 %v214
      %v523 = vpop.f32.mrf.mxu0
      %v524 = vadd.f32 %v511, %v523
      %v525 = vpop.f32.mrf.mxu0
      %526 = vdwg.mxu0
      %v527 = vmul.f32 %v524, 5.656854
      %v528 = vld [vmem:[%s3] sm:$0xf]
      %v529 = vadd.f32 %v527, %v528
      %vm530 = vcmask 257024
      %531 = vst.msk [vmem:[%s195] sm:$0xf] %vm530, %v529
      %p532 = scmp.lt.s32.totalorder %s15, 1
      %s533 = scalar_select %p532, %s15, 1
      %s534 = smul.addr %s533, 4
      %s535 = scalar_lea.vmem %s4, %s534
      // Predicated region
      $region37: #{transformer2e_forward.9} parent=35 // pred_check
        %p536 = pneg %p122
      $region38: #{transformer2e_forward.9} parent=35 // pred_check_branch
        %538 = sbr.rel (%p536) target = $region40
      $region39: #{transformer2e_forward.9} parent=35 // pred_region
        _
      $region40: #{transformer2e_forward.9} parent=35 // pred_fallthru
        _
    $region36: #{transformer2e_forward.9} parent=5 // pred_fallthru
      _
    %p539 = scmp.le.s32.totalorder 2, %s10
    // Predicated region
    $region41: #{transformer2e_forward.9} parent=5 // pred_check
      %p540 = pneg %p539
    $region42: #{transformer2e_forward.9} parent=5 // pred_check_branch
      %542 = sbr.rel (%p540) target = $region44
    $region43: #{transformer2e_forward.9} parent=5 // pred_region
      %s543 = ssub.s32 %s10, 2
      // Predicated region
      $region45: #{transformer2e_forward.9} parent=43 // pred_check
        %p544 = pneg %p128
      $region46: #{transformer2e_forward.9} parent=43 // pred_check_branch
        %546 = sbr.rel (%p544) target = $region48
      $region47: #{transformer2e_forward.9} parent=43 // pred_region
        %p547 = scmp.lt.s32.totalorder %s16, 1
        %s548 = scalar_select %p547, %s16, 1
        %s549 = smul.addr %s548, 4
        %s550 = scalar_lea.vmem %s4, %s549
      $region48: #{transformer2e_forward.9} parent=43 // pred_fallthru
        _
    $region44: #{transformer2e_forward.9} parent=5 // pred_fallthru
      _
  $region6: #{transformer2e_forward.9} parent=0 // loop_footer
    %s14 = sadd.s32 1, %s10
  $region7: #{transformer2e_forward.9} parent=0 // loop_footer_branch
    %9 = sbr.rel target = $region3
  $region8: #{transformer2e_forward.9} parent=0 // loop_exit
    _

// kernel: transformer2e_forward.11
$region0: #{transformer2e_forward.11}
  #allocation0 [shape = 'u32[]', space=smem, size = 0x4, offset = 0x4, fixed_abs, tag = 'smem constant byte address 0x4 - core index']
  #allocation1 [shape = 'u32[72,128]{1,0:T(1,128)}', space=vmem, size = 0x9000, scoped, tag = 'internal scratch']
  %s0 = inlined_call_operand.vmem [shape: f32[2,4,32], index: 0, kind: input, shape index: {}]
  %s1 = inlined_call_operand.vmem [shape: f32[2,4,32], index: 1, kind: input, shape index: {}]
  %s2 = inlined_call_operand.vmem [shape: f32[1,32], index: 2, kind: input, shape index: {}]
  %s3 = inlined_call_operand.vmem [shape: f32[1,32], index: 3, kind: input, shape index: {}]
  %s4 = inlined_call_operand.vmem [shape: f32[1,32], index: 4, kind: input, shape index: {}]
  %s5 = inlined_call_operand.vmem [shape: f32[1,32], index: 5, kind: input, shape index: {}]
  %s6 = inlined_call_operand.vmem [shape: f32[32,128], index: 6, kind: input, shape index: {}]
  %s7 = inlined_call_operand.vmem [shape: f32[1,128], index: 7, kind: input, shape index: {}]
  %s8 = inlined_call_operand.hbm [shape: f32[2,128], index: 8, kind: output, shape index: {}]
  %s9 = sld [smem:[#allocation0]]
  $region42: #{transformer2e_forward.11} parent=0
    _
  %s11 = ssub.s32 1, %s9
  %s12 = scalar_select 0, %s11, %s9
  $region1: #{transformer2e_forward.11} parent=0
    #allocation2 [shape = 'u8[1024]{0}', space=vmem, size = 0x400, scoped, tag = 'output window, operand 0, single buffered']
    #allocation3 [shape = 's32[1]{0}', space=sflag, size = 0x4, scoped, tag = 'scoped memory for transformer2e_forward.11']
    %13 = vsyncpa [#allocation3], 0
    // Predicated region
    $region2: #{transformer2e_forward.11} parent=1 // pred_check
      _
    $region3: #{transformer2e_forward.11} parent=1 // pred_check_branch
      %15 = sbr.rel (0) target = $region5
    $region4: #{transformer2e_forward.11} parent=1 // pred_region
      _
    $region5: #{transformer2e_forward.11} parent=1 // pred_fallthru
      _
    // Predicated region
    $region6: #{transformer2e_forward.11} parent=1 // pred_check
      _
    $region7: #{transformer2e_forward.11} parent=1 // pred_check_branch
      %17 = sbr.rel (0) target = $region9
    $region8: #{transformer2e_forward.11} parent=1 // pred_region
      _
    $region9: #{transformer2e_forward.11} parent=1 // pred_fallthru
      _
    // Predicated region
    $region10: #{transformer2e_forward.11} parent=1 // pred_check
      _
    $region11: #{transformer2e_forward.11} parent=1 // pred_check_branch
      %19 = sbr.rel (0) target = $region13
    $region12: #{transformer2e_forward.11} parent=1 // pred_region
      _
    $region13: #{transformer2e_forward.11} parent=1 // pred_fallthru
      _
    // Predicated region
    $region14: #{transformer2e_forward.11} parent=1 // pred_check
      _
    $region15: #{transformer2e_forward.11} parent=1 // pred_check_branch
      %21 = sbr.rel (0) target = $region17
    $region16: #{transformer2e_forward.11} parent=1 // pred_region
      _
    $region17: #{transformer2e_forward.11} parent=1 // pred_fallthru
      _
    // Predicated region
    $region18: #{transformer2e_forward.11} parent=1 // pred_check
      _
    $region19: #{transformer2e_forward.11} parent=1 // pred_check_branch
      %23 = sbr.rel (0) target = $region21
    $region20: #{transformer2e_forward.11} parent=1 // pred_region
      _
    $region21: #{transformer2e_forward.11} parent=1 // pred_fallthru
      _
    // Predicated region
    $region22: #{transformer2e_forward.11} parent=1 // pred_check
      _
    $region23: #{transformer2e_forward.11} parent=1 // pred_check_branch
      %25 = sbr.rel (0) target = $region25
    $region24: #{transformer2e_forward.11} parent=1 // pred_region
      _
    $region25: #{transformer2e_forward.11} parent=1 // pred_fallthru
      _
    // Predicated region
    $region26: #{transformer2e_forward.11} parent=1 // pred_check
      _
    $region27: #{transformer2e_forward.11} parent=1 // pred_check_branch
      %27 = sbr.rel (0) target = $region29
    $region28: #{transformer2e_forward.11} parent=1 // pred_region
      _
    $region29: #{transformer2e_forward.11} parent=1 // pred_fallthru
      _
    // Predicated region
    $region30: #{transformer2e_forward.11} parent=1 // pred_check
      _
    $region31: #{transformer2e_forward.11} parent=1 // pred_check_branch
      %29 = sbr.rel (0) target = $region33
    $region32: #{transformer2e_forward.11} parent=1 // pred_region
      _
    $region33: #{transformer2e_forward.11} parent=1 // pred_fallthru
      _
    %v30 = vld [vmem:[%s0] sm:$0xf]
    %v31 = vld [vmem:[%s0 + $0x4] sm:$0xf]
    %v32 = vld [vmem:[%s1] sm:$0xf]
    %v33 = vld [vmem:[%s1 + $0x4] sm:$0xf]
    %v34 = vld [vmem:[%s2] sm:$0x1]
    %v35 = vld [vmem:[%s3] sm:$0x1]
    %vm36 = vcmask 257024
    %v37 = vsel %vm36, %v30, 0.0
    %38 = vadd.xlane.f32.xlu0 %v37
    %v39 = vpop.xlane.xlu0 %38
    %v40 = vsel %vm36, %v31, 0.0
    %41 = vadd.xlane.f32.xlu0 %v40
    %v42 = vpop.xlane.xlu0 %41
    %v43 = vrcp.pop 32.0
    %v44 = vmul.f32 32.0, %v43
    %v45 = vsub.f32 1.0, %v44
    %v46 = vmul.f32 %v43, %v45
    %v47 = vadd.f32 %v43, %v46
    %vm48 = vweird.f32 %v43
    %v49 = vsel %vm48, %v43, %v47
    %v50 = vmul.f32 %v39, %v49
    %v51 = vmul.f32 %v42, %v49
    %v52 = vsub.f32 %v30, %v50
    %v53 = vsub.f32 %v31, %v51
    %v54 = vmul.f32 %v52, %v52
    %v55 = vmul.f32 %v53, %v53
    %v56 = vsel %vm36, %v54, 0.0
    %57 = vadd.xlane.f32.xlu0 %v56
    %v58 = vpop.xlane.xlu0 %57
    %v59 = vsel %vm36, %v55, 0.0
    %60 = vadd.xlane.f32.xlu0 %v59
    %v61 = vpop.xlane.xlu0 %60
    %v62 = vrcp.pop 31.0
    %v63 = vmul.f32 31.0, %v62
    %v64 = vsub.f32 1.0, %v63
    %v65 = vmul.f32 %v62, %v64
    %v66 = vadd.f32 %v62, %v65
    %vm67 = vweird.f32 %v62
    %v68 = vsel %vm67, %v62, %v66
    %v69 = vmul.f32 %v58, %v68
    %v70 = vmul.f32 %v61, %v68
    %v71 = vrsqrt.pop %v69
    %v72 = vmul.f32 %v71, %v69
    %v73 = vmul.f32 %v72, %v71
    %v74 = vmul.f32 0.5, %v73
    %v75 = vsub.f32 1.5, %v74
    %v76 = vmul.f32 %v71, %v75
    %v77 = vmul.f32 %v69, %v76
    %vm78 = vcmp.eq.f32.partialorder %v69, inf
    %v79 = vsel %vm78, %v69, %v77
    %vm80 = vcmp.eq.f32.partialorder %v69, 0.0
    %v81 = vand.u32 %v69, 2147483648
    %v82 = vsel %vm80, %v81, %v79
    %v83 = vrsqrt.pop %v70
    %v84 = vmul.f32 %v83, %v70
    %v85 = vmul.f32 %v84, %v83
    %v86 = vmul.f32 0.5, %v85
    %v87 = vsub.f32 1.5, %v86
    %v88 = vmul.f32 %v83, %v87
    %v89 = vmul.f32 %v70, %v88
    %vm90 = vcmp.eq.f32.partialorder %v70, inf
    %v91 = vsel %vm90, %v70, %v89
    %vm92 = vcmp.eq.f32.partialorder %v70, 0.0
    %v93 = vand.u32 %v70, 2147483648
    %v94 = vsel %vm92, %v93, %v91
    %v96 = vperm.slane %v34, 0
    %v98 = vmul.f32 %v96, %v52
    %v99 = vmul.f32 %v96, %v53
    %v100 = vadd.f32 %v82, 1e-06
    %v101 = vadd.f32 %v94, 1e-06
    %v102 = vrcp.pop %v100
    %v103 = vmul.f32 %v100, %v102
    %v104 = vsub.f32 1.0, %v103
    %v105 = vmul.f32 %v102, %v104
    %v106 = vadd.f32 %v102, %v105
    %vm107 = vweird.f32 %v100
    %vm108 = vweird.f32 %v102
    %vm109 = vmor %vm107, %vm108
    %v110 = vsel %vm109, %v102, %v106
    %v111 = vand.u32 2147483647, %v100
    %vm112 = vcmp.eq.f32.partialorder %v111, 8.507059e+37
    %v113 = vand.u32 %v100, 2147483648
    %v114 = vor.u32 1.1754944e-38, %v113
    %v115 = vsel %vm112, %v114, %v110
    %v116 = vmul.f32 %v98, %v115
    %v117 = vrcp.pop %v101
    %v118 = vmul.f32 %v101, %v117
    %v119 = vsub.f32 1.0, %v118
    %v120 = vmul.f32 %v117, %v119
    %v121 = vadd.f32 %v117, %v120
    %vm122 = vweird.f32 %v101
    %vm123 = vweird.f32 %v117
    %vm124 = vmor %vm122, %vm123
    %v125 = vsel %vm124, %v117, %v121
    %v126 = vand.u32 2147483647, %v101
    %vm127 = vcmp.eq.f32.partialorder %v126, 8.507059e+37
    %v128 = vand.u32 %v101, 2147483648
    %v129 = vor.u32 1.1754944e-38, %v128
    %v130 = vsel %vm127, %v129, %v125
    %v131 = vmul.f32 %v99, %v130
    %v133 = vperm.slane %v35, 0
    %v135 = vadd.f32 %v116, %v133
    %v136 = vadd.f32 %v131, %v133
    %v137 = vld [vmem:[%s4] sm:$0x1]
    %v138 = vld [vmem:[%s5] sm:$0x1]
    %v139 = vsel %vm36, %v32, 0.0
    %140 = vadd.xlane.f32.xlu0 %v139
    %v141 = vpop.xlane.xlu0 %140
    %v142 = vsel %vm36, %v33, 0.0
    %143 = vadd.xlane.f32.xlu0 %v142
    %v144 = vpop.xlane.xlu0 %143
    %v145 = vmul.f32 %v141, %v49
    %v146 = vmul.f32 %v144, %v49
    %v147 = vsub.f32 %v32, %v145
    %v148 = vsub.f32 %v33, %v146
    %v149 = vmul.f32 %v147, %v147
    %v150 = vmul.f32 %v148, %v148
    %v151 = vsel %vm36, %v149, 0.0
    %152 = vadd.xlane.f32.xlu0 %v151
    %v153 = vpop.xlane.xlu0 %152
    %v154 = vsel %vm36, %v150, 0.0
    %155 = vadd.xlane.f32.xlu0 %v154
    %v156 = vpop.xlane.xlu0 %155
    %v157 = vmul.f32 %v153, %v68
    %v158 = vmul.f32 %v156, %v68
    %v159 = vrsqrt.pop %v157
    %v160 = vmul.f32 %v159, %v157
    %v161 = vmul.f32 %v160, %v159
    %v162 = vmul.f32 0.5, %v161
    %v163 = vsub.f32 1.5, %v162
    %v164 = vmul.f32 %v159, %v163
    %v165 = vmul.f32 %v157, %v164
    %vm166 = vcmp.eq.f32.partialorder %v157, inf
    %v167 = vsel %vm166, %v157, %v165
    %vm168 = vcmp.eq.f32.partialorder %v157, 0.0
    %v169 = vand.u32 %v157, 2147483648
    %v170 = vsel %vm168, %v169, %v167
    %v171 = vrsqrt.pop %v158
    %v172 = vmul.f32 %v171, %v158
    %v173 = vmul.f32 %v172, %v171
    %v174 = vmul.f32 0.5, %v173
    %v175 = vsub.f32 1.5, %v174
    %v176 = vmul.f32 %v171, %v175
    %v177 = vmul.f32 %v158, %v176
    %vm178 = vcmp.eq.f32.partialorder %v158, inf
    %v179 = vsel %vm178, %v158, %v177
    %vm180 = vcmp.eq.f32.partialorder %v158, 0.0
    %v181 = vand.u32 %v158, 2147483648
    %v182 = vsel %vm180, %v181, %v179
    %v184 = vperm.slane %v137, 0
    %v186 = vmul.f32 %v184, %v147
    %v187 = vmul.f32 %v184, %v148
    %v188 = vadd.f32 %v170, 1e-06
    %v189 = vadd.f32 %v182, 1e-06
    %v190 = vrcp.pop %v188
    %v191 = vmul.f32 %v188, %v190
    %v192 = vsub.f32 1.0, %v191
    %v193 = vmul.f32 %v190, %v192
    %v194 = vadd.f32 %v190, %v193
    %vm195 = vweird.f32 %v188
    %vm196 = vweird.f32 %v190
    %vm197 = vmor %vm195, %vm196
    %v198 = vsel %vm197, %v190, %v194
    %v199 = vand.u32 2147483647, %v188
    %vm200 = vcmp.eq.f32.partialorder %v199, 8.507059e+37
    %v201 = vand.u32 %v188, 2147483648
    %v202 = vor.u32 1.1754944e-38, %v201
    %v203 = vsel %vm200, %v202, %v198
    %v204 = vmul.f32 %v186, %v203
    %v205 = vrcp.pop %v189
    %v206 = vmul.f32 %v189, %v205
    %v207 = vsub.f32 1.0, %v206
    %v208 = vmul.f32 %v205, %v207
    %v209 = vadd.f32 %v205, %v208
    %vm210 = vweird.f32 %v189
    %vm211 = vweird.f32 %v205
    %vm212 = vmor %vm210, %vm211
    %v213 = vsel %vm212, %v205, %v209
    %v214 = vand.u32 2147483647, %v189
    %vm215 = vcmp.eq.f32.partialorder %v214, 8.507059e+37
    %v216 = vand.u32 %v189, 2147483648
    %v217 = vor.u32 1.1754944e-38, %v216
    %v218 = vsel %vm215, %v217, %v213
    %v219 = vmul.f32 %v187, %v218
    %v221 = vperm.slane %v138, 0
    %v223 = vadd.f32 %v204, %v221
    %v224 = vadd.f32 %v219, %v221
    %v225 = vsel %vm36, %v135, 0.0
    %v226 = vrot.slane %v225, 4
    %v227 = vadd.f32 %v225, %v226
    %v228 = vrot.slane %v227, 2
    %v229 = vadd.f32 %v227, %v228
    %v230 = vrot.slane %v229, 1
    %v231 = vadd.f32 %v229, %v230
    %v232 = vsel %vm36, %v136, 0.0
    %v233 = vrot.slane %v232, 4
    %v234 = vadd.f32 %v232, %v233
    %v235 = vrot.slane %v234, 2
    %v236 = vadd.f32 %v234, %v235
    %v237 = vrot.slane %v236, 1
    %v238 = vadd.f32 %v236, %v237
    %v239 = vsel %vm36, %v223, 0.0
    %v240 = vrot.slane %v239, 4
    %v241 = vadd.f32 %v239, %v240
    %v242 = vrot.slane %v241, 2
    %v243 = vadd.f32 %v241, %v242
    %v244 = vrot.slane %v243, 1
    %v245 = vadd.f32 %v243, %v244
    %v246 = vsel %vm36, %v224, 0.0
    %v247 = vrot.slane %v246, 4
    %v248 = vadd.f32 %v246, %v247
    %v249 = vrot.slane %v248, 2
    %v250 = vadd.f32 %v248, %v249
    %v251 = vrot.slane %v250, 1
    %v252 = vadd.f32 %v250, %v251
    %v253 = vadd.f32 %v231, %v245
    %v254 = vadd.f32 %v238, %v252
    %v255 = vmul.f32 %v253, 0.125
    %v256 = vmul.f32 %v254, 0.125
    %v257 = vsub.f32 0.0, %v255
    %v258 = vsub.f32 0.0, %v256
    %v259 = vmul.f32 %v257, 1.442695
    %v260 = vpow.pop %v259
    %v261 = vmul.f32 %v258, 1.442695
    %v262 = vpow.pop %v261
    %v263 = vadd.f32 %v260, 1.0
    %v264 = vadd.f32 %v262, 1.0
    %v265 = vrcp.pop %v263
    %v266 = vmul.f32 %v263, %v265
    %v267 = vsub.f32 1.0, %v266
    %v268 = vmul.f32 %v265, %v267
    %v269 = vadd.f32 %v265, %v268
    %vm270 = vweird.f32 %v263
    %vm271 = vweird.f32 %v265
    %vm272 = vmor %vm270, %vm271
    %v273 = vsel %vm272, %v265, %v269
    %v274 = vand.u32 2147483647, %v263
    %vm275 = vcmp.eq.f32.partialorder %v274, 8.507059e+37
    %v276 = vand.u32 %v263, 2147483648
    %v277 = vor.u32 1.1754944e-38, %v276
    %v278 = vsel %vm275, %v277, %v273
    %v279 = vmul.f32 1.0, %v278
    %v280 = vrcp.pop %v264
    %v281 = vmul.f32 %v264, %v280
    %v282 = vsub.f32 1.0, %v281
    %v283 = vmul.f32 %v280, %v282
    %v284 = vadd.f32 %v280, %v283
    %vm285 = vweird.f32 %v264
    %vm286 = vweird.f32 %v280
    %vm287 = vmor %vm285, %vm286
    %v288 = vsel %vm287, %v280, %v284
    %v289 = vand.u32 2147483647, %v264
    %vm290 = vcmp.eq.f32.partialorder %v289, 8.507059e+37
    %v291 = vand.u32 %v264, 2147483648
    %v292 = vor.u32 1.1754944e-38, %v291
    %v293 = vsel %vm290, %v292, %v288
    %v294 = vmul.f32 1.0, %v293
    %v295 = vld [vmem:[%s6] sm:$0xff]
    %v296 = vld [vmem:[%s6 + $0x8] sm:$0xff]
    %v297 = vld [vmem:[%s6 + $0x10] sm:$0xff]
    %v298 = vld [vmem:[%s6 + $0x18] sm:$0xff]
    %v299 = vld [vmem:[%s7] sm:$0x1]
    %v301 = vperm.slane %v299, 0
    %vm305 = vcmask 1041409
    %v306 = vsel %vm305, %v294, %v279
    %vm307 = vcmask 261120
    %v308 = vsel %vm307, %v306, 0
    %310 = vmatpush.msra.mxu0 0.0
    %311 = vmatpush.msra.mxu0 0.0
    %312 = vmatpush.msra.mxu0 0.0
    %313 = vmatpush.msra.mxu0 0.0
    %314 = vmatpush.msra.mxu0 0.0
    %315 = vmatpush.msra.mxu0 0.0
    %316 = vmatpush.msra.mxu0 0.0
    %317 = vmatpush.msra.mxu0 0.0
    %318 = vmatpush.msra.mxu0 0.0
    %319 = vmatpush.msra.mxu0 0.0
    %320 = vmatpush.msra.mxu0 0.0
    %321 = vmatpush.msra.mxu0 0.0
    %322 = vmatpush.msra.mxu0 %v298
    %323 = vmatpush.msra.mxu0 %v297
    %324 = vmatpush.msra.mxu0 %v296
    %325 = vmatpush.msra.mxu0 %v295
    %326 = vmatmul.f32.gmra.mxu0 %v308
    %v327 = vpop.f32.mrf.mxu0
    %v328 = vadd.f32 %v301, %v327
    %329 = vdwg.mxu0
    %330 = vst [vmem:[#allocation2] sm:$0x3] %v328
    // Predicated region
    $region34: #{transformer2e_forward.11} parent=1 // pred_check
      _
    $region35: #{transformer2e_forward.11} parent=1 // pred_check_branch
      %332 = sbr.rel (0) target = $region37
    $region36: #{transformer2e_forward.11} parent=1 // pred_region
      %334 = vsyncadd [#allocation3], 0
      %s336 = sshll.u32 [#allocation2], 4
      %s337 = int_to_ptr.vmem [resolvable:$true] %s336
      %s338 = sshll.u32 %s8, 4
      %s339 = int_to_ptr.hbm [resolvable:$true] %s338
      %341 = dma.vmem_to_hbm [thread:$0]  %s337, 32, %s339, [#allocation3]
    $region37: #{transformer2e_forward.11} parent=1 // pred_fallthru
      _
    // Predicated region
    $region38: #{transformer2e_forward.11} parent=1 // pred_check
      _
    $region39: #{transformer2e_forward.11} parent=1 // pred_check_branch
      %343 = sbr.rel (0) target = $region41
    $region40: #{transformer2e_forward.11} parent=1 // pred_region
      %345 = dma.done [#allocation3], 32
    $region41: #{transformer2e_forward.11} parent=1 // pred_fallthru
      _
    %346 = vsyncpa [#allocation3], 1

// kernel: transformer2e_forward.10
$region0: #{transformer2e_forward.10}
  #allocation0 [shape = 'u32[]', space=smem, size = 0x4, offset = 0x4, fixed_abs, tag = 'smem constant byte address 0x4 - core index']
  #allocation1 [shape = 'u32[72,128]{1,0:T(1,128)}', space=vmem, size = 0x9000, scoped, tag = 'internal scratch']
  %s0 = inlined_call_operand.vmem [shape: f32[2,4,32], index: 0, kind: input, shape index: {}]
  %s1 = inlined_call_operand.vmem [shape: f32[2,1,32], index: 1, kind: input, shape index: {}]
  %s2 = inlined_call_operand.vmem [shape: f32[2,1,32], index: 2, kind: input, shape index: {}]
  %s3 = inlined_call_operand.vmem [shape: bf16[2,32,128], index: 3, kind: input, shape index: {}]
  %s4 = inlined_call_operand.vmem [shape: f32[2,1,128], index: 4, kind: input, shape index: {}]
  %s5 = inlined_call_operand.vmem [shape: bf16[2,32,32], index: 5, kind: input, shape index: {}]
  %s6 = inlined_call_operand.vmem [shape: f32[2,1,32], index: 6, kind: input, shape index: {}]
  %s7 = inlined_call_operand.vmem [shape: f32[2,1,32], index: 7, kind: input, shape index: {}]
  %s8 = inlined_call_operand.vmem [shape: f32[2,1,32], index: 8, kind: input, shape index: {}]
  %s9 = inlined_call_operand.vmem [shape: bf16[2,32,2048], index: 9, kind: input, shape index: {}]
  %s10 = inlined_call_operand.vmem [shape: f32[2,1,2048], index: 10, kind: input, shape index: {}]
  %s11 = inlined_call_operand.vmem [shape: bf16[2,2048,32], index: 11, kind: input, shape index: {}]
  %s12 = inlined_call_operand.vmem [shape: f32[2,1,32], index: 12, kind: input, shape index: {}]
  %s13 = inlined_call_operand.vmem [shape: f32[2,4,32], index: 13, kind: output, shape index: {}]
  %s14 = sld [smem:[#allocation0]]
  $region85: #{transformer2e_forward.10} parent=0
    _
  %s16 = ssub.s32 1, %s14
  %s17 = scalar_select 0, %s16, %s14
  loop: start=0, step=1, limit=4
  $region2: #{transformer2e_forward.10} parent=0 // loop_pre_header
    _
  $region3: #{transformer2e_forward.10} parent=0 // loop_header
    %s19 = sphi 0, %s23
    %p20 = scmp.ge.s32.totalorder %s19, 4
    %s29 = sphi 0, %s31
    %s32 = sphi 0, %s29
    %s33 = sphi 0, %s32
    %s49 = sphi 0, %s33
    %s53 = sphi 0, %s53
    %s55 = sphi 0, %s53
    %s56 = sphi 0, %s55
    %s70 = sphi 0, %s56
    %s74 = sphi 0, %s74
    %s76 = sphi 0, %s74
    %s77 = sphi 0, %s76
    %s91 = sphi 0, %s77
    %s95 = sphi 0, %s95
    %s97 = sphi 0, %s95
    %s98 = sphi 0, %s97
    %s112 = sphi 0, %s98
    %s116 = sphi 0, %s116
    %s118 = sphi 0, %s116
    %s119 = sphi 0, %s118
    %s133 = sphi 0, %s119
    %s137 = sphi 0, %s137
    %s139 = sphi 0, %s137
    %s140 = sphi 0, %s139
    %s154 = sphi 0, %s140
    %s158 = sphi 0, %s158
    %s160 = sphi 0, %s158
    %s161 = sphi 0, %s160
    %s175 = sphi 0, %s161
    %s179 = sphi 0, %s179
    %s181 = sphi 0, %s179
    %s182 = sphi 0, %s181
    %s196 = sphi 0, %s182
    %s200 = sphi 0, %s200
    %s202 = sphi 0, %s200
    %s203 = sphi 0, %s202
    %s217 = sphi 0, %s203
    %s221 = sphi 0, %s221
    %s223 = sphi 0, %s221
    %s224 = sphi 0, %s223
    %s238 = sphi 0, %s224
    %s242 = sphi 0, %s242
    %s244 = sphi 0, %s242
    %s245 = sphi 0, %s244
    %s259 = sphi 0, %s245
    %s263 = sphi 0, %s263
    %s265 = sphi 0, %s263
    %s266 = sphi 0, %s265
    %s280 = sphi 0, %s266
    %s284 = sphi 0, %s284
    %s286 = sphi 0, %s284
    %s287 = sphi 0, %s286
    %s301 = sphi 0, %s287
    %s307 = sphi 0, %s309
    %s310 = sphi 0, %s307
    %s311 = sphi 0, %s310
    %s327 = sphi 0, %s311
  $region4: #{transformer2e_forward.10} parent=0 // loop_header_branch
    %22 = sbr.rel (%p20) target = $region8
  $region5: #{transformer2e_forward.10} parent=0 // loop_body
    %s24 = ssub.s32 %s19, 1
    %s25 = ssub.s32 %s19, 2
    %s26 = sadd.s32 %s19, 1
    %s27 = ssub.s32 %s19, %s26
    %p28 = scmp.eq.s32.totalorder %s27, 0
    %s30 = sadd.s32 %s29, 1
    %s31 = scalar_select %p28, %s29, %s30
    %p34 = pneg %p28
    %p35 = scmp.eq.s32.totalorder %s19, 1
    %p36 = por %p34, %p35
    %p37 = scmp.ne.s32.totalorder %s29, %s32
    %p38 = scmp.eq.s32.totalorder %s19, 0
    %p39 = por %p37, %p38
    %p40 = scmp.ne.s32.totalorder %s29, %s32
    %p41 = scmp.eq.s32.totalorder %s24, 1
    %p42 = por %p40, %p41
    %p43 = scmp.ne.s32.totalorder %s32, %s33
    %p44 = scmp.eq.s32.totalorder %s24, 0
    %p45 = por %p43, %p44
    %p46 = scmp.ne.s32.totalorder %s32, %s33
    %p47 = scmp.eq.s32.totalorder %s25, 1
    %p48 = por %p46, %p47
    %p50 = scmp.ne.s32.totalorder %s33, %s49
    %p51 = scmp.eq.s32.totalorder %s25, 0
    %p52 = por %p50, %p51
    %s54 = sadd.s32 %s53, 1
    %p57 = scmp.eq.s32.totalorder %s19, 1
    %p58 = scmp.ne.s32.totalorder %s53, %s55
    %p59 = scmp.eq.s32.totalorder %s19, 0
    %p60 = por %p58, %p59
    %p61 = scmp.ne.s32.totalorder %s53, %s55
    %p62 = scmp.eq.s32.totalorder %s24, 1
    %p63 = por %p61, %p62
    %p64 = scmp.ne.s32.totalorder %s55, %s56
    %p65 = scmp.eq.s32.totalorder %s24, 0
    %p66 = por %p64, %p65
    %p67 = scmp.ne.s32.totalorder %s55, %s56
    %p68 = scmp.eq.s32.totalorder %s25, 1
    %p69 = por %p67, %p68
    %p71 = scmp.ne.s32.totalorder %s56, %s70
    %p72 = scmp.eq.s32.totalorder %s25, 0
    %p73 = por %p71, %p72
    %s75 = sadd.s32 %s74, 1
    %p78 = scmp.eq.s32.totalorder %s19, 1
    %p79 = scmp.ne.s32.totalorder %s74, %s76
    %p80 = scmp.eq.s32.totalorder %s19, 0
    %p81 = por %p79, %p80
    %p82 = scmp.ne.s32.totalorder %s74, %s76
    %p83 = scmp.eq.s32.totalorder %s24, 1
    %p84 = por %p82, %p83
    %p85 = scmp.ne.s32.totalorder %s76, %s77
    %p86 = scmp.eq.s32.totalorder %s24, 0
    %p87 = por %p85, %p86
    %p88 = scmp.ne.s32.totalorder %s76, %s77
    %p89 = scmp.eq.s32.totalorder %s25, 1
    %p90 = por %p88, %p89
    %p92 = scmp.ne.s32.totalorder %s77, %s91
    %p93 = scmp.eq.s32.totalorder %s25, 0
    %p94 = por %p92, %p93
    %s96 = sadd.s32 %s95, 1
    %p99 = scmp.eq.s32.totalorder %s19, 1
    %p100 = scmp.ne.s32.totalorder %s95, %s97
    %p101 = scmp.eq.s32.totalorder %s19, 0
    %p102 = por %p100, %p101
    %p103 = scmp.ne.s32.totalorder %s95, %s97
    %p104 = scmp.eq.s32.totalorder %s24, 1
    %p105 = por %p103, %p104
    %p106 = scmp.ne.s32.totalorder %s97, %s98
    %p107 = scmp.eq.s32.totalorder %s24, 0
    %p108 = por %p106, %p107
    %p109 = scmp.ne.s32.totalorder %s97, %s98
    %p110 = scmp.eq.s32.totalorder %s25, 1
    %p111 = por %p109, %p110
    %p113 = scmp.ne.s32.totalorder %s98, %s112
    %p114 = scmp.eq.s32.totalorder %s25, 0
    %p115 = por %p113, %p114
    %s117 = sadd.s32 %s116, 1
    %p120 = scmp.eq.s32.totalorder %s19, 1
    %p121 = scmp.ne.s32.totalorder %s116, %s118
    %p122 = scmp.eq.s32.totalorder %s19, 0
    %p123 = por %p121, %p122
    %p124 = scmp.ne.s32.totalorder %s116, %s118
    %p125 = scmp.eq.s32.totalorder %s24, 1
    %p126 = por %p124, %p125
    %p127 = scmp.ne.s32.totalorder %s118, %s119
    %p128 = scmp.eq.s32.totalorder %s24, 0
    %p129 = por %p127, %p128
    %p130 = scmp.ne.s32.totalorder %s118, %s119
    %p131 = scmp.eq.s32.totalorder %s25, 1
    %p132 = por %p130, %p131
    %p134 = scmp.ne.s32.totalorder %s119, %s133
    %p135 = scmp.eq.s32.totalorder %s25, 0
    %p136 = por %p134, %p135
    %s138 = sadd.s32 %s137, 1
    %p141 = scmp.eq.s32.totalorder %s19, 1
    %p142 = scmp.ne.s32.totalorder %s137, %s139
    %p143 = scmp.eq.s32.totalorder %s19, 0
    %p144 = por %p142, %p143
    %p145 = scmp.ne.s32.totalorder %s137, %s139
    %p146 = scmp.eq.s32.totalorder %s24, 1
    %p147 = por %p145, %p146
    %p148 = scmp.ne.s32.totalorder %s139, %s140
    %p149 = scmp.eq.s32.totalorder %s24, 0
    %p150 = por %p148, %p149
    %p151 = scmp.ne.s32.totalorder %s139, %s140
    %p152 = scmp.eq.s32.totalorder %s25, 1
    %p153 = por %p151, %p152
    %p155 = scmp.ne.s32.totalorder %s140, %s154
    %p156 = scmp.eq.s32.totalorder %s25, 0
    %p157 = por %p155, %p156
    %s159 = sadd.s32 %s158, 1
    %p162 = scmp.eq.s32.totalorder %s19, 1
    %p163 = scmp.ne.s32.totalorder %s158, %s160
    %p164 = scmp.eq.s32.totalorder %s19, 0
    %p165 = por %p163, %p164
    %p166 = scmp.ne.s32.totalorder %s158, %s160
    %p167 = scmp.eq.s32.totalorder %s24, 1
    %p168 = por %p166, %p167
    %p169 = scmp.ne.s32.totalorder %s160, %s161
    %p170 = scmp.eq.s32.totalorder %s24, 0
    %p171 = por %p169, %p170
    %p172 = scmp.ne.s32.totalorder %s160, %s161
    %p173 = scmp.eq.s32.totalorder %s25, 1
    %p174 = por %p172, %p173
    %p176 = scmp.ne.s32.totalorder %s161, %s175
    %p177 = scmp.eq.s32.totalorder %s25, 0
    %p178 = por %p176, %p177
    %s180 = sadd.s32 %s179, 1
    %p183 = scmp.eq.s32.totalorder %s19, 1
    %p184 = scmp.ne.s32.totalorder %s179, %s181
    %p185 = scmp.eq.s32.totalorder %s19, 0
    %p186 = por %p184, %p185
    %p187 = scmp.ne.s32.totalorder %s179, %s181
    %p188 = scmp.eq.s32.totalorder %s24, 1
    %p189 = por %p187, %p188
    %p190 = scmp.ne.s32.totalorder %s181, %s182
    %p191 = scmp.eq.s32.totalorder %s24, 0
    %p192 = por %p190, %p191
    %p193 = scmp.ne.s32.totalorder %s181, %s182
    %p194 = scmp.eq.s32.totalorder %s25, 1
    %p195 = por %p193, %p194
    %p197 = scmp.ne.s32.totalorder %s182, %s196
    %p198 = scmp.eq.s32.totalorder %s25, 0
    %p199 = por %p197, %p198
    %s201 = sadd.s32 %s200, 1
    %p204 = scmp.eq.s32.totalorder %s19, 1
    %p205 = scmp.ne.s32.totalorder %s200, %s202
    %p206 = scmp.eq.s32.totalorder %s19, 0
    %p207 = por %p205, %p206
    %p208 = scmp.ne.s32.totalorder %s200, %s202
    %p209 = scmp.eq.s32.totalorder %s24, 1
    %p210 = por %p208, %p209
    %p211 = scmp.ne.s32.totalorder %s202, %s203
    %p212 = scmp.eq.s32.totalorder %s24, 0
    %p213 = por %p211, %p212
    %p214 = scmp.ne.s32.totalorder %s202, %s203
    %p215 = scmp.eq.s32.totalorder %s25, 1
    %p216 = por %p214, %p215
    %p218 = scmp.ne.s32.totalorder %s203, %s217
    %p219 = scmp.eq.s32.totalorder %s25, 0
    %p220 = por %p218, %p219
    %s222 = sadd.s32 %s221, 1
    %p225 = scmp.eq.s32.totalorder %s19, 1
    %p226 = scmp.ne.s32.totalorder %s221, %s223
    %p227 = scmp.eq.s32.totalorder %s19, 0
    %p228 = por %p226, %p227
    %p229 = scmp.ne.s32.totalorder %s221, %s223
    %p230 = scmp.eq.s32.totalorder %s24, 1
    %p231 = por %p229, %p230
    %p232 = scmp.ne.s32.totalorder %s223, %s224
    %p233 = scmp.eq.s32.totalorder %s24, 0
    %p234 = por %p232, %p233
    %p235 = scmp.ne.s32.totalorder %s223, %s224
    %p236 = scmp.eq.s32.totalorder %s25, 1
    %p237 = por %p235, %p236
    %p239 = scmp.ne.s32.totalorder %s224, %s238
    %p240 = scmp.eq.s32.totalorder %s25, 0
    %p241 = por %p239, %p240
    %s243 = sadd.s32 %s242, 1
    %p246 = scmp.eq.s32.totalorder %s19, 1
    %p247 = scmp.ne.s32.totalorder %s242, %s244
    %p248 = scmp.eq.s32.totalorder %s19, 0
    %p249 = por %p247, %p248
    %p250 = scmp.ne.s32.totalorder %s242, %s244
    %p251 = scmp.eq.s32.totalorder %s24, 1
    %p252 = por %p250, %p251
    %p253 = scmp.ne.s32.totalorder %s244, %s245
    %p254 = scmp.eq.s32.totalorder %s24, 0
    %p255 = por %p253, %p254
    %p256 = scmp.ne.s32.totalorder %s244, %s245
    %p257 = scmp.eq.s32.totalorder %s25, 1
    %p258 = por %p256, %p257
    %p260 = scmp.ne.s32.totalorder %s245, %s259
    %p261 = scmp.eq.s32.totalorder %s25, 0
    %p262 = por %p260, %p261
    %s264 = sadd.s32 %s263, 1
    %p267 = scmp.eq.s32.totalorder %s19, 1
    %p268 = scmp.ne.s32.totalorder %s263, %s265
    %p269 = scmp.eq.s32.totalorder %s19, 0
    %p270 = por %p268, %p269
    %p271 = scmp.ne.s32.totalorder %s263, %s265
    %p272 = scmp.eq.s32.totalorder %s24, 1
    %p273 = por %p271, %p272
    %p274 = scmp.ne.s32.totalorder %s265, %s266
    %p275 = scmp.eq.s32.totalorder %s24, 0
    %p276 = por %p274, %p275
    %p277 = scmp.ne.s32.totalorder %s265, %s266
    %p278 = scmp.eq.s32.totalorder %s25, 1
    %p279 = por %p277, %p278
    %p281 = scmp.ne.s32.totalorder %s266, %s280
    %p282 = scmp.eq.s32.totalorder %s25, 0
    %p283 = por %p281, %p282
    %s285 = sadd.s32 %s284, 1
    %p288 = scmp.eq.s32.totalorder %s19, 1
    %p289 = scmp.ne.s32.totalorder %s284, %s286
    %p290 = scmp.eq.s32.totalorder %s19, 0
    %p291 = por %p289, %p290
    %p292 = scmp.ne.s32.totalorder %s284, %s286
    %p293 = scmp.eq.s32.totalorder %s24, 1
    %p294 = por %p292, %p293
    %p295 = scmp.ne.s32.totalorder %s286, %s287
    %p296 = scmp.eq.s32.totalorder %s24, 0
    %p297 = por %p295, %p296
    %p298 = scmp.ne.s32.totalorder %s286, %s287
    %p299 = scmp.eq.s32.totalorder %s25, 1
    %p300 = por %p298, %p299
    %p302 = scmp.ne.s32.totalorder %s287, %s301
    %p303 = scmp.eq.s32.totalorder %s25, 0
    %p304 = por %p302, %p303
    %s305 = ssub.s32 %s19, %s26
    %p306 = scmp.eq.s32.totalorder %s305, 0
    %s308 = sadd.s32 %s307, 1
    %s309 = scalar_select %p306, %s307, %s308
    %p312 = pneg %p306
    %p313 = scmp.eq.s32.totalorder %s19, 1
    %p314 = por %p312, %p313
    %p315 = scmp.ne.s32.totalorder %s307, %s310
    %p316 = scmp.eq.s32.totalorder %s19, 0
    %p317 = por %p315, %p316
    %p318 = scmp.ne.s32.totalorder %s307, %s310
    %p319 = scmp.eq.s32.totalorder %s24, 1
    %p320 = por %p318, %p319
    %p321 = scmp.ne.s32.totalorder %s310, %s311
    %p322 = scmp.eq.s32.totalorder %s24, 0
    %p323 = por %p321, %p322
    %p324 = scmp.ne.s32.totalorder %s310, %s311
    %p325 = scmp.eq.s32.totalorder %s25, 1
    %p326 = por %p324, %p325
    %p328 = scmp.ne.s32.totalorder %s311, %s327
    %p329 = scmp.eq.s32.totalorder %s25, 0
    %p330 = por %p328, %p329
    %p331 = scmp.le.s32.totalorder 1, %s19
    %p332 = scmp.lt.s32.totalorder %s19, 3
    %p333 = pnand %p331, %p332
    %p334 = pneg %p333
    // Predicated region
    $region9: #{transformer2e_forward.10} parent=5 // pred_check
      _
    $region10: #{transformer2e_forward.10} parent=5 // pred_check_branch
      %336 = sbr.rel (%p333) target = $region12
    $region11: #{transformer2e_forward.10} parent=5 // pred_region
      %s337 = ssub.s32 %s19, 1
      // Predicated region
      $region13: #{transformer2e_forward.10} parent=11 // pred_check
        %p338 = pneg %p66
      $region14: #{transformer2e_forward.10} parent=11 // pred_check_branch
        %340 = sbr.rel (%p338) target = $region16
      $region15: #{transformer2e_forward.10} parent=11 // pred_region
        _
      $region16: #{transformer2e_forward.10} parent=11 // pred_fallthru
        _
      // Predicated region
      $region17: #{transformer2e_forward.10} parent=11 // pred_check
        %p341 = pneg %p87
      $region18: #{transformer2e_forward.10} parent=11 // pred_check_branch
        %343 = sbr.rel (%p341) target = $region20
      $region19: #{transformer2e_forward.10} parent=11 // pred_region
        _
      $region20: #{transformer2e_forward.10} parent=11 // pred_fallthru
        _
      // Predicated region
      $region21: #{transformer2e_forward.10} parent=11 // pred_check
        %p344 = pneg %p108
      $region22: #{transformer2e_forward.10} parent=11 // pred_check_branch
        %346 = sbr.rel (%p344) target = $region24
      $region23: #{transformer2e_forward.10} parent=11 // pred_region
        _
      $region24: #{transformer2e_forward.10} parent=11 // pred_fallthru
        _
      // Predicated region
      $region25: #{transformer2e_forward.10} parent=11 // pred_check
        %p347 = pneg %p129
      $region26: #{transformer2e_forward.10} parent=11 // pred_check_branch
        %349 = sbr.rel (%p347) target = $region28
      $region27: #{transformer2e_forward.10} parent=11 // pred_region
        _
      $region28: #{transformer2e_forward.10} parent=11 // pred_fallthru
        _
      // Predicated region
      $region29: #{transformer2e_forward.10} parent=11 // pred_check
        %p350 = pneg %p150
      $region30: #{transformer2e_forward.10} parent=11 // pred_check_branch
        %352 = sbr.rel (%p350) target = $region32
      $region31: #{transformer2e_forward.10} parent=11 // pred_region
        _
      $region32: #{transformer2e_forward.10} parent=11 // pred_fallthru
        _
      // Predicated region
      $region33: #{transformer2e_forward.10} parent=11 // pred_check
        %p353 = pneg %p171
      $region34: #{transformer2e_forward.10} parent=11 // pred_check_branch
        %355 = sbr.rel (%p353) target = $region36
      $region35: #{transformer2e_forward.10} parent=11 // pred_region
        _
      $region36: #{transformer2e_forward.10} parent=11 // pred_fallthru
        _
      // Predicated region
      $region37: #{transformer2e_forward.10} parent=11 // pred_check
        %p356 = pneg %p192
      $region38: #{transformer2e_forward.10} parent=11 // pred_check_branch
        %358 = sbr.rel (%p356) target = $region40
      $region39: #{transformer2e_forward.10} parent=11 // pred_region
        _
      $region40: #{transformer2e_forward.10} parent=11 // pred_fallthru
        _
      // Predicated region
      $region41: #{transformer2e_forward.10} parent=11 // pred_check
        %p359 = pneg %p213
      $region42: #{transformer2e_forward.10} parent=11 // pred_check_branch
        %361 = sbr.rel (%p359) target = $region44
      $region43: #{transformer2e_forward.10} parent=11 // pred_region
        _
      $region44: #{transformer2e_forward.10} parent=11 // pred_fallthru
        _
      // Predicated region
      $region45: #{transformer2e_forward.10} parent=11 // pred_check
        %p362 = pneg %p234
      $region46: #{transformer2e_forward.10} parent=11 // pred_check_branch
        %364 = sbr.rel (%p362) target = $region48
      $region47: #{transformer2e_forward.10} parent=11 // pred_region
        _
      $region48: #{transformer2e_forward.10} parent=11 // pred_fallthru
        _
      // Predicated region
      $region49: #{transformer2e_forward.10} parent=11 // pred_check
        %p365 = pneg %p255
      $region50: #{transformer2e_forward.10} parent=11 // pred_check_branch
        %367 = sbr.rel (%p365) target = $region52
      $region51: #{transformer2e_forward.10} parent=11 // pred_region
        _
      $region52: #{transformer2e_forward.10} parent=11 // pred_fallthru
        _
      // Predicated region
      $region53: #{transformer2e_forward.10} parent=11 // pred_check
        %p368 = pneg %p276
      $region54: #{transformer2e_forward.10} parent=11 // pred_check_branch
        %370 = sbr.rel (%p368) target = $region56
      $region55: #{transformer2e_forward.10} parent=11 // pred_region
        _
      $region56: #{transformer2e_forward.10} parent=11 // pred_fallthru
        _
      // Predicated region
      $region57: #{transformer2e_forward.10} parent=11 // pred_check
        %p371 = pneg %p297
      $region58: #{transformer2e_forward.10} parent=11 // pred_check_branch
        %373 = sbr.rel (%p371) target = $region60
      $region59: #{transformer2e_forward.10} parent=11 // pred_region
        _
      $region60: #{transformer2e_forward.10} parent=11 // pred_fallthru
        _
    $region12: #{transformer2e_forward.10} parent=5 // pred_fallthru
      _
    %p374 = scmp.lt.s32.totalorder %s19, 2
    // Predicated region
    $region61: #{transformer2e_forward.10} parent=5 // pred_check
      %p375 = pneg %p374
    $region62: #{transformer2e_forward.10} parent=5 // pred_check_branch
      %377 = sbr.rel (%p375) target = $region64
    $region63: #{transformer2e_forward.10} parent=5 // pred_region
      // Predicated region
      $region65: #{transformer2e_forward.10} parent=63 // pred_check
        %p378 = pneg %p39
      $region66: #{transformer2e_forward.10} parent=63 // pred_check_branch
        %380 = sbr.rel (%p378) target = $region68
      $region67: #{transformer2e_forward.10} parent=63 // pred_region
        %p381 = scmp.lt.s32.totalorder %s19, 1
        %s382 = scalar_select %p381, %s19, 1
        %s383 = smul.addr %s382, 4
        %s384 = scalar_lea.vmem %s0, %s383
      $region68: #{transformer2e_forward.10} parent=63 // pred_fallthru
        _
    $region64: #{transformer2e_forward.10} parent=5 // pred_fallthru
      _
    %p385 = scmp.le.s32.totalorder 1, %s19
    %p386 = scmp.lt.s32.totalorder %s19, 3
    %p387 = pnand %p385, %p386
    %p388 = pneg %p387
    // Predicated region
    $region69: #{transformer2e_forward.10} parent=5 // pred_check
      _
    $region70: #{transformer2e_forward.10} parent=5 // pred_check_branch
      %390 = sbr.rel (%p387) target = $region72
    $region71: #{transformer2e_forward.10} parent=5 // pred_region
      %s391 = ssub.s32 %s19, 1
      %p392 = scmp.lt.s32.totalorder %s24, 1
      %s393 = scalar_select %p392, %s24, 1
      %s394 = smul.addr %s393, 4
      %s395 = scalar_lea.vmem %s0, %s394
      %p396 = pneg %p45
      %p397 = pneg %p42
      %p398 = pneg %p66
      %p399 = pneg %p63
      %p400 = pneg %p87
      %p401 = pneg %p84
      %p402 = pneg %p108
      %p403 = pneg %p105
      %p404 = pneg %p129
      %p405 = pneg %p126
      %p406 = pneg %p150
      %p407 = pneg %p147
      %p408 = pneg %p171
      %p409 = pneg %p168
      %p410 = pneg %p192
      %p411 = pneg %p189
      %p412 = pneg %p213
      %p413 = pneg %p210
      %p414 = pneg %p234
      %p415 = pneg %p231
      %p416 = pneg %p255
      %p417 = pneg %p252
      %p418 = pneg %p276
      %p419 = pneg %p273
      %p420 = pneg %p297
      %p421 = pneg %p294
      %p422 = pneg %p323
      %p423 = pneg %p320
      %p424 = scmp.lt.s32.totalorder %s24, 1
      %s425 = scalar_select %p424, %s24, 1
      %s426 = smul.addr %s425, 4
      %s427 = scalar_lea.vmem %s13, %s426
      %p428 = scmp.lt.s32.totalorder %s24, 1
      %s429 = scalar_select %p428, %s24, 1
      %s430 = smul.addr %s429, 4
      %s431 = scalar_lea.vmem %s0, %s430
      %p432 = scmp.lt.s32.totalorder %s24, 1
      %s433 = scalar_select %p432, %s24, 1
      %s434 = smul.addr %s433, 4
      %s435 = scalar_lea.vmem %s13, %s434
      %v437 = vld [vmem:[%s431] sm:$0xf]
      %v438 = vld [vmem:[%s1] sm:$0x1]
      %v439 = vld [vmem:[%s2] sm:$0x1]
      %vm440 = vcmask 257024
      %v441 = vsel %vm440, %v437, 0.0
      %442 = vadd.xlane.f32.xlu0 %v441
      %v443 = vpop.xlane.xlu0 %442
      %v444 = vrcp.pop 32.0
      %v445 = vmul.f32 32.0, %v444
      %v446 = vsub.f32 1.0, %v445
      %v447 = vmul.f32 %v444, %v446
      %v448 = vadd.f32 %v444, %v447
      %vm449 = vweird.f32 %v444
      %v450 = vsel %vm449, %v444, %v448
      %v451 = vmul.f32 %v443, %v450
      %v452 = vsub.f32 %v437, %v451
      %v453 = vmul.f32 %v452, %v452
      %v454 = vsel %vm440, %v453, 0.0
      %455 = vadd.xlane.f32.xlu0 %v454
      %v456 = vpop.xlane.xlu0 %455
      %v457 = vrcp.pop 31.0
      %v458 = vmul.f32 31.0, %v457
      %v459 = vsub.f32 1.0, %v458
      %v460 = vmul.f32 %v457, %v459
      %v461 = vadd.f32 %v457, %v460
      %vm462 = vweird.f32 %v457
      %v463 = vsel %vm462, %v457, %v461
      %v464 = vmul.f32 %v456, %v463
      %v465 = vrsqrt.pop %v464
      %v466 = vmul.f32 %v465, %v464
      %v467 = vmul.f32 %v466, %v465
      %v468 = vmul.f32 0.5, %v467
      %v469 = vsub.f32 1.5, %v468
      %v470 = vmul.f32 %v465, %v469
      %v471 = vmul.f32 %v464, %v470
      %vm472 = vcmp.eq.f32.partialorder %v464, inf
      %v473 = vsel %vm472, %v464, %v471
      %vm474 = vcmp.eq.f32.partialorder %v464, 0.0
      %v475 = vand.u32 %v464, 2147483648
      %v476 = vsel %vm474, %v475, %v473
      %v478 = vperm.slane %v438, 0
      %v480 = vmul.f32 %v478, %v452
      %v481 = vadd.f32 %v476, 1e-06
      %v482 = vrcp.pop %v481
      %v483 = vmul.f32 %v481, %v482
      %v484 = vsub.f32 1.0, %v483
      %v485 = vmul.f32 %v482, %v484
      %v486 = vadd.f32 %v482, %v485
      %vm487 = vweird.f32 %v481
      %vm488 = vweird.f32 %v482
      %vm489 = vmor %vm487, %vm488
      %v490 = vsel %vm489, %v482, %v486
      %v491 = vand.u32 2147483647, %v481
      %vm492 = vcmp.eq.f32.partialorder %v491, 8.507059e+37
      %v493 = vand.u32 %v481, 2147483648
      %v494 = vor.u32 1.1754944e-38, %v493
      %v495 = vsel %vm492, %v494, %v490
      %v496 = vmul.f32 %v480, %v495
      %v498 = vperm.slane %v439, 0
      %v500 = vadd.f32 %v496, %v498
      %v501 = vpack.c.bf16 %v500, %v500
      %v502 = vld [vmem:[%s3] sm:$0xf]
      %v503 = vld [vmem:[%s3 + $0x4] sm:$0xf]
      %v504 = vld [vmem:[%s3 + $0x8] sm:$0xf]
      %v505 = vld [vmem:[%s3 + $0xc] sm:$0xf]
      %v506 = vld [vmem:[%s4] sm:$0x1]
      %v508 = vperm.slane %v506, 0
      %v514 = vunpack.c.l.b16 %v502
      %v515 = vunpack.c.l.b16 %v503
      %v516 = vunpack.c.l.b16 %v504
      %v517 = vunpack.c.l.b16 %v505
      %v518 = vpack.c.b16 %v515, %v514
      %v519 = vpack.c.b16 %v517, %v516
      %vm522 = vcmask 261120
      %v524 = vsel %vm522, %v501, 0
      %526 = vmatpush.bf16.msra.mxu0 0
      %527 = vmatpush.bf16.msra.mxu0 0
      %528 = vmatpush.bf16.msra.mxu0 0
      %529 = vmatpush.bf16.msra.mxu0 0
      %530 = vmatpush.bf16.msra.mxu0 0
      %531 = vmatpush.bf16.msra.mxu0 0
      %532 = vmatpush.bf16.msra.mxu0 %v519
      %533 = vmatpush.bf16.msra.mxu0 %v518
      %534 = vmatmul.bf16.gmra.mxu0 %v524
      %v535 = vpop.f32.mrf.mxu0
      %v536 = vadd.f32 %v508, %v535
      %v537 = vpop.f32.mrf.mxu0
      %538 = vdwg.mxu0
      %540 = vrot.lane.b32.xlu0 %v536, 96
      %v541 = vpop.permute.xlu0 %540
      %vm542 = vcmask 64512
      %v543 = vsel %vm542, %v536, 0
      %v545 = vsel %vm542, %v541, 0
      %547 = vmatpush.xpose.msra.mxu0 0.0
      %548 = vmatpush.xpose.msra.mxu0 0.0
      %549 = vmatpush.xpose.msra.mxu0 0.0
      %550 = vmatpush.xpose.msra.mxu0 0.0
      %551 = vmatpush.xpose.msra.mxu0 0.0
      %552 = vmatpush.xpose.msra.mxu0 0.0
      %553 = vmatpush.xpose.msra.mxu0 0.0
      %554 = vmatpush.xpose.msra.mxu0 0.0
      %555 = vmatpush.xpose.msra.mxu0 0.0
      %556 = vmatpush.xpose.msra.mxu0 0.0
      %557 = vmatpush.xpose.msra.mxu0 0.0
      %558 = vmatpush.xpose.msra.mxu0 0.0
      %559 = vmatpush.xpose.msra.mxu0 0.0
      %560 = vmatpush.xpose.msra.mxu0 0.0
      %561 = vmatpush.xpose.msra.mxu0 0.0
      %562 = vmatpush.xpose.msra.mxu0 %v545
      %563 = vmatmul.f32.gmra.mxu0 %v543
      %v564 = vpop.f32.mrf.mxu0
      %v565 = vadd.f32 0.0, %v564
      %566 = vdwg.mxu0
      %v567 = vmul.f32 %v565, 0.35355338
      %vm568 = vcmask 27648
      %v569 = vsel %vm568, %v567, -inf
      %570 = vmax.xlane.f32.xlu0 %v569
      %v571 = vpop.xlane.xlu0 %570
      %v572 = vsub.f32 %v567, %v571
      %v573 = vmul.f32 %v572, 1.442695
      %v574 = vpow.pop %v573
      %v575 = vsel %vm568, %v574, 0.0
      %576 = vadd.xlane.f32.xlu0 %v575
      %v577 = vpop.xlane.xlu0 %576
      %v578 = vrcp.pop %v577
      %v579 = vmul.f32 %v574, %v578
      %580 = vrot.lane.b32.xlu0 %v536, 64
      %v581 = vpop.permute.xlu0 %580
      %vm582 = vcmask 31744
      %v584 = vsel %vm582, %v579, 0
      %vm586 = vcmask 1043456
      %v587 = vsel %vm586, %v581, 0
      %589 = vmatpush.msra.mxu0 0.0
      %590 = vmatpush.msra.mxu0 0.0
      %591 = vmatpush.msra.mxu0 0.0
      %592 = vmatpush.msra.mxu0 0.0
      %593 = vmatpush.msra.mxu0 0.0
      %594 = vmatpush.msra.mxu0 0.0
      %595 = vmatpush.msra.mxu0 0.0
      %596 = vmatpush.msra.mxu0 0.0
      %597 = vmatpush.msra.mxu0 0.0
      %598 = vmatpush.msra.mxu0 0.0
      %599 = vmatpush.msra.mxu0 0.0
      %600 = vmatpush.msra.mxu0 0.0
      %601 = vmatpush.msra.mxu0 0.0
      %602 = vmatpush.msra.mxu0 0.0
      %603 = vmatpush.msra.mxu0 0.0
      %604 = vmatpush.msra.mxu0 %v587
      %605 = vmatmul.f32.gmra.mxu0 %v584
      %v606 = vpop.f32.mrf.mxu0
      %v607 = vadd.f32 0.0, %v606
      %608 = vdwg.mxu0
      %609 = vrot.lane.b32.xlu0 %v536, 120
      %v610 = vpop.permute.xlu0 %609
      %611 = vrot.lane.b32.xlu0 %v536, 88
      %v612 = vpop.permute.xlu0 %611
      %v613 = vsel %vm542, %v610, 0
      %v615 = vsel %vm542, %v612, 0
      %617 = vmatpush.xpose.msra.mxu0 0.0
      %618 = vmatpush.xpose.msra.mxu0 0.0
      %619 = vmatpush.xpose.msra.mxu0 0.0
      %620 = vmatpush.xpose.msra.mxu0 0.0
      %621 = vmatpush.xpose.msra.mxu0 0.0
      %622 = vmatpush.xpose.msra.mxu0 0.0
      %623 = vmatpush.xpose.msra.mxu0 0.0
      %624 = vmatpush.xpose.msra.mxu0 0.0
      %625 = vmatpush.xpose.msra.mxu0 0.0
      %626 = vmatpush.xpose.msra.mxu0 0.0
      %627 = vmatpush.xpose.msra.mxu0 0.0
      %628 = vmatpush.xpose.msra.mxu0 0.0
      %629 = vmatpush.xpose.msra.mxu0 0.0
      %630 = vmatpush.xpose.msra.mxu0 0.0
      %631 = vmatpush.xpose.msra.mxu0 0.0
      %632 = vmatpush.xpose.msra.mxu0 %v615
      %633 = vmatmul.f32.gmra.mxu0 %v613
      %v634 = vpop.f32.mrf.mxu0
      %v635 = vadd.f32 0.0, %v634
      %636 = vdwg.mxu0
      %v637 = vmul.f32 %v635, 0.35355338
      %v638 = vsel %vm568, %v637, -inf
      %639 = vmax.xlane.f32.xlu0 %v638
      %v640 = vpop.xlane.xlu0 %639
      %v641 = vsub.f32 %v637, %v640
      %v642 = vmul.f32 %v641, 1.442695
      %v643 = vpow.pop %v642
      %v644 = vsel %vm568, %v643, 0.0
      %645 = vadd.xlane.f32.xlu0 %v644
      %v646 = vpop.xlane.xlu0 %645
      %v647 = vrcp.pop %v646
      %v648 = vmul.f32 %v643, %v647
      %649 = vrot.lane.b32.xlu0 %v536, 56
      %v650 = vpop.permute.xlu0 %649
      %v652 = vsel %vm582, %v648, 0
      %v654 = vsel %vm586, %v650, 0
      %656 = vmatpush.msra.mxu0 0.0
      %657 = vmatpush.msra.mxu0 0.0
      %658 = vmatpush.msra.mxu0 0.0
      %659 = vmatpush.msra.mxu0 0.0
      %660 = vmatpush.msra.mxu0 0.0
      %661 = vmatpush.msra.mxu0 0.0
      %662 = vmatpush.msra.mxu0 0.0
      %663 = vmatpush.msra.mxu0 0.0
      %664 = vmatpush.msra.mxu0 0.0
      %665 = vmatpush.msra.mxu0 0.0
      %666 = vmatpush.msra.mxu0 0.0
      %667 = vmatpush.msra.mxu0 0.0
      %668 = vmatpush.msra.mxu0 0.0
      %669 = vmatpush.msra.mxu0 0.0
      %670 = vmatpush.msra.mxu0 0.0
      %671 = vmatpush.msra.mxu0 %v654
      %672 = vmatmul.f32.gmra.mxu0 %v652
      %v673 = vpop.f32.mrf.mxu0
      %v674 = vadd.f32 0.0, %v673
      %675 = vdwg.mxu0
      %676 = vrot.lane.b32.xlu0 %v536, 112
      %v677 = vpop.permute.xlu0 %676
      %678 = vrot.lane.b32.xlu0 %v536, 80
      %v679 = vpop.permute.xlu0 %678
      %v680 = vsel %vm542, %v677, 0
      %v682 = vsel %vm542, %v679, 0
      %684 = vmatpush.xpose.msra.mxu0 0.0
      %685 = vmatpush.xpose.msra.mxu0 0.0
      %686 = vmatpush.xpose.msra.mxu0 0.0
      %687 = vmatpush.xpose.msra.mxu0 0.0
      %688 = vmatpush.xpose.msra.mxu0 0.0
      %689 = vmatpush.xpose.msra.mxu0 0.0
      %690 = vmatpush.xpose.msra.mxu0 0.0
      %691 = vmatpush.xpose.msra.mxu0 0.0
      %692 = vmatpush.xpose.msra.mxu0 0.0
      %693 = vmatpush.xpose.msra.mxu0 0.0
      %694 = vmatpush.xpose.msra.mxu0 0.0
      %695 = vmatpush.xpose.msra.mxu0 0.0
      %696 = vmatpush.xpose.msra.mxu0 0.0
      %697 = vmatpush.xpose.msra.mxu0 0.0
      %698 = vmatpush.xpose.msra.mxu0 0.0
      %699 = vmatpush.xpose.msra.mxu0 %v682
      %700 = vmatmul.f32.gmra.mxu0 %v680
      %v701 = vpop.f32.mrf.mxu0
      %v702 = vadd.f32 0.0, %v701
      %703 = vdwg.mxu0
      %v704 = vmul.f32 %v702, 0.35355338
      %v705 = vsel %vm568, %v704, -inf
      %706 = vmax.xlane.f32.xlu0 %v705
      %v707 = vpop.xlane.xlu0 %706
      %v708 = vsub.f32 %v704, %v707
      %v709 = vmul.f32 %v708, 1.442695
      %v710 = vpow.pop %v709
      %v711 = vsel %vm568, %v710, 0.0
      %712 = vadd.xlane.f32.xlu0 %v711
      %v713 = vpop.xlane.xlu0 %712
      %v714 = vrcp.pop %v713
      %v715 = vmul.f32 %v710, %v714
      %716 = vrot.lane.b32.xlu0 %v536, 48
      %v717 = vpop.permute.xlu0 %716
      %v719 = vsel %vm582, %v715, 0
      %v721 = vsel %vm586, %v717, 0
      %723 = vmatpush.msra.mxu0 0.0
      %724 = vmatpush.msra.mxu0 0.0
      %725 = vmatpush.msra.mxu0 0.0
      %726 = vmatpush.msra.mxu0 0.0
      %727 = vmatpush.msra.mxu0 0.0
      %728 = vmatpush.msra.mxu0 0.0
      %729 = vmatpush.msra.mxu0 0.0
      %730 = vmatpush.msra.mxu0 0.0
      %731 = vmatpush.msra.mxu0 0.0
      %732 = vmatpush.msra.mxu0 0.0
      %733 = vmatpush.msra.mxu0 0.0
      %734 = vmatpush.msra.mxu0 0.0
      %735 = vmatpush.msra.mxu0 0.0
      %736 = vmatpush.msra.mxu0 0.0
      %737 = vmatpush.msra.mxu0 0.0
      %738 = vmatpush.msra.mxu0 %v721
      %739 = vmatmul.f32.gmra.mxu0 %v719
      %v740 = vpop.f32.mrf.mxu0
      %v741 = vadd.f32 0.0, %v740
      %742 = vdwg.mxu0
      %743 = vrot.lane.b32.xlu0 %v536, 104
      %v744 = vpop.permute.xlu0 %743
      %745 = vrot.lane.b32.xlu0 %v536, 72
      %v746 = vpop.permute.xlu0 %745
      %v747 = vsel %vm542, %v744, 0
      %v749 = vsel %vm542, %v746, 0
      %751 = vmatpush.xpose.msra.mxu0 0.0
      %752 = vmatpush.xpose.msra.mxu0 0.0
      %753 = vmatpush.xpose.msra.mxu0 0.0
      %754 = vmatpush.xpose.msra.mxu0 0.0
      %755 = vmatpush.xpose.msra.mxu0 0.0
      %756 = vmatpush.xpose.msra.mxu0 0.0
      %757 = vmatpush.xpose.msra.mxu0 0.0
      %758 = vmatpush.xpose.msra.mxu0 0.0
      %759 = vmatpush.xpose.msra.mxu0 0.0
      %760 = vmatpush.xpose.msra.mxu0 0.0
      %761 = vmatpush.xpose.msra.mxu0 0.0
      %762 = vmatpush.xpose.msra.mxu0 0.0
      %763 = vmatpush.xpose.msra.mxu0 0.0
      %764 = vmatpush.xpose.msra.mxu0 0.0
      %765 = vmatpush.xpose.msra.mxu0 0.0
      %766 = vmatpush.xpose.msra.mxu0 %v749
      %767 = vmatmul.f32.gmra.mxu0 %v747
      %v768 = vpop.f32.mrf.mxu0
      %v769 = vadd.f32 0.0, %v768
      %770 = vdwg.mxu0
      %v771 = vmul.f32 %v769, 0.35355338
      %v772 = vsel %vm568, %v771, -inf
      %773 = vmax.xlane.f32.xlu0 %v772
      %v774 = vpop.xlane.xlu0 %773
      %v775 = vsub.f32 %v771, %v774
      %v776 = vmul.f32 %v775, 1.442695
      %v777 = vpow.pop %v776
      %v778 = vsel %vm568, %v777, 0.0
      %779 = vadd.xlane.f32.xlu0 %v778
      %v780 = vpop.xlane.xlu0 %779
      %v781 = vrcp.pop %v780
      %v782 = vmul.f32 %v777, %v781
      %783 = vrot.lane.b32.xlu0 %v536, 40
      %v784 = vpop.permute.xlu0 %783
      %v786 = vsel %vm582, %v782, 0
      %v788 = vsel %vm586, %v784, 0
      %790 = vmatpush.msra.mxu0 0.0
      %791 = vmatpush.msra.mxu0 0.0
      %792 = vmatpush.msra.mxu0 0.0
      %793 = vmatpush.msra.mxu0 0.0
      %794 = vmatpush.msra.mxu0 0.0
      %795 = vmatpush.msra.mxu0 0.0
      %796 = vmatpush.msra.mxu0 0.0
      %797 = vmatpush.msra.mxu0 0.0
      %798 = vmatpush.msra.mxu0 0.0
      %799 = vmatpush.msra.mxu0 0.0
      %800 = vmatpush.msra.mxu0 0.0
      %801 = vmatpush.msra.mxu0 0.0
      %802 = vmatpush.msra.mxu0 0.0
      %803 = vmatpush.msra.mxu0 0.0
      %804 = vmatpush.msra.mxu0 0.0
      %805 = vmatpush.msra.mxu0 %v788
      %806 = vmatmul.f32.gmra.mxu0 %v786
      %v807 = vpop.f32.mrf.mxu0
      %v808 = vadd.f32 0.0, %v807
      %809 = vdwg.mxu0
      %811 = vrot.lane.b32.xlu0 %v674, 8
      %v812 = vpop.permute.xlu0 %811
      %815 = vrot.lane.b32.xlu0 %v741, 16
      %v816 = vpop.permute.xlu0 %815
      %819 = vrot.lane.b32.xlu0 %v808, 24
      %v820 = vpop.permute.xlu0 %819
      %v822 = vsel %vm542, %v607, %v812
      %vm823 = vcmask 130048
      %v824 = vsel %vm823, %v822, %v816
      %vm825 = vcmask 195584
      %v826 = vsel %vm825, %v824, %v820
      %v827 = vpack.c.bf16 %v826, %v826
      %v828 = vld [vmem:[%s5] sm:$0xf]
      %v829 = vld [vmem:[%s5 + $0x4] sm:$0xf]
      %v830 = vld [vmem:[%s5 + $0x8] sm:$0xf]
      %v831 = vld [vmem:[%s5 + $0xc] sm:$0xf]
      %v832 = vld [vmem:[%s6] sm:$0x1]
      %v834 = vperm.slane %v832, 0
      %v840 = vunpack.c.l.b16 %v828
      %v841 = vunpack.c.l.b16 %v829
      %v842 = vunpack.c.l.b16 %v830
      %v843 = vunpack.c.l.b16 %v831
      %v844 = vpack.c.b16 %v841, %v840
      %v845 = vpack.c.b16 %v843, %v842
      %v849 = vsel %vm522, %v827, 0
      %851 = vmatpush.bf16.msra.mxu0 0
      %852 = vmatpush.bf16.msra.mxu0 0
      %853 = vmatpush.bf16.msra.mxu0 0
      %854 = vmatpush.bf16.msra.mxu0 0
      %855 = vmatpush.bf16.msra.mxu0 0
      %856 = vmatpush.bf16.msra.mxu0 0
      %857 = vmatpush.bf16.msra.mxu0 %v845
      %858 = vmatpush.bf16.msra.mxu0 %v844
      %859 = vmatmul.bf16.gmra.mxu0 %v849
      %v860 = vpop.f32.mrf.mxu0
      %v861 = vadd.f32 %v834, %v860
      %v862 = vpop.f32.mrf.mxu0
      %863 = vdwg.mxu0
      %v864 = vadd.f32 %v437, %v861
      %v865 = vld [vmem:[%s7] sm:$0x1]
      %v866 = vld [vmem:[%s8] sm:$0x1]
      %v867 = vsel %vm440, %v864, 0.0
      %868 = vadd.xlane.f32.xlu0 %v867
      %v869 = vpop.xlane.xlu0 %868
      %v870 = vmul.f32 %v869, %v450
      %v871 = vsub.f32 %v864, %v870
      %v872 = vmul.f32 %v871, %v871
      %v873 = vsel %vm440, %v872, 0.0
      %874 = vadd.xlane.f32.xlu0 %v873
      %v875 = vpop.xlane.xlu0 %874
      %v876 = vmul.f32 %v875, %v463
      %v877 = vrsqrt.pop %v876
      %v878 = vmul.f32 %v877, %v876
      %v879 = vmul.f32 %v878, %v877
      %v880 = vmul.f32 0.5, %v879
      %v881 = vsub.f32 1.5, %v880
      %v882 = vmul.f32 %v877, %v881
      %v883 = vmul.f32 %v876, %v882
      %vm884 = vcmp.eq.f32.partialorder %v876, inf
      %v885 = vsel %vm884, %v876, %v883
      %vm886 = vcmp.eq.f32.partialorder %v876, 0.0
      %v887 = vand.u32 %v876, 2147483648
      %v888 = vsel %vm886, %v887, %v885
      %v890 = vperm.slane %v865, 0
      %v892 = vmul.f32 %v890, %v871
      %v893 = vadd.f32 %v888, 1e-06
      %v894 = vrcp.pop %v893
      %v895 = vmul.f32 %v893, %v894
      %v896 = vsub.f32 1.0, %v895
      %v897 = vmul.f32 %v894, %v896
      %v898 = vadd.f32 %v894, %v897
      %vm899 = vweird.f32 %v893
      %vm900 = vweird.f32 %v894
      %vm901 = vmor %vm899, %vm900
      %v902 = vsel %vm901, %v894, %v898
      %v903 = vand.u32 2147483647, %v893
      %vm904 = vcmp.eq.f32.partialorder %v903, 8.507059e+37
      %v905 = vand.u32 %v893, 2147483648
      %v906 = vor.u32 1.1754944e-38, %v905
      %v907 = vsel %vm904, %v906, %v902
      %v908 = vmul.f32 %v892, %v907
      %v910 = vperm.slane %v866, 0
      %v912 = vadd.f32 %v908, %v910
      %v913 = vpack.c.bf16 %v912, %v912
      %v914 = vld [vmem:[%s9] sm:$0xff]
      %v915 = vld [vmem:[%s9 + $0x8] sm:$0xff]
      %v916 = vld [vmem:[%s9 + $0x40] sm:$0xff]
      %v917 = vld [vmem:[%s9 + $0x48] sm:$0xff]
      %v918 = vld [vmem:[%s9 + $0x80] sm:$0xff]
      %v919 = vld [vmem:[%s9 + $0x88] sm:$0xff]
      %v920 = vld [vmem:[%s9 + $0xc0] sm:$0xff]
      %v921 = vld [vmem:[%s9 + $0xc8] sm:$0xff]
      %v922 = vld [vmem:[%s10] sm:$0xf]
      %v924 = vperm.slane %v922, 0
      %v925 = vperm.slane %v922, 1
      %v926 = vperm.slane %v922, 2
      %v927 = vperm.slane %v922, 3
      %v940 = vunpack.c.l.b16 %v914
      %v941 = vunpack.c.h.b16 %v914
      %v942 = vunpack.c.l.b16 %v915
      %v943 = vunpack.c.h.b16 %v915
      %v944 = vunpack.c.l.b16 %v916
      %v945 = vunpack.c.h.b16 %v916
      %v946 = vunpack.c.l.b16 %v917
      %v947 = vunpack.c.h.b16 %v917
      %v948 = vunpack.c.l.b16 %v918
      %v949 = vunpack.c.h.b16 %v918
      %v950 = vunpack.c.l.b16 %v919
      %v951 = vunpack.c.h.b16 %v919
      %v952 = vunpack.c.l.b16 %v920
      %v953 = vunpack.c.h.b16 %v920
      %v954 = vunpack.c.l.b16 %v921
      %v955 = vunpack.c.h.b16 %v921
      %v956 = vpack.c.b16 %v944, %v940
      %v957 = vpack.c.b16 %v945, %v941
      %v958 = vpack.c.b16 %v946, %v942
      %v959 = vpack.c.b16 %v947, %v943
      %v960 = vpack.c.b16 %v952, %v948
      %v961 = vpack.c.b16 %v953, %v949
      %v962 = vpack.c.b16 %v954, %v950
      %v963 = vpack.c.b16 %v955, %v951
      %v973 = vsel %vm522, %v913, 0
      %975 = vmatpush.bf16.msra.mxu0 0
      %976 = vmatpush.bf16.msra.mxu0 0
      %977 = vmatpush.bf16.msra.mxu0 0
      %978 = vmatpush.bf16.msra.mxu0 0
      %979 = vmatpush.bf16.msra.mxu0 0
      %980 = vmatpush.bf16.msra.mxu0 0
      %981 = vmatpush.bf16.msra.mxu0 %v960
      %982 = vmatpush.bf16.msra.mxu0 %v956
      %983 = vmatmul.bf16.gmra.mxu0 %v973
      %v984 = vpop.f32.mrf.mxu0
      %v985 = vadd.f32 %v924, %v984
      %v986 = vpop.f32.mrf.mxu0
      %987 = vdwg.mxu0
      %988 = vmatpush.bf16.msra.mxu0 0
      %989 = vmatpush.bf16.msra.mxu0 0
      %990 = vmatpush.bf16.msra.mxu0 0
      %991 = vmatpush.bf16.msra.mxu0 0
      %992 = vmatpush.bf16.msra.mxu0 0
      %993 = vmatpush.bf16.msra.mxu0 0
      %994 = vmatpush.bf16.msra.mxu0 %v961
      %995 = vmatpush.bf16.msra.mxu0 %v957
      %996 = vmatmul.bf16.gmra.mxu0 %v973
      %v997 = vpop.f32.mrf.mxu0
      %v998 = vadd.f32 %v925, %v997
      %v999 = vpop.f32.mrf.mxu0
      %1000 = vdwg.mxu0
      %1001 = vmatpush.bf16.msra.mxu0 0
      %1002 = vmatpush.bf16.msra.mxu0 0
      %1003 = vmatpush.bf16.msra.mxu0 0
      %1004 = vmatpush.bf16.msra.mxu0 0
      %1005 = vmatpush.bf16.msra.mxu0 0
      %1006 = vmatpush.bf16.msra.mxu0 0
      %1007 = vmatpush.bf16.msra.mxu0 %v962
      %1008 = vmatpush.bf16.msra.mxu0 %v958
      %1009 = vmatmul.bf16.gmra.mxu0 %v973
      %v1010 = vpop.f32.mrf.mxu0
      %v1011 = vadd.f32 %v926, %v1010
      %v1012 = vpop.f32.mrf.mxu0
      %1013 = vdwg.mxu0
      %1014 = vmatpush.bf16.msra.mxu0 0
      %1015 = vmatpush.bf16.msra.mxu0 0
      %1016 = vmatpush.bf16.msra.mxu0 0
      %1017 = vmatpush.bf16.msra.mxu0 0
      %1018 = vmatpush.bf16.msra.mxu0 0
      %1019 = vmatpush.bf16.msra.mxu0 0
      %1020 = vmatpush.bf16.msra.mxu0 %v963
      %1021 = vmatpush.bf16.msra.mxu0 %v959
      %1022 = vmatmul.bf16.gmra.mxu0 %v973
      %v1023 = vpop.f32.mrf.mxu0
      %v1024 = vadd.f32 %v927, %v1023
      %v1025 = vpop.f32.mrf.mxu0
      %1026 = vdwg.mxu0
      %v1027 = vmax.f32 %v985, 0.0
      %v1028 = vmax.f32 %v998, 0.0
      %v1029 = vmax.f32 %v1011, 0.0
      %v1030 = vmax.f32 %v1024, 0.0
      %v1031 = vpack.c.bf16 %v1027, %v1027
      %v1032 = vpack.c.bf16 %v1028, %v1028
      %v1033 = vpack.c.bf16 %v1029, %v1029
      %v1034 = vpack.c.bf16 %v1030, %v1030
      %v1035 = vld [vmem:[%s11] sm:$0xf]
      %v1036 = vld [vmem:[%s11 + $0x4] sm:$0xf]
      %v1037 = vld [vmem:[%s11 + $0x8] sm:$0xf]
      %v1038 = vld [vmem:[%s11 + $0xc] sm:$0xf]
      %v1039 = vld [vmem:[%s11 + $0x10] sm:$0xf]
      %v1040 = vld [vmem:[%s11 + $0x14] sm:$0xf]
      %v1041 = vld [vmem:[%s11 + $0x18] sm:$0xf]
      %v1042 = vld [vmem:[%s11 + $0x1c] sm:$0xf]
      %v1043 = vld [vmem:[%s11 + $0x20] sm:$0xf]
      %v1044 = vld [vmem:[%s11 + $0x24] sm:$0xf]
      %v1045 = vld [vmem:[%s11 + $0x28] sm:$0xf]
      %v1046 = vld [vmem:[%s11 + $0x2c] sm:$0xf]
      %v1047 = vld [vmem:[%s11 + $0x30] sm:$0xf]
      %v1048 = vld [vmem:[%s11 + $0x34] sm:$0xf]
      %v1049 = vld [vmem:[%s11 + $0x38] sm:$0xf]
      %v1050 = vld [vmem:[%s11 + $0x3c] sm:$0xf]
      %v1051 = vld [vmem:[%s11 + $0x40] sm:$0xf]
      %v1052 = vld [vmem:[%s11 + $0x44] sm:$0xf]
      %v1053 = vld [vmem:[%s11 + $0x48] sm:$0xf]
      %v1054 = vld [vmem:[%s11 + $0x4c] sm:$0xf]
      %v1055 = vld [vmem:[%s11 + $0x50] sm:$0xf]
      %v1056 = vld [vmem:[%s11 + $0x54] sm:$0xf]
      %v1057 = vld [vmem:[%s11 + $0x58] sm:$0xf]
      %v1058 = vld [vmem:[%s11 + $0x5c] sm:$0xf]
      %v1059 = vld [vmem:[%s11 + $0x60] sm:$0xf]
      %v1060 = vld [vmem:[%s11 + $0x64] sm:$0xf]
      %v1061 = vld [vmem:[%s11 + $0x68] sm:$0xf]
      %v1062 = vld [vmem:[%s11 + $0x6c] sm:$0xf]
      %v1063 = vld [vmem:[%s11 + $0x70] sm:$0xf]
      %v1064 = vld [vmem:[%s11 + $0x74] sm:$0xf]
      %v1065 = vld [vmem:[%s11 + $0x78] sm:$0xf]
      %v1066 = vld [vmem:[%s11 + $0x7c] sm:$0xf]
      %v1067 = vld [vmem:[%s11 + $0x80] sm:$0xf]
      %v1068 = vld [vmem:[%s11 + $0x84] sm:$0xf]
      %v1069 = vld [vmem:[%s11 + $0x88] sm:$0xf]
      %v1070 = vld [vmem:[%s11 + $0x8c] sm:$0xf]
      %v1071 = vld [vmem:[%s11 + $0x90] sm:$0xf]
      %v1072 = vld [vmem:[%s11 + $0x94] sm:$0xf]
      %v1073 = vld [vmem:[%s11 + $0x98] sm:$0xf]
      %v1074 = vld [vmem:[%s11 + $0x9c] sm:$0xf]
      %v1075 = vld [vmem:[%s11 + $0xa0] sm:$0xf]
      %v1076 = vld [vmem:[%s11 + $0xa4] sm:$0xf]
      %v1077 = vld [vmem:[%s11 + $0xa8] sm:$0xf]
      %v1078 = vld [vmem:[%s11 + $0xac] sm:$0xf]
      %v1079 = vld [vmem:[%s11 + $0xb0] sm:$0xf]
      %v1080 = vld [vmem:[%s11 + $0xb4] sm:$0xf]
      %v1081 = vld [vmem:[%s11 + $0xb8] sm:$0xf]
      %v1082 = vld [vmem:[%s11 + $0xbc] sm:$0xf]
      %v1083 = vld [vmem:[%s11 + $0xc0] sm:$0xf]
      %v1084 = vld [vmem:[%s11 + $0xc4] sm:$0xf]
      %v1085 = vld [vmem:[%s11 + $0xc8] sm:$0xf]
      %v1086 = vld [vmem:[%s11 + $0xcc] sm:$0xf]
      %v1087 = vld [vmem:[%s11 + $0xd0] sm:$0xf]
      %v1088 = vld [vmem:[%s11 + $0xd4] sm:$0xf]
      %v1089 = vld [vmem:[%s11 + $0xd8] sm:$0xf]
      %v1090 = vld [vmem:[%s11 + $0xdc] sm:$0xf]
      %v1091 = vld [vmem:[%s11 + $0xe0] sm:$0xf]
      %v1092 = vld [vmem:[%s11 + $0xe4] sm:$0xf]
      %v1093 = vld [vmem:[%s11 + $0xe8] sm:$0xf]
      %v1094 = vld [vmem:[%s11 + $0xec] sm:$0xf]
      %v1095 = vld [vmem:[%s11 + $0xf0] sm:$0xf]
      %v1096 = vld [vmem:[%s11 + $0xf4] sm:$0xf]
      %v1097 = vld [vmem:[%s11 + $0xf8] sm:$0xf]
      %v1098 = vld [vmem:[%s11 + $0xfc] sm:$0xf]
      %v1099 = vld [vmem:[%s9 + $0x10] sm:$0xff]
      %v1100 = vld [vmem:[%s9 + $0x18] sm:$0xff]
      %v1101 = vld [vmem:[%s9 + $0x50] sm:$0xff]
      %v1102 = vld [vmem:[%s9 + $0x58] sm:$0xff]
      %v1103 = vld [vmem:[%s9 + $0x90] sm:$0xff]
      %v1104 = vld [vmem:[%s9 + $0x98] sm:$0xff]
      %v1105 = vld [vmem:[%s9 + $0xd0] sm:$0xff]
      %v1106 = vld [vmem:[%s9 + $0xd8] sm:$0xff]
      %v1107 = vld [vmem:[%s10 + $0x4] sm:$0xf]
      %v1109 = vperm.slane %v1107, 0
      %v1110 = vperm.slane %v1107, 1
      %v1111 = vperm.slane %v1107, 2
      %v1112 = vperm.slane %v1107, 3
      %v1125 = vunpack.c.l.b16 %v1099
      %v1126 = vunpack.c.h.b16 %v1099
      %v1127 = vunpack.c.l.b16 %v1100
      %v1128 = vunpack.c.h.b16 %v1100
      %v1129 = vunpack.c.l.b16 %v1101
      %v1130 = vunpack.c.h.b16 %v1101
      %v1131 = vunpack.c.l.b16 %v1102
      %v1132 = vunpack.c.h.b16 %v1102
      %v1133 = vunpack.c.l.b16 %v1103
      %v1134 = vunpack.c.h.b16 %v1103
      %v1135 = vunpack.c.l.b16 %v1104
      %v1136 = vunpack.c.h.b16 %v1104
      %v1137 = vunpack.c.l.b16 %v1105
      %v1138 = vunpack.c.h.b16 %v1105
      %v1139 = vunpack.c.l.b16 %v1106
      %v1140 = vunpack.c.h.b16 %v1106
      %v1141 = vpack.c.b16 %v1129, %v1125
      %v1142 = vpack.c.b16 %v1130, %v1126
      %v1143 = vpack.c.b16 %v1131, %v1127
      %v1144 = vpack.c.b16 %v1132, %v1128
      %v1145 = vpack.c.b16 %v1137, %v1133
      %v1146 = vpack.c.b16 %v1138, %v1134
      %v1147 = vpack.c.b16 %v1139, %v1135
      %v1148 = vpack.c.b16 %v1140, %v1136
      %1157 = vmatpush.bf16.msra.mxu0 0
      %1158 = vmatpush.bf16.msra.mxu0 0
      %1159 = vmatpush.bf16.msra.mxu0 0
      %1160 = vmatpush.bf16.msra.mxu0 0
      %1161 = vmatpush.bf16.msra.mxu0 0
      %1162 = vmatpush.bf16.msra.mxu0 0
      %1163 = vmatpush.bf16.msra.mxu0 %v1145
      %1164 = vmatpush.bf16.msra.mxu0 %v1141
      %1165 = vmatmul.bf16.gmra.mxu0 %v973
      %v1166 = vpop.f32.mrf.mxu0
      %v1167 = vadd.f32 %v1109, %v1166
      %v1168 = vpop.f32.mrf.mxu0
      %1169 = vdwg.mxu0
      %1170 = vmatpush.bf16.msra.mxu0 0
      %1171 = vmatpush.bf16.msra.mxu0 0
      %1172 = vmatpush.bf16.msra.mxu0 0
      %1173 = vmatpush.bf16.msra.mxu0 0
      %1174 = vmatpush.bf16.msra.mxu0 0
      %1175 = vmatpush.bf16.msra.mxu0 0
      %1176 = vmatpush.bf16.msra.mxu0 %v1146
      %1177 = vmatpush.bf16.msra.mxu0 %v1142
      %1178 = vmatmul.bf16.gmra.mxu0 %v973
      %v1179 = vpop.f32.mrf.mxu0
      %v1180 = vadd.f32 %v1110, %v1179
      %v1181 = vpop.f32.mrf.mxu0
      %1182 = vdwg.mxu0
      %1183 = vmatpush.bf16.msra.mxu0 0
      %1184 = vmatpush.bf16.msra.mxu0 0
      %1185 = vmatpush.bf16.msra.mxu0 0
      %1186 = vmatpush.bf16.msra.mxu0 0
      %1187 = vmatpush.bf16.msra.mxu0 0
      %1188 = vmatpush.bf16.msra.mxu0 0
      %1189 = vmatpush.bf16.msra.mxu0 %v1147
      %1190 = vmatpush.bf16.msra.mxu0 %v1143
      %1191 = vmatmul.bf16.gmra.mxu0 %v973
      %v1192 = vpop.f32.mrf.mxu0
      %v1193 = vadd.f32 %v1111, %v1192
      %v1194 = vpop.f32.mrf.mxu0
      %1195 = vdwg.mxu0
      %1196 = vmatpush.bf16.msra.mxu0 0
      %1197 = vmatpush.bf16.msra.mxu0 0
      %1198 = vmatpush.bf16.msra.mxu0 0
      %1199 = vmatpush.bf16.msra.mxu0 0
      %1200 = vmatpush.bf16.msra.mxu0 0
      %1201 = vmatpush.bf16.msra.mxu0 0
      %1202 = vmatpush.bf16.msra.mxu0 %v1148
      %1203 = vmatpush.bf16.msra.mxu0 %v1144
      %1204 = vmatmul.bf16.gmra.mxu0 %v973
      %v1205 = vpop.f32.mrf.mxu0
      %v1206 = vadd.f32 %v1112, %v1205
      %v1207 = vpop.f32.mrf.mxu0
      %1208 = vdwg.mxu0
      %v1209 = vmax.f32 %v1167, 0.0
      %v1210 = vmax.f32 %v1180, 0.0
      %v1211 = vmax.f32 %v1193, 0.0
      %v1212 = vmax.f32 %v1206, 0.0
      %v1213 = vpack.c.bf16 %v1209, %v1209
      %v1214 = vpack.c.bf16 %v1210, %v1210
      %v1215 = vpack.c.bf16 %v1211, %v1211
      %v1216 = vpack.c.bf16 %v1212, %v1212
      %v1217 = vld [vmem:[%s11 + $0x100] sm:$0xf]
      %v1218 = vld [vmem:[%s11 + $0x104] sm:$0xf]
      %v1219 = vld [vmem:[%s11 + $0x108] sm:$0xf]
      %v1220 = vld [vmem:[%s11 + $0x10c] sm:$0xf]
      %v1221 = vld [vmem:[%s11 + $0x110] sm:$0xf]
      %v1222 = vld [vmem:[%s11 + $0x114] sm:$0xf]
      %v1223 = vld [vmem:[%s11 + $0x118] sm:$0xf]
      %v1224 = vld [vmem:[%s11 + $0x11c] sm:$0xf]
      %v1225 = vld [vmem:[%s11 + $0x120] sm:$0xf]
      %v1226 = vld [vmem:[%s11 + $0x124] sm:$0xf]
      %v1227 = vld [vmem:[%s11 + $0x128] sm:$0xf]
      %v1228 = vld [vmem:[%s11 + $0x12c] sm:$0xf]
      %v1229 = vld [vmem:[%s11 + $0x130] sm:$0xf]
      %v1230 = vld [vmem:[%s11 + $0x134] sm:$0xf]
      %v1231 = vld [vmem:[%s11 + $0x138] sm:$0xf]
      %v1232 = vld [vmem:[%s11 + $0x13c] sm:$0xf]
      %v1233 = vld [vmem:[%s11 + $0x140] sm:$0xf]
      %v1234 = vld [vmem:[%s11 + $0x144] sm:$0xf]
      %v1235 = vld [vmem:[%s11 + $0x148] sm:$0xf]
      %v1236 = vld [vmem:[%s11 + $0x14c] sm:$0xf]
      %v1237 = vld [vmem:[%s11 + $0x150] sm:$0xf]
      %v1238 = vld [vmem:[%s11 + $0x154] sm:$0xf]
      %v1239 = vld [vmem:[%s11 + $0x158] sm:$0xf]
      %v1240 = vld [vmem:[%s11 + $0x15c] sm:$0xf]
      %v1241 = vld [vmem:[%s11 + $0x160] sm:$0xf]
      %v1242 = vld [vmem:[%s11 + $0x164] sm:$0xf]
      %v1243 = vld [vmem:[%s11 + $0x168] sm:$0xf]
      %v1244 = vld [vmem:[%s11 + $0x16c] sm:$0xf]
      %v1245 = vld [vmem:[%s11 + $0x170] sm:$0xf]
      %v1246 = vld [vmem:[%s11 + $0x174] sm:$0xf]
      %v1247 = vld [vmem:[%s11 + $0x178] sm:$0xf]
      %v1248 = vld [vmem:[%s11 + $0x17c] sm:$0xf]
      %v1249 = vld [vmem:[%s11 + $0x180] sm:$0xf]
      %v1250 = vld [vmem:[%s11 + $0x184] sm:$0xf]
      %v1251 = vld [vmem:[%s11 + $0x188] sm:$0xf]
      %v1252 = vld [vmem:[%s11 + $0x18c] sm:$0xf]
      %v1253 = vld [vmem:[%s11 + $0x190] sm:$0xf]
      %v1254 = vld [vmem:[%s11 + $0x194] sm:$0xf]
      %v1255 = vld [vmem:[%s11 + $0x198] sm:$0xf]
      %v1256 = vld [vmem:[%s11 + $0x19c] sm:$0xf]
      %v1257 = vld [vmem:[%s11 + $0x1a0] sm:$0xf]
      %v1258 = vld [vmem:[%s11 + $0x1a4] sm:$0xf]
      %v1259 = vld [vmem:[%s11 + $0x1a8] sm:$0xf]
      %v1260 = vld [vmem:[%s11 + $0x1ac] sm:$0xf]
      %v1261 = vld [vmem:[%s11 + $0x1b0] sm:$0xf]
      %v1262 = vld [vmem:[%s11 + $0x1b4] sm:$0xf]
      %v1263 = vld [vmem:[%s11 + $0x1b8] sm:$0xf]
      %v1264 = vld [vmem:[%s11 + $0x1bc] sm:$0xf]
      %v1265 = vld [vmem:[%s11 + $0x1c0] sm:$0xf]
      %v1266 = vld [vmem:[%s11 + $0x1c4] sm:$0xf]
      %v1267 = vld [vmem:[%s11 + $0x1c8] sm:$0xf]
      %v1268 = vld [vmem:[%s11 + $0x1cc] sm:$0xf]
      %v1269 = vld [vmem:[%s11 + $0x1d0] sm:$0xf]
      %v1270 = vld [vmem:[%s11 + $0x1d4] sm:$0xf]
      %v1271 = vld [vmem:[%s11 + $0x1d8] sm:$0xf]
      %v1272 = vld [vmem:[%s11 + $0x1dc] sm:$0xf]
      %v1273 = vld [vmem:[%s11 + $0x1e0] sm:$0xf]
      %v1274 = vld [vmem:[%s11 + $0x1e4] sm:$0xf]
      %v1275 = vld [vmem:[%s11 + $0x1e8] sm:$0xf]
      %v1276 = vld [vmem:[%s11 + $0x1ec] sm:$0xf]
      %v1277 = vld [vmem:[%s11 + $0x1f0] sm:$0xf]
      %v1278 = vld [vmem:[%s11 + $0x1f4] sm:$0xf]
      %v1279 = vld [vmem:[%s11 + $0x1f8] sm:$0xf]
      %v1280 = vld [vmem:[%s11 + $0x1fc] sm:$0xf]
      %v1345 = vunpack.c.l.b16 %v1217
      %v1346 = vunpack.c.l.b16 %v1218
      %v1347 = vunpack.c.l.b16 %v1219
      %v1348 = vunpack.c.l.b16 %v1220
      %v1349 = vunpack.c.l.b16 %v1221
      %v1350 = vunpack.c.l.b16 %v1222
      %v1351 = vunpack.c.l.b16 %v1223
      %v1352 = vunpack.c.l.b16 %v1224
      %v1353 = vunpack.c.l.b16 %v1225
      %v1354 = vunpack.c.l.b16 %v1226
      %v1355 = vunpack.c.l.b16 %v1227
      %v1356 = vunpack.c.l.b16 %v1228
      %v1357 = vunpack.c.l.b16 %v1229
      %v1358 = vunpack.c.l.b16 %v1230
      %v1359 = vunpack.c.l.b16 %v1231
      %v1360 = vunpack.c.l.b16 %v1232
      %v1361 = vunpack.c.l.b16 %v1233
      %v1362 = vunpack.c.l.b16 %v1234
      %v1363 = vunpack.c.l.b16 %v1235
      %v1364 = vunpack.c.l.b16 %v1236
      %v1365 = vunpack.c.l.b16 %v1237
      %v1366 = vunpack.c.l.b16 %v1238
      %v1367 = vunpack.c.l.b16 %v1239
      %v1368 = vunpack.c.l.b16 %v1240
      %v1369 = vunpack.c.l.b16 %v1241
      %v1370 = vunpack.c.l.b16 %v1242
      %v1371 = vunpack.c.l.b16 %v1243
      %v1372 = vunpack.c.l.b16 %v1244
      %v1373 = vunpack.c.l.b16 %v1245
      %v1374 = vunpack.c.l.b16 %v1246
      %v1375 = vunpack.c.l.b16 %v1247
      %v1376 = vunpack.c.l.b16 %v1248
      %v1377 = vunpack.c.l.b16 %v1249
      %v1378 = vunpack.c.l.b16 %v1250
      %v1379 = vunpack.c.l.b16 %v1251
      %v1380 = vunpack.c.l.b16 %v1252
      %v1381 = vunpack.c.l.b16 %v1253
      %v1382 = vunpack.c.l.b16 %v1254
      %v1383 = vunpack.c.l.b16 %v1255
      %v1384 = vunpack.c.l.b16 %v1256
      %v1385 = vunpack.c.l.b16 %v1257
      %v1386 = vunpack.c.l.b16 %v1258
      %v1387 = vunpack.c.l.b16 %v1259
      %v1388 = vunpack.c.l.b16 %v1260
      %v1389 = vunpack.c.l.b16 %v1261
      %v1390 = vunpack.c.l.b16 %v1262
      %v1391 = vunpack.c.l.b16 %v1263
      %v1392 = vunpack.c.l.b16 %v1264
      %v1393 = vunpack.c.l.b16 %v1265
      %v1394 = vunpack.c.l.b16 %v1266
      %v1395 = vunpack.c.l.b16 %v1267
      %v1396 = vunpack.c.l.b16 %v1268
      %v1397 = vunpack.c.l.b16 %v1269
      %v1398 = vunpack.c.l.b16 %v1270
      %v1399 = vunpack.c.l.b16 %v1271
      %v1400 = vunpack.c.l.b16 %v1272
      %v1401 = vunpack.c.l.b16 %v1273
      %v1402 = vunpack.c.l.b16 %v1274
      %v1403 = vunpack.c.l.b16 %v1275
      %v1404 = vunpack.c.l.b16 %v1276
      %v1405 = vunpack.c.l.b16 %v1277
      %v1406 = vunpack.c.l.b16 %v1278
      %v1407 = vunpack.c.l.b16 %v1279
      %v1408 = vunpack.c.l.b16 %v1280
      %v1409 = vpack.c.b16 %v1346, %v1345
      %v1410 = vpack.c.b16 %v1348, %v1347
      %v1411 = vpack.c.b16 %v1350, %v1349
      %v1412 = vpack.c.b16 %v1352, %v1351
      %v1413 = vpack.c.b16 %v1354, %v1353
      %v1414 = vpack.c.b16 %v1356, %v1355
      %v1415 = vpack.c.b16 %v1358, %v1357
      %v1416 = vpack.c.b16 %v1360, %v1359
      %v1417 = vpack.c.b16 %v1362, %v1361
      %v1418 = vpack.c.b16 %v1364, %v1363
      %v1419 = vpack.c.b16 %v1366, %v1365
      %v1420 = vpack.c.b16 %v1368, %v1367
      %v1421 = vpack.c.b16 %v1370, %v1369
      %v1422 = vpack.c.b16 %v1372, %v1371
      %v1423 = vpack.c.b16 %v1374, %v1373
      %v1424 = vpack.c.b16 %v1376, %v1375
      %v1425 = vpack.c.b16 %v1378, %v1377
      %v1426 = vpack.c.b16 %v1380, %v1379
      %v1427 = vpack.c.b16 %v1382, %v1381
      %v1428 = vpack.c.b16 %v1384, %v1383
      %v1429 = vpack.c.b16 %v1386, %v1385
      %v1430 = vpack.c.b16 %v1388, %v1387
      %v1431 = vpack.c.b16 %v1390, %v1389
      %v1432 = vpack.c.b16 %v1392, %v1391
      %v1433 = vpack.c.b16 %v1394, %v1393
      %v1434 = vpack.c.b16 %v1396, %v1395
      %v1435 = vpack.c.b16 %v1398, %v1397
      %v1436 = vpack.c.b16 %v1400, %v1399
      %v1437 = vpack.c.b16 %v1402, %v1401
      %v1438 = vpack.c.b16 %v1404, %v1403
      %v1439 = vpack.c.b16 %v1406, %v1405
      %v1440 = vpack.c.b16 %v1408, %v1407
      %1473 = vmatpush.bf16.msra.mxu0 %v1416
      %1474 = vmatpush.bf16.msra.mxu0 %v1415
      %1475 = vmatpush.bf16.msra.mxu0 %v1414
      %1476 = vmatpush.bf16.msra.mxu0 %v1413
      %1477 = vmatpush.bf16.msra.mxu0 %v1412
      %1478 = vmatpush.bf16.msra.mxu0 %v1411
      %1479 = vmatpush.bf16.msra.mxu0 %v1410
      %1480 = vmatpush.bf16.msra.mxu0 %v1409
      %1481 = vmatmul.bf16.gmra.mxu0 %v1213
      %v1482 = vpop.f32.mrf.mxu0
      %v1483 = vadd.f32 0.0, %v1482
      %v1484 = vpop.f32.mrf.mxu0
      %1485 = vdwg.mxu0
      %1486 = vmatpush.bf16.msra.mxu0 %v1424
      %1487 = vmatpush.bf16.msra.mxu0 %v1423
      %1488 = vmatpush.bf16.msra.mxu0 %v1422
      %1489 = vmatpush.bf16.msra.mxu0 %v1421
      %1490 = vmatpush.bf16.msra.mxu0 %v1420
      %1491 = vmatpush.bf16.msra.mxu0 %v1419
      %1492 = vmatpush.bf16.msra.mxu0 %v1418
      %1493 = vmatpush.bf16.msra.mxu0 %v1417
      %1494 = vmatmul.bf16.gmra.mxu0 %v1214
      %v1495 = vpop.f32.mrf.mxu0
      %v1496 = vadd.f32 %v1483, %v1495
      %v1497 = vpop.f32.mrf.mxu0
      %1498 = vdwg.mxu0
      %1499 = vmatpush.bf16.msra.mxu0 %v1432
      %1500 = vmatpush.bf16.msra.mxu0 %v1431
      %1501 = vmatpush.bf16.msra.mxu0 %v1430
      %1502 = vmatpush.bf16.msra.mxu0 %v1429
      %1503 = vmatpush.bf16.msra.mxu0 %v1428
      %1504 = vmatpush.bf16.msra.mxu0 %v1427
      %1505 = vmatpush.bf16.msra.mxu0 %v1426
      %1506 = vmatpush.bf16.msra.mxu0 %v1425
      %1507 = vmatmul.bf16.gmra.mxu0 %v1215
      %v1508 = vpop.f32.mrf.mxu0
      %v1509 = vadd.f32 %v1496, %v1508
      %v1510 = vpop.f32.mrf.mxu0
      %1511 = vdwg.mxu0
      %1512 = vmatpush.bf16.msra.mxu0 %v1440
      %1513 = vmatpush.bf16.msra.mxu0 %v1439
      %1514 = vmatpush.bf16.msra.mxu0 %v1438
      %1515 = vmatpush.bf16.msra.mxu0 %v1437
      %1516 = vmatpush.bf16.msra.mxu0 %v1436
      %1517 = vmatpush.bf16.msra.mxu0 %v1435
      %1518 = vmatpush.bf16.msra.mxu0 %v1434
      %1519 = vmatpush.bf16.msra.mxu0 %v1433
      %1520 = vmatmul.bf16.gmra.mxu0 %v1216
      %v1521 = vpop.f32.mrf.mxu0
      %v1522 = vadd.f32 %v1509, %v1521
      %v1523 = vpop.f32.mrf.mxu0
      %1524 = vdwg.mxu0
      %v1589 = vunpack.c.l.b16 %v1035
      %v1590 = vunpack.c.l.b16 %v1036
      %v1591 = vunpack.c.l.b16 %v1037
      %v1592 = vunpack.c.l.b16 %v1038
      %v1593 = vunpack.c.l.b16 %v1039
      %v1594 = vunpack.c.l.b16 %v1040
      %v1595 = vunpack.c.l.b16 %v1041
      %v1596 = vunpack.c.l.b16 %v1042
      %v1597 = vunpack.c.l.b16 %v1043
      %v1598 = vunpack.c.l.b16 %v1044
      %v1599 = vunpack.c.l.b16 %v1045
      %v1600 = vunpack.c.l.b16 %v1046
      %v1601 = vunpack.c.l.b16 %v1047
      %v1602 = vunpack.c.l.b16 %v1048
      %v1603 = vunpack.c.l.b16 %v1049
      %v1604 = vunpack.c.l.b16 %v1050
      %v1605 = vunpack.c.l.b16 %v1051
      %v1606 = vunpack.c.l.b16 %v1052
      %v1607 = vunpack.c.l.b16 %v1053
      %v1608 = vunpack.c.l.b16 %v1054
      %v1609 = vunpack.c.l.b16 %v1055
      %v1610 = vunpack.c.l.b16 %v1056
      %v1611 = vunpack.c.l.b16 %v1057
      %v1612 = vunpack.c.l.b16 %v1058
      %v1613 = vunpack.c.l.b16 %v1059
      %v1614 = vunpack.c.l.b16 %v1060
      %v1615 = vunpack.c.l.b16 %v1061
      %v1616 = vunpack.c.l.b16 %v1062
      %v1617 = vunpack.c.l.b16 %v1063
      %v1618 = vunpack.c.l.b16 %v1064
      %v1619 = vunpack.c.l.b16 %v1065
      %v1620 = vunpack.c.l.b16 %v1066
      %v1621 = vunpack.c.l.b16 %v1067
      %v1622 = vunpack.c.l.b16 %v1068
      %v1623 = vunpack.c.l.b16 %v1069
      %v1624 = vunpack.c.l.b16 %v1070
      %v1625 = vunpack.c.l.b16 %v1071
      %v1626 = vunpack.c.l.b16 %v1072
      %v1627 = vunpack.c.l.b16 %v1073
      %v1628 = vunpack.c.l.b16 %v1074
      %v1629 = vunpack.c.l.b16 %v1075
      %v1630 = vunpack.c.l.b16 %v1076
      %v1631 = vunpack.c.l.b16 %v1077
      %v1632 = vunpack.c.l.b16 %v1078
      %v1633 = vunpack.c.l.b16 %v1079
      %v1634 = vunpack.c.l.b16 %v1080
      %v1635 = vunpack.c.l.b16 %v1081
      %v1636 = vunpack.c.l.b16 %v1082
      %v1637 = vunpack.c.l.b16 %v1083
      %v1638 = vunpack.c.l.b16 %v1084
      %v1639 = vunpack.c.l.b16 %v1085
      %v1640 = vunpack.c.l.b16 %v1086
      %v1641 = vunpack.c.l.b16 %v1087
      %v1642 = vunpack.c.l.b16 %v1088
      %v1643 = vunpack.c.l.b16 %v1089
      %v1644 = vunpack.c.l.b16 %v1090
      %v1645 = vunpack.c.l.b16 %v1091
      %v1646 = vunpack.c.l.b16 %v1092
      %v1647 = vunpack.c.l.b16 %v1093
      %v1648 = vunpack.c.l.b16 %v1094
      %v1649 = vunpack.c.l.b16 %v1095
      %v1650 = vunpack.c.l.b16 %v1096
      %v1651 = vunpack.c.l.b16 %v1097
      %v1652 = vunpack.c.l.b16 %v1098
      %v1653 = vpack.c.b16 %v1590, %v1589
      %v1654 = vpack.c.b16 %v1592, %v1591
      %v1655 = vpack.c.b16 %v1594, %v1593
      %v1656 = vpack.c.b16 %v1596, %v1595
      %v1657 = vpack.c.b16 %v1598, %v1597
      %v1658 = vpack.c.b16 %v1600, %v1599
      %v1659 = vpack.c.b16 %v1602, %v1601
      %v1660 = vpack.c.b16 %v1604, %v1603
      %v1661 = vpack.c.b16 %v1606, %v1605
      %v1662 = vpack.c.b16 %v1608, %v1607
      %v1663 = vpack.c.b16 %v1610, %v1609
      %v1664 = vpack.c.b16 %v1612, %v1611
      %v1665 = vpack.c.b16 %v1614, %v1613
      %v1666 = vpack.c.b16 %v1616, %v1615
      %v1667 = vpack.c.b16 %v1618, %v1617
      %v1668 = vpack.c.b16 %v1620, %v1619
      %v1669 = vpack.c.b16 %v1622, %v1621
      %v1670 = vpack.c.b16 %v1624, %v1623
      %v1671 = vpack.c.b16 %v1626, %v1625
      %v1672 = vpack.c.b16 %v1628, %v1627
      %v1673 = vpack.c.b16 %v1630, %v1629
      %v1674 = vpack.c.b16 %v1632, %v1631
      %v1675 = vpack.c.b16 %v1634, %v1633
      %v1676 = vpack.c.b16 %v1636, %v1635
      %v1677 = vpack.c.b16 %v1638, %v1637
      %v1678 = vpack.c.b16 %v1640, %v1639
      %v1679 = vpack.c.b16 %v1642, %v1641
      %v1680 = vpack.c.b16 %v1644, %v1643
      %v1681 = vpack.c.b16 %v1646, %v1645
      %v1682 = vpack.c.b16 %v1648, %v1647
      %v1683 = vpack.c.b16 %v1650, %v1649
      %v1684 = vpack.c.b16 %v1652, %v1651
      %1717 = vmatpush.bf16.msra.mxu0 %v1660
      %1718 = vmatpush.bf16.msra.mxu0 %v1659
      %1719 = vmatpush.bf16.msra.mxu0 %v1658
      %1720 = vmatpush.bf16.msra.mxu0 %v1657
      %1721 = vmatpush.bf16.msra.mxu0 %v1656
      %1722 = vmatpush.bf16.msra.mxu0 %v1655
      %1723 = vmatpush.bf16.msra.mxu0 %v1654
      %1724 = vmatpush.bf16.msra.mxu0 %v1653
      %1725 = vmatmul.bf16.gmra.mxu0 %v1031
      %v1726 = vpop.f32.mrf.mxu0
      %v1727 = vadd.f32 %v1522, %v1726
      %v1728 = vpop.f32.mrf.mxu0
      %1729 = vdwg.mxu0
      %1730 = vmatpush.bf16.msra.mxu0 %v1668
      %1731 = vmatpush.bf16.msra.mxu0 %v1667
      %1732 = vmatpush.bf16.msra.mxu0 %v1666
      %1733 = vmatpush.bf16.msra.mxu0 %v1665
      %1734 = vmatpush.bf16.msra.mxu0 %v1664
      %1735 = vmatpush.bf16.msra.mxu0 %v1663
      %1736 = vmatpush.bf16.msra.mxu0 %v1662
      %1737 = vmatpush.bf16.msra.mxu0 %v1661
      %1738 = vmatmul.bf16.gmra.mxu0 %v1032
      %v1739 = vpop.f32.mrf.mxu0
      %v1740 = vadd.f32 %v1727, %v1739
      %v1741 = vpop.f32.mrf.mxu0
      %1742 = vdwg.mxu0
      %1743 = vmatpush.bf16.msra.mxu0 %v1676
      %1744 = vmatpush.bf16.msra.mxu0 %v1675
      %1745 = vmatpush.bf16.msra.mxu0 %v1674
      %1746 = vmatpush.bf16.msra.mxu0 %v1673
      %1747 = vmatpush.bf16.msra.mxu0 %v1672
      %1748 = vmatpush.bf16.msra.mxu0 %v1671
      %1749 = vmatpush.bf16.msra.mxu0 %v1670
      %1750 = vmatpush.bf16.msra.mxu0 %v1669
      %1751 = vmatmul.bf16.gmra.mxu0 %v1033
      %v1752 = vpop.f32.mrf.mxu0
      %v1753 = vadd.f32 %v1740, %v1752
      %v1754 = vpop.f32.mrf.mxu0
      %1755 = vdwg.mxu0
      %1756 = vmatpush.bf16.msra.mxu0 %v1684
      %1757 = vmatpush.bf16.msra.mxu0 %v1683
      %1758 = vmatpush.bf16.msra.mxu0 %v1682
      %1759 = vmatpush.bf16.msra.mxu0 %v1681
      %1760 = vmatpush.bf16.msra.mxu0 %v1680
      %1761 = vmatpush.bf16.msra.mxu0 %v1679
      %1762 = vmatpush.bf16.msra.mxu0 %v1678
      %1763 = vmatpush.bf16.msra.mxu0 %v1677
      %1764 = vmatmul.bf16.gmra.mxu0 %v1034
      %v1765 = vpop.f32.mrf.mxu0
      %v1766 = vadd.f32 %v1753, %v1765
      %v1767 = vpop.f32.mrf.mxu0
      %1768 = vdwg.mxu0
      %v1769 = vld [vmem:[%s9 + $0x20] sm:$0xff]
      %v1770 = vld [vmem:[%s9 + $0x28] sm:$0xff]
      %v1771 = vld [vmem:[%s9 + $0x60] sm:$0xff]
      %v1772 = vld [vmem:[%s9 + $0x68] sm:$0xff]
      %v1773 = vld [vmem:[%s9 + $0xa0] sm:$0xff]
      %v1774 = vld [vmem:[%s9 + $0xa8] sm:$0xff]
      %v1775 = vld [vmem:[%s9 + $0xe0] sm:$0xff]
      %v1776 = vld [vmem:[%s9 + $0xe8] sm:$0xff]
      %v1777 = vld [vmem:[%s10 + $0x8] sm:$0xf]
      %v1779 = vperm.slane %v1777, 0
      %v1780 = vperm.slane %v1777, 1
      %v1781 = vperm.slane %v1777, 2
      %v1782 = vperm.slane %v1777, 3
      %v1795 = vunpack.c.l.b16 %v1769
      %v1796 = vunpack.c.h.b16 %v1769
      %v1797 = vunpack.c.l.b16 %v1770
      %v1798 = vunpack.c.h.b16 %v1770
      %v1799 = vunpack.c.l.b16 %v1771
      %v1800 = vunpack.c.h.b16 %v1771
      %v1801 = vunpack.c.l.b16 %v1772
      %v1802 = vunpack.c.h.b16 %v1772
      %v1803 = vunpack.c.l.b16 %v1773
      %v1804 = vunpack.c.h.b16 %v1773
      %v1805 = vunpack.c.l.b16 %v1774
      %v1806 = vunpack.c.h.b16 %v1774
      %v1807 = vunpack.c.l.b16 %v1775
      %v1808 = vunpack.c.h.b16 %v1775
      %v1809 = vunpack.c.l.b16 %v1776
      %v1810 = vunpack.c.h.b16 %v1776
      %v1811 = vpack.c.b16 %v1799, %v1795
      %v1812 = vpack.c.b16 %v1800, %v1796
      %v1813 = vpack.c.b16 %v1801, %v1797
      %v1814 = vpack.c.b16 %v1802, %v1798
      %v1815 = vpack.c.b16 %v1807, %v1803
      %v1816 = vpack.c.b16 %v1808, %v1804
      %v1817 = vpack.c.b16 %v1809, %v1805
      %v1818 = vpack.c.b16 %v1810, %v1806
      %1827 = vmatpush.bf16.msra.mxu0 0
      %1828 = vmatpush.bf16.msra.mxu0 0
      %1829 = vmatpush.bf16.msra.mxu0 0
      %1830 = vmatpush.bf16.msra.mxu0 0
      %1831 = vmatpush.bf16.msra.mxu0 0
      %1832 = vmatpush.bf16.msra.mxu0 0
      %1833 = vmatpush.bf16.msra.mxu0 %v1815
      %1834 = vmatpush.bf16.msra.mxu0 %v1811
      %1835 = vmatmul.bf16.gmra.mxu0 %v973
      %v1836 = vpop.f32.mrf.mxu0
      %v1837 = vadd.f32 %v1779, %v1836
      %v1838 = vpop.f32.mrf.mxu0
      %1839 = vdwg.mxu0
      %1840 = vmatpush.bf16.msra.mxu0 0
      %1841 = vmatpush.bf16.msra.mxu0 0
      %1842 = vmatpush.bf16.msra.mxu0 0
      %1843 = vmatpush.bf16.msra.mxu0 0
      %1844 = vmatpush.bf16.msra.mxu0 0
      %1845 = vmatpush.bf16.msra.mxu0 0
      %1846 = vmatpush.bf16.msra.mxu0 %v1816
      %1847 = vmatpush.bf16.msra.mxu0 %v1812
      %1848 = vmatmul.bf16.gmra.mxu0 %v973
      %v1849 = vpop.f32.mrf.mxu0
      %v1850 = vadd.f32 %v1780, %v1849
      %v1851 = vpop.f32.mrf.mxu0
      %1852 = vdwg.mxu0
      %1853 = vmatpush.bf16.msra.mxu0 0
      %1854 = vmatpush.bf16.msra.mxu0 0
      %1855 = vmatpush.bf16.msra.mxu0 0
      %1856 = vmatpush.bf16.msra.mxu0 0
      %1857 = vmatpush.bf16.msra.mxu0 0
      %1858 = vmatpush.bf16.msra.mxu0 0
      %1859 = vmatpush.bf16.msra.mxu0 %v1817
      %1860 = vmatpush.bf16.msra.mxu0 %v1813
      %1861 = vmatmul.bf16.gmra.mxu0 %v973
      %v1862 = vpop.f32.mrf.mxu0
      %v1863 = vadd.f32 %v1781, %v1862
      %v1864 = vpop.f32.mrf.mxu0
      %1865 = vdwg.mxu0
      %1866 = vmatpush.bf16.msra.mxu0 0
      %1867 = vmatpush.bf16.msra.mxu0 0
      %1868 = vmatpush.bf16.msra.mxu0 0
      %1869 = vmatpush.bf16.msra.mxu0 0
      %1870 = vmatpush.bf16.msra.mxu0 0
      %1871 = vmatpush.bf16.msra.mxu0 0
      %1872 = vmatpush.bf16.msra.mxu0 %v1818
      %1873 = vmatpush.bf16.msra.mxu0 %v1814
      %1874 = vmatmul.bf16.gmra.mxu0 %v973
      %v1875 = vpop.f32.mrf.mxu0
      %v1876 = vadd.f32 %v1782, %v1875
      %v1877 = vpop.f32.mrf.mxu0
      %1878 = vdwg.mxu0
      %v1879 = vmax.f32 %v1837, 0.0
      %v1880 = vmax.f32 %v1850, 0.0
      %v1881 = vmax.f32 %v1863, 0.0
      %v1882 = vmax.f32 %v1876, 0.0
      %v1883 = vpack.c.bf16 %v1879, %v1879
      %v1884 = vpack.c.bf16 %v1880, %v1880
      %v1885 = vpack.c.bf16 %v1881, %v1881
      %v1886 = vpack.c.bf16 %v1882, %v1882
      %v1887 = vld [vmem:[%s11 + $0x200] sm:$0xf]
      %v1888 = vld [vmem:[%s11 + $0x204] sm:$0xf]
      %v1889 = vld [vmem:[%s11 + $0x208] sm:$0xf]
      %v1890 = vld [vmem:[%s11 + $0x20c] sm:$0xf]
      %v1891 = vld [vmem:[%s11 + $0x210] sm:$0xf]
      %v1892 = vld [vmem:[%s11 + $0x214] sm:$0xf]
      %v1893 = vld [vmem:[%s11 + $0x218] sm:$0xf]
      %v1894 = vld [vmem:[%s11 + $0x21c] sm:$0xf]
      %v1895 = vld [vmem:[%s11 + $0x220] sm:$0xf]
      %v1896 = vld [vmem:[%s11 + $0x224] sm:$0xf]
      %v1897 = vld [vmem:[%s11 + $0x228] sm:$0xf]
      %v1898 = vld [vmem:[%s11 + $0x22c] sm:$0xf]
      %v1899 = vld [vmem:[%s11 + $0x230] sm:$0xf]
      %v1900 = vld [vmem:[%s11 + $0x234] sm:$0xf]
      %v1901 = vld [vmem:[%s11 + $0x238] sm:$0xf]
      %v1902 = vld [vmem:[%s11 + $0x23c] sm:$0xf]
      %v1903 = vld [vmem:[%s11 + $0x240] sm:$0xf]
      %v1904 = vld [vmem:[%s11 + $0x244] sm:$0xf]
      %v1905 = vld [vmem:[%s11 + $0x248] sm:$0xf]
      %v1906 = vld [vmem:[%s11 + $0x24c] sm:$0xf]
      %v1907 = vld [vmem:[%s11 + $0x250] sm:$0xf]
      %v1908 = vld [vmem:[%s11 + $0x254] sm:$0xf]
      %v1909 = vld [vmem:[%s11 + $0x258] sm:$0xf]
      %v1910 = vld [vmem:[%s11 + $0x25c] sm:$0xf]
      %v1911 = vld [vmem:[%s11 + $0x260] sm:$0xf]
      %v1912 = vld [vmem:[%s11 + $0x264] sm:$0xf]
      %v1913 = vld [vmem:[%s11 + $0x268] sm:$0xf]
      %v1914 = vld [vmem:[%s11 + $0x26c] sm:$0xf]
      %v1915 = vld [vmem:[%s11 + $0x270] sm:$0xf]
      %v1916 = vld [vmem:[%s11 + $0x274] sm:$0xf]
      %v1917 = vld [vmem:[%s11 + $0x278] sm:$0xf]
      %v1918 = vld [vmem:[%s11 + $0x27c] sm:$0xf]
      %v1919 = vld [vmem:[%s11 + $0x280] sm:$0xf]
      %v1920 = vld [vmem:[%s11 + $0x284] sm:$0xf]
      %v1921 = vld [vmem:[%s11 + $0x288] sm:$0xf]
      %v1922 = vld [vmem:[%s11 + $0x28c] sm:$0xf]
      %v1923 = vld [vmem:[%s11 + $0x290] sm:$0xf]
      %v1924 = vld [vmem:[%s11 + $0x294] sm:$0xf]
      %v1925 = vld [vmem:[%s11 + $0x298] sm:$0xf]
      %v1926 = vld [vmem:[%s11 + $0x29c] sm:$0xf]
      %v1927 = vld [vmem:[%s11 + $0x2a0] sm:$0xf]
      %v1928 = vld [vmem:[%s11 + $0x2a4] sm:$0xf]
      %v1929 = vld [vmem:[%s11 + $0x2a8] sm:$0xf]
      %v1930 = vld [vmem:[%s11 + $0x2ac] sm:$0xf]
      %v1931 = vld [vmem:[%s11 + $0x2b0] sm:$0xf]
      %v1932 = vld [vmem:[%s11 + $0x2b4] sm:$0xf]
      %v1933 = vld [vmem:[%s11 + $0x2b8] sm:$0xf]
      %v1934 = vld [vmem:[%s11 + $0x2bc] sm:$0xf]
      %v1935 = vld [vmem:[%s11 + $0x2c0] sm:$0xf]
      %v1936 = vld [vmem:[%s11 + $0x2c4] sm:$0xf]
      %v1937 = vld [vmem:[%s11 + $0x2c8] sm:$0xf]
      %v1938 = vld [vmem:[%s11 + $0x2cc] sm:$0xf]
      %v1939 = vld [vmem:[%s11 + $0x2d0] sm:$0xf]
      %v1940 = vld [vmem:[%s11 + $0x2d4] sm:$0xf]
      %v1941 = vld [vmem:[%s11 + $0x2d8] sm:$0xf]
      %v1942 = vld [vmem:[%s11 + $0x2dc] sm:$0xf]
      %v1943 = vld [vmem:[%s11 + $0x2e0] sm:$0xf]
      %v1944 = vld [vmem:[%s11 + $0x2e4] sm:$0xf]
      %v1945 = vld [vmem:[%s11 + $0x2e8] sm:$0xf]
      %v1946 = vld [vmem:[%s11 + $0x2ec] sm:$0xf]
      %v1947 = vld [vmem:[%s11 + $0x2f0] sm:$0xf]
      %v1948 = vld [vmem:[%s11 + $0x2f4] sm:$0xf]
      %v1949 = vld [vmem:[%s11 + $0x2f8] sm:$0xf]
      %v1950 = vld [vmem:[%s11 + $0x2fc] sm:$0xf]
      %v2015 = vunpack.c.l.b16 %v1887
      %v2016 = vunpack.c.l.b16 %v1888
      %v2017 = vunpack.c.l.b16 %v1889
      %v2018 = vunpack.c.l.b16 %v1890
      %v2019 = vunpack.c.l.b16 %v1891
      %v2020 = vunpack.c.l.b16 %v1892
      %v2021 = vunpack.c.l.b16 %v1893
      %v2022 = vunpack.c.l.b16 %v1894
      %v2023 = vunpack.c.l.b16 %v1895
      %v2024 = vunpack.c.l.b16 %v1896
      %v2025 = vunpack.c.l.b16 %v1897
      %v2026 = vunpack.c.l.b16 %v1898
      %v2027 = vunpack.c.l.b16 %v1899
      %v2028 = vunpack.c.l.b16 %v1900
      %v2029 = vunpack.c.l.b16 %v1901
      %v2030 = vunpack.c.l.b16 %v1902
      %v2031 = vunpack.c.l.b16 %v1903
      %v2032 = vunpack.c.l.b16 %v1904
      %v2033 = vunpack.c.l.b16 %v1905
      %v2034 = vunpack.c.l.b16 %v1906
      %v2035 = vunpack.c.l.b16 %v1907
      %v2036 = vunpack.c.l.b16 %v1908
      %v2037 = vunpack.c.l.b16 %v1909
      %v2038 = vunpack.c.l.b16 %v1910
      %v2039 = vunpack.c.l.b16 %v1911
      %v2040 = vunpack.c.l.b16 %v1912
      %v2041 = vunpack.c.l.b16 %v1913
      %v2042 = vunpack.c.l.b16 %v1914
      %v2043 = vunpack.c.l.b16 %v1915
      %v2044 = vunpack.c.l.b16 %v1916
      %v2045 = vunpack.c.l.b16 %v1917
      %v2046 = vunpack.c.l.b16 %v1918
      %v2047 = vunpack.c.l.b16 %v1919
      %v2048 = vunpack.c.l.b16 %v1920
      %v2049 = vunpack.c.l.b16 %v1921
      %v2050 = vunpack.c.l.b16 %v1922
      %v2051 = vunpack.c.l.b16 %v1923
      %v2052 = vunpack.c.l.b16 %v1924
      %v2053 = vunpack.c.l.b16 %v1925
      %v2054 = vunpack.c.l.b16 %v1926
      %v2055 = vunpack.c.l.b16 %v1927
      %v2056 = vunpack.c.l.b16 %v1928
      %v2057 = vunpack.c.l.b16 %v1929
      %v2058 = vunpack.c.l.b16 %v1930
      %v2059 = vunpack.c.l.b16 %v1931
      %v2060 = vunpack.c.l.b16 %v1932
      %v2061 = vunpack.c.l.b16 %v1933
      %v2062 = vunpack.c.l.b16 %v1934
      %v2063 = vunpack.c.l.b16 %v1935
      %v2064 = vunpack.c.l.b16 %v1936
      %v2065 = vunpack.c.l.b16 %v1937
      %v2066 = vunpack.c.l.b16 %v1938
      %v2067 = vunpack.c.l.b16 %v1939
      %v2068 = vunpack.c.l.b16 %v1940
      %v2069 = vunpack.c.l.b16 %v1941
      %v2070 = vunpack.c.l.b16 %v1942
      %v2071 = vunpack.c.l.b16 %v1943
      %v2072 = vunpack.c.l.b16 %v1944
      %v2073 = vunpack.c.l.b16 %v1945
      %v2074 = vunpack.c.l.b16 %v1946
      %v2075 = vunpack.c.l.b16 %v1947
      %v2076 = vunpack.c.l.b16 %v1948
      %v2077 = vunpack.c.l.b16 %v1949
      %v2078 = vunpack.c.l.b16 %v1950
      %v2079 = vpack.c.b16 %v2016, %v2015
      %v2080 = vpack.c.b16 %v2018, %v2017
      %v2081 = vpack.c.b16 %v2020, %v2019
      %v2082 = vpack.c.b16 %v2022, %v2021
      %v2083 = vpack.c.b16 %v2024, %v2023
      %v2084 = vpack.c.b16 %v2026, %v2025
      %v2085 = vpack.c.b16 %v2028, %v2027
      %v2086 = vpack.c.b16 %v2030, %v2029
      %v2087 = vpack.c.b16 %v2032, %v2031
      %v2088 = vpack.c.b16 %v2034, %v2033
      %v2089 = vpack.c.b16 %v2036, %v2035
      %v2090 = vpack.c.b16 %v2038, %v2037
      %v2091 = vpack.c.b16 %v2040, %v2039
      %v2092 = vpack.c.b16 %v2042, %v2041
      %v2093 = vpack.c.b16 %v2044, %v2043
      %v2094 = vpack.c.b16 %v2046, %v2045
      %v2095 = vpack.c.b16 %v2048, %v2047
      %v2096 = vpack.c.b16 %v2050, %v2049
      %v2097 = vpack.c.b16 %v2052, %v2051
      %v2098 = vpack.c.b16 %v2054, %v2053
      %v2099 = vpack.c.b16 %v2056, %v2055
      %v2100 = vpack.c.b16 %v2058, %v2057
      %v2101 = vpack.c.b16 %v2060, %v2059
      %v2102 = vpack.c.b16 %v2062, %v2061
      %v2103 = vpack.c.b16 %v2064, %v2063
      %v2104 = vpack.c.b16 %v2066, %v2065
      %v2105 = vpack.c.b16 %v2068, %v2067
      %v2106 = vpack.c.b16 %v2070, %v2069
      %v2107 = vpack.c.b16 %v2072, %v2071
      %v2108 = vpack.c.b16 %v2074, %v2073
      %v2109 = vpack.c.b16 %v2076, %v2075
      %v2110 = vpack.c.b16 %v2078, %v2077
      %2143 = vmatpush.bf16.msra.mxu0 %v2086
      %2144 = vmatpush.bf16.msra.mxu0 %v2085
      %2145 = vmatpush.bf16.msra.mxu0 %v2084
      %2146 = vmatpush.bf16.msra.mxu0 %v2083
      %2147 = vmatpush.bf16.msra.mxu0 %v2082
      %2148 = vmatpush.bf16.msra.mxu0 %v2081
      %2149 = vmatpush.bf16.msra.mxu0 %v2080
      %2150 = vmatpush.bf16.msra.mxu0 %v2079
      %2151 = vmatmul.bf16.gmra.mxu0 %v1883
      %v2152 = vpop.f32.mrf.mxu0
      %v2153 = vadd.f32 0.0, %v2152
      %v2154 = vpop.f32.mrf.mxu0
      %2155 = vdwg.mxu0
      %2156 = vmatpush.bf16.msra.mxu0 %v2094
      %2157 = vmatpush.bf16.msra.mxu0 %v2093
      %2158 = vmatpush.bf16.msra.mxu0 %v2092
      %2159 = vmatpush.bf16.msra.mxu0 %v2091
      %2160 = vmatpush.bf16.msra.mxu0 %v2090
      %2161 = vmatpush.bf16.msra.mxu0 %v2089
      %2162 = vmatpush.bf16.msra.mxu0 %v2088
      %2163 = vmatpush.bf16.msra.mxu0 %v2087
      %2164 = vmatmul.bf16.gmra.mxu0 %v1884
      %v2165 = vpop.f32.mrf.mxu0
      %v2166 = vadd.f32 %v2153, %v2165
      %v2167 = vpop.f32.mrf.mxu0
      %2168 = vdwg.mxu0
      %2169 = vmatpush.bf16.msra.mxu0 %v2102
      %2170 = vmatpush.bf16.msra.mxu0 %v2101
      %2171 = vmatpush.bf16.msra.mxu0 %v2100
      %2172 = vmatpush.bf16.msra.mxu0 %v2099
      %2173 = vmatpush.bf16.msra.mxu0 %v2098
      %2174 = vmatpush.bf16.msra.mxu0 %v2097
      %2175 = vmatpush.bf16.msra.mxu0 %v2096
      %2176 = vmatpush.bf16.msra.mxu0 %v2095
      %2177 = vmatmul.bf16.gmra.mxu0 %v1885
      %v2178 = vpop.f32.mrf.mxu0
      %v2179 = vadd.f32 %v2166, %v2178
      %v2180 = vpop.f32.mrf.mxu0
      %2181 = vdwg.mxu0
      %2182 = vmatpush.bf16.msra.mxu0 %v2110
      %2183 = vmatpush.bf16.msra.mxu0 %v2109
      %2184 = vmatpush.bf16.msra.mxu0 %v2108
      %2185 = vmatpush.bf16.msra.mxu0 %v2107
      %2186 = vmatpush.bf16.msra.mxu0 %v2106
      %2187 = vmatpush.bf16.msra.mxu0 %v2105
      %2188 = vmatpush.bf16.msra.mxu0 %v2104
      %2189 = vmatpush.bf16.msra.mxu0 %v2103
      %2190 = vmatmul.bf16.gmra.mxu0 %v1886
      %v2191 = vpop.f32.mrf.mxu0
      %v2192 = vadd.f32 %v2179, %v2191
      %v2193 = vpop.f32.mrf.mxu0
      %2194 = vdwg.mxu0
      %v2195 = vadd.f32 %v1766, %v2192
      %v2196 = vld [vmem:[%s9 + $0x30] sm:$0xff]
      %v2197 = vld [vmem:[%s9 + $0x38] sm:$0xff]
      %v2198 = vld [vmem:[%s9 + $0x70] sm:$0xff]
      %v2199 = vld [vmem:[%s9 + $0x78] sm:$0xff]
      %v2200 = vld [vmem:[%s9 + $0xb0] sm:$0xff]
      %v2201 = vld [vmem:[%s9 + $0xb8] sm:$0xff]
      %v2202 = vld [vmem:[%s9 + $0xf0] sm:$0xff]
      %v2203 = vld [vmem:[%s9 + $0xf8] sm:$0xff]
      %v2204 = vld [vmem:[%s10 + $0xc] sm:$0xf]
      %v2206 = vperm.slane %v2204, 0
      %v2207 = vperm.slane %v2204, 1
      %v2208 = vperm.slane %v2204, 2
      %v2209 = vperm.slane %v2204, 3
      %v2222 = vunpack.c.l.b16 %v2196
      %v2223 = vunpack.c.h.b16 %v2196
      %v2224 = vunpack.c.l.b16 %v2197
      %v2225 = vunpack.c.h.b16 %v2197
      %v2226 = vunpack.c.l.b16 %v2198
      %v2227 = vunpack.c.h.b16 %v2198
      %v2228 = vunpack.c.l.b16 %v2199
      %v2229 = vunpack.c.h.b16 %v2199
      %v2230 = vunpack.c.l.b16 %v2200
      %v2231 = vunpack.c.h.b16 %v2200
      %v2232 = vunpack.c.l.b16 %v2201
      %v2233 = vunpack.c.h.b16 %v2201
      %v2234 = vunpack.c.l.b16 %v2202
      %v2235 = vunpack.c.h.b16 %v2202
      %v2236 = vunpack.c.l.b16 %v2203
      %v2237 = vunpack.c.h.b16 %v2203
      %v2238 = vpack.c.b16 %v2226, %v2222
      %v2239 = vpack.c.b16 %v2227, %v2223
      %v2240 = vpack.c.b16 %v2228, %v2224
      %v2241 = vpack.c.b16 %v2229, %v2225
      %v2242 = vpack.c.b16 %v2234, %v2230
      %v2243 = vpack.c.b16 %v2235, %v2231
      %v2244 = vpack.c.b16 %v2236, %v2232
      %v2245 = vpack.c.b16 %v2237, %v2233
      %2254 = vmatpush.bf16.msra.mxu0 0
      %2255 = vmatpush.bf16.msra.mxu0 0
      %2256 = vmatpush.bf16.msra.mxu0 0
      %2257 = vmatpush.bf16.msra.mxu0 0
      %2258 = vmatpush.bf16.msra.mxu0 0
      %2259 = vmatpush.bf16.msra.mxu0 0
      %2260 = vmatpush.bf16.msra.mxu0 %v2242
      %2261 = vmatpush.bf16.msra.mxu0 %v2238
      %2262 = vmatmul.bf16.gmra.mxu0 %v973
      %v2263 = vpop.f32.mrf.mxu0
      %v2264 = vadd.f32 %v2206, %v2263
      %v2265 = vpop.f32.mrf.mxu0
      %2266 = vdwg.mxu0
      %2267 = vmatpush.bf16.msra.mxu0 0
      %2268 = vmatpush.bf16.msra.mxu0 0
      %2269 = vmatpush.bf16.msra.mxu0 0
      %2270 = vmatpush.bf16.msra.mxu0 0
      %2271 = vmatpush.bf16.msra.mxu0 0
      %2272 = vmatpush.bf16.msra.mxu0 0
      %2273 = vmatpush.bf16.msra.mxu0 %v2243
      %2274 = vmatpush.bf16.msra.mxu0 %v2239
      %2275 = vmatmul.bf16.gmra.mxu0 %v973
      %v2276 = vpop.f32.mrf.mxu0
      %v2277 = vadd.f32 %v2207, %v2276
      %v2278 = vpop.f32.mrf.mxu0
      %2279 = vdwg.mxu0
      %2280 = vmatpush.bf16.msra.mxu0 0
      %2281 = vmatpush.bf16.msra.mxu0 0
      %2282 = vmatpush.bf16.msra.mxu0 0
      %2283 = vmatpush.bf16.msra.mxu0 0
      %2284 = vmatpush.bf16.msra.mxu0 0
      %2285 = vmatpush.bf16.msra.mxu0 0
      %2286 = vmatpush.bf16.msra.mxu0 %v2244
      %2287 = vmatpush.bf16.msra.mxu0 %v2240
      %2288 = vmatmul.bf16.gmra.mxu0 %v973
      %v2289 = vpop.f32.mrf.mxu0
      %v2290 = vadd.f32 %v2208, %v2289
      %v2291 = vpop.f32.mrf.mxu0
      %2292 = vdwg.mxu0
      %2293 = vmatpush.bf16.msra.mxu0 0
      %2294 = vmatpush.bf16.msra.mxu0 0
      %2295 = vmatpush.bf16.msra.mxu0 0
      %2296 = vmatpush.bf16.msra.mxu0 0
      %2297 = vmatpush.bf16.msra.mxu0 0
      %2298 = vmatpush.bf16.msra.mxu0 0
      %2299 = vmatpush.bf16.msra.mxu0 %v2245
      %2300 = vmatpush.bf16.msra.mxu0 %v2241
      %2301 = vmatmul.bf16.gmra.mxu0 %v973
      %v2302 = vpop.f32.mrf.mxu0
      %v2303 = vadd.f32 %v2209, %v2302
      %v2304 = vpop.f32.mrf.mxu0
      %2305 = vdwg.mxu0
      %v2306 = vmax.f32 %v2264, 0.0
      %v2307 = vmax.f32 %v2277, 0.0
      %v2308 = vmax.f32 %v2290, 0.0
      %v2309 = vmax.f32 %v2303, 0.0
      %v2310 = vpack.c.bf16 %v2306, %v2306
      %v2311 = vpack.c.bf16 %v2307, %v2307
      %v2312 = vpack.c.bf16 %v2308, %v2308
      %v2313 = vpack.c.bf16 %v2309, %v2309
      %v2314 = vld [vmem:[%s11 + $0x300] sm:$0xf]
      %v2315 = vld [vmem:[%s11 + $0x304] sm:$0xf]
      %v2316 = vld [vmem:[%s11 + $0x308] sm:$0xf]
      %v2317 = vld [vmem:[%s11 + $0x30c] sm:$0xf]
      %v2318 = vld [vmem:[%s11 + $0x310] sm:$0xf]
      %v2319 = vld [vmem:[%s11 + $0x314] sm:$0xf]
      %v2320 = vld [vmem:[%s11 + $0x318] sm:$0xf]
      %v2321 = vld [vmem:[%s11 + $0x31c] sm:$0xf]
      %v2322 = vld [vmem:[%s11 + $0x320] sm:$0xf]
      %v2323 = vld [vmem:[%s11 + $0x324] sm:$0xf]
      %v2324 = vld [vmem:[%s11 + $0x328] sm:$0xf]
      %v2325 = vld [vmem:[%s11 + $0x32c] sm:$0xf]
      %v2326 = vld [vmem:[%s11 + $0x330] sm:$0xf]
      %v2327 = vld [vmem:[%s11 + $0x334] sm:$0xf]
      %v2328 = vld [vmem:[%s11 + $0x338] sm:$0xf]
      %v2329 = vld [vmem:[%s11 + $0x33c] sm:$0xf]
      %v2330 = vld [vmem:[%s11 + $0x340] sm:$0xf]
      %v2331 = vld [vmem:[%s11 + $0x344] sm:$0xf]
      %v2332 = vld [vmem:[%s11 + $0x348] sm:$0xf]
      %v2333 = vld [vmem:[%s11 + $0x34c] sm:$0xf]
      %v2334 = vld [vmem:[%s11 + $0x350] sm:$0xf]
      %v2335 = vld [vmem:[%s11 + $0x354] sm:$0xf]
      %v2336 = vld [vmem:[%s11 + $0x358] sm:$0xf]
      %v2337 = vld [vmem:[%s11 + $0x35c] sm:$0xf]
      %v2338 = vld [vmem:[%s11 + $0x360] sm:$0xf]
      %v2339 = vld [vmem:[%s11 + $0x364] sm:$0xf]
      %v2340 = vld [vmem:[%s11 + $0x368] sm:$0xf]
      %v2341 = vld [vmem:[%s11 + $0x36c] sm:$0xf]
      %v2342 = vld [vmem:[%s11 + $0x370] sm:$0xf]
      %v2343 = vld [vmem:[%s11 + $0x374] sm:$0xf]
      %v2344 = vld [vmem:[%s11 + $0x378] sm:$0xf]
      %v2345 = vld [vmem:[%s11 + $0x37c] sm:$0xf]
      %v2346 = vld [vmem:[%s11 + $0x380] sm:$0xf]
      %v2347 = vld [vmem:[%s11 + $0x384] sm:$0xf]
      %v2348 = vld [vmem:[%s11 + $0x388] sm:$0xf]
      %v2349 = vld [vmem:[%s11 + $0x38c] sm:$0xf]
      %v2350 = vld [vmem:[%s11 + $0x390] sm:$0xf]
      %v2351 = vld [vmem:[%s11 + $0x394] sm:$0xf]
      %v2352 = vld [vmem:[%s11 + $0x398] sm:$0xf]
      %v2353 = vld [vmem:[%s11 + $0x39c] sm:$0xf]
      %v2354 = vld [vmem:[%s11 + $0x3a0] sm:$0xf]
      %v2355 = vld [vmem:[%s11 + $0x3a4] sm:$0xf]
      %v2356 = vld [vmem:[%s11 + $0x3a8] sm:$0xf]
      %v2357 = vld [vmem:[%s11 + $0x3ac] sm:$0xf]
      %v2358 = vld [vmem:[%s11 + $0x3b0] sm:$0xf]
      %v2359 = vld [vmem:[%s11 + $0x3b4] sm:$0xf]
      %v2360 = vld [vmem:[%s11 + $0x3b8] sm:$0xf]
      %v2361 = vld [vmem:[%s11 + $0x3bc] sm:$0xf]
      %v2362 = vld [vmem:[%s11 + $0x3c0] sm:$0xf]
      %v2363 = vld [vmem:[%s11 + $0x3c4] sm:$0xf]
      %v2364 = vld [vmem:[%s11 + $0x3c8] sm:$0xf]
      %v2365 = vld [vmem:[%s11 + $0x3cc] sm:$0xf]
      %v2366 = vld [vmem:[%s11 + $0x3d0] sm:$0xf]
      %v2367 = vld [vmem:[%s11 + $0x3d4] sm:$0xf]
      %v2368 = vld [vmem:[%s11 + $0x3d8] sm:$0xf]
      %v2369 = vld [vmem:[%s11 + $0x3dc] sm:$0xf]
      %v2370 = vld [vmem:[%s11 + $0x3e0] sm:$0xf]
      %v2371 = vld [vmem:[%s11 + $0x3e4] sm:$0xf]
      %v2372 = vld [vmem:[%s11 + $0x3e8] sm:$0xf]
      %v2373 = vld [vmem:[%s11 + $0x3ec] sm:$0xf]
      %v2374 = vld [vmem:[%s11 + $0x3f0] sm:$0xf]
      %v2375 = vld [vmem:[%s11 + $0x3f4] sm:$0xf]
      %v2376 = vld [vmem:[%s11 + $0x3f8] sm:$0xf]
      %v2377 = vld [vmem:[%s11 + $0x3fc] sm:$0xf]
      %v2442 = vunpack.c.l.b16 %v2314
      %v2443 = vunpack.c.l.b16 %v2315
      %v2444 = vunpack.c.l.b16 %v2316
      %v2445 = vunpack.c.l.b16 %v2317
      %v2446 = vunpack.c.l.b16 %v2318
      %v2447 = vunpack.c.l.b16 %v2319
      %v2448 = vunpack.c.l.b16 %v2320
      %v2449 = vunpack.c.l.b16 %v2321
      %v2450 = vunpack.c.l.b16 %v2322
      %v2451 = vunpack.c.l.b16 %v2323
      %v2452 = vunpack.c.l.b16 %v2324
      %v2453 = vunpack.c.l.b16 %v2325
      %v2454 = vunpack.c.l.b16 %v2326
      %v2455 = vunpack.c.l.b16 %v2327
      %v2456 = vunpack.c.l.b16 %v2328
      %v2457 = vunpack.c.l.b16 %v2329
      %v2458 = vunpack.c.l.b16 %v2330
      %v2459 = vunpack.c.l.b16 %v2331
      %v2460 = vunpack.c.l.b16 %v2332
      %v2461 = vunpack.c.l.b16 %v2333
      %v2462 = vunpack.c.l.b16 %v2334
      %v2463 = vunpack.c.l.b16 %v2335
      %v2464 = vunpack.c.l.b16 %v2336
      %v2465 = vunpack.c.l.b16 %v2337
      %v2466 = vunpack.c.l.b16 %v2338
      %v2467 = vunpack.c.l.b16 %v2339
      %v2468 = vunpack.c.l.b16 %v2340
      %v2469 = vunpack.c.l.b16 %v2341
      %v2470 = vunpack.c.l.b16 %v2342
      %v2471 = vunpack.c.l.b16 %v2343
      %v2472 = vunpack.c.l.b16 %v2344
      %v2473 = vunpack.c.l.b16 %v2345
      %v2474 = vunpack.c.l.b16 %v2346
      %v2475 = vunpack.c.l.b16 %v2347
      %v2476 = vunpack.c.l.b16 %v2348
      %v2477 = vunpack.c.l.b16 %v2349
      %v2478 = vunpack.c.l.b16 %v2350
      %v2479 = vunpack.c.l.b16 %v2351
      %v2480 = vunpack.c.l.b16 %v2352
      %v2481 = vunpack.c.l.b16 %v2353
      %v2482 = vunpack.c.l.b16 %v2354
      %v2483 = vunpack.c.l.b16 %v2355
      %v2484 = vunpack.c.l.b16 %v2356
      %v2485 = vunpack.c.l.b16 %v2357
      %v2486 = vunpack.c.l.b16 %v2358
      %v2487 = vunpack.c.l.b16 %v2359
      %v2488 = vunpack.c.l.b16 %v2360
      %v2489 = vunpack.c.l.b16 %v2361
      %v2490 = vunpack.c.l.b16 %v2362
      %v2491 = vunpack.c.l.b16 %v2363
      %v2492 = vunpack.c.l.b16 %v2364
      %v2493 = vunpack.c.l.b16 %v2365
      %v2494 = vunpack.c.l.b16 %v2366
      %v2495 = vunpack.c.l.b16 %v2367
      %v2496 = vunpack.c.l.b16 %v2368
      %v2497 = vunpack.c.l.b16 %v2369
      %v2498 = vunpack.c.l.b16 %v2370
      %v2499 = vunpack.c.l.b16 %v2371
      %v2500 = vunpack.c.l.b16 %v2372
      %v2501 = vunpack.c.l.b16 %v2373
      %v2502 = vunpack.c.l.b16 %v2374
      %v2503 = vunpack.c.l.b16 %v2375
      %v2504 = vunpack.c.l.b16 %v2376
      %v2505 = vunpack.c.l.b16 %v2377
      %v2506 = vpack.c.b16 %v2443, %v2442
      %v2507 = vpack.c.b16 %v2445, %v2444
      %v2508 = vpack.c.b16 %v2447, %v2446
      %v2509 = vpack.c.b16 %v2449, %v2448
      %v2510 = vpack.c.b16 %v2451, %v2450
      %v2511 = vpack.c.b16 %v2453, %v2452
      %v2512 = vpack.c.b16 %v2455, %v2454
      %v2513 = vpack.c.b16 %v2457, %v2456
      %v2514 = vpack.c.b16 %v2459, %v2458
      %v2515 = vpack.c.b16 %v2461, %v2460
      %v2516 = vpack.c.b16 %v2463, %v2462
      %v2517 = vpack.c.b16 %v2465, %v2464
      %v2518 = vpack.c.b16 %v2467, %v2466
      %v2519 = vpack.c.b16 %v2469, %v2468
      %v2520 = vpack.c.b16 %v2471, %v2470
      %v2521 = vpack.c.b16 %v2473, %v2472
      %v2522 = vpack.c.b16 %v2475, %v2474
      %v2523 = vpack.c.b16 %v2477, %v2476
      %v2524 = vpack.c.b16 %v2479, %v2478
      %v2525 = vpack.c.b16 %v2481, %v2480
      %v2526 = vpack.c.b16 %v2483, %v2482
      %v2527 = vpack.c.b16 %v2485, %v2484
      %v2528 = vpack.c.b16 %v2487, %v2486
      %v2529 = vpack.c.b16 %v2489, %v2488
      %v2530 = vpack.c.b16 %v2491, %v2490
      %v2531 = vpack.c.b16 %v2493, %v2492
      %v2532 = vpack.c.b16 %v2495, %v2494
      %v2533 = vpack.c.b16 %v2497, %v2496
      %v2534 = vpack.c.b16 %v2499, %v2498
      %v2535 = vpack.c.b16 %v2501, %v2500
      %v2536 = vpack.c.b16 %v2503, %v2502
      %v2537 = vpack.c.b16 %v2505, %v2504
      %2570 = vmatpush.bf16.msra.mxu0 %v2513
      %2571 = vmatpush.bf16.msra.mxu0 %v2512
      %2572 = vmatpush.bf16.msra.mxu0 %v2511
      %2573 = vmatpush.bf16.msra.mxu0 %v2510
      %2574 = vmatpush.bf16.msra.mxu0 %v2509
      %2575 = vmatpush.bf16.msra.mxu0 %v2508
      %2576 = vmatpush.bf16.msra.mxu0 %v2507
      %2577 = vmatpush.bf16.msra.mxu0 %v2506
      %2578 = vmatmul.bf16.gmra.mxu0 %v2310
      %v2579 = vpop.f32.mrf.mxu0
      %v2580 = vadd.f32 0.0, %v2579
      %v2581 = vpop.f32.mrf.mxu0
      %2582 = vdwg.mxu0
      %2583 = vmatpush.bf16.msra.mxu0 %v2521
      %2584 = vmatpush.bf16.msra.mxu0 %v2520
      %2585 = vmatpush.bf16.msra.mxu0 %v2519
      %2586 = vmatpush.bf16.msra.mxu0 %v2518
      %2587 = vmatpush.bf16.msra.mxu0 %v2517
      %2588 = vmatpush.bf16.msra.mxu0 %v2516
      %2589 = vmatpush.bf16.msra.mxu0 %v2515
      %2590 = vmatpush.bf16.msra.mxu0 %v2514
      %2591 = vmatmul.bf16.gmra.mxu0 %v2311
      %v2592 = vpop.f32.mrf.mxu0
      %v2593 = vadd.f32 %v2580, %v2592
      %v2594 = vpop.f32.mrf.mxu0
      %2595 = vdwg.mxu0
      %2596 = vmatpush.bf16.msra.mxu0 %v2529
      %2597 = vmatpush.bf16.msra.mxu0 %v2528
      %2598 = vmatpush.bf16.msra.mxu0 %v2527
      %2599 = vmatpush.bf16.msra.mxu0 %v2526
      %2600 = vmatpush.bf16.msra.mxu0 %v2525
      %2601 = vmatpush.bf16.msra.mxu0 %v2524
      %2602 = vmatpush.bf16.msra.mxu0 %v2523
      %2603 = vmatpush.bf16.msra.mxu0 %v2522
      %2604 = vmatmul.bf16.gmra.mxu0 %v2312
      %v2605 = vpop.f32.mrf.mxu0
      %v2606 = vadd.f32 %v2593, %v2605
      %v2607 = vpop.f32.mrf.mxu0
      %2608 = vdwg.mxu0
      %2609 = vmatpush.bf16.msra.mxu0 %v2537
      %2610 = vmatpush.bf16.msra.mxu0 %v2536
      %2611 = vmatpush.bf16.msra.mxu0 %v2535
      %2612 = vmatpush.bf16.msra.mxu0 %v2534
      %2613 = vmatpush.bf16.msra.mxu0 %v2533
      %2614 = vmatpush.bf16.msra.mxu0 %v2532
      %2615 = vmatpush.bf16.msra.mxu0 %v2531
      %2616 = vmatpush.bf16.msra.mxu0 %v2530
      %2617 = vmatmul.bf16.gmra.mxu0 %v2313
      %v2618 = vpop.f32.mrf.mxu0
      %v2619 = vadd.f32 %v2606, %v2618
      %v2620 = vpop.f32.mrf.mxu0
      %2621 = vdwg.mxu0
      %v2622 = vadd.f32 %v2195, %v2619
      %v2623 = vadd.f32 %v864, %v2622
      %v2624 = vld [vmem:[%s12] sm:$0x1]
      %v2626 = vperm.slane %v2624, 0
      %v2628 = vadd.f32 %v2623, %v2626
      %s2629 = scalar_lea.vmem %s1, 1
      %v2630 = vld [vmem:[%s2629] sm:$0x1]
      %s2631 = scalar_lea.vmem %s2, 1
      %v2632 = vld [vmem:[%s2631] sm:$0x1]
      %v2633 = vsel %vm440, %v2628, 0.0
      %2634 = vadd.xlane.f32.xlu0 %v2633
      %v2635 = vpop.xlane.xlu0 %2634
      %v2636 = vmul.f32 %v2635, %v450
      %v2637 = vsub.f32 %v2628, %v2636
      %v2638 = vmul.f32 %v2637, %v2637
      %v2639 = vsel %vm440, %v2638, 0.0
      %2640 = vadd.xlane.f32.xlu0 %v2639
      %v2641 = vpop.xlane.xlu0 %2640
      %v2642 = vmul.f32 %v2641, %v463
      %v2643 = vrsqrt.pop %v2642
      %v2644 = vmul.f32 %v2643, %v2642
      %v2645 = vmul.f32 %v2644, %v2643
      %v2646 = vmul.f32 0.5, %v2645
      %v2647 = vsub.f32 1.5, %v2646
      %v2648 = vmul.f32 %v2643, %v2647
      %v2649 = vmul.f32 %v2642, %v2648
      %vm2650 = vcmp.eq.f32.partialorder %v2642, inf
      %v2651 = vsel %vm2650, %v2642, %v2649
      %vm2652 = vcmp.eq.f32.partialorder %v2642, 0.0
      %v2653 = vand.u32 %v2642, 2147483648
      %v2654 = vsel %vm2652, %v2653, %v2651
      %v2656 = vperm.slane %v2630, 0
      %v2658 = vmul.f32 %v2656, %v2637
      %v2659 = vadd.f32 %v2654, 1e-06
      %v2660 = vrcp.pop %v2659
      %v2661 = vmul.f32 %v2659, %v2660
      %v2662 = vsub.f32 1.0, %v2661
      %v2663 = vmul.f32 %v2660, %v2662
      %v2664 = vadd.f32 %v2660, %v2663
      %vm2665 = vweird.f32 %v2659
      %vm2666 = vweird.f32 %v2660
      %vm2667 = vmor %vm2665, %vm2666
      %v2668 = vsel %vm2667, %v2660, %v2664
      %v2669 = vand.u32 2147483647, %v2659
      %vm2670 = vcmp.eq.f32.partialorder %v2669, 8.507059e+37
      %v2671 = vand.u32 %v2659, 2147483648
      %v2672 = vor.u32 1.1754944e-38, %v2671
      %v2673 = vsel %vm2670, %v2672, %v2668
      %v2674 = vmul.f32 %v2658, %v2673
      %v2676 = vperm.slane %v2632, 0
      %v2678 = vadd.f32 %v2674, %v2676
      %v2679 = vpack.c.bf16 %v2678, %v2678
      %s2680 = scalar_lea.vmem %s3, 16
      %v2681 = vld [vmem:[%s2680] sm:$0xf]
      %v2682 = vld [vmem:[%s2680 + $0x4] sm:$0xf]
      %v2683 = vld [vmem:[%s2680 + $0x8] sm:$0xf]
      %v2684 = vld [vmem:[%s2680 + $0xc] sm:$0xf]
      %s2685 = scalar_lea.vmem %s4, 1
      %v2686 = vld [vmem:[%s2685] sm:$0x1]
      %v2688 = vperm.slane %v2686, 0
      %v2694 = vunpack.c.l.b16 %v2681
      %v2695 = vunpack.c.l.b16 %v2682
      %v2696 = vunpack.c.l.b16 %v2683
      %v2697 = vunpack.c.l.b16 %v2684
      %v2698 = vpack.c.b16 %v2695, %v2694
      %v2699 = vpack.c.b16 %v2697, %v2696
      %v2703 = vsel %vm522, %v2679, 0
      %2705 = vmatpush.bf16.msra.mxu0 0
      %2706 = vmatpush.bf16.msra.mxu0 0
      %2707 = vmatpush.bf16.msra.mxu0 0
      %2708 = vmatpush.bf16.msra.mxu0 0
      %2709 = vmatpush.bf16.msra.mxu0 0
      %2710 = vmatpush.bf16.msra.mxu0 0
      %2711 = vmatpush.bf16.msra.mxu0 %v2699
      %2712 = vmatpush.bf16.msra.mxu0 %v2698
      %2713 = vmatmul.bf16.gmra.mxu0 %v2703
      %v2714 = vpop.f32.mrf.mxu0
      %v2715 = vadd.f32 %v2688, %v2714
      %v2716 = vpop.f32.mrf.mxu0
      %2717 = vdwg.mxu0
      %2719 = vrot.lane.b32.xlu0 %v2715, 96
      %v2720 = vpop.permute.xlu0 %2719
      %v2721 = vsel %vm542, %v2715, 0
      %v2723 = vsel %vm542, %v2720, 0
      %2725 = vmatpush.xpose.msra.mxu0 0.0
      %2726 = vmatpush.xpose.msra.mxu0 0.0
      %2727 = vmatpush.xpose.msra.mxu0 0.0
      %2728 = vmatpush.xpose.msra.mxu0 0.0
      %2729 = vmatpush.xpose.msra.mxu0 0.0
      %2730 = vmatpush.xpose.msra.mxu0 0.0
      %2731 = vmatpush.xpose.msra.mxu0 0.0
      %2732 = vmatpush.xpose.msra.mxu0 0.0
      %2733 = vmatpush.xpose.msra.mxu0 0.0
      %2734 = vmatpush.xpose.msra.mxu0 0.0
      %2735 = vmatpush.xpose.msra.mxu0 0.0
      %2736 = vmatpush.xpose.msra.mxu0 0.0
      %2737 = vmatpush.xpose.msra.mxu0 0.0
      %2738 = vmatpush.xpose.msra.mxu0 0.0
      %2739 = vmatpush.xpose.msra.mxu0 0.0
      %2740 = vmatpush.xpose.msra.mxu0 %v2723
      %2741 = vmatmul.f32.gmra.mxu0 %v2721
      %v2742 = vpop.f32.mrf.mxu0
      %v2743 = vadd.f32 0.0, %v2742
      %2744 = vdwg.mxu0
      %v2745 = vmul.f32 %v2743, 0.35355338
      %v2746 = vsel %vm568, %v2745, -inf
      %2747 = vmax.xlane.f32.xlu0 %v2746
      %v2748 = vpop.xlane.xlu0 %2747
      %v2749 = vsub.f32 %v2745, %v2748
      %v2750 = vmul.f32 %v2749, 1.442695
      %v2751 = vpow.pop %v2750
      %v2752 = vsel %vm568, %v2751, 0.0
      %2753 = vadd.xlane.f32.xlu0 %v2752
      %v2754 = vpop.xlane.xlu0 %2753
      %v2755 = vrcp.pop %v2754
      %v2756 = vmul.f32 %v2751, %v2755
      %2757 = vrot.lane.b32.xlu0 %v2715, 64
      %v2758 = vpop.permute.xlu0 %2757
      %v2760 = vsel %vm582, %v2756, 0
      %v2762 = vsel %vm586, %v2758, 0
      %2764 = vmatpush.msra.mxu0 0.0
      %2765 = vmatpush.msra.mxu0 0.0
      %2766 = vmatpush.msra.mxu0 0.0
      %2767 = vmatpush.msra.mxu0 0.0
      %2768 = vmatpush.msra.mxu0 0.0
      %2769 = vmatpush.msra.mxu0 0.0
      %2770 = vmatpush.msra.mxu0 0.0
      %2771 = vmatpush.msra.mxu0 0.0
      %2772 = vmatpush.msra.mxu0 0.0
      %2773 = vmatpush.msra.mxu0 0.0
      %2774 = vmatpush.msra.mxu0 0.0
      %2775 = vmatpush.msra.mxu0 0.0
      %2776 = vmatpush.msra.mxu0 0.0
      %2777 = vmatpush.msra.mxu0 0.0
      %2778 = vmatpush.msra.mxu0 0.0
      %2779 = vmatpush.msra.mxu0 %v2762
      %2780 = vmatmul.f32.gmra.mxu0 %v2760
      %v2781 = vpop.f32.mrf.mxu0
      %v2782 = vadd.f32 0.0, %v2781
      %2783 = vdwg.mxu0
      %2784 = vrot.lane.b32.xlu0 %v2715, 120
      %v2785 = vpop.permute.xlu0 %2784
      %2786 = vrot.lane.b32.xlu0 %v2715, 88
      %v2787 = vpop.permute.xlu0 %2786
      %v2788 = vsel %vm542, %v2785, 0
      %v2790 = vsel %vm542, %v2787, 0
      %2792 = vmatpush.xpose.msra.mxu0 0.0
      %2793 = vmatpush.xpose.msra.mxu0 0.0
      %2794 = vmatpush.xpose.msra.mxu0 0.0
      %2795 = vmatpush.xpose.msra.mxu0 0.0
      %2796 = vmatpush.xpose.msra.mxu0 0.0
      %2797 = vmatpush.xpose.msra.mxu0 0.0
      %2798 = vmatpush.xpose.msra.mxu0 0.0
      %2799 = vmatpush.xpose.msra.mxu0 0.0
      %2800 = vmatpush.xpose.msra.mxu0 0.0
      %2801 = vmatpush.xpose.msra.mxu0 0.0
      %2802 = vmatpush.xpose.msra.mxu0 0.0
      %2803 = vmatpush.xpose.msra.mxu0 0.0
      %2804 = vmatpush.xpose.msra.mxu0 0.0
      %2805 = vmatpush.xpose.msra.mxu0 0.0
      %2806 = vmatpush.xpose.msra.mxu0 0.0
      %2807 = vmatpush.xpose.msra.mxu0 %v2790
      %2808 = vmatmul.f32.gmra.mxu0 %v2788
      %v2809 = vpop.f32.mrf.mxu0
      %v2810 = vadd.f32 0.0, %v2809
      %2811 = vdwg.mxu0
      %v2812 = vmul.f32 %v2810, 0.35355338
      %v2813 = vsel %vm568, %v2812, -inf
      %2814 = vmax.xlane.f32.xlu0 %v2813
      %v2815 = vpop.xlane.xlu0 %2814
      %v2816 = vsub.f32 %v2812, %v2815
      %v2817 = vmul.f32 %v2816, 1.442695
      %v2818 = vpow.pop %v2817
      %v2819 = vsel %vm568, %v2818, 0.0
      %2820 = vadd.xlane.f32.xlu0 %v2819
      %v2821 = vpop.xlane.xlu0 %2820
      %v2822 = vrcp.pop %v2821
      %v2823 = vmul.f32 %v2818, %v2822
      %2824 = vrot.lane.b32.xlu0 %v2715, 56
      %v2825 = vpop.permute.xlu0 %2824
      %v2827 = vsel %vm582, %v2823, 0
      %v2829 = vsel %vm586, %v2825, 0
      %2831 = vmatpush.msra.mxu0 0.0
      %2832 = vmatpush.msra.mxu0 0.0
      %2833 = vmatpush.msra.mxu0 0.0
      %2834 = vmatpush.msra.mxu0 0.0
      %2835 = vmatpush.msra.mxu0 0.0
      %2836 = vmatpush.msra.mxu0 0.0
      %2837 = vmatpush.msra.mxu0 0.0
      %2838 = vmatpush.msra.mxu0 0.0
      %2839 = vmatpush.msra.mxu0 0.0
      %2840 = vmatpush.msra.mxu0 0.0
      %2841 = vmatpush.msra.mxu0 0.0
      %2842 = vmatpush.msra.mxu0 0.0
      %2843 = vmatpush.msra.mxu0 0.0
      %2844 = vmatpush.msra.mxu0 0.0
      %2845 = vmatpush.msra.mxu0 0.0
      %2846 = vmatpush.msra.mxu0 %v2829
      %2847 = vmatmul.f32.gmra.mxu0 %v2827
      %v2848 = vpop.f32.mrf.mxu0
      %v2849 = vadd.f32 0.0, %v2848
      %2850 = vdwg.mxu0
      %2851 = vrot.lane.b32.xlu0 %v2715, 112
      %v2852 = vpop.permute.xlu0 %2851
      %2853 = vrot.lane.b32.xlu0 %v2715, 80
      %v2854 = vpop.permute.xlu0 %2853
      %v2855 = vsel %vm542, %v2852, 0
      %v2857 = vsel %vm542, %v2854, 0
      %2859 = vmatpush.xpose.msra.mxu0 0.0
      %2860 = vmatpush.xpose.msra.mxu0 0.0
      %2861 = vmatpush.xpose.msra.mxu0 0.0
      %2862 = vmatpush.xpose.msra.mxu0 0.0
      %2863 = vmatpush.xpose.msra.mxu0 0.0
      %2864 = vmatpush.xpose.msra.mxu0 0.0
      %2865 = vmatpush.xpose.msra.mxu0 0.0
      %2866 = vmatpush.xpose.msra.mxu0 0.0
      %2867 = vmatpush.xpose.msra.mxu0 0.0
      %2868 = vmatpush.xpose.msra.mxu0 0.0
      %2869 = vmatpush.xpose.msra.mxu0 0.0
      %2870 = vmatpush.xpose.msra.mxu0 0.0
      %2871 = vmatpush.xpose.msra.mxu0 0.0
      %2872 = vmatpush.xpose.msra.mxu0 0.0
      %2873 = vmatpush.xpose.msra.mxu0 0.0
      %2874 = vmatpush.xpose.msra.mxu0 %v2857
      %2875 = vmatmul.f32.gmra.mxu0 %v2855
      %v2876 = vpop.f32.mrf.mxu0
      %v2877 = vadd.f32 0.0, %v2876
      %2878 = vdwg.mxu0
      %v2879 = vmul.f32 %v2877, 0.35355338
      %v2880 = vsel %vm568, %v2879, -inf
      %2881 = vmax.xlane.f32.xlu0 %v2880
      %v2882 = vpop.xlane.xlu0 %2881
      %v2883 = vsub.f32 %v2879, %v2882
      %v2884 = vmul.f32 %v2883, 1.442695
      %v2885 = vpow.pop %v2884
      %v2886 = vsel %vm568, %v2885, 0.0
      %2887 = vadd.xlane.f32.xlu0 %v2886
      %v2888 = vpop.xlane.xlu0 %2887
      %v2889 = vrcp.pop %v2888
      %v2890 = vmul.f32 %v2885, %v2889
      %2891 = vrot.lane.b32.xlu0 %v2715, 48
      %v2892 = vpop.permute.xlu0 %2891
      %v2894 = vsel %vm582, %v2890, 0
      %v2896 = vsel %vm586, %v2892, 0
      %2898 = vmatpush.msra.mxu0 0.0
      %2899 = vmatpush.msra.mxu0 0.0
      %2900 = vmatpush.msra.mxu0 0.0
      %2901 = vmatpush.msra.mxu0 0.0
      %2902 = vmatpush.msra.mxu0 0.0
      %2903 = vmatpush.msra.mxu0 0.0
      %2904 = vmatpush.msra.mxu0 0.0
      %2905 = vmatpush.msra.mxu0 0.0
      %2906 = vmatpush.msra.mxu0 0.0
      %2907 = vmatpush.msra.mxu0 0.0
      %2908 = vmatpush.msra.mxu0 0.0
      %2909 = vmatpush.msra.mxu0 0.0
      %2910 = vmatpush.msra.mxu0 0.0
      %2911 = vmatpush.msra.mxu0 0.0
      %2912 = vmatpush.msra.mxu0 0.0
      %2913 = vmatpush.msra.mxu0 %v2896
      %2914 = vmatmul.f32.gmra.mxu0 %v2894
      %v2915 = vpop.f32.mrf.mxu0
      %v2916 = vadd.f32 0.0, %v2915
      %2917 = vdwg.mxu0
      %2918 = vrot.lane.b32.xlu0 %v2715, 104
      %v2919 = vpop.permute.xlu0 %2918
      %2920 = vrot.lane.b32.xlu0 %v2715, 72
      %v2921 = vpop.permute.xlu0 %2920
      %v2922 = vsel %vm542, %v2919, 0
      %v2924 = vsel %vm542, %v2921, 0
      %2926 = vmatpush.xpose.msra.mxu0 0.0
      %2927 = vmatpush.xpose.msra.mxu0 0.0
      %2928 = vmatpush.xpose.msra.mxu0 0.0
      %2929 = vmatpush.xpose.msra.mxu0 0.0
      %2930 = vmatpush.xpose.msra.mxu0 0.0
      %2931 = vmatpush.xpose.msra.mxu0 0.0
      %2932 = vmatpush.xpose.msra.mxu0 0.0
      %2933 = vmatpush.xpose.msra.mxu0 0.0
      %2934 = vmatpush.xpose.msra.mxu0 0.0
      %2935 = vmatpush.xpose.msra.mxu0 0.0
      %2936 = vmatpush.xpose.msra.mxu0 0.0
      %2937 = vmatpush.xpose.msra.mxu0 0.0
      %2938 = vmatpush.xpose.msra.mxu0 0.0
      %2939 = vmatpush.xpose.msra.mxu0 0.0
      %2940 = vmatpush.xpose.msra.mxu0 0.0
      %2941 = vmatpush.xpose.msra.mxu0 %v2924
      %2942 = vmatmul.f32.gmra.mxu0 %v2922
      %v2943 = vpop.f32.mrf.mxu0
      %v2944 = vadd.f32 0.0, %v2943
      %2945 = vdwg.mxu0
      %v2946 = vmul.f32 %v2944, 0.35355338
      %v2947 = vsel %vm568, %v2946, -inf
      %2948 = vmax.xlane.f32.xlu0 %v2947
      %v2949 = vpop.xlane.xlu0 %2948
      %v2950 = vsub.f32 %v2946, %v2949
      %v2951 = vmul.f32 %v2950, 1.442695
      %v2952 = vpow.pop %v2951
      %v2953 = vsel %vm568, %v2952, 0.0
      %2954 = vadd.xlane.f32.xlu0 %v2953
      %v2955 = vpop.xlane.xlu0 %2954
      %v2956 = vrcp.pop %v2955
      %v2957 = vmul.f32 %v2952, %v2956
      %2958 = vrot.lane.b32.xlu0 %v2715, 40
      %v2959 = vpop.permute.xlu0 %2958
      %v2961 = vsel %vm582, %v2957, 0
      %v2963 = vsel %vm586, %v2959, 0
      %2965 = vmatpush.msra.mxu0 0.0
      %2966 = vmatpush.msra.mxu0 0.0
      %2967 = vmatpush.msra.mxu0 0.0
      %2968 = vmatpush.msra.mxu0 0.0
      %2969 = vmatpush.msra.mxu0 0.0
      %2970 = vmatpush.msra.mxu0 0.0
      %2971 = vmatpush.msra.mxu0 0.0
      %2972 = vmatpush.msra.mxu0 0.0
      %2973 = vmatpush.msra.mxu0 0.0
      %2974 = vmatpush.msra.mxu0 0.0
      %2975 = vmatpush.msra.mxu0 0.0
      %2976 = vmatpush.msra.mxu0 0.0
      %2977 = vmatpush.msra.mxu0 0.0
      %2978 = vmatpush.msra.mxu0 0.0
      %2979 = vmatpush.msra.mxu0 0.0
      %2980 = vmatpush.msra.mxu0 %v2963
      %2981 = vmatmul.f32.gmra.mxu0 %v2961
      %v2982 = vpop.f32.mrf.mxu0
      %v2983 = vadd.f32 0.0, %v2982
      %2984 = vdwg.mxu0
      %2986 = vrot.lane.b32.xlu0 %v2849, 8
      %v2987 = vpop.permute.xlu0 %2986
      %2990 = vrot.lane.b32.xlu0 %v2916, 16
      %v2991 = vpop.permute.xlu0 %2990
      %2994 = vrot.lane.b32.xlu0 %v2983, 24
      %v2995 = vpop.permute.xlu0 %2994
      %v2997 = vsel %vm542, %v2782, %v2987
      %v2998 = vsel %vm823, %v2997, %v2991
      %v2999 = vsel %vm825, %v2998, %v2995
      %v3000 = vpack.c.bf16 %v2999, %v2999
      %s3001 = scalar_lea.vmem %s5, 16
      %v3002 = vld [vmem:[%s3001] sm:$0xf]
      %v3003 = vld [vmem:[%s3001 + $0x4] sm:$0xf]
      %v3004 = vld [vmem:[%s3001 + $0x8] sm:$0xf]
      %v3005 = vld [vmem:[%s3001 + $0xc] sm:$0xf]
      %s3006 = scalar_lea.vmem %s6, 1
      %v3007 = vld [vmem:[%s3006] sm:$0x1]
      %v3009 = vperm.slane %v3007, 0
      %v3015 = vunpack.c.l.b16 %v3002
      %v3016 = vunpack.c.l.b16 %v3003
      %v3017 = vunpack.c.l.b16 %v3004
      %v3018 = vunpack.c.l.b16 %v3005
      %v3019 = vpack.c.b16 %v3016, %v3015
      %v3020 = vpack.c.b16 %v3018, %v3017
      %v3024 = vsel %vm522, %v3000, 0
      %3026 = vmatpush.bf16.msra.mxu0 0
      %3027 = vmatpush.bf16.msra.mxu0 0
      %3028 = vmatpush.bf16.msra.mxu0 0
      %3029 = vmatpush.bf16.msra.mxu0 0
      %3030 = vmatpush.bf16.msra.mxu0 0
      %3031 = vmatpush.bf16.msra.mxu0 0
      %3032 = vmatpush.bf16.msra.mxu0 %v3020
      %3033 = vmatpush.bf16.msra.mxu0 %v3019
      %3034 = vmatmul.bf16.gmra.mxu0 %v3024
      %v3035 = vpop.f32.mrf.mxu0
      %v3036 = vadd.f32 %v3009, %v3035
      %v3037 = vpop.f32.mrf.mxu0
      %3038 = vdwg.mxu0
      %v3039 = vadd.f32 %v2628, %v3036
      %s3040 = scalar_lea.vmem %s7, 1
      %v3041 = vld [vmem:[%s3040] sm:$0x1]
      %s3042 = scalar_lea.vmem %s8, 1
      %v3043 = vld [vmem:[%s3042] sm:$0x1]
      %v3044 = vsel %vm440, %v3039, 0.0
      %3045 = vadd.xlane.f32.xlu0 %v3044
      %v3046 = vpop.xlane.xlu0 %3045
      %v3047 = vmul.f32 %v3046, %v450
      %v3048 = vsub.f32 %v3039, %v3047
      %v3049 = vmul.f32 %v3048, %v3048
      %v3050 = vsel %vm440, %v3049, 0.0
      %3051 = vadd.xlane.f32.xlu0 %v3050
      %v3052 = vpop.xlane.xlu0 %3051
      %v3053 = vmul.f32 %v3052, %v463
      %v3054 = vrsqrt.pop %v3053
      %v3055 = vmul.f32 %v3054, %v3053
      %v3056 = vmul.f32 %v3055, %v3054
      %v3057 = vmul.f32 0.5, %v3056
      %v3058 = vsub.f32 1.5, %v3057
      %v3059 = vmul.f32 %v3054, %v3058
      %v3060 = vmul.f32 %v3053, %v3059
      %vm3061 = vcmp.eq.f32.partialorder %v3053, inf
      %v3062 = vsel %vm3061, %v3053, %v3060
      %vm3063 = vcmp.eq.f32.partialorder %v3053, 0.0
      %v3064 = vand.u32 %v3053, 2147483648
      %v3065 = vsel %vm3063, %v3064, %v3062
      %v3067 = vperm.slane %v3041, 0
      %v3069 = vmul.f32 %v3067, %v3048
      %v3070 = vadd.f32 %v3065, 1e-06
      %v3071 = vrcp.pop %v3070
      %v3072 = vmul.f32 %v3070, %v3071
      %v3073 = vsub.f32 1.0, %v3072
      %v3074 = vmul.f32 %v3071, %v3073
      %v3075 = vadd.f32 %v3071, %v3074
      %vm3076 = vweird.f32 %v3070
      %vm3077 = vweird.f32 %v3071
      %vm3078 = vmor %vm3076, %vm3077
      %v3079 = vsel %vm3078, %v3071, %v3075
      %v3080 = vand.u32 2147483647, %v3070
      %vm3081 = vcmp.eq.f32.partialorder %v3080, 8.507059e+37
      %v3082 = vand.u32 %v3070, 2147483648
      %v3083 = vor.u32 1.1754944e-38, %v3082
      %v3084 = vsel %vm3081, %v3083, %v3079
      %v3085 = vmul.f32 %v3069, %v3084
      %v3087 = vperm.slane %v3043, 0
      %v3089 = vadd.f32 %v3085, %v3087
      %v3090 = vpack.c.bf16 %v3089, %v3089
      %s3091 = scalar_lea.vmem %s9, 256
      %v3092 = vld [vmem:[%s3091] sm:$0xff]
      %v3093 = vld [vmem:[%s3091 + $0x8] sm:$0xff]
      %v3094 = vld [vmem:[%s3091 + $0x40] sm:$0xff]
      %v3095 = vld [vmem:[%s3091 + $0x48] sm:$0xff]
      %v3096 = vld [vmem:[%s3091 + $0x80] sm:$0xff]
      %v3097 = vld [vmem:[%s3091 + $0x88] sm:$0xff]
      %v3098 = vld [vmem:[%s3091 + $0xc0] sm:$0xff]
      %v3099 = vld [vmem:[%s3091 + $0xc8] sm:$0xff]
      %s3100 = scalar_lea.vmem %s10, 16
      %v3101 = vld [vmem:[%s3100] sm:$0xf]
      %v3103 = vperm.slane %v3101, 0
      %v3104 = vperm.slane %v3101, 1
      %v3105 = vperm.slane %v3101, 2
      %v3106 = vperm.slane %v3101, 3
      %v3119 = vunpack.c.l.b16 %v3092
      %v3120 = vunpack.c.h.b16 %v3092
      %v3121 = vunpack.c.l.b16 %v3093
      %v3122 = vunpack.c.h.b16 %v3093
      %v3123 = vunpack.c.l.b16 %v3094
      %v3124 = vunpack.c.h.b16 %v3094
      %v3125 = vunpack.c.l.b16 %v3095
      %v3126 = vunpack.c.h.b16 %v3095
      %v3127 = vunpack.c.l.b16 %v3096
      %v3128 = vunpack.c.h.b16 %v3096
      %v3129 = vunpack.c.l.b16 %v3097
      %v3130 = vunpack.c.h.b16 %v3097
      %v3131 = vunpack.c.l.b16 %v3098
      %v3132 = vunpack.c.h.b16 %v3098
      %v3133 = vunpack.c.l.b16 %v3099
      %v3134 = vunpack.c.h.b16 %v3099
      %v3135 = vpack.c.b16 %v3123, %v3119
      %v3136 = vpack.c.b16 %v3124, %v3120
      %v3137 = vpack.c.b16 %v3125, %v3121
      %v3138 = vpack.c.b16 %v3126, %v3122
      %v3139 = vpack.c.b16 %v3131, %v3127
      %v3140 = vpack.c.b16 %v3132, %v3128
      %v3141 = vpack.c.b16 %v3133, %v3129
      %v3142 = vpack.c.b16 %v3134, %v3130
      %v3152 = vsel %vm522, %v3090, 0
      %3154 = vmatpush.bf16.msra.mxu0 0
      %3155 = vmatpush.bf16.msra.mxu0 0
      %3156 = vmatpush.bf16.msra.mxu0 0
      %3157 = vmatpush.bf16.msra.mxu0 0
      %3158 = vmatpush.bf16.msra.mxu0 0
      %3159 = vmatpush.bf16.msra.mxu0 0
      %3160 = vmatpush.bf16.msra.mxu0 %v3139
      %3161 = vmatpush.bf16.msra.mxu0 %v3135
      %3162 = vmatmul.bf16.gmra.mxu0 %v3152
      %v3163 = vpop.f32.mrf.mxu0
      %v3164 = vadd.f32 %v3103, %v3163
      %v3165 = vpop.f32.mrf.mxu0
      %3166 = vdwg.mxu0
      %3167 = vmatpush.bf16.msra.mxu0 0
      %3168 = vmatpush.bf16.msra.mxu0 0
      %3169 = vmatpush.bf16.msra.mxu0 0
      %3170 = vmatpush.bf16.msra.mxu0 0
      %3171 = vmatpush.bf16.msra.mxu0 0
      %3172 = vmatpush.bf16.msra.mxu0 0
      %3173 = vmatpush.bf16.msra.mxu0 %v3140
      %3174 = vmatpush.bf16.msra.mxu0 %v3136
      %3175 = vmatmul.bf16.gmra.mxu0 %v3152
      %v3176 = vpop.f32.mrf.mxu0
      %v3177 = vadd.f32 %v3104, %v3176
      %v3178 = vpop.f32.mrf.mxu0
      %3179 = vdwg.mxu0
      %3180 = vmatpush.bf16.msra.mxu0 0
      %3181 = vmatpush.bf16.msra.mxu0 0
      %3182 = vmatpush.bf16.msra.mxu0 0
      %3183 = vmatpush.bf16.msra.mxu0 0
      %3184 = vmatpush.bf16.msra.mxu0 0
      %3185 = vmatpush.bf16.msra.mxu0 0
      %3186 = vmatpush.bf16.msra.mxu0 %v3141
      %3187 = vmatpush.bf16.msra.mxu0 %v3137
      %3188 = vmatmul.bf16.gmra.mxu0 %v3152
      %v3189 = vpop.f32.mrf.mxu0
      %v3190 = vadd.f32 %v3105, %v3189
      %v3191 = vpop.f32.mrf.mxu0
      %3192 = vdwg.mxu0
      %3193 = vmatpush.bf16.msra.mxu0 0
      %3194 = vmatpush.bf16.msra.mxu0 0
      %3195 = vmatpush.bf16.msra.mxu0 0
      %3196 = vmatpush.bf16.msra.mxu0 0
      %3197 = vmatpush.bf16.msra.mxu0 0
      %3198 = vmatpush.bf16.msra.mxu0 0
      %3199 = vmatpush.bf16.msra.mxu0 %v3142
      %3200 = vmatpush.bf16.msra.mxu0 %v3138
      %3201 = vmatmul.bf16.gmra.mxu0 %v3152
      %v3202 = vpop.f32.mrf.mxu0
      %v3203 = vadd.f32 %v3106, %v3202
      %v3204 = vpop.f32.mrf.mxu0
      %3205 = vdwg.mxu0
      %v3206 = vmax.f32 %v3164, 0.0
      %v3207 = vmax.f32 %v3177, 0.0
      %v3208 = vmax.f32 %v3190, 0.0
      %v3209 = vmax.f32 %v3203, 0.0
      %v3210 = vpack.c.bf16 %v3206, %v3206
      %v3211 = vpack.c.bf16 %v3207, %v3207
      %v3212 = vpack.c.bf16 %v3208, %v3208
      %v3213 = vpack.c.bf16 %v3209, %v3209
      %s3214 = scalar_lea.vmem %s11, 1024
      %v3215 = vld [vmem:[%s3214] sm:$0xf]
      %v3216 = vld [vmem:[%s3214 + $0x4] sm:$0xf]
      %v3217 = vld [vmem:[%s3214 + $0x8] sm:$0xf]
      %v3218 = vld [vmem:[%s3214 + $0xc] sm:$0xf]
      %v3219 = vld [vmem:[%s3214 + $0x10] sm:$0xf]
      %v3220 = vld [vmem:[%s3214 + $0x14] sm:$0xf]
      %v3221 = vld [vmem:[%s3214 + $0x18] sm:$0xf]
      %v3222 = vld [vmem:[%s3214 + $0x1c] sm:$0xf]
      %v3223 = vld [vmem:[%s3214 + $0x20] sm:$0xf]
      %v3224 = vld [vmem:[%s3214 + $0x24] sm:$0xf]
      %v3225 = vld [vmem:[%s3214 + $0x28] sm:$0xf]
      %v3226 = vld [vmem:[%s3214 + $0x2c] sm:$0xf]
      %v3227 = vld [vmem:[%s3214 + $0x30] sm:$0xf]
      %v3228 = vld [vmem:[%s3214 + $0x34] sm:$0xf]
      %v3229 = vld [vmem:[%s3214 + $0x38] sm:$0xf]
      %v3230 = vld [vmem:[%s3214 + $0x3c] sm:$0xf]
      %v3231 = vld [vmem:[%s3214 + $0x40] sm:$0xf]
      %v3232 = vld [vmem:[%s3214 + $0x44] sm:$0xf]
      %v3233 = vld [vmem:[%s3214 + $0x48] sm:$0xf]
      %v3234 = vld [vmem:[%s3214 + $0x4c] sm:$0xf]
      %v3235 = vld [vmem:[%s3214 + $0x50] sm:$0xf]
      %v3236 = vld [vmem:[%s3214 + $0x54] sm:$0xf]
      %v3237 = vld [vmem:[%s3214 + $0x58] sm:$0xf]
      %v3238 = vld [vmem:[%s3214 + $0x5c] sm:$0xf]
      %v3239 = vld [vmem:[%s3214 + $0x60] sm:$0xf]
      %v3240 = vld [vmem:[%s3214 + $0x64] sm:$0xf]
      %v3241 = vld [vmem:[%s3214 + $0x68] sm:$0xf]
      %v3242 = vld [vmem:[%s3214 + $0x6c] sm:$0xf]
      %v3243 = vld [vmem:[%s3214 + $0x70] sm:$0xf]
      %v3244 = vld [vmem:[%s3214 + $0x74] sm:$0xf]
      %v3245 = vld [vmem:[%s3214 + $0x78] sm:$0xf]
      %v3246 = vld [vmem:[%s3214 + $0x7c] sm:$0xf]
      %v3247 = vld [vmem:[%s3214 + $0x80] sm:$0xf]
      %v3248 = vld [vmem:[%s3214 + $0x84] sm:$0xf]
      %v3249 = vld [vmem:[%s3214 + $0x88] sm:$0xf]
      %v3250 = vld [vmem:[%s3214 + $0x8c] sm:$0xf]
      %v3251 = vld [vmem:[%s3214 + $0x90] sm:$0xf]
      %v3252 = vld [vmem:[%s3214 + $0x94] sm:$0xf]
      %v3253 = vld [vmem:[%s3214 + $0x98] sm:$0xf]
      %v3254 = vld [vmem:[%s3214 + $0x9c] sm:$0xf]
      %v3255 = vld [vmem:[%s3214 + $0xa0] sm:$0xf]
      %v3256 = vld [vmem:[%s3214 + $0xa4] sm:$0xf]
      %v3257 = vld [vmem:[%s3214 + $0xa8] sm:$0xf]
      %v3258 = vld [vmem:[%s3214 + $0xac] sm:$0xf]
      %v3259 = vld [vmem:[%s3214 + $0xb0] sm:$0xf]
      %v3260 = vld [vmem:[%s3214 + $0xb4] sm:$0xf]
      %v3261 = vld [vmem:[%s3214 + $0xb8] sm:$0xf]
      %v3262 = vld [vmem:[%s3214 + $0xbc] sm:$0xf]
      %v3263 = vld [vmem:[%s3214 + $0xc0] sm:$0xf]
      %v3264 = vld [vmem:[%s3214 + $0xc4] sm:$0xf]
      %v3265 = vld [vmem:[%s3214 + $0xc8] sm:$0xf]
      %v3266 = vld [vmem:[%s3214 + $0xcc] sm:$0xf]
      %v3267 = vld [vmem:[%s3214 + $0xd0] sm:$0xf]
      %v3268 = vld [vmem:[%s3214 + $0xd4] sm:$0xf]
      %v3269 = vld [vmem:[%s3214 + $0xd8] sm:$0xf]
      %v3270 = vld [vmem:[%s3214 + $0xdc] sm:$0xf]
      %v3271 = vld [vmem:[%s3214 + $0xe0] sm:$0xf]
      %v3272 = vld [vmem:[%s3214 + $0xe4] sm:$0xf]
      %v3273 = vld [vmem:[%s3214 + $0xe8] sm:$0xf]
      %v3274 = vld [vmem:[%s3214 + $0xec] sm:$0xf]
      %v3275 = vld [vmem:[%s3214 + $0xf0] sm:$0xf]
      %v3276 = vld [vmem:[%s3214 + $0xf4] sm:$0xf]
      %v3277 = vld [vmem:[%s3214 + $0xf8] sm:$0xf]
      %v3278 = vld [vmem:[%s3214 + $0xfc] sm:$0xf]
      %v3279 = vld [vmem:[%s3091 + $0x10] sm:$0xff]
      %v3280 = vld [vmem:[%s3091 + $0x18] sm:$0xff]
      %v3281 = vld [vmem:[%s3091 + $0x50] sm:$0xff]
      %v3282 = vld [vmem:[%s3091 + $0x58] sm:$0xff]
      %v3283 = vld [vmem:[%s3091 + $0x90] sm:$0xff]
      %v3284 = vld [vmem:[%s3091 + $0x98] sm:$0xff]
      %v3285 = vld [vmem:[%s3091 + $0xd0] sm:$0xff]
      %v3286 = vld [vmem:[%s3091 + $0xd8] sm:$0xff]
      %v3287 = vld [vmem:[%s3100 + $0x4] sm:$0xf]
      %v3289 = vperm.slane %v3287, 0
      %v3290 = vperm.slane %v3287, 1
      %v3291 = vperm.slane %v3287, 2
      %v3292 = vperm.slane %v3287, 3
      %v3305 = vunpack.c.l.b16 %v3279
      %v3306 = vunpack.c.h.b16 %v3279
      %v3307 = vunpack.c.l.b16 %v3280
      %v3308 = vunpack.c.h.b16 %v3280
      %v3309 = vunpack.c.l.b16 %v3281
      %v3310 = vunpack.c.h.b16 %v3281
      %v3311 = vunpack.c.l.b16 %v3282
      %v3312 = vunpack.c.h.b16 %v3282
      %v3313 = vunpack.c.l.b16 %v3283
      %v3314 = vunpack.c.h.b16 %v3283
      %v3315 = vunpack.c.l.b16 %v3284
      %v3316 = vunpack.c.h.b16 %v3284
      %v3317 = vunpack.c.l.b16 %v3285
      %v3318 = vunpack.c.h.b16 %v3285
      %v3319 = vunpack.c.l.b16 %v3286
      %v3320 = vunpack.c.h.b16 %v3286
      %v3321 = vpack.c.b16 %v3309, %v3305
      %v3322 = vpack.c.b16 %v3310, %v3306
      %v3323 = vpack.c.b16 %v3311, %v3307
      %v3324 = vpack.c.b16 %v3312, %v3308
      %v3325 = vpack.c.b16 %v3317, %v3313
      %v3326 = vpack.c.b16 %v3318, %v3314
      %v3327 = vpack.c.b16 %v3319, %v3315
      %v3328 = vpack.c.b16 %v3320, %v3316
      %3337 = vmatpush.bf16.msra.mxu0 0
      %3338 = vmatpush.bf16.msra.mxu0 0
      %3339 = vmatpush.bf16.msra.mxu0 0
      %3340 = vmatpush.bf16.msra.mxu0 0
      %3341 = vmatpush.bf16.msra.mxu0 0
      %3342 = vmatpush.bf16.msra.mxu0 0
      %3343 = vmatpush.bf16.msra.mxu0 %v3325
      %3344 = vmatpush.bf16.msra.mxu0 %v3321
      %3345 = vmatmul.bf16.gmra.mxu0 %v3152
      %v3346 = vpop.f32.mrf.mxu0
      %v3347 = vadd.f32 %v3289, %v3346
      %v3348 = vpop.f32.mrf.mxu0
      %3349 = vdwg.mxu0
      %3350 = vmatpush.bf16.msra.mxu0 0
      %3351 = vmatpush.bf16.msra.mxu0 0
      %3352 = vmatpush.bf16.msra.mxu0 0
      %3353 = vmatpush.bf16.msra.mxu0 0
      %3354 = vmatpush.bf16.msra.mxu0 0
      %3355 = vmatpush.bf16.msra.mxu0 0
      %3356 = vmatpush.bf16.msra.mxu0 %v3326
      %3357 = vmatpush.bf16.msra.mxu0 %v3322
      %3358 = vmatmul.bf16.gmra.mxu0 %v3152
      %v3359 = vpop.f32.mrf.mxu0
      %v3360 = vadd.f32 %v3290, %v3359
      %v3361 = vpop.f32.mrf.mxu0
      %3362 = vdwg.mxu0
      %3363 = vmatpush.bf16.msra.mxu0 0
      %3364 = vmatpush.bf16.msra.mxu0 0
      %3365 = vmatpush.bf16.msra.mxu0 0
      %3366 = vmatpush.bf16.msra.mxu0 0
      %3367 = vmatpush.bf16.msra.mxu0 0
      %3368 = vmatpush.bf16.msra.mxu0 0
      %3369 = vmatpush.bf16.msra.mxu0 %v3327
      %3370 = vmatpush.bf16.msra.mxu0 %v3323
      %3371 = vmatmul.bf16.gmra.mxu0 %v3152
      %v3372 = vpop.f32.mrf.mxu0
      %v3373 = vadd.f32 %v3291, %v3372
      %v3374 = vpop.f32.mrf.mxu0
      %3375 = vdwg.mxu0
      %3376 = vmatpush.bf16.msra.mxu0 0
      %3377 = vmatpush.bf16.msra.mxu0 0
      %3378 = vmatpush.bf16.msra.mxu0 0
      %3379 = vmatpush.bf16.msra.mxu0 0
      %3380 = vmatpush.bf16.msra.mxu0 0
      %3381 = vmatpush.bf16.msra.mxu0 0
      %3382 = vmatpush.bf16.msra.mxu0 %v3328
      %3383 = vmatpush.bf16.msra.mxu0 %v3324
      %3384 = vmatmul.bf16.gmra.mxu0 %v3152
      %v3385 = vpop.f32.mrf.mxu0
      %v3386 = vadd.f32 %v3292, %v3385
      %v3387 = vpop.f32.mrf.mxu0
      %3388 = vdwg.mxu0
      %v3389 = vmax.f32 %v3347, 0.0
      %v3390 = vmax.f32 %v3360, 0.0
      %v3391 = vmax.f32 %v3373, 0.0
      %v3392 = vmax.f32 %v3386, 0.0
      %v3393 = vpack.c.bf16 %v3389, %v3389
      %v3394 = vpack.c.bf16 %v3390, %v3390
      %v3395 = vpack.c.bf16 %v3391, %v3391
      %v3396 = vpack.c.bf16 %v3392, %v3392
      %v3397 = vld [vmem:[%s3214 + $0x100] sm:$0xf]
      %v3398 = vld [vmem:[%s3214 + $0x104] sm:$0xf]
      %v3399 = vld [vmem:[%s3214 + $0x108] sm:$0xf]
      %v3400 = vld [vmem:[%s3214 + $0x10c] sm:$0xf]
      %v3401 = vld [vmem:[%s3214 + $0x110] sm:$0xf]
      %v3402 = vld [vmem:[%s3214 + $0x114] sm:$0xf]
      %v3403 = vld [vmem:[%s3214 + $0x118] sm:$0xf]
      %v3404 = vld [vmem:[%s3214 + $0x11c] sm:$0xf]
      %v3405 = vld [vmem:[%s3214 + $0x120] sm:$0xf]
      %v3406 = vld [vmem:[%s3214 + $0x124] sm:$0xf]
      %v3407 = vld [vmem:[%s3214 + $0x128] sm:$0xf]
      %v3408 = vld [vmem:[%s3214 + $0x12c] sm:$0xf]
      %v3409 = vld [vmem:[%s3214 + $0x130] sm:$0xf]
      %v3410 = vld [vmem:[%s3214 + $0x134] sm:$0xf]
      %v3411 = vld [vmem:[%s3214 + $0x138] sm:$0xf]
      %v3412 = vld [vmem:[%s3214 + $0x13c] sm:$0xf]
      %v3413 = vld [vmem:[%s3214 + $0x140] sm:$0xf]
      %v3414 = vld [vmem:[%s3214 + $0x144] sm:$0xf]
      %v3415 = vld [vmem:[%s3214 + $0x148] sm:$0xf]
      %v3416 = vld [vmem:[%s3214 + $0x14c] sm:$0xf]
      %v3417 = vld [vmem:[%s3214 + $0x150] sm:$0xf]
      %v3418 = vld [vmem:[%s3214 + $0x154] sm:$0xf]
      %v3419 = vld [vmem:[%s3214 + $0x158] sm:$0xf]
      %v3420 = vld [vmem:[%s3214 + $0x15c] sm:$0xf]
      %v3421 = vld [vmem:[%s3214 + $0x160] sm:$0xf]
      %v3422 = vld [vmem:[%s3214 + $0x164] sm:$0xf]
      %v3423 = vld [vmem:[%s3214 + $0x168] sm:$0xf]
      %v3424 = vld [vmem:[%s3214 + $0x16c] sm:$0xf]
      %v3425 = vld [vmem:[%s3214 + $0x170] sm:$0xf]
      %v3426 = vld [vmem:[%s3214 + $0x174] sm:$0xf]
      %v3427 = vld [vmem:[%s3214 + $0x178] sm:$0xf]
      %v3428 = vld [vmem:[%s3214 + $0x17c] sm:$0xf]
      %v3429 = vld [vmem:[%s3214 + $0x180] sm:$0xf]
      %v3430 = vld [vmem:[%s3214 + $0x184] sm:$0xf]
      %v3431 = vld [vmem:[%s3214 + $0x188] sm:$0xf]
      %v3432 = vld [vmem:[%s3214 + $0x18c] sm:$0xf]
      %v3433 = vld [vmem:[%s3214 + $0x190] sm:$0xf]
      %v3434 = vld [vmem:[%s3214 + $0x194] sm:$0xf]
      %v3435 = vld [vmem:[%s3214 + $0x198] sm:$0xf]
      %v3436 = vld [vmem:[%s3214 + $0x19c] sm:$0xf]
      %v3437 = vld [vmem:[%s3214 + $0x1a0] sm:$0xf]
      %v3438 = vld [vmem:[%s3214 + $0x1a4] sm:$0xf]
      %v3439 = vld [vmem:[%s3214 + $0x1a8] sm:$0xf]
      %v3440 = vld [vmem:[%s3214 + $0x1ac] sm:$0xf]
      %v3441 = vld [vmem:[%s3214 + $0x1b0] sm:$0xf]
      %v3442 = vld [vmem:[%s3214 + $0x1b4] sm:$0xf]
      %v3443 = vld [vmem:[%s3214 + $0x1b8] sm:$0xf]
      %v3444 = vld [vmem:[%s3214 + $0x1bc] sm:$0xf]
      %v3445 = vld [vmem:[%s3214 + $0x1c0] sm:$0xf]
      %v3446 = vld [vmem:[%s3214 + $0x1c4] sm:$0xf]
      %v3447 = vld [vmem:[%s3214 + $0x1c8] sm:$0xf]
      %v3448 = vld [vmem:[%s3214 + $0x1cc] sm:$0xf]
      %v3449 = vld [vmem:[%s3214 + $0x1d0] sm:$0xf]
      %v3450 = vld [vmem:[%s3214 + $0x1d4] sm:$0xf]
      %v3451 = vld [vmem:[%s3214 + $0x1d8] sm:$0xf]
      %v3452 = vld [vmem:[%s3214 + $0x1dc] sm:$0xf]
      %v3453 = vld [vmem:[%s3214 + $0x1e0] sm:$0xf]
      %v3454 = vld [vmem:[%s3214 + $0x1e4] sm:$0xf]
      %v3455 = vld [vmem:[%s3214 + $0x1e8] sm:$0xf]
      %v3456 = vld [vmem:[%s3214 + $0x1ec] sm:$0xf]
      %v3457 = vld [vmem:[%s3214 + $0x1f0] sm:$0xf]
      %v3458 = vld [vmem:[%s3214 + $0x1f4] sm:$0xf]
      %v3459 = vld [vmem:[%s3214 + $0x1f8] sm:$0xf]
      %v3460 = vld [vmem:[%s3214 + $0x1fc] sm:$0xf]
      %v3525 = vunpack.c.l.b16 %v3397
      %v3526 = vunpack.c.l.b16 %v3398
      %v3527 = vunpack.c.l.b16 %v3399
      %v3528 = vunpack.c.l.b16 %v3400
      %v3529 = vunpack.c.l.b16 %v3401
      %v3530 = vunpack.c.l.b16 %v3402
      %v3531 = vunpack.c.l.b16 %v3403
      %v3532 = vunpack.c.l.b16 %v3404
      %v3533 = vunpack.c.l.b16 %v3405
      %v3534 = vunpack.c.l.b16 %v3406
      %v3535 = vunpack.c.l.b16 %v3407
      %v3536 = vunpack.c.l.b16 %v3408
      %v3537 = vunpack.c.l.b16 %v3409
      %v3538 = vunpack.c.l.b16 %v3410
      %v3539 = vunpack.c.l.b16 %v3411
      %v3540 = vunpack.c.l.b16 %v3412
      %v3541 = vunpack.c.l.b16 %v3413
      %v3542 = vunpack.c.l.b16 %v3414
      %v3543 = vunpack.c.l.b16 %v3415
      %v3544 = vunpack.c.l.b16 %v3416
      %v3545 = vunpack.c.l.b16 %v3417
      %v3546 = vunpack.c.l.b16 %v3418
      %v3547 = vunpack.c.l.b16 %v3419
      %v3548 = vunpack.c.l.b16 %v3420
      %v3549 = vunpack.c.l.b16 %v3421
      %v3550 = vunpack.c.l.b16 %v3422
      %v3551 = vunpack.c.l.b16 %v3423
      %v3552 = vunpack.c.l.b16 %v3424
      %v3553 = vunpack.c.l.b16 %v3425
      %v3554 = vunpack.c.l.b16 %v3426
      %v3555 = vunpack.c.l.b16 %v3427
      %v3556 = vunpack.c.l.b16 %v3428
      %v3557 = vunpack.c.l.b16 %v3429
      %v3558 = vunpack.c.l.b16 %v3430
      %v3559 = vunpack.c.l.b16 %v3431
      %v3560 = vunpack.c.l.b16 %v3432
      %v3561 = vunpack.c.l.b16 %v3433
      %v3562 = vunpack.c.l.b16 %v3434
      %v3563 = vunpack.c.l.b16 %v3435
      %v3564 = vunpack.c.l.b16 %v3436
      %v3565 = vunpack.c.l.b16 %v3437
      %v3566 = vunpack.c.l.b16 %v3438
      %v3567 = vunpack.c.l.b16 %v3439
      %v3568 = vunpack.c.l.b16 %v3440
      %v3569 = vunpack.c.l.b16 %v3441
      %v3570 = vunpack.c.l.b16 %v3442
      %v3571 = vunpack.c.l.b16 %v3443
      %v3572 = vunpack.c.l.b16 %v3444
      %v3573 = vunpack.c.l.b16 %v3445
      %v3574 = vunpack.c.l.b16 %v3446
      %v3575 = vunpack.c.l.b16 %v3447
      %v3576 = vunpack.c.l.b16 %v3448
      %v3577 = vunpack.c.l.b16 %v3449
      %v3578 = vunpack.c.l.b16 %v3450
      %v3579 = vunpack.c.l.b16 %v3451
      %v3580 = vunpack.c.l.b16 %v3452
      %v3581 = vunpack.c.l.b16 %v3453
      %v3582 = vunpack.c.l.b16 %v3454
      %v3583 = vunpack.c.l.b16 %v3455
      %v3584 = vunpack.c.l.b16 %v3456
      %v3585 = vunpack.c.l.b16 %v3457
      %v3586 = vunpack.c.l.b16 %v3458
      %v3587 = vunpack.c.l.b16 %v3459
      %v3588 = vunpack.c.l.b16 %v3460
      %v3589 = vpack.c.b16 %v3526, %v3525
      %v3590 = vpack.c.b16 %v3528, %v3527
      %v3591 = vpack.c.b16 %v3530, %v3529
      %v3592 = vpack.c.b16 %v3532, %v3531
      %v3593 = vpack.c.b16 %v3534, %v3533
      %v3594 = vpack.c.b16 %v3536, %v3535
      %v3595 = vpack.c.b16 %v3538, %v3537
      %v3596 = vpack.c.b16 %v3540, %v3539
      %v3597 = vpack.c.b16 %v3542, %v3541
      %v3598 = vpack.c.b16 %v3544, %v3543
      %v3599 = vpack.c.b16 %v3546, %v3545
      %v3600 = vpack.c.b16 %v3548, %v3547
      %v3601 = vpack.c.b16 %v3550, %v3549
      %v3602 = vpack.c.b16 %v3552, %v3551
      %v3603 = vpack.c.b16 %v3554, %v3553
      %v3604 = vpack.c.b16 %v3556, %v3555
      %v3605 = vpack.c.b16 %v3558, %v3557
      %v3606 = vpack.c.b16 %v3560, %v3559
      %v3607 = vpack.c.b16 %v3562, %v3561
      %v3608 = vpack.c.b16 %v3564, %v3563
      %v3609 = vpack.c.b16 %v3566, %v3565
      %v3610 = vpack.c.b16 %v3568, %v3567
      %v3611 = vpack.c.b16 %v3570, %v3569
      %v3612 = vpack.c.b16 %v3572, %v3571
      %v3613 = vpack.c.b16 %v3574, %v3573
      %v3614 = vpack.c.b16 %v3576, %v3575
      %v3615 = vpack.c.b16 %v3578, %v3577
      %v3616 = vpack.c.b16 %v3580, %v3579
      %v3617 = vpack.c.b16 %v3582, %v3581
      %v3618 = vpack.c.b16 %v3584, %v3583
      %v3619 = vpack.c.b16 %v3586, %v3585
      %v3620 = vpack.c.b16 %v3588, %v3587
      %3653 = vmatpush.bf16.msra.mxu0 %v3596
      %3654 = vmatpush.bf16.msra.mxu0 %v3595
      %3655 = vmatpush.bf16.msra.mxu0 %v3594
      %3656 = vmatpush.bf16.msra.mxu0 %v3593
      %3657 = vmatpush.bf16.msra.mxu0 %v3592
      %3658 = vmatpush.bf16.msra.mxu0 %v3591
      %3659 = vmatpush.bf16.msra.mxu0 %v3590
      %3660 = vmatpush.bf16.msra.mxu0 %v3589
      %3661 = vmatmul.bf16.gmra.mxu0 %v3393
      %v3662 = vpop.f32.mrf.mxu0
      %v3663 = vadd.f32 0.0, %v3662
      %v3664 = vpop.f32.mrf.mxu0
      %3665 = vdwg.mxu0
      %3666 = vmatpush.bf16.msra.mxu0 %v3604
      %3667 = vmatpush.bf16.msra.mxu0 %v3603
      %3668 = vmatpush.bf16.msra.mxu0 %v3602
      %3669 = vmatpush.bf16.msra.mxu0 %v3601
      %3670 = vmatpush.bf16.msra.mxu0 %v3600
      %3671 = vmatpush.bf16.msra.mxu0 %v3599
      %3672 = vmatpush.bf16.msra.mxu0 %v3598
      %3673 = vmatpush.bf16.msra.mxu0 %v3597
      %3674 = vmatmul.bf16.gmra.mxu0 %v3394
      %v3675 = vpop.f32.mrf.mxu0
      %v3676 = vadd.f32 %v3663, %v3675
      %v3677 = vpop.f32.mrf.mxu0
      %3678 = vdwg.mxu0
      %3679 = vmatpush.bf16.msra.mxu0 %v3612
      %3680 = vmatpush.bf16.msra.mxu0 %v3611
      %3681 = vmatpush.bf16.msra.mxu0 %v3610
      %3682 = vmatpush.bf16.msra.mxu0 %v3609
      %3683 = vmatpush.bf16.msra.mxu0 %v3608
      %3684 = vmatpush.bf16.msra.mxu0 %v3607
      %3685 = vmatpush.bf16.msra.mxu0 %v3606
      %3686 = vmatpush.bf16.msra.mxu0 %v3605
      %3687 = vmatmul.bf16.gmra.mxu0 %v3395
      %v3688 = vpop.f32.mrf.mxu0
      %v3689 = vadd.f32 %v3676, %v3688
      %v3690 = vpop.f32.mrf.mxu0
      %3691 = vdwg.mxu0
      %3692 = vmatpush.bf16.msra.mxu0 %v3620
      %3693 = vmatpush.bf16.msra.mxu0 %v3619
      %3694 = vmatpush.bf16.msra.mxu0 %v3618
      %3695 = vmatpush.bf16.msra.mxu0 %v3617
      %3696 = vmatpush.bf16.msra.mxu0 %v3616
      %3697 = vmatpush.bf16.msra.mxu0 %v3615
      %3698 = vmatpush.bf16.msra.mxu0 %v3614
      %3699 = vmatpush.bf16.msra.mxu0 %v3613
      %3700 = vmatmul.bf16.gmra.mxu0 %v3396
      %v3701 = vpop.f32.mrf.mxu0
      %v3702 = vadd.f32 %v3689, %v3701
      %v3703 = vpop.f32.mrf.mxu0
      %3704 = vdwg.mxu0
      %v3769 = vunpack.c.l.b16 %v3215
      %v3770 = vunpack.c.l.b16 %v3216
      %v3771 = vunpack.c.l.b16 %v3217
      %v3772 = vunpack.c.l.b16 %v3218
      %v3773 = vunpack.c.l.b16 %v3219
      %v3774 = vunpack.c.l.b16 %v3220
      %v3775 = vunpack.c.l.b16 %v3221
      %v3776 = vunpack.c.l.b16 %v3222
      %v3777 = vunpack.c.l.b16 %v3223
      %v3778 = vunpack.c.l.b16 %v3224
      %v3779 = vunpack.c.l.b16 %v3225
      %v3780 = vunpack.c.l.b16 %v3226
      %v3781 = vunpack.c.l.b16 %v3227
      %v3782 = vunpack.c.l.b16 %v3228
      %v3783 = vunpack.c.l.b16 %v3229
      %v3784 = vunpack.c.l.b16 %v3230
      %v3785 = vunpack.c.l.b16 %v3231
      %v3786 = vunpack.c.l.b16 %v3232
      %v3787 = vunpack.c.l.b16 %v3233
      %v3788 = vunpack.c.l.b16 %v3234
      %v3789 = vunpack.c.l.b16 %v3235
      %v3790 = vunpack.c.l.b16 %v3236
      %v3791 = vunpack.c.l.b16 %v3237
      %v3792 = vunpack.c.l.b16 %v3238
      %v3793 = vunpack.c.l.b16 %v3239
      %v3794 = vunpack.c.l.b16 %v3240
      %v3795 = vunpack.c.l.b16 %v3241
      %v3796 = vunpack.c.l.b16 %v3242
      %v3797 = vunpack.c.l.b16 %v3243
      %v3798 = vunpack.c.l.b16 %v3244
      %v3799 = vunpack.c.l.b16 %v3245
      %v3800 = vunpack.c.l.b16 %v3246
      %v3801 = vunpack.c.l.b16 %v3247
      %v3802 = vunpack.c.l.b16 %v3248
      %v3803 = vunpack.c.l.b16 %v3249
      %v3804 = vunpack.c.l.b16 %v3250
      %v3805 = vunpack.c.l.b16 %v3251
      %v3806 = vunpack.c.l.b16 %v3252
      %v3807 = vunpack.c.l.b16 %v3253
      %v3808 = vunpack.c.l.b16 %v3254
      %v3809 = vunpack.c.l.b16 %v3255
      %v3810 = vunpack.c.l.b16 %v3256
      %v3811 = vunpack.c.l.b16 %v3257
      %v3812 = vunpack.c.l.b16 %v3258
      %v3813 = vunpack.c.l.b16 %v3259
      %v3814 = vunpack.c.l.b16 %v3260
      %v3815 = vunpack.c.l.b16 %v3261
      %v3816 = vunpack.c.l.b16 %v3262
      %v3817 = vunpack.c.l.b16 %v3263
      %v3818 = vunpack.c.l.b16 %v3264
      %v3819 = vunpack.c.l.b16 %v3265
      %v3820 = vunpack.c.l.b16 %v3266
      %v3821 = vunpack.c.l.b16 %v3267
      %v3822 = vunpack.c.l.b16 %v3268
      %v3823 = vunpack.c.l.b16 %v3269
      %v3824 = vunpack.c.l.b16 %v3270
      %v3825 = vunpack.c.l.b16 %v3271
      %v3826 = vunpack.c.l.b16 %v3272
      %v3827 = vunpack.c.l.b16 %v3273
      %v3828 = vunpack.c.l.b16 %v3274
      %v3829 = vunpack.c.l.b16 %v3275
      %v3830 = vunpack.c.l.b16 %v3276
      %v3831 = vunpack.c.l.b16 %v3277
      %v3832 = vunpack.c.l.b16 %v3278
      %v3833 = vpack.c.b16 %v3770, %v3769
      %v3834 = vpack.c.b16 %v3772, %v3771
      %v3835 = vpack.c.b16 %v3774, %v3773
      %v3836 = vpack.c.b16 %v3776, %v3775
      %v3837 = vpack.c.b16 %v3778, %v3777
      %v3838 = vpack.c.b16 %v3780, %v3779
      %v3839 = vpack.c.b16 %v3782, %v3781
      %v3840 = vpack.c.b16 %v3784, %v3783
      %v3841 = vpack.c.b16 %v3786, %v3785
      %v3842 = vpack.c.b16 %v3788, %v3787
      %v3843 = vpack.c.b16 %v3790, %v3789
      %v3844 = vpack.c.b16 %v3792, %v3791
      %v3845 = vpack.c.b16 %v3794, %v3793
      %v3846 = vpack.c.b16 %v3796, %v3795
      %v3847 = vpack.c.b16 %v3798, %v3797
      %v3848 = vpack.c.b16 %v3800, %v3799
      %v3849 = vpack.c.b16 %v3802, %v3801
      %v3850 = vpack.c.b16 %v3804, %v3803
      %v3851 = vpack.c.b16 %v3806, %v3805
      %v3852 = vpack.c.b16 %v3808, %v3807
      %v3853 = vpack.c.b16 %v3810, %v3809
      %v3854 = vpack.c.b16 %v3812, %v3811
      %v3855 = vpack.c.b16 %v3814, %v3813
      %v3856 = vpack.c.b16 %v3816, %v3815
      %v3857 = vpack.c.b16 %v3818, %v3817
      %v3858 = vpack.c.b16 %v3820, %v3819
      %v3859 = vpack.c.b16 %v3822, %v3821
      %v3860 = vpack.c.b16 %v3824, %v3823
      %v3861 = vpack.c.b16 %v3826, %v3825
      %v3862 = vpack.c.b16 %v3828, %v3827
      %v3863 = vpack.c.b16 %v3830, %v3829
      %v3864 = vpack.c.b16 %v3832, %v3831
      %3897 = vmatpush.bf16.msra.mxu0 %v3840
      %3898 = vmatpush.bf16.msra.mxu0 %v3839
      %3899 = vmatpush.bf16.msra.mxu0 %v3838
      %3900 = vmatpush.bf16.msra.mxu0 %v3837
      %3901 = vmatpush.bf16.msra.mxu0 %v3836
      %3902 = vmatpush.bf16.msra.mxu0 %v3835
      %3903 = vmatpush.bf16.msra.mxu0 %v3834
      %3904 = vmatpush.bf16.msra.mxu0 %v3833
      %3905 = vmatmul.bf16.gmra.mxu0 %v3210
      %v3906 = vpop.f32.mrf.mxu0
      %v3907 = vadd.f32 %v3702, %v3906
      %v3908 = vpop.f32.mrf.mxu0
      %3909 = vdwg.mxu0
      %3910 = vmatpush.bf16.msra.mxu0 %v3848
      %3911 = vmatpush.bf16.msra.mxu0 %v3847
      %3912 = vmatpush.bf16.msra.mxu0 %v3846
      %3913 = vmatpush.bf16.msra.mxu0 %v3845
      %3914 = vmatpush.bf16.msra.mxu0 %v3844
      %3915 = vmatpush.bf16.msra.mxu0 %v3843
      %3916 = vmatpush.bf16.msra.mxu0 %v3842
      %3917 = vmatpush.bf16.msra.mxu0 %v3841
      %3918 = vmatmul.bf16.gmra.mxu0 %v3211
      %v3919 = vpop.f32.mrf.mxu0
      %v3920 = vadd.f32 %v3907, %v3919
      %v3921 = vpop.f32.mrf.mxu0
      %3922 = vdwg.mxu0
      %3923 = vmatpush.bf16.msra.mxu0 %v3856
      %3924 = vmatpush.bf16.msra.mxu0 %v3855
      %3925 = vmatpush.bf16.msra.mxu0 %v3854
      %3926 = vmatpush.bf16.msra.mxu0 %v3853
      %3927 = vmatpush.bf16.msra.mxu0 %v3852
      %3928 = vmatpush.bf16.msra.mxu0 %v3851
      %3929 = vmatpush.bf16.msra.mxu0 %v3850
      %3930 = vmatpush.bf16.msra.mxu0 %v3849
      %3931 = vmatmul.bf16.gmra.mxu0 %v3212
      %v3932 = vpop.f32.mrf.mxu0
      %v3933 = vadd.f32 %v3920, %v3932
      %v3934 = vpop.f32.mrf.mxu0
      %3935 = vdwg.mxu0
      %3936 = vmatpush.bf16.msra.mxu0 %v3864
      %3937 = vmatpush.bf16.msra.mxu0 %v3863
      %3938 = vmatpush.bf16.msra.mxu0 %v3862
      %3939 = vmatpush.bf16.msra.mxu0 %v3861
      %3940 = vmatpush.bf16.msra.mxu0 %v3860
      %3941 = vmatpush.bf16.msra.mxu0 %v3859
      %3942 = vmatpush.bf16.msra.mxu0 %v3858
      %3943 = vmatpush.bf16.msra.mxu0 %v3857
      %3944 = vmatmul.bf16.gmra.mxu0 %v3213
      %v3945 = vpop.f32.mrf.mxu0
      %v3946 = vadd.f32 %v3933, %v3945
      %v3947 = vpop.f32.mrf.mxu0
      %3948 = vdwg.mxu0
      %v3949 = vld [vmem:[%s3091 + $0x20] sm:$0xff]
      %v3950 = vld [vmem:[%s3091 + $0x28] sm:$0xff]
      %v3951 = vld [vmem:[%s3091 + $0x60] sm:$0xff]
      %v3952 = vld [vmem:[%s3091 + $0x68] sm:$0xff]
      %v3953 = vld [vmem:[%s3091 + $0xa0] sm:$0xff]
      %v3954 = vld [vmem:[%s3091 + $0xa8] sm:$0xff]
      %v3955 = vld [vmem:[%s3091 + $0xe0] sm:$0xff]
      %v3956 = vld [vmem:[%s3091 + $0xe8] sm:$0xff]
      %v3957 = vld [vmem:[%s3100 + $0x8] sm:$0xf]
      %v3959 = vperm.slane %v3957, 0
      %v3960 = vperm.slane %v3957, 1
      %v3961 = vperm.slane %v3957, 2
      %v3962 = vperm.slane %v3957, 3
      %v3975 = vunpack.c.l.b16 %v3949
      %v3976 = vunpack.c.h.b16 %v3949
      %v3977 = vunpack.c.l.b16 %v3950
      %v3978 = vunpack.c.h.b16 %v3950
      %v3979 = vunpack.c.l.b16 %v3951
      %v3980 = vunpack.c.h.b16 %v3951
      %v3981 = vunpack.c.l.b16 %v3952
      %v3982 = vunpack.c.h.b16 %v3952
      %v3983 = vunpack.c.l.b16 %v3953
      %v3984 = vunpack.c.h.b16 %v3953
      %v3985 = vunpack.c.l.b16 %v3954
      %v3986 = vunpack.c.h.b16 %v3954
      %v3987 = vunpack.c.l.b16 %v3955
      %v3988 = vunpack.c.h.b16 %v3955
      %v3989 = vunpack.c.l.b16 %v3956
      %v3990 = vunpack.c.h.b16 %v3956
      %v3991 = vpack.c.b16 %v3979, %v3975
      %v3992 = vpack.c.b16 %v3980, %v3976
      %v3993 = vpack.c.b16 %v3981, %v3977
      %v3994 = vpack.c.b16 %v3982, %v3978
      %v3995 = vpack.c.b16 %v3987, %v3983
      %v3996 = vpack.c.b16 %v3988, %v3984
      %v3997 = vpack.c.b16 %v3989, %v3985
      %v3998 = vpack.c.b16 %v3990, %v3986
      %4007 = vmatpush.bf16.msra.mxu0 0
      %4008 = vmatpush.bf16.msra.mxu0 0
      %4009 = vmatpush.bf16.msra.mxu0 0
      %4010 = vmatpush.bf16.msra.mxu0 0
      %4011 = vmatpush.bf16.msra.mxu0 0
      %4012 = vmatpush.bf16.msra.mxu0 0
      %4013 = vmatpush.bf16.msra.mxu0 %v3995
      %4014 = vmatpush.bf16.msra.mxu0 %v3991
      %4015 = vmatmul.bf16.gmra.mxu0 %v3152
      %v4016 = vpop.f32.mrf.mxu0
      %v4017 = vadd.f32 %v3959, %v4016
      %v4018 = vpop.f32.mrf.mxu0
      %4019 = vdwg.mxu0
      %4020 = vmatpush.bf16.msra.mxu0 0
      %4021 = vmatpush.bf16.msra.mxu0 0
      %4022 = vmatpush.bf16.msra.mxu0 0
      %4023 = vmatpush.bf16.msra.mxu0 0
      %4024 = vmatpush.bf16.msra.mxu0 0
      %4025 = vmatpush.bf16.msra.mxu0 0
      %4026 = vmatpush.bf16.msra.mxu0 %v3996
      %4027 = vmatpush.bf16.msra.mxu0 %v3992
      %4028 = vmatmul.bf16.gmra.mxu0 %v3152
      %v4029 = vpop.f32.mrf.mxu0
      %v4030 = vadd.f32 %v3960, %v4029
      %v4031 = vpop.f32.mrf.mxu0
      %4032 = vdwg.mxu0
      %4033 = vmatpush.bf16.msra.mxu0 0
      %4034 = vmatpush.bf16.msra.mxu0 0
      %4035 = vmatpush.bf16.msra.mxu0 0
      %4036 = vmatpush.bf16.msra.mxu0 0
      %4037 = vmatpush.bf16.msra.mxu0 0
      %4038 = vmatpush.bf16.msra.mxu0 0
      %4039 = vmatpush.bf16.msra.mxu0 %v3997
      %4040 = vmatpush.bf16.msra.mxu0 %v3993
      %4041 = vmatmul.bf16.gmra.mxu0 %v3152
      %v4042 = vpop.f32.mrf.mxu0
      %v4043 = vadd.f32 %v3961, %v4042
      %v4044 = vpop.f32.mrf.mxu0
      %4045 = vdwg.mxu0
      %4046 = vmatpush.bf16.msra.mxu0 0
      %4047 = vmatpush.bf16.msra.mxu0 0
      %4048 = vmatpush.bf16.msra.mxu0 0
      %4049 = vmatpush.bf16.msra.mxu0 0
      %4050 = vmatpush.bf16.msra.mxu0 0
      %4051 = vmatpush.bf16.msra.mxu0 0
      %4052 = vmatpush.bf16.msra.mxu0 %v3998
      %4053 = vmatpush.bf16.msra.mxu0 %v3994
      %4054 = vmatmul.bf16.gmra.mxu0 %v3152
      %v4055 = vpop.f32.mrf.mxu0
      %v4056 = vadd.f32 %v3962, %v4055
      %v4057 = vpop.f32.mrf.mxu0
      %4058 = vdwg.mxu0
      %v4059 = vmax.f32 %v4017, 0.0
      %v4060 = vmax.f32 %v4030, 0.0
      %v4061 = vmax.f32 %v4043, 0.0
      %v4062 = vmax.f32 %v4056, 0.0
      %v4063 = vpack.c.bf16 %v4059, %v4059
      %v4064 = vpack.c.bf16 %v4060, %v4060
      %v4065 = vpack.c.bf16 %v4061, %v4061
      %v4066 = vpack.c.bf16 %v4062, %v4062
      %v4067 = vld [vmem:[%s3214 + $0x200] sm:$0xf]
      %v4068 = vld [vmem:[%s3214 + $0x204] sm:$0xf]
      %v4069 = vld [vmem:[%s3214 + $0x208] sm:$0xf]
      %v4070 = vld [vmem:[%s3214 + $0x20c] sm:$0xf]
      %v4071 = vld [vmem:[%s3214 + $0x210] sm:$0xf]
      %v4072 = vld [vmem:[%s3214 + $0x214] sm:$0xf]
      %v4073 = vld [vmem:[%s3214 + $0x218] sm:$0xf]
      %v4074 = vld [vmem:[%s3214 + $0x21c] sm:$0xf]
      %v4075 = vld [vmem:[%s3214 + $0x220] sm:$0xf]
      %v4076 = vld [vmem:[%s3214 + $0x224] sm:$0xf]
      %v4077 = vld [vmem:[%s3214 + $0x228] sm:$0xf]
      %v4078 = vld [vmem:[%s3214 + $0x22c] sm:$0xf]
      %v4079 = vld [vmem:[%s3214 + $0x230] sm:$0xf]
      %v4080 = vld [vmem:[%s3214 + $0x234] sm:$0xf]
      %v4081 = vld [vmem:[%s3214 + $0x238] sm:$0xf]
      %v4082 = vld [vmem:[%s3214 + $0x23c] sm:$0xf]
      %v4083 = vld [vmem:[%s3214 + $0x240] sm:$0xf]
      %v4084 = vld [vmem:[%s3214 + $0x244] sm:$0xf]
      %v4085 = vld [vmem:[%s3214 + $0x248] sm:$0xf]
      %v4086 = vld [vmem:[%s3214 + $0x24c] sm:$0xf]
      %v4087 = vld [vmem:[%s3214 + $0x250] sm:$0xf]
      %v4088 = vld [vmem:[%s3214 + $0x254] sm:$0xf]
      %v4089 = vld [vmem:[%s3214 + $0x258] sm:$0xf]
      %v4090 = vld [vmem:[%s3214 + $0x25c] sm:$0xf]
      %v4091 = vld [vmem:[%s3214 + $0x260] sm:$0xf]
      %v4092 = vld [vmem:[%s3214 + $0x264] sm:$0xf]
      %v4093 = vld [vmem:[%s3214 + $0x268] sm:$0xf]
      %v4094 = vld [vmem:[%s3214 + $0x26c] sm:$0xf]
      %v4095 = vld [vmem:[%s3214 + $0x270] sm:$0xf]
      %v4096 = vld [vmem:[%s3214 + $0x274] sm:$0xf]
      %v4097 = vld [vmem:[%s3214 + $0x278] sm:$0xf]
      %v4098 = vld [vmem:[%s3214 + $0x27c] sm:$0xf]
      %v4099 = vld [vmem:[%s3214 + $0x280] sm:$0xf]
      %v4100 = vld [vmem:[%s3214 + $0x284] sm:$0xf]
      %v4101 = vld [vmem:[%s3214 + $0x288] sm:$0xf]
      %v4102 = vld [vmem:[%s3214 + $0x28c] sm:$0xf]
      %v4103 = vld [vmem:[%s3214 + $0x290] sm:$0xf]
      %v4104 = vld [vmem:[%s3214 + $0x294] sm:$0xf]
      %v4105 = vld [vmem:[%s3214 + $0x298] sm:$0xf]
      %v4106 = vld [vmem:[%s3214 + $0x29c] sm:$0xf]
      %v4107 = vld [vmem:[%s3214 + $0x2a0] sm:$0xf]
      %v4108 = vld [vmem:[%s3214 + $0x2a4] sm:$0xf]
      %v4109 = vld [vmem:[%s3214 + $0x2a8] sm:$0xf]
      %v4110 = vld [vmem:[%s3214 + $0x2ac] sm:$0xf]
      %v4111 = vld [vmem:[%s3214 + $0x2b0] sm:$0xf]
      %v4112 = vld [vmem:[%s3214 + $0x2b4] sm:$0xf]
      %v4113 = vld [vmem:[%s3214 + $0x2b8] sm:$0xf]
      %v4114 = vld [vmem:[%s3214 + $0x2bc] sm:$0xf]
      %v4115 = vld [vmem:[%s3214 + $0x2c0] sm:$0xf]
      %v4116 = vld [vmem:[%s3214 + $0x2c4] sm:$0xf]
      %v4117 = vld [vmem:[%s3214 + $0x2c8] sm:$0xf]
      %v4118 = vld [vmem:[%s3214 + $0x2cc] sm:$0xf]
      %v4119 = vld [vmem:[%s3214 + $0x2d0] sm:$0xf]
      %v4120 = vld [vmem:[%s3214 + $0x2d4] sm:$0xf]
      %v4121 = vld [vmem:[%s3214 + $0x2d8] sm:$0xf]
      %v4122 = vld [vmem:[%s3214 + $0x2dc] sm:$0xf]
      %v4123 = vld [vmem:[%s3214 + $0x2e0] sm:$0xf]
      %v4124 = vld [vmem:[%s3214 + $0x2e4] sm:$0xf]
      %v4125 = vld [vmem:[%s3214 + $0x2e8] sm:$0xf]
      %v4126 = vld [vmem:[%s3214 + $0x2ec] sm:$0xf]
      %v4127 = vld [vmem:[%s3214 + $0x2f0] sm:$0xf]
      %v4128 = vld [vmem:[%s3214 + $0x2f4] sm:$0xf]
      %v4129 = vld [vmem:[%s3214 + $0x2f8] sm:$0xf]
      %v4130 = vld [vmem:[%s3214 + $0x2fc] sm:$0xf]
      %v4195 = vunpack.c.l.b16 %v4067
      %v4196 = vunpack.c.l.b16 %v4068
      %v4197 = vunpack.c.l.b16 %v4069
      %v4198 = vunpack.c.l.b16 %v4070
      %v4199 = vunpack.c.l.b16 %v4071
      %v4200 = vunpack.c.l.b16 %v4072
      %v4201 = vunpack.c.l.b16 %v4073
      %v4202 = vunpack.c.l.b16 %v4074
      %v4203 = vunpack.c.l.b16 %v4075
      %v4204 = vunpack.c.l.b16 %v4076
      %v4205 = vunpack.c.l.b16 %v4077
      %v4206 = vunpack.c.l.b16 %v4078
      %v4207 = vunpack.c.l.b16 %v4079
      %v4208 = vunpack.c.l.b16 %v4080
      %v4209 = vunpack.c.l.b16 %v4081
      %v4210 = vunpack.c.l.b16 %v4082
      %v4211 = vunpack.c.l.b16 %v4083
      %v4212 = vunpack.c.l.b16 %v4084
      %v4213 = vunpack.c.l.b16 %v4085
      %v4214 = vunpack.c.l.b16 %v4086
      %v4215 = vunpack.c.l.b16 %v4087
      %v4216 = vunpack.c.l.b16 %v4088
      %v4217 = vunpack.c.l.b16 %v4089
      %v4218 = vunpack.c.l.b16 %v4090
      %v4219 = vunpack.c.l.b16 %v4091
      %v4220 = vunpack.c.l.b16 %v4092
      %v4221 = vunpack.c.l.b16 %v4093
      %v4222 = vunpack.c.l.b16 %v4094
      %v4223 = vunpack.c.l.b16 %v4095
      %v4224 = vunpack.c.l.b16 %v4096
      %v4225 = vunpack.c.l.b16 %v4097
      %v4226 = vunpack.c.l.b16 %v4098
      %v4227 = vunpack.c.l.b16 %v4099
      %v4228 = vunpack.c.l.b16 %v4100
      %v4229 = vunpack.c.l.b16 %v4101
      %v4230 = vunpack.c.l.b16 %v4102
      %v4231 = vunpack.c.l.b16 %v4103
      %v4232 = vunpack.c.l.b16 %v4104
      %v4233 = vunpack.c.l.b16 %v4105
      %v4234 = vunpack.c.l.b16 %v4106
      %v4235 = vunpack.c.l.b16 %v4107
      %v4236 = vunpack.c.l.b16 %v4108
      %v4237 = vunpack.c.l.b16 %v4109
      %v4238 = vunpack.c.l.b16 %v4110
      %v4239 = vunpack.c.l.b16 %v4111
      %v4240 = vunpack.c.l.b16 %v4112
      %v4241 = vunpack.c.l.b16 %v4113
      %v4242 = vunpack.c.l.b16 %v4114
      %v4243 = vunpack.c.l.b16 %v4115
      %v4244 = vunpack.c.l.b16 %v4116
      %v4245 = vunpack.c.l.b16 %v4117
      %v4246 = vunpack.c.l.b16 %v4118
      %v4247 = vunpack.c.l.b16 %v4119
      %v4248 = vunpack.c.l.b16 %v4120
      %v4249 = vunpack.c.l.b16 %v4121
      %v4250 = vunpack.c.l.b16 %v4122
      %v4251 = vunpack.c.l.b16 %v4123
      %v4252 = vunpack.c.l.b16 %v4124
      %v4253 = vunpack.c.l.b16 %v4125
      %v4254 = vunpack.c.l.b16 %v4126
      %v4255 = vunpack.c.l.b16 %v4127
      %v4256 = vunpack.c.l.b16 %v4128
      %v4257 = vunpack.c.l.b16 %v4129
      %v4258 = vunpack.c.l.b16 %v4130
      %v4259 = vpack.c.b16 %v4196, %v4195
      %v4260 = vpack.c.b16 %v4198, %v4197
      %v4261 = vpack.c.b16 %v4200, %v4199
      %v4262 = vpack.c.b16 %v4202, %v4201
      %v4263 = vpack.c.b16 %v4204, %v4203
      %v4264 = vpack.c.b16 %v4206, %v4205
      %v4265 = vpack.c.b16 %v4208, %v4207
      %v4266 = vpack.c.b16 %v4210, %v4209
      %v4267 = vpack.c.b16 %v4212, %v4211
      %v4268 = vpack.c.b16 %v4214, %v4213
      %v4269 = vpack.c.b16 %v4216, %v4215
      %v4270 = vpack.c.b16 %v4218, %v4217
      %v4271 = vpack.c.b16 %v4220, %v4219
      %v4272 = vpack.c.b16 %v4222, %v4221
      %v4273 = vpack.c.b16 %v4224, %v4223
      %v4274 = vpack.c.b16 %v4226, %v4225
      %v4275 = vpack.c.b16 %v4228, %v4227
      %v4276 = vpack.c.b16 %v4230, %v4229
      %v4277 = vpack.c.b16 %v4232, %v4231
      %v4278 = vpack.c.b16 %v4234, %v4233
      %v4279 = vpack.c.b16 %v4236, %v4235
      %v4280 = vpack.c.b16 %v4238, %v4237
      %v4281 = vpack.c.b16 %v4240, %v4239
      %v4282 = vpack.c.b16 %v4242, %v4241
      %v4283 = vpack.c.b16 %v4244, %v4243
      %v4284 = vpack.c.b16 %v4246, %v4245
      %v4285 = vpack.c.b16 %v4248, %v4247
      %v4286 = vpack.c.b16 %v4250, %v4249
      %v4287 = vpack.c.b16 %v4252, %v4251
      %v4288 = vpack.c.b16 %v4254, %v4253
      %v4289 = vpack.c.b16 %v4256, %v4255
      %v4290 = vpack.c.b16 %v4258, %v4257
      %4323 = vmatpush.bf16.msra.mxu0 %v4266
      %4324 = vmatpush.bf16.msra.mxu0 %v4265
      %4325 = vmatpush.bf16.msra.mxu0 %v4264
      %4326 = vmatpush.bf16.msra.mxu0 %v4263
      %4327 = vmatpush.bf16.msra.mxu0 %v4262
      %4328 = vmatpush.bf16.msra.mxu0 %v4261
      %4329 = vmatpush.bf16.msra.mxu0 %v4260
      %4330 = vmatpush.bf16.msra.mxu0 %v4259
      %4331 = vmatmul.bf16.gmra.mxu0 %v4063
      %v4332 = vpop.f32.mrf.mxu0
      %v4333 = vadd.f32 0.0, %v4332
      %v4334 = vpop.f32.mrf.mxu0
      %4335 = vdwg.mxu0
      %4336 = vmatpush.bf16.msra.mxu0 %v4274
      %4337 = vmatpush.bf16.msra.mxu0 %v4273
      %4338 = vmatpush.bf16.msra.mxu0 %v4272
      %4339 = vmatpush.bf16.msra.mxu0 %v4271
      %4340 = vmatpush.bf16.msra.mxu0 %v4270
      %4341 = vmatpush.bf16.msra.mxu0 %v4269
      %4342 = vmatpush.bf16.msra.mxu0 %v4268
      %4343 = vmatpush.bf16.msra.mxu0 %v4267
      %4344 = vmatmul.bf16.gmra.mxu0 %v4064
      %v4345 = vpop.f32.mrf.mxu0
      %v4346 = vadd.f32 %v4333, %v4345
      %v4347 = vpop.f32.mrf.mxu0
      %4348 = vdwg.mxu0
      %4349 = vmatpush.bf16.msra.mxu0 %v4282
      %4350 = vmatpush.bf16.msra.mxu0 %v4281
      %4351 = vmatpush.bf16.msra.mxu0 %v4280
      %4352 = vmatpush.bf16.msra.mxu0 %v4279
      %4353 = vmatpush.bf16.msra.mxu0 %v4278
      %4354 = vmatpush.bf16.msra.mxu0 %v4277
      %4355 = vmatpush.bf16.msra.mxu0 %v4276
      %4356 = vmatpush.bf16.msra.mxu0 %v4275
      %4357 = vmatmul.bf16.gmra.mxu0 %v4065
      %v4358 = vpop.f32.mrf.mxu0
      %v4359 = vadd.f32 %v4346, %v4358
      %v4360 = vpop.f32.mrf.mxu0
      %4361 = vdwg.mxu0
      %4362 = vmatpush.bf16.msra.mxu0 %v4290
      %4363 = vmatpush.bf16.msra.mxu0 %v4289
      %4364 = vmatpush.bf16.msra.mxu0 %v4288
      %4365 = vmatpush.bf16.msra.mxu0 %v4287
      %4366 = vmatpush.bf16.msra.mxu0 %v4286
      %4367 = vmatpush.bf16.msra.mxu0 %v4285
      %4368 = vmatpush.bf16.msra.mxu0 %v4284
      %4369 = vmatpush.bf16.msra.mxu0 %v4283
      %4370 = vmatmul.bf16.gmra.mxu0 %v4066
      %v4371 = vpop.f32.mrf.mxu0
      %v4372 = vadd.f32 %v4359, %v4371
      %v4373 = vpop.f32.mrf.mxu0
      %4374 = vdwg.mxu0
      %v4375 = vadd.f32 %v3946, %v4372
      %v4376 = vld [vmem:[%s3091 + $0x30] sm:$0xff]
      %v4377 = vld [vmem:[%s3091 + $0x38] sm:$0xff]
      %v4378 = vld [vmem:[%s3091 + $0x70] sm:$0xff]
      %v4379 = vld [vmem:[%s3091 + $0x78] sm:$0xff]
      %v4380 = vld [vmem:[%s3091 + $0xb0] sm:$0xff]
      %v4381 = vld [vmem:[%s3091 + $0xb8] sm:$0xff]
      %v4382 = vld [vmem:[%s3091 + $0xf0] sm:$0xff]
      %v4383 = vld [vmem:[%s3091 + $0xf8] sm:$0xff]
      %v4384 = vld [vmem:[%s3100 + $0xc] sm:$0xf]
      %v4386 = vperm.slane %v4384, 0
      %v4387 = vperm.slane %v4384, 1
      %v4388 = vperm.slane %v4384, 2
      %v4389 = vperm.slane %v4384, 3
      %v4402 = vunpack.c.l.b16 %v4376
      %v4403 = vunpack.c.h.b16 %v4376
      %v4404 = vunpack.c.l.b16 %v4377
      %v4405 = vunpack.c.h.b16 %v4377
      %v4406 = vunpack.c.l.b16 %v4378
      %v4407 = vunpack.c.h.b16 %v4378
      %v4408 = vunpack.c.l.b16 %v4379
      %v4409 = vunpack.c.h.b16 %v4379
      %v4410 = vunpack.c.l.b16 %v4380
      %v4411 = vunpack.c.h.b16 %v4380
      %v4412 = vunpack.c.l.b16 %v4381
      %v4413 = vunpack.c.h.b16 %v4381
      %v4414 = vunpack.c.l.b16 %v4382
      %v4415 = vunpack.c.h.b16 %v4382
      %v4416 = vunpack.c.l.b16 %v4383
      %v4417 = vunpack.c.h.b16 %v4383
      %v4418 = vpack.c.b16 %v4406, %v4402
      %v4419 = vpack.c.b16 %v4407, %v4403
      %v4420 = vpack.c.b16 %v4408, %v4404
      %v4421 = vpack.c.b16 %v4409, %v4405
      %v4422 = vpack.c.b16 %v4414, %v4410
      %v4423 = vpack.c.b16 %v4415, %v4411
      %v4424 = vpack.c.b16 %v4416, %v4412
      %v4425 = vpack.c.b16 %v4417, %v4413
      %4434 = vmatpush.bf16.msra.mxu0 0
      %4435 = vmatpush.bf16.msra.mxu0 0
      %4436 = vmatpush.bf16.msra.mxu0 0
      %4437 = vmatpush.bf16.msra.mxu0 0
      %4438 = vmatpush.bf16.msra.mxu0 0
      %4439 = vmatpush.bf16.msra.mxu0 0
      %4440 = vmatpush.bf16.msra.mxu0 %v4422
      %4441 = vmatpush.bf16.msra.mxu0 %v4418
      %4442 = vmatmul.bf16.gmra.mxu0 %v3152
      %v4443 = vpop.f32.mrf.mxu0
      %v4444 = vadd.f32 %v4386, %v4443
      %v4445 = vpop.f32.mrf.mxu0
      %4446 = vdwg.mxu0
      %4447 = vmatpush.bf16.msra.mxu0 0
      %4448 = vmatpush.bf16.msra.mxu0 0
      %4449 = vmatpush.bf16.msra.mxu0 0
      %4450 = vmatpush.bf16.msra.mxu0 0
      %4451 = vmatpush.bf16.msra.mxu0 0
      %4452 = vmatpush.bf16.msra.mxu0 0
      %4453 = vmatpush.bf16.msra.mxu0 %v4423
      %4454 = vmatpush.bf16.msra.mxu0 %v4419
      %4455 = vmatmul.bf16.gmra.mxu0 %v3152
      %v4456 = vpop.f32.mrf.mxu0
      %v4457 = vadd.f32 %v4387, %v4456
      %v4458 = vpop.f32.mrf.mxu0
      %4459 = vdwg.mxu0
      %4460 = vmatpush.bf16.msra.mxu0 0
      %4461 = vmatpush.bf16.msra.mxu0 0
      %4462 = vmatpush.bf16.msra.mxu0 0
      %4463 = vmatpush.bf16.msra.mxu0 0
      %4464 = vmatpush.bf16.msra.mxu0 0
      %4465 = vmatpush.bf16.msra.mxu0 0
      %4466 = vmatpush.bf16.msra.mxu0 %v4424
      %4467 = vmatpush.bf16.msra.mxu0 %v4420
      %4468 = vmatmul.bf16.gmra.mxu0 %v3152
      %v4469 = vpop.f32.mrf.mxu0
      %v4470 = vadd.f32 %v4388, %v4469
      %v4471 = vpop.f32.mrf.mxu0
      %4472 = vdwg.mxu0
      %4473 = vmatpush.bf16.msra.mxu0 0
      %4474 = vmatpush.bf16.msra.mxu0 0
      %4475 = vmatpush.bf16.msra.mxu0 0
      %4476 = vmatpush.bf16.msra.mxu0 0
      %4477 = vmatpush.bf16.msra.mxu0 0
      %4478 = vmatpush.bf16.msra.mxu0 0
      %4479 = vmatpush.bf16.msra.mxu0 %v4425
      %4480 = vmatpush.bf16.msra.mxu0 %v4421
      %4481 = vmatmul.bf16.gmra.mxu0 %v3152
      %v4482 = vpop.f32.mrf.mxu0
      %v4483 = vadd.f32 %v4389, %v4482
      %v4484 = vpop.f32.mrf.mxu0
      %4485 = vdwg.mxu0
      %v4486 = vmax.f32 %v4444, 0.0
      %v4487 = vmax.f32 %v4457, 0.0
      %v4488 = vmax.f32 %v4470, 0.0
      %v4489 = vmax.f32 %v4483, 0.0
      %v4490 = vpack.c.bf16 %v4486, %v4486
      %v4491 = vpack.c.bf16 %v4487, %v4487
      %v4492 = vpack.c.bf16 %v4488, %v4488
      %v4493 = vpack.c.bf16 %v4489, %v4489
      %v4494 = vld [vmem:[%s3214 + $0x300] sm:$0xf]
      %v4495 = vld [vmem:[%s3214 + $0x304] sm:$0xf]
      %v4496 = vld [vmem:[%s3214 + $0x308] sm:$0xf]
      %v4497 = vld [vmem:[%s3214 + $0x30c] sm:$0xf]
      %v4498 = vld [vmem:[%s3214 + $0x310] sm:$0xf]
      %v4499 = vld [vmem:[%s3214 + $0x314] sm:$0xf]
      %v4500 = vld [vmem:[%s3214 + $0x318] sm:$0xf]
      %v4501 = vld [vmem:[%s3214 + $0x31c] sm:$0xf]
      %v4502 = vld [vmem:[%s3214 + $0x320] sm:$0xf]
      %v4503 = vld [vmem:[%s3214 + $0x324] sm:$0xf]
      %v4504 = vld [vmem:[%s3214 + $0x328] sm:$0xf]
      %v4505 = vld [vmem:[%s3214 + $0x32c] sm:$0xf]
      %v4506 = vld [vmem:[%s3214 + $0x330] sm:$0xf]
      %v4507 = vld [vmem:[%s3214 + $0x334] sm:$0xf]
      %v4508 = vld [vmem:[%s3214 + $0x338] sm:$0xf]
      %v4509 = vld [vmem:[%s3214 + $0x33c] sm:$0xf]
      %v4510 = vld [vmem:[%s3214 + $0x340] sm:$0xf]
      %v4511 = vld [vmem:[%s3214 + $0x344] sm:$0xf]
      %v4512 = vld [vmem:[%s3214 + $0x348] sm:$0xf]
      %v4513 = vld [vmem:[%s3214 + $0x34c] sm:$0xf]
      %v4514 = vld [vmem:[%s3214 + $0x350] sm:$0xf]
      %v4515 = vld [vmem:[%s3214 + $0x354] sm:$0xf]
      %v4516 = vld [vmem:[%s3214 + $0x358] sm:$0xf]
      %v4517 = vld [vmem:[%s3214 + $0x35c] sm:$0xf]
      %v4518 = vld [vmem:[%s3214 + $0x360] sm:$0xf]
      %v4519 = vld [vmem:[%s3214 + $0x364] sm:$0xf]
      %v4520 = vld [vmem:[%s3214 + $0x368] sm:$0xf]
      %v4521 = vld [vmem:[%s3214 + $0x36c] sm:$0xf]
      %v4522 = vld [vmem:[%s3214 + $0x370] sm:$0xf]
      %v4523 = vld [vmem:[%s3214 + $0x374] sm:$0xf]
      %v4524 = vld [vmem:[%s3214 + $0x378] sm:$0xf]
      %v4525 = vld [vmem:[%s3214 + $0x37c] sm:$0xf]
      %v4526 = vld [vmem:[%s3214 + $0x380] sm:$0xf]
      %v4527 = vld [vmem:[%s3214 + $0x384] sm:$0xf]
      %v4528 = vld [vmem:[%s3214 + $0x388] sm:$0xf]
      %v4529 = vld [vmem:[%s3214 + $0x38c] sm:$0xf]
      %v4530 = vld [vmem:[%s3214 + $0x390] sm:$0xf]
      %v4531 = vld [vmem:[%s3214 + $0x394] sm:$0xf]
      %v4532 = vld [vmem:[%s3214 + $0x398] sm:$0xf]
      %v4533 = vld [vmem:[%s3214 + $0x39c] sm:$0xf]
      %v4534 = vld [vmem:[%s3214 + $0x3a0] sm:$0xf]
      %v4535 = vld [vmem:[%s3214 + $0x3a4] sm:$0xf]
      %v4536 = vld [vmem:[%s3214 + $0x3a8] sm:$0xf]
      %v4537 = vld [vmem:[%s3214 + $0x3ac] sm:$0xf]
      %v4538 = vld [vmem:[%s3214 + $0x3b0] sm:$0xf]
      %v4539 = vld [vmem:[%s3214 + $0x3b4] sm:$0xf]
      %v4540 = vld [vmem:[%s3214 + $0x3b8] sm:$0xf]
      %v4541 = vld [vmem:[%s3214 + $0x3bc] sm:$0xf]
      %v4542 = vld [vmem:[%s3214 + $0x3c0] sm:$0xf]
      %v4543 = vld [vmem:[%s3214 + $0x3c4] sm:$0xf]
      %v4544 = vld [vmem:[%s3214 + $0x3c8] sm:$0xf]
      %v4545 = vld [vmem:[%s3214 + $0x3cc] sm:$0xf]
      %v4546 = vld [vmem:[%s3214 + $0x3d0] sm:$0xf]
      %v4547 = vld [vmem:[%s3214 + $0x3d4] sm:$0xf]
      %v4548 = vld [vmem:[%s3214 + $0x3d8] sm:$0xf]
      %v4549 = vld [vmem:[%s3214 + $0x3dc] sm:$0xf]
      %v4550 = vld [vmem:[%s3214 + $0x3e0] sm:$0xf]
      %v4551 = vld [vmem:[%s3214 + $0x3e4] sm:$0xf]
      %v4552 = vld [vmem:[%s3214 + $0x3e8] sm:$0xf]
      %v4553 = vld [vmem:[%s3214 + $0x3ec] sm:$0xf]
      %v4554 = vld [vmem:[%s3214 + $0x3f0] sm:$0xf]
      %v4555 = vld [vmem:[%s3214 + $0x3f4] sm:$0xf]
      %v4556 = vld [vmem:[%s3214 + $0x3f8] sm:$0xf]
      %v4557 = vld [vmem:[%s3214 + $0x3fc] sm:$0xf]
      %v4622 = vunpack.c.l.b16 %v4494
      %v4623 = vunpack.c.l.b16 %v4495
      %v4624 = vunpack.c.l.b16 %v4496
      %v4625 = vunpack.c.l.b16 %v4497
      %v4626 = vunpack.c.l.b16 %v4498
      %v4627 = vunpack.c.l.b16 %v4499
      %v4628 = vunpack.c.l.b16 %v4500
      %v4629 = vunpack.c.l.b16 %v4501
      %v4630 = vunpack.c.l.b16 %v4502
      %v4631 = vunpack.c.l.b16 %v4503
      %v4632 = vunpack.c.l.b16 %v4504
      %v4633 = vunpack.c.l.b16 %v4505
      %v4634 = vunpack.c.l.b16 %v4506
      %v4635 = vunpack.c.l.b16 %v4507
      %v4636 = vunpack.c.l.b16 %v4508
      %v4637 = vunpack.c.l.b16 %v4509
      %v4638 = vunpack.c.l.b16 %v4510
      %v4639 = vunpack.c.l.b16 %v4511
      %v4640 = vunpack.c.l.b16 %v4512
      %v4641 = vunpack.c.l.b16 %v4513
      %v4642 = vunpack.c.l.b16 %v4514
      %v4643 = vunpack.c.l.b16 %v4515
      %v4644 = vunpack.c.l.b16 %v4516
      %v4645 = vunpack.c.l.b16 %v4517
      %v4646 = vunpack.c.l.b16 %v4518
      %v4647 = vunpack.c.l.b16 %v4519
      %v4648 = vunpack.c.l.b16 %v4520
      %v4649 = vunpack.c.l.b16 %v4521
      %v4650 = vunpack.c.l.b16 %v4522
      %v4651 = vunpack.c.l.b16 %v4523
      %v4652 = vunpack.c.l.b16 %v4524
      %v4653 = vunpack.c.l.b16 %v4525
      %v4654 = vunpack.c.l.b16 %v4526
      %v4655 = vunpack.c.l.b16 %v4527
      %v4656 = vunpack.c.l.b16 %v4528
      %v4657 = vunpack.c.l.b16 %v4529
      %v4658 = vunpack.c.l.b16 %v4530
      %v4659 = vunpack.c.l.b16 %v4531
      %v4660 = vunpack.c.l.b16 %v4532
      %v4661 = vunpack.c.l.b16 %v4533
      %v4662 = vunpack.c.l.b16 %v4534
      %v4663 = vunpack.c.l.b16 %v4535
      %v4664 = vunpack.c.l.b16 %v4536
      %v4665 = vunpack.c.l.b16 %v4537
      %v4666 = vunpack.c.l.b16 %v4538
      %v4667 = vunpack.c.l.b16 %v4539
      %v4668 = vunpack.c.l.b16 %v4540
      %v4669 = vunpack.c.l.b16 %v4541
      %v4670 = vunpack.c.l.b16 %v4542
      %v4671 = vunpack.c.l.b16 %v4543
      %v4672 = vunpack.c.l.b16 %v4544
      %v4673 = vunpack.c.l.b16 %v4545
      %v4674 = vunpack.c.l.b16 %v4546
      %v4675 = vunpack.c.l.b16 %v4547
      %v4676 = vunpack.c.l.b16 %v4548
      %v4677 = vunpack.c.l.b16 %v4549
      %v4678 = vunpack.c.l.b16 %v4550
      %v4679 = vunpack.c.l.b16 %v4551
      %v4680 = vunpack.c.l.b16 %v4552
      %v4681 = vunpack.c.l.b16 %v4553
      %v4682 = vunpack.c.l.b16 %v4554
      %v4683 = vunpack.c.l.b16 %v4555
      %v4684 = vunpack.c.l.b16 %v4556
      %v4685 = vunpack.c.l.b16 %v4557
      %v4686 = vpack.c.b16 %v4623, %v4622
      %v4687 = vpack.c.b16 %v4625, %v4624
      %v4688 = vpack.c.b16 %v4627, %v4626
      %v4689 = vpack.c.b16 %v4629, %v4628
      %v4690 = vpack.c.b16 %v4631, %v4630
      %v4691 = vpack.c.b16 %v4633, %v4632
      %v4692 = vpack.c.b16 %v4635, %v4634
      %v4693 = vpack.c.b16 %v4637, %v4636
      %v4694 = vpack.c.b16 %v4639, %v4638
      %v4695 = vpack.c.b16 %v4641, %v4640
      %v4696 = vpack.c.b16 %v4643, %v4642
      %v4697 = vpack.c.b16 %v4645, %v4644
      %v4698 = vpack.c.b16 %v4647, %v4646
      %v4699 = vpack.c.b16 %v4649, %v4648
      %v4700 = vpack.c.b16 %v4651, %v4650
      %v4701 = vpack.c.b16 %v4653, %v4652
      %v4702 = vpack.c.b16 %v4655, %v4654
      %v4703 = vpack.c.b16 %v4657, %v4656
      %v4704 = vpack.c.b16 %v4659, %v4658
      %v4705 = vpack.c.b16 %v4661, %v4660
      %v4706 = vpack.c.b16 %v4663, %v4662
      %v4707 = vpack.c.b16 %v4665, %v4664
      %v4708 = vpack.c.b16 %v4667, %v4666
      %v4709 = vpack.c.b16 %v4669, %v4668
      %v4710 = vpack.c.b16 %v4671, %v4670
      %v4711 = vpack.c.b16 %v4673, %v4672
      %v4712 = vpack.c.b16 %v4675, %v4674
      %v4713 = vpack.c.b16 %v4677, %v4676
      %v4714 = vpack.c.b16 %v4679, %v4678
      %v4715 = vpack.c.b16 %v4681, %v4680
      %v4716 = vpack.c.b16 %v4683, %v4682
      %v4717 = vpack.c.b16 %v4685, %v4684
      %4750 = vmatpush.bf16.msra.mxu0 %v4693
      %4751 = vmatpush.bf16.msra.mxu0 %v4692
      %4752 = vmatpush.bf16.msra.mxu0 %v4691
      %4753 = vmatpush.bf16.msra.mxu0 %v4690
      %4754 = vmatpush.bf16.msra.mxu0 %v4689
      %4755 = vmatpush.bf16.msra.mxu0 %v4688
      %4756 = vmatpush.bf16.msra.mxu0 %v4687
      %4757 = vmatpush.bf16.msra.mxu0 %v4686
      %4758 = vmatmul.bf16.gmra.mxu0 %v4490
      %v4759 = vpop.f32.mrf.mxu0
      %v4760 = vadd.f32 0.0, %v4759
      %v4761 = vpop.f32.mrf.mxu0
      %4762 = vdwg.mxu0
      %4763 = vmatpush.bf16.msra.mxu0 %v4701
      %4764 = vmatpush.bf16.msra.mxu0 %v4700
      %4765 = vmatpush.bf16.msra.mxu0 %v4699
      %4766 = vmatpush.bf16.msra.mxu0 %v4698
      %4767 = vmatpush.bf16.msra.mxu0 %v4697
      %4768 = vmatpush.bf16.msra.mxu0 %v4696
      %4769 = vmatpush.bf16.msra.mxu0 %v4695
      %4770 = vmatpush.bf16.msra.mxu0 %v4694
      %4771 = vmatmul.bf16.gmra.mxu0 %v4491
      %v4772 = vpop.f32.mrf.mxu0
      %v4773 = vadd.f32 %v4760, %v4772
      %v4774 = vpop.f32.mrf.mxu0
      %4775 = vdwg.mxu0
      %4776 = vmatpush.bf16.msra.mxu0 %v4709
      %4777 = vmatpush.bf16.msra.mxu0 %v4708
      %4778 = vmatpush.bf16.msra.mxu0 %v4707
      %4779 = vmatpush.bf16.msra.mxu0 %v4706
      %4780 = vmatpush.bf16.msra.mxu0 %v4705
      %4781 = vmatpush.bf16.msra.mxu0 %v4704
      %4782 = vmatpush.bf16.msra.mxu0 %v4703
      %4783 = vmatpush.bf16.msra.mxu0 %v4702
      %4784 = vmatmul.bf16.gmra.mxu0 %v4492
      %v4785 = vpop.f32.mrf.mxu0
      %v4786 = vadd.f32 %v4773, %v4785
      %v4787 = vpop.f32.mrf.mxu0
      %4788 = vdwg.mxu0
      %4789 = vmatpush.bf16.msra.mxu0 %v4717
      %4790 = vmatpush.bf16.msra.mxu0 %v4716
      %4791 = vmatpush.bf16.msra.mxu0 %v4715
      %4792 = vmatpush.bf16.msra.mxu0 %v4714
      %4793 = vmatpush.bf16.msra.mxu0 %v4713
      %4794 = vmatpush.bf16.msra.mxu0 %v4712
      %4795 = vmatpush.bf16.msra.mxu0 %v4711
      %4796 = vmatpush.bf16.msra.mxu0 %v4710
      %4797 = vmatmul.bf16.gmra.mxu0 %v4493
      %v4798 = vpop.f32.mrf.mxu0
      %v4799 = vadd.f32 %v4786, %v4798
      %v4800 = vpop.f32.mrf.mxu0
      %4801 = vdwg.mxu0
      %v4802 = vadd.f32 %v4375, %v4799
      %v4803 = vadd.f32 %v3039, %v4802
      %s4804 = scalar_lea.vmem %s12, 1
      %v4805 = vld [vmem:[%s4804] sm:$0x1]
      %v4807 = vperm.slane %v4805, 0
      %v4809 = vadd.f32 %v4803, %v4807
      %4810 = vst.msk [vmem:[%s435] sm:$0xf] %vm440, %v4809
      %p4811 = scmp.lt.s32.totalorder %s24, 1
      %s4812 = scalar_select %p4811, %s24, 1
      %s4813 = smul.addr %s4812, 4
      %s4814 = scalar_lea.vmem %s13, %s4813
      // Predicated region
      $region73: #{transformer2e_forward.10} parent=71 // pred_check
        %p4815 = pneg %p320
      $region74: #{transformer2e_forward.10} parent=71 // pred_check_branch
        %4817 = sbr.rel (%p4815) target = $region76
      $region75: #{transformer2e_forward.10} parent=71 // pred_region
        _
      $region76: #{transformer2e_forward.10} parent=71 // pred_fallthru
        _
    $region72: #{transformer2e_forward.10} parent=5 // pred_fallthru
      _
    %p4818 = scmp.le.s32.totalorder 2, %s19
    // Predicated region
    $region77: #{transformer2e_forward.10} parent=5 // pred_check
      %p4819 = pneg %p4818
    $region78: #{transformer2e_forward.10} parent=5 // pred_check_branch
      %4821 = sbr.rel (%p4819) target = $region80
    $region79: #{transformer2e_forward.10} parent=5 // pred_region
      %s4822 = ssub.s32 %s19, 2
      // Predicated region
      $region81: #{transformer2e_forward.10} parent=79 // pred_check
        %p4823 = pneg %p326
      $region82: #{transformer2e_forward.10} parent=79 // pred_check_branch
        %4825 = sbr.rel (%p4823) target = $region84
      $region83: #{transformer2e_forward.10} parent=79 // pred_region
        %p4826 = scmp.lt.s32.totalorder %s25, 1
        %s4827 = scalar_select %p4826, %s25, 1
        %s4828 = smul.addr %s4827, 4
        %s4829 = scalar_lea.vmem %s13, %s4828
      $region84: #{transformer2e_forward.10} parent=79 // pred_fallthru
        _
    $region80: #{transformer2e_forward.10} parent=5 // pred_fallthru
      _
  $region6: #{transformer2e_forward.10} parent=0 // loop_footer
    %s23 = sadd.s32 1, %s19
  $region7: #{transformer2e_forward.10} parent=0 // loop_footer_branch
    %18 = sbr.rel target = $region3
  $region8: #{transformer2e_forward.10} parent=0 // loop_exit
    _

</llo_original>
